<compile_context>
chip_gen: v7x
topology: tpu7x:2x2x1
jax: 0.10.0
libtpu: 0.0.40
codegen_flags: <defaults>
</compile_context>

<pallas_src>
import numpy as np
import jax
import jax.numpy as jnp
from jax.experimental import pallas as pl
from jax.experimental.pallas import tpu as pltpu

ACTION_SPACE_SIZE = 4096
H = W = 8          # chess board
C1 = 16            # conv1 out channels
C2 = 32            # conv2 out channels


def _round_up(x, m):
    return (x + m - 1) // m * m


# ----------------------------------------------------------------------------
# One-time parameter prep (host side, outside jit): densify / band the 3x3
# convs and pre-permute fc1 so the kernel needs no layout work at all.
# ----------------------------------------------------------------------------
def _dense_conv3x3_matrix(w_hwio):
    """Fold a 3x3 'same' conv on the fixed 8x8 board into a dense matrix.

    Rows: NHWC-flattened input  i = (hi*8 + wi)*cin  + ci
    Cols: NHWC-flattened output j = (ho*8 + wo)*cout + co
    so   y_flat = x_flat @ M   reproduces the zero-padded conv.
    """
    w = np.asarray(w_hwio, np.float32)              # (3, 3, cin, cout)
    _, _, cin, cout = w.shape
    m = np.zeros((H * W * cin, H * W * cout), np.float32)
    for ho in range(H):
        for wo in range(W):
            j0 = (ho * W + wo) * cout
            for kh in range(3):
                for kw in range(3):
                    hi, wi = ho + kh - 1, wo + kw - 1
                    if 0 <= hi < H and 0 <= wi < W:
                        i0 = (hi * W + wi) * cin
                        m[i0:i0 + cin, j0:j0 + cout] = w[kh, kw]
    return m


def prepare_params(params, weight_dtype=jnp.bfloat16):
    """Host-side prep: dense conv1, banded conv2, permuted/split fc1, cast."""
    n_hidden = params["fc1_w"].shape[1]             # 256

    # conv1 -> dense (64, 1024); zero-pad rows to 128 so the first matmul K is
    # lane-full (matches the lane-padded input tile).
    c1 = _dense_conv3x3_matrix(params["conv1_w"])                   # (64, 1024)
    c1 = np.pad(c1, ((0, 128 - c1.shape[0]), (0, 0)))               # (128, 1024)

    # conv2 -> dense (1024, 2048), then keep only the 3-row input band feeding
    # each output board row: (8, 384, 256).  Band ho reads input rows starting
    # at min(max(ho-1,0), 5)*128; any extra row-block inside that window has
    # zero weight, so the banded product equals the full dense product.
    c2 = _dense_conv3x3_matrix(params["conv2_w"])                   # (1024, 2048)
    rbs_in, rbs_out = W * C1, W * C2                                # 128, 256
    bands = np.stack([
        c2[min(max(ho - 1, 0), H - 3) * rbs_in:
           min(max(ho - 1, 0), H - 3) * rbs_in + 3 * rbs_in,
           ho * rbs_out:(ho + 1) * rbs_out]
        for ho in range(H)])                                        # (8, 384, 256)

    # fc1 rows are stored in PyTorch NCHW-flatten order (c*64 + p); permute to
    # NHWC order (p*32 + c) so no activation transpose is needed, then split
    # into the 8 row-blocks matching conv2's banded output row-blocks.
    fc1 = np.asarray(params["fc1_w"], np.float32).reshape(C2, H * W, n_hidden)
    fc1 = fc1.transpose(1, 0, 2).reshape(H * W * C2, n_hidden)
    fc1_bands = fc1.reshape(H, rbs_out, n_hidden)                   # (8, 256, 256)

    f32 = jnp.float32
    return {
        "c1_w": jnp.asarray(c1, weight_dtype),                      # (128, 1024)
        "c1_b": jnp.tile(jnp.asarray(params["conv1_b"], f32), H * W)[None, :],   # (1, 1024)
        "c2_w": jnp.asarray(bands, weight_dtype),                   # (8, 384, 256)
        "c2_b": jnp.tile(jnp.asarray(params["conv2_b"], f32), W)[None, :],       # (1, 256)
        "fc1_w": jnp.asarray(fc1_bands, weight_dtype),              # (8, 256, 256)
        "fc1_b": jnp.asarray(params["fc1_b"], f32)[None, :],        # (1, 256)
        "fc2_w": jnp.asarray(params["fc2_w"], weight_dtype),        # (256, 4096)
        "fc2_b": jnp.asarray(params["fc2_b"], f32)[None, :],        # (1, 4096)
    }


# ----------------------------------------------------------------------------
# Fused forward kernel: conv1 -> relu -> [banded conv2 -> relu -> fc1-chunk]x8
# -> relu -> fc2, all lane-dense MXU matmuls on one batch tile.  Weights stay
# VMEM-resident (constant index_maps, single-buffered).
# ----------------------------------------------------------------------------
def _fused_forward_kernel(x_ref, c1w_ref, c1b_ref, c2w_ref, c2b_ref,
                          fc1w_ref, fc1b_ref, fc2w_ref, fc2b_ref, o_ref):
    wdt = c1w_ref.dtype                      # bf16 (prod) or f32 (check variant)
    n_bands, band_k, _ = c2w_ref.shape       # (8, 384, 256)
    rbs = band_k // 3                        # input rows per board row = 8*16

    # conv1: one lane-full matmul on the zero-padded board vector.
    x = x_ref[...].astype(wdt)                                        # (bt, 128)
    h1 = jnp.dot(x, c1w_ref[...], preferred_element_type=jnp.float32)
    h1 = jnp.maximum(h1 + c1b_ref[...], 0.0)                          # (bt, 1024) f32
    h1c = h1.astype(wdt)

    # conv2 (banded) + fc1 fused: board output row ho only sees input rows
    # ho-1..ho+1 (384 lane-aligned columns of h1), and the matching fc1
    # row-block is accumulated immediately, so (bt, 2048) never materializes.
    c2b = c2b_ref[...]                                                # (1, 256)
    acc = jnp.zeros((x.shape[0], fc1w_ref.shape[-1]), jnp.float32)    # (bt, 256)
    for ho in range(n_bands):                                         # static unroll (8)
        hs = min(max(ho - 1, 0), n_bands - 3) * rbs                   # static, 128-aligned
        h2 = jnp.dot(h1c[:, hs:hs + band_k], c2w_ref[ho],
                     preferred_element_type=jnp.float32)              # (bt, 256)
        h2 = jnp.maximum(h2 + c2b, 0.0).astype(wdt)                   # conv2 + ReLU
        acc = acc + jnp.dot(h2, fc1w_ref[ho],
                            preferred_element_type=jnp.float32)       # fc1 partial
    h3 = jnp.maximum(acc + fc1b_ref[...], 0.0).astype(wdt)            # (bt, 256)

    # fc2: MXU M dimension == batch tile; latency-bound at tiny batch by design.
    o_ref[...] = (jnp.dot(h3, fc2w_ref[...], preferred_element_type=jnp.float32)
                  + fc2b_ref[...])                                    # (bt, 4096) f32


def _resident_spec(arr):
    """Weight/bias spec: constant index_map (block never changes -> stays
    VMEM-resident across batch tiles) and single-buffered via pl.Buffered(1),
    halving the VMEM the pipeline reserves for these constant operands."""
    zeros = (0,) * arr.ndim
    return pl.BlockSpec(arr.shape, lambda i, _z=zeros: _z,
                        pipeline_mode=pl.Buffered(1))


def chess_cnn_forward(prep, x_nchw, *, block_b=256,
                      vmem_limit_bytes=48 * 1024 * 1024):
    """Fused ChessCNN forward.  block_b guidance: 128 on v5e, 256-512 on v6e,
    <=256 on v7x (64 MiB VMEM/TC) — with bf16 weights the default 256 fits
    comfortably on all three generations."""
    b = x_nchw.shape[0]
    # cin == 1, so the NCHW flatten of (B, 1, 8, 8) is just (B, 64), col = h*8+w.
    x2d = x_nchw.reshape(b, H * W)
    kin = prep["c1_w"].shape[0]                      # 128 (lane-padded K)
    n_out = prep["fc2_w"].shape[1]                   # 4096

    bp0 = _round_up(b, 8)
    if bp0 >= 16:
        # >= 2 grid steps so dimension_semantics=("parallel",) shards batch
        # tiles onto both TensorCores on v7x; ~0.35us extra step cost elsewhere.
        bt = min(block_b, _round_up((bp0 + 1) // 2, 8))
    else:
        bt = bp0
    bp = _round_up(bp0, bt)
    x2d = jnp.pad(x2d, ((0, bp - b), (0, kin - H * W)))   # batch pad + lane pad 64->128

    out = pl.pallas_call(
        _fused_forward_kernel,
        out_shape=jax.ShapeDtypeStruct((bp, n_out), jnp.float32),
        grid=(bp // bt,),
        in_specs=[
            pl.BlockSpec((bt, kin), lambda i: (i, 0)),
            _resident_spec(prep["c1_w"]), _resident_spec(prep["c1_b"]),
            _resident_spec(prep["c2_w"]), _resident_spec(prep["c2_b"]),
            _resident_spec(prep["fc1_w"]), _resident_spec(prep["fc1_b"]),
            _resident_spec(prep["fc2_w"]), _resident_spec(prep["fc2_b"]),
        ],
        out_specs=pl.BlockSpec((bt, n_out), lambda i: (i, 0)),
        compiler_params=pltpu.CompilerParams(
            dimension_semantics=("parallel",),
            vmem_limit_bytes=vmem_limit_bytes),
    )(x2d, prep["c1_w"], prep["c1_b"], prep["c2_w"], prep["c2_b"],
      prep["fc1_w"], prep["fc1_b"], prep["fc2_w"], prep["fc2_b"])
    return out[:b]


# ----------------------------------------------------------------------------
# Parameter init (HWIO conv weights, (in, out) fc weights) and XLA reference.
# ----------------------------------------------------------------------------
def init_params(key, action_size=ACTION_SPACE_SIZE):
    ks = jax.random.split(key, 8)
    s = 0.1
    return {
        "conv1_w": s * jax.random.normal(ks[0], (3, 3, 1, C1), jnp.float32),
        "conv1_b": s * jax.random.normal(ks[1], (C1,), jnp.float32),
        "conv2_w": s * jax.random.normal(ks[2], (3, 3, C1, C2), jnp.float32),
        "conv2_b": s * jax.random.normal(ks[3], (C2,), jnp.float32),
        "fc1_w": s * jax.random.normal(ks[4], (C2 * H * W, 256), jnp.float32),
        "fc1_b": s * jax.random.normal(ks[5], (256,), jnp.float32),
        "fc2_w": s * jax.random.normal(ks[6], (256, action_size), jnp.float32),
        "fc2_b": s * jax.random.normal(ks[7], (action_size,), jnp.float32),
    }


def reference_forward(params, x_nchw):
    """Pure-JAX (XLA) reference with PyTorch semantics, for verification."""
    def conv(x, w_hwio, b):
        w_oihw = jnp.transpose(w_hwio, (3, 2, 0, 1))
        y = jax.lax.conv_general_dilated(
            x, w_oihw, window_strides=(1, 1), padding="SAME",
            dimension_numbers=("NCHW", "OIHW", "NCHW"))
        return jax.nn.relu(y + b[None, :, None, None])

    h = conv(x_nchw, params["conv1_w"], params["conv1_b"])
    h = conv(h, params["conv2_w"], params["conv2_b"])
    hf = h.reshape(h.shape[0], -1)                     # NCHW flatten, as PyTorch
    hf = jax.nn.relu(hf @ params["fc1_w"] + params["fc1_b"])
    return hf @ params["fc2_w"] + params["fc2_b"]


if __name__ == "__main__":
    key = jax.random.PRNGKey(0)
    k_param, k_x = jax.random.split(key)
    params = init_params(k_param)

    batch = 2
    x = jax.random.normal(k_x, (batch, 1, H, W), jnp.float32)   # NCHW like PyTorch
    ref = jax.block_until_ready(reference_forward(params, x))

    fwd = jax.jit(chess_cnn_forward)

    # 1) f32-weight variant: tight semantic check (dense-conv banding, bias
    #    tiling and fc1 permutation must match the PyTorch module exactly).
    prep32 = prepare_params(params, weight_dtype=jnp.float32)
    out32 = jax.block_until_ready(fwd(prep32, x))
    assert out32.shape == (batch, ACTION_SPACE_SIZE) and out32.dtype == jnp.float32
    assert jnp.allclose(out32, ref, atol=2e-3, rtol=2e-3), "f32 kernel mismatch vs XLA reference"

    # 2) bf16-weight variant (production config): bf16 MXU operands with f32
    #    accumulation and f32 bias/ReLU; compared with a bf16-appropriate bound.
    prep16 = prepare_params(params, weight_dtype=jnp.bfloat16)
    out16 = jax.block_until_ready(fwd(prep16, x))
    assert out16.shape == (batch, ACTION_SPACE_SIZE) and out16.dtype == jnp.float32
    err = float(jnp.max(jnp.abs(out16 - ref)))
    scale = float(jnp.max(jnp.abs(ref)))
    assert err <= 3e-2 * scale + 3e-2, f"bf16 kernel error too large: {err} (scale {scale})"

    print("KERNEL_OK")
</pallas_src>

<mosaic_0001>
module attributes {stable_mosaic.version = 11 : i64} {
  func.func @_fused_forward_kernel(%arg0: i32, %arg1: memref<8x128xf32, #tpu.memory_space<vmem>>, %arg2: memref<128x1024xf32, #tpu.memory_space<vmem>>, %arg3: memref<1x1024xf32, #tpu.memory_space<vmem>>, %arg4: memref<8x384x256xf32, #tpu.memory_space<vmem>>, %arg5: memref<1x256xf32, #tpu.memory_space<vmem>>, %arg6: memref<8x256x256xf32, #tpu.memory_space<vmem>>, %arg7: memref<1x256xf32, #tpu.memory_space<vmem>>, %arg8: memref<256x4096xf32, #tpu.memory_space<vmem>>, %arg9: memref<1x4096xf32, #tpu.memory_space<vmem>>, %arg10: memref<8x4096xf32, #tpu.memory_space<vmem>>) attributes {dimension_semantics = [#tpu.dimension_semantics<parallel>], iteration_bounds = array<i64: 1>, scalar_prefetch = 0 : i64, scratch_operands = 0 : i64, tpu.core_type = #tpu.core_type<tc>, window_params = [{transform_indices = @transform_0, window_bounds = array<i64: 8, 128>}, {pipeline_mode = #tpu.pipeline_mode<synchronous>, transform_indices = @transform_1, window_bounds = array<i64: 128, 1024>}, {pipeline_mode = #tpu.pipeline_mode<synchronous>, transform_indices = @transform_2, window_bounds = array<i64: 1, 1024>}, {pipeline_mode = #tpu.pipeline_mode<synchronous>, transform_indices = @transform_3, window_bounds = array<i64: 8, 384, 256>}, {pipeline_mode = #tpu.pipeline_mode<synchronous>, transform_indices = @transform_4, window_bounds = array<i64: 1, 256>}, {pipeline_mode = #tpu.pipeline_mode<synchronous>, transform_indices = @transform_5, window_bounds = array<i64: 8, 256, 256>}, {pipeline_mode = #tpu.pipeline_mode<synchronous>, transform_indices = @transform_6, window_bounds = array<i64: 1, 256>}, {pipeline_mode = #tpu.pipeline_mode<synchronous>, transform_indices = @transform_7, window_bounds = array<i64: 256, 4096>}, {pipeline_mode = #tpu.pipeline_mode<synchronous>, transform_indices = @transform_8, window_bounds = array<i64: 1, 4096>}, {transform_indices = @transform_9, window_bounds = array<i64: 8, 4096>}]} {
    %c0 = arith.constant 0 : index
    %c0_0 = arith.constant 0 : index
    %0 = vector.load %arg1[%c0, %c0_0] : memref<8x128xf32, #tpu.memory_space<vmem>>, vector<8x128xf32>
    %c0_1 = arith.constant 0 : index
    %c0_2 = arith.constant 0 : index
    %1 = vector.load %arg2[%c0_1, %c0_2] : memref<128x1024xf32, #tpu.memory_space<vmem>>, vector<128x1024xf32>
    %cst = arith.constant dense<0.000000e+00> : vector<8x1024xf32>
    %2 = tpu.matmul %0, %1, %cst {dimension_numbers = #tpu.dot_dimension_numbers<[1], [0], [0], [1], [0, 0, 1, 1], [], []>} : vector<8x128xf32>, vector<128x1024xf32>, vector<8x1024xf32> -> vector<8x1024xf32>
    %c0_3 = arith.constant 0 : index
    %c0_4 = arith.constant 0 : index
    %3 = vector.load %arg3[%c0_3, %c0_4] : memref<1x1024xf32, #tpu.memory_space<vmem>>, vector<1x1024xf32>
    %4 = vector.broadcast %3 : vector<1x1024xf32> to vector<8x1024xf32>
    %5 = arith.addf %2, %4 : vector<8x1024xf32>
    %cst_5 = arith.constant 0.000000e+00 : f32
    %6 = vector.broadcast %cst_5 : f32 to vector<8x1024xf32>
    %7 = arith.maximumf %5, %6 : vector<8x1024xf32>
    %c0_6 = arith.constant 0 : index
    %c0_7 = arith.constant 0 : index
    %8 = vector.load %arg5[%c0_6, %c0_7] : memref<1x256xf32, #tpu.memory_space<vmem>>, vector<1x256xf32>
    %cst_8 = arith.constant 0.000000e+00 : f32
    %9 = vector.broadcast %cst_8 : f32 to vector<8x256xf32>
    %10 = vector.extract_strided_slice %7 {offsets = [0, 0], sizes = [8, 384], strides = [1, 1]} : vector<8x1024xf32> to vector<8x384xf32>
    %c0_9 = arith.constant 0 : index
    %c0_10 = arith.constant 0 : index
    %c0_11 = arith.constant 0 : index
    %11 = vector.load %arg4[%c0_9, %c0_10, %c0_11] : memref<8x384x256xf32, #tpu.memory_space<vmem>>, vector<1x384x256xf32>
    %12 = vector.shape_cast %11 : vector<1x384x256xf32> to vector<384x256xf32>
    %cst_12 = arith.constant dense<0.000000e+00> : vector<8x256xf32>
    %13 = tpu.matmul %10, %12, %cst_12 {dimension_numbers = #tpu.dot_dimension_numbers<[1], [0], [0], [1], [0, 0, 1, 1], [], []>} : vector<8x384xf32>, vector<384x256xf32>, vector<8x256xf32> -> vector<8x256xf32>
    %14 = vector.broadcast %8 : vector<1x256xf32> to vector<8x256xf32>
    %15 = arith.addf %13, %14 : vector<8x256xf32>
    %cst_13 = arith.constant 0.000000e+00 : f32
    %16 = vector.broadcast %cst_13 : f32 to vector<8x256xf32>
    %17 = arith.maximumf %15, %16 : vector<8x256xf32>
    %c0_14 = arith.constant 0 : index
    %c0_15 = arith.constant 0 : index
    %c0_16 = arith.constant 0 : index
    %18 = vector.load %arg6[%c0_14, %c0_15, %c0_16] : memref<8x256x256xf32, #tpu.memory_space<vmem>>, vector<1x256x256xf32>
    %19 = vector.shape_cast %18 : vector<1x256x256xf32> to vector<256x256xf32>
    %cst_17 = arith.constant dense<0.000000e+00> : vector<8x256xf32>
    %20 = tpu.matmul %17, %19, %cst_17 {dimension_numbers = #tpu.dot_dimension_numbers<[1], [0], [0], [1], [0, 0, 1, 1], [], []>} : vector<8x256xf32>, vector<256x256xf32>, vector<8x256xf32> -> vector<8x256xf32>
    %21 = arith.addf %9, %20 : vector<8x256xf32>
    %22 = vector.extract_strided_slice %7 {offsets = [0, 0], sizes = [8, 384], strides = [1, 1]} : vector<8x1024xf32> to vector<8x384xf32>
    %c1 = arith.constant 1 : index
    %c0_18 = arith.constant 0 : index
    %c0_19 = arith.constant 0 : index
    %23 = vector.load %arg4[%c1, %c0_18, %c0_19] : memref<8x384x256xf32, #tpu.memory_space<vmem>>, vector<1x384x256xf32>
    %24 = vector.shape_cast %23 : vector<1x384x256xf32> to vector<384x256xf32>
    %cst_20 = arith.constant dense<0.000000e+00> : vector<8x256xf32>
    %25 = tpu.matmul %22, %24, %cst_20 {dimension_numbers = #tpu.dot_dimension_numbers<[1], [0], [0], [1], [0, 0, 1, 1], [], []>} : vector<8x384xf32>, vector<384x256xf32>, vector<8x256xf32> -> vector<8x256xf32>
    %26 = vector.broadcast %8 : vector<1x256xf32> to vector<8x256xf32>
    %27 = arith.addf %25, %26 : vector<8x256xf32>
    %cst_21 = arith.constant 0.000000e+00 : f32
    %28 = vector.broadcast %cst_21 : f32 to vector<8x256xf32>
    %29 = arith.maximumf %27, %28 : vector<8x256xf32>
    %c1_22 = arith.constant 1 : index
    %c0_23 = arith.constant 0 : index
    %c0_24 = arith.constant 0 : index
    %30 = vector.load %arg6[%c1_22, %c0_23, %c0_24] : memref<8x256x256xf32, #tpu.memory_space<vmem>>, vector<1x256x256xf32>
    %31 = vector.shape_cast %30 : vector<1x256x256xf32> to vector<256x256xf32>
    %cst_25 = arith.constant dense<0.000000e+00> : vector<8x256xf32>
    %32 = tpu.matmul %29, %31, %cst_25 {dimension_numbers = #tpu.dot_dimension_numbers<[1], [0], [0], [1], [0, 0, 1, 1], [], []>} : vector<8x256xf32>, vector<256x256xf32>, vector<8x256xf32> -> vector<8x256xf32>
    %33 = arith.addf %21, %32 : vector<8x256xf32>
    %34 = vector.extract_strided_slice %7 {offsets = [0, 128], sizes = [8, 384], strides = [1, 1]} : vector<8x1024xf32> to vector<8x384xf32>
    %c2 = arith.constant 2 : index
    %c0_26 = arith.constant 0 : index
    %c0_27 = arith.constant 0 : index
    %35 = vector.load %arg4[%c2, %c0_26, %c0_27] : memref<8x384x256xf32, #tpu.memory_space<vmem>>, vector<1x384x256xf32>
    %36 = vector.shape_cast %35 : vector<1x384x256xf32> to vector<384x256xf32>
    %cst_28 = arith.constant dense<0.000000e+00> : vector<8x256xf32>
    %37 = tpu.matmul %34, %36, %cst_28 {dimension_numbers = #tpu.dot_dimension_numbers<[1], [0], [0], [1], [0, 0, 1, 1], [], []>} : vector<8x384xf32>, vector<384x256xf32>, vector<8x256xf32> -> vector<8x256xf32>
    %38 = vector.broadcast %8 : vector<1x256xf32> to vector<8x256xf32>
    %39 = arith.addf %37, %38 : vector<8x256xf32>
    %cst_29 = arith.constant 0.000000e+00 : f32
    %40 = vector.broadcast %cst_29 : f32 to vector<8x256xf32>
    %41 = arith.maximumf %39, %40 : vector<8x256xf32>
    %c2_30 = arith.constant 2 : index
    %c0_31 = arith.constant 0 : index
    %c0_32 = arith.constant 0 : index
    %42 = vector.load %arg6[%c2_30, %c0_31, %c0_32] : memref<8x256x256xf32, #tpu.memory_space<vmem>>, vector<1x256x256xf32>
    %43 = vector.shape_cast %42 : vector<1x256x256xf32> to vector<256x256xf32>
    %cst_33 = arith.constant dense<0.000000e+00> : vector<8x256xf32>
    %44 = tpu.matmul %41, %43, %cst_33 {dimension_numbers = #tpu.dot_dimension_numbers<[1], [0], [0], [1], [0, 0, 1, 1], [], []>} : vector<8x256xf32>, vector<256x256xf32>, vector<8x256xf32> -> vector<8x256xf32>
    %45 = arith.addf %33, %44 : vector<8x256xf32>
    %46 = vector.extract_strided_slice %7 {offsets = [0, 256], sizes = [8, 384], strides = [1, 1]} : vector<8x1024xf32> to vector<8x384xf32>
    %c3 = arith.constant 3 : index
    %c0_34 = arith.constant 0 : index
    %c0_35 = arith.constant 0 : index
    %47 = vector.load %arg4[%c3, %c0_34, %c0_35] : memref<8x384x256xf32, #tpu.memory_space<vmem>>, vector<1x384x256xf32>
    %48 = vector.shape_cast %47 : vector<1x384x256xf32> to vector<384x256xf32>
    %cst_36 = arith.constant dense<0.000000e+00> : vector<8x256xf32>
    %49 = tpu.matmul %46, %48, %cst_36 {dimension_numbers = #tpu.dot_dimension_numbers<[1], [0], [0], [1], [0, 0, 1, 1], [], []>} : vector<8x384xf32>, vector<384x256xf32>, vector<8x256xf32> -> vector<8x256xf32>
    %50 = vector.broadcast %8 : vector<1x256xf32> to vector<8x256xf32>
    %51 = arith.addf %49, %50 : vector<8x256xf32>
    %cst_37 = arith.constant 0.000000e+00 : f32
    %52 = vector.broadcast %cst_37 : f32 to vector<8x256xf32>
    %53 = arith.maximumf %51, %52 : vector<8x256xf32>
    %c3_38 = arith.constant 3 : index
    %c0_39 = arith.constant 0 : index
    %c0_40 = arith.constant 0 : index
    %54 = vector.load %arg6[%c3_38, %c0_39, %c0_40] : memref<8x256x256xf32, #tpu.memory_space<vmem>>, vector<1x256x256xf32>
    %55 = vector.shape_cast %54 : vector<1x256x256xf32> to vector<256x256xf32>
    %cst_41 = arith.constant dense<0.000000e+00> : vector<8x256xf32>
    %56 = tpu.matmul %53, %55, %cst_41 {dimension_numbers = #tpu.dot_dimension_numbers<[1], [0], [0], [1], [0, 0, 1, 1], [], []>} : vector<8x256xf32>, vector<256x256xf32>, vector<8x256xf32> -> vector<8x256xf32>
    %57 = arith.addf %45, %56 : vector<8x256xf32>
    %58 = vector.extract_strided_slice %7 {offsets = [0, 384], sizes = [8, 384], strides = [1, 1]} : vector<8x1024xf32> to vector<8x384xf32>
    %c4 = arith.constant 4 : index
    %c0_42 = arith.constant 0 : index
    %c0_43 = arith.constant 0 : index
    %59 = vector.load %arg4[%c4, %c0_42, %c0_43] : memref<8x384x256xf32, #tpu.memory_space<vmem>>, vector<1x384x256xf32>
    %60 = vector.shape_cast %59 : vector<1x384x256xf32> to vector<384x256xf32>
    %cst_44 = arith.constant dense<0.000000e+00> : vector<8x256xf32>
    %61 = tpu.matmul %58, %60, %cst_44 {dimension_numbers = #tpu.dot_dimension_numbers<[1], [0], [0], [1], [0, 0, 1, 1], [], []>} : vector<8x384xf32>, vector<384x256xf32>, vector<8x256xf32> -> vector<8x256xf32>
    %62 = vector.broadcast %8 : vector<1x256xf32> to vector<8x256xf32>
    %63 = arith.addf %61, %62 : vector<8x256xf32>
    %cst_45 = arith.constant 0.000000e+00 : f32
    %64 = vector.broadcast %cst_45 : f32 to vector<8x256xf32>
    %65 = arith.maximumf %63, %64 : vector<8x256xf32>
    %c4_46 = arith.constant 4 : index
    %c0_47 = arith.constant 0 : index
    %c0_48 = arith.constant 0 : index
    %66 = vector.load %arg6[%c4_46, %c0_47, %c0_48] : memref<8x256x256xf32, #tpu.memory_space<vmem>>, vector<1x256x256xf32>
    %67 = vector.shape_cast %66 : vector<1x256x256xf32> to vector<256x256xf32>
    %cst_49 = arith.constant dense<0.000000e+00> : vector<8x256xf32>
    %68 = tpu.matmul %65, %67, %cst_49 {dimension_numbers = #tpu.dot_dimension_numbers<[1], [0], [0], [1], [0, 0, 1, 1], [], []>} : vector<8x256xf32>, vector<256x256xf32>, vector<8x256xf32> -> vector<8x256xf32>
    %69 = arith.addf %57, %68 : vector<8x256xf32>
    %70 = vector.extract_strided_slice %7 {offsets = [0, 512], sizes = [8, 384], strides = [1, 1]} : vector<8x1024xf32> to vector<8x384xf32>
    %c5 = arith.constant 5 : index
    %c0_50 = arith.constant 0 : index
    %c0_51 = arith.constant 0 : index
    %71 = vector.load %arg4[%c5, %c0_50, %c0_51] : memref<8x384x256xf32, #tpu.memory_space<vmem>>, vector<1x384x256xf32>
    %72 = vector.shape_cast %71 : vector<1x384x256xf32> to vector<384x256xf32>
    %cst_52 = arith.constant dense<0.000000e+00> : vector<8x256xf32>
    %73 = tpu.matmul %70, %72, %cst_52 {dimension_numbers = #tpu.dot_dimension_numbers<[1], [0], [0], [1], [0, 0, 1, 1], [], []>} : vector<8x384xf32>, vector<384x256xf32>, vector<8x256xf32> -> vector<8x256xf32>
    %74 = vector.broadcast %8 : vector<1x256xf32> to vector<8x256xf32>
    %75 = arith.addf %73, %74 : vector<8x256xf32>
    %cst_53 = arith.constant 0.000000e+00 : f32
    %76 = vector.broadcast %cst_53 : f32 to vector<8x256xf32>
    %77 = arith.maximumf %75, %76 : vector<8x256xf32>
    %c5_54 = arith.constant 5 : index
    %c0_55 = arith.constant 0 : index
    %c0_56 = arith.constant 0 : index
    %78 = vector.load %arg6[%c5_54, %c0_55, %c0_56] : memref<8x256x256xf32, #tpu.memory_space<vmem>>, vector<1x256x256xf32>
    %79 = vector.shape_cast %78 : vector<1x256x256xf32> to vector<256x256xf32>
    %cst_57 = arith.constant dense<0.000000e+00> : vector<8x256xf32>
    %80 = tpu.matmul %77, %79, %cst_57 {dimension_numbers = #tpu.dot_dimension_numbers<[1], [0], [0], [1], [0, 0, 1, 1], [], []>} : vector<8x256xf32>, vector<256x256xf32>, vector<8x256xf32> -> vector<8x256xf32>
    %81 = arith.addf %69, %80 : vector<8x256xf32>
    %82 = vector.extract_strided_slice %7 {offsets = [0, 640], sizes = [8, 384], strides = [1, 1]} : vector<8x1024xf32> to vector<8x384xf32>
    %c6 = arith.constant 6 : index
    %c0_58 = arith.constant 0 : index
    %c0_59 = arith.constant 0 : index
    %83 = vector.load %arg4[%c6, %c0_58, %c0_59] : memref<8x384x256xf32, #tpu.memory_space<vmem>>, vector<1x384x256xf32>
    %84 = vector.shape_cast %83 : vector<1x384x256xf32> to vector<384x256xf32>
    %cst_60 = arith.constant dense<0.000000e+00> : vector<8x256xf32>
    %85 = tpu.matmul %82, %84, %cst_60 {dimension_numbers = #tpu.dot_dimension_numbers<[1], [0], [0], [1], [0, 0, 1, 1], [], []>} : vector<8x384xf32>, vector<384x256xf32>, vector<8x256xf32> -> vector<8x256xf32>
    %86 = vector.broadcast %8 : vector<1x256xf32> to vector<8x256xf32>
    %87 = arith.addf %85, %86 : vector<8x256xf32>
    %cst_61 = arith.constant 0.000000e+00 : f32
    %88 = vector.broadcast %cst_61 : f32 to vector<8x256xf32>
    %89 = arith.maximumf %87, %88 : vector<8x256xf32>
    %c6_62 = arith.constant 6 : index
    %c0_63 = arith.constant 0 : index
    %c0_64 = arith.constant 0 : index
    %90 = vector.load %arg6[%c6_62, %c0_63, %c0_64] : memref<8x256x256xf32, #tpu.memory_space<vmem>>, vector<1x256x256xf32>
    %91 = vector.shape_cast %90 : vector<1x256x256xf32> to vector<256x256xf32>
    %cst_65 = arith.constant dense<0.000000e+00> : vector<8x256xf32>
    %92 = tpu.matmul %89, %91, %cst_65 {dimension_numbers = #tpu.dot_dimension_numbers<[1], [0], [0], [1], [0, 0, 1, 1], [], []>} : vector<8x256xf32>, vector<256x256xf32>, vector<8x256xf32> -> vector<8x256xf32>
    %93 = arith.addf %81, %92 : vector<8x256xf32>
    %94 = vector.extract_strided_slice %7 {offsets = [0, 640], sizes = [8, 384], strides = [1, 1]} : vector<8x1024xf32> to vector<8x384xf32>
    %c7 = arith.constant 7 : index
    %c0_66 = arith.constant 0 : index
    %c0_67 = arith.constant 0 : index
    %95 = vector.load %arg4[%c7, %c0_66, %c0_67] : memref<8x384x256xf32, #tpu.memory_space<vmem>>, vector<1x384x256xf32>
    %96 = vector.shape_cast %95 : vector<1x384x256xf32> to vector<384x256xf32>
    %cst_68 = arith.constant dense<0.000000e+00> : vector<8x256xf32>
    %97 = tpu.matmul %94, %96, %cst_68 {dimension_numbers = #tpu.dot_dimension_numbers<[1], [0], [0], [1], [0, 0, 1, 1], [], []>} : vector<8x384xf32>, vector<384x256xf32>, vector<8x256xf32> -> vector<8x256xf32>
    %98 = vector.broadcast %8 : vector<1x256xf32> to vector<8x256xf32>
    %99 = arith.addf %97, %98 : vector<8x256xf32>
    %cst_69 = arith.constant 0.000000e+00 : f32
    %100 = vector.broadcast %cst_69 : f32 to vector<8x256xf32>
    %101 = arith.maximumf %99, %100 : vector<8x256xf32>
    %c7_70 = arith.constant 7 : index
    %c0_71 = arith.constant 0 : index
    %c0_72 = arith.constant 0 : index
    %102 = vector.load %arg6[%c7_70, %c0_71, %c0_72] : memref<8x256x256xf32, #tpu.memory_space<vmem>>, vector<1x256x256xf32>
    %103 = vector.shape_cast %102 : vector<1x256x256xf32> to vector<256x256xf32>
    %cst_73 = arith.constant dense<0.000000e+00> : vector<8x256xf32>
    %104 = tpu.matmul %101, %103, %cst_73 {dimension_numbers = #tpu.dot_dimension_numbers<[1], [0], [0], [1], [0, 0, 1, 1], [], []>} : vector<8x256xf32>, vector<256x256xf32>, vector<8x256xf32> -> vector<8x256xf32>
    %105 = arith.addf %93, %104 : vector<8x256xf32>
    %c0_74 = arith.constant 0 : index
    %c0_75 = arith.constant 0 : index
    %106 = vector.load %arg7[%c0_74, %c0_75] : memref<1x256xf32, #tpu.memory_space<vmem>>, vector<1x256xf32>
    %107 = vector.broadcast %106 : vector<1x256xf32> to vector<8x256xf32>
    %108 = arith.addf %105, %107 : vector<8x256xf32>
    %cst_76 = arith.constant 0.000000e+00 : f32
    %109 = vector.broadcast %cst_76 : f32 to vector<8x256xf32>
    %110 = arith.maximumf %108, %109 : vector<8x256xf32>
    %c0_77 = arith.constant 0 : index
    %c0_78 = arith.constant 0 : index
    %111 = vector.load %arg8[%c0_77, %c0_78] : memref<256x4096xf32, #tpu.memory_space<vmem>>, vector<256x4096xf32>
    %cst_79 = arith.constant dense<0.000000e+00> : vector<8x4096xf32>
    %112 = tpu.matmul %110, %111, %cst_79 {dimension_numbers = #tpu.dot_dimension_numbers<[1], [0], [0], [1], [0, 0, 1, 1], [], []>} : vector<8x256xf32>, vector<256x4096xf32>, vector<8x4096xf32> -> vector<8x4096xf32>
    %c0_80 = arith.constant 0 : index
    %c0_81 = arith.constant 0 : index
    %113 = vector.load %arg9[%c0_80, %c0_81] : memref<1x4096xf32, #tpu.memory_space<vmem>>, vector<1x4096xf32>
    %114 = vector.broadcast %113 : vector<1x4096xf32> to vector<8x4096xf32>
    %115 = arith.addf %112, %114 : vector<8x4096xf32>
    %c0_82 = arith.constant 0 : index
    %c0_83 = arith.constant 0 : index
    %116 = vector.load %arg10[%c0_82, %c0_83] : memref<8x4096xf32, #tpu.memory_space<vmem>>, vector<8x4096xf32>
    tpu.vector_store %arg10[%c0_82, %c0_83], %115 {strides = array<i32>} : memref<8x4096xf32, #tpu.memory_space<vmem>>, vector<8x4096xf32>,
    return
  }
  func.func @transform_0(%arg0: i32) -> (i32, i32) {
    %c0_i32 = arith.constant 0 : i32
    %c0_i32_0 = arith.constant 0 : i32
    return %arg0, %c0_i32 : i32, i32
  }
  func.func @transform_1(%arg0: i32) -> (i32, i32) {
    %c0_i32 = arith.constant 0 : i32
    %c0_i32_0 = arith.constant 0 : i32
    %c0_i32_1 = arith.constant 0 : i32
    return %c0_i32, %c0_i32_0 : i32, i32
  }
  func.func @transform_2(%arg0: i32) -> (i32, i32) {
    %c0_i32 = arith.constant 0 : i32
    %c0_i32_0 = arith.constant 0 : i32
    %c0_i32_1 = arith.constant 0 : i32
    return %c0_i32, %c0_i32_0 : i32, i32
  }
  func.func @transform_3(%arg0: i32) -> (i32, i32, i32) {
    %c0_i32 = arith.constant 0 : i32
    %c0_i32_0 = arith.constant 0 : i32
    %c0_i32_1 = arith.constant 0 : i32
    %c0_i32_2 = arith.constant 0 : i32
    return %c0_i32, %c0_i32_0, %c0_i32_1 : i32, i32, i32
  }
  func.func @transform_4(%arg0: i32) -> (i32, i32) {
    %c0_i32 = arith.constant 0 : i32
    %c0_i32_0 = arith.constant 0 : i32
    %c0_i32_1 = arith.constant 0 : i32
    return %c0_i32, %c0_i32_0 : i32, i32
  }
  func.func @transform_5(%arg0: i32) -> (i32, i32, i32) {
    %c0_i32 = arith.constant 0 : i32
    %c0_i32_0 = arith.constant 0 : i32
    %c0_i32_1 = arith.constant 0 : i32
    %c0_i32_2 = arith.constant 0 : i32
    return %c0_i32, %c0_i32_0, %c0_i32_1 : i32, i32, i32
  }
  func.func @transform_6(%arg0: i32) -> (i32, i32) {
    %c0_i32 = arith.constant 0 : i32
    %c0_i32_0 = arith.constant 0 : i32
    %c0_i32_1 = arith.constant 0 : i32
    return %c0_i32, %c0_i32_0 : i32, i32
  }
  func.func @transform_7(%arg0: i32) -> (i32, i32) {
    %c0_i32 = arith.constant 0 : i32
    %c0_i32_0 = arith.constant 0 : i32
    %c0_i32_1 = arith.constant 0 : i32
    return %c0_i32, %c0_i32_0 : i32, i32
  }
  func.func @transform_8(%arg0: i32) -> (i32, i32) {
    %c0_i32 = arith.constant 0 : i32
    %c0_i32_0 = arith.constant 0 : i32
    %c0_i32_1 = arith.constant 0 : i32
    return %c0_i32, %c0_i32_0 : i32, i32
  }
  func.func @transform_9(%arg0: i32) -> (i32, i32) {
    %c0_i32 = arith.constant 0 : i32
    %c0_i32_0 = arith.constant 0 : i32
    return %arg0, %c0_i32 : i32, i32
  }
}

</mosaic_0001>

<llo_original>
// kernel: chess_cnn_forward.1
$region0: #{chess_cnn_forward.1}
  #allocation0 [shape = 'u32[]', space=smem, size = 0x4, offset = 0x4, fixed_abs, tag = 'smem constant byte address 0x4 - core index']
  #allocation1 [shape = 'u32[144,128]{1,0:T(1,128)}', space=vmem, size = 0x12000, scoped, tag = 'internal scratch']
  %s0 = inlined_call_operand.vmem [shape: f32[8,128], index: 0, kind: input, shape index: {}]
  %s1 = inlined_call_operand.hbm [shape: f32[128,1024], index: 1, kind: input, shape index: {}]
  %s2 = inlined_call_operand.hbm [shape: f32[1,1024], index: 2, kind: input, shape index: {}]
  %s3 = inlined_call_operand.hbm [shape: f32[8,384,256], index: 3, kind: input, shape index: {}]
  %s4 = inlined_call_operand.hbm [shape: f32[1,256], index: 4, kind: input, shape index: {}]
  %s5 = inlined_call_operand.hbm [shape: f32[8,256,256], index: 5, kind: input, shape index: {}]
  %s6 = inlined_call_operand.hbm [shape: f32[1,256], index: 6, kind: input, shape index: {}]
  %s7 = inlined_call_operand.hbm [shape: f32[256,4096], index: 7, kind: input, shape index: {}]
  %s8 = inlined_call_operand.hbm [shape: f32[1,4096], index: 8, kind: input, shape index: {}]
  %s9 = inlined_call_operand.vmem [shape: f32[8,4096], index: 9, kind: output, shape index: {}]
  %s10 = sld [smem:[#allocation0]]
  $region78: #{chess_cnn_forward.1} parent=0
    _
  %s12 = ssub.s32 1, %s10
  %s13 = scalar_select 0, %s12, %s10
  $region1: #{chess_cnn_forward.1} parent=0
    #allocation2 [shape = 'u8[524288]{0}', space=vmem, size = 0x80000, scoped, tag = 'input window, operand 1, single buffered']
    #allocation3 [shape = 's32[1]{0}', space=sflag, size = 0x4, scoped, tag = 'scoped memory for chess_cnn_forward.1']
    #allocation4 [shape = 'u8[4096]{0}', space=vmem, size = 0x1000, scoped, tag = 'input window, operand 2, single buffered']
    #allocation5 [shape = 's32[1]{0}', space=sflag, size = 0x4, scoped, tag = 'scoped memory for chess_cnn_forward.1']
    #allocation6 [shape = 'u8[3145728]{0}', space=vmem, size = 0x300000, scoped, tag = 'input window, operand 3, single buffered']
    #allocation7 [shape = 'u8[1024]{0}', space=vmem, size = 0x400, scoped, tag = 'input window, operand 4, single buffered']
    #allocation8 [shape = 's32[1]{0}', space=sflag, size = 0x4, scoped, tag = 'scoped memory for chess_cnn_forward.1']
    #allocation9 [shape = 'u8[2097152]{0}', space=vmem, size = 0x200000, scoped, tag = 'input window, operand 5, single buffered']
    #allocation10 [shape = 'u8[1024]{0}', space=vmem, size = 0x400, scoped, tag = 'input window, operand 6, single buffered']
    #allocation11 [shape = 's32[1]{0}', space=sflag, size = 0x4, scoped, tag = 'scoped memory for chess_cnn_forward.1']
    #allocation12 [shape = 'u8[4194304]{0}', space=vmem, size = 0x400000, scoped, tag = 'input window, operand 7, single buffered']
    #allocation13 [shape = 'u8[16384]{0}', space=vmem, size = 0x4000, scoped, tag = 'input window, operand 8, single buffered']
    #allocation14 [shape = 's32[1]{0}', space=sflag, size = 0x4, scoped, tag = 'scoped memory for chess_cnn_forward.1']
    %14 = vsyncpa [#allocation3], 0
    %15 = vsyncpa [#allocation5], 0
    %16 = vsyncpa [#allocation8], 0
    %17 = vsyncpa [#allocation11], 0
    %18 = vsyncpa [#allocation14], 0
    // Predicated region
    $region2: #{chess_cnn_forward.1} parent=1 // pred_check
      _
    $region3: #{chess_cnn_forward.1} parent=1 // pred_check_branch
      %20 = sbr.rel (0) target = $region5
    $region4: #{chess_cnn_forward.1} parent=1 // pred_region
      _
    $region5: #{chess_cnn_forward.1} parent=1 // pred_fallthru
      _
    // Predicated region
    $region6: #{chess_cnn_forward.1} parent=1 // pred_check
      _
    $region7: #{chess_cnn_forward.1} parent=1 // pred_check_branch
      %22 = sbr.rel (0) target = $region9
    $region8: #{chess_cnn_forward.1} parent=1 // pred_region
      %s24 = ssub.s32 16384, 16384
      %25 = vsyncadd [#allocation3], %s24
      %s26 = sshll.u32 [#allocation2], 4
      %s27 = int_to_ptr.vmem [resolvable:$true] %s26
      %32 = dma.hbm_to_vmem [thread:$0]  %s1, 16384, %s27, [#allocation3], 1024, 1024, 64
    $region9: #{chess_cnn_forward.1} parent=1 // pred_fallthru
      _
    // Predicated region
    $region10: #{chess_cnn_forward.1} parent=1 // pred_check
      _
    $region11: #{chess_cnn_forward.1} parent=1 // pred_check_branch
      %34 = sbr.rel (0) target = $region13
    $region12: #{chess_cnn_forward.1} parent=1 // pred_region
      %s36 = ssub.s32 128, 128
      %37 = vsyncadd [#allocation5], %s36
      %s39 = sshll.u32 [#allocation4], 4
      %s40 = int_to_ptr.vmem [resolvable:$true] %s39
      %42 = dma.hbm_to_vmem [thread:$0]  %s2, 128, %s40, [#allocation5]
    $region13: #{chess_cnn_forward.1} parent=1 // pred_fallthru
      _
    // Predicated region
    $region14: #{chess_cnn_forward.1} parent=1 // pred_check
      _
    $region15: #{chess_cnn_forward.1} parent=1 // pred_check_branch
      %44 = sbr.rel (0) target = $region17
    $region16: #{chess_cnn_forward.1} parent=1 // pred_region
      %s46 = ssub.s32 98304, 98304
      %47 = vsyncadd [#allocation5], %s46
      %s48 = sshll.u32 [#allocation6], 4
      %s49 = int_to_ptr.vmem [resolvable:$true] %s48
      %54 = dma.hbm_to_vmem [thread:$0]  %s3, 98304, %s49, [#allocation5], 256, 256, 16
    $region17: #{chess_cnn_forward.1} parent=1 // pred_fallthru
      _
    // Predicated region
    $region18: #{chess_cnn_forward.1} parent=1 // pred_check
      _
    $region19: #{chess_cnn_forward.1} parent=1 // pred_check_branch
      %56 = sbr.rel (0) target = $region21
    $region20: #{chess_cnn_forward.1} parent=1 // pred_region
      %s58 = ssub.s32 32, 32
      %59 = vsyncadd [#allocation8], %s58
      %s61 = sshll.u32 [#allocation7], 4
      %s62 = int_to_ptr.vmem [resolvable:$true] %s61
      %64 = dma.hbm_to_vmem [thread:$0]  %s4, 32, %s62, [#allocation8]
    $region21: #{chess_cnn_forward.1} parent=1 // pred_fallthru
      _
    // Predicated region
    $region22: #{chess_cnn_forward.1} parent=1 // pred_check
      _
    $region23: #{chess_cnn_forward.1} parent=1 // pred_check_branch
      %66 = sbr.rel (0) target = $region25
    $region24: #{chess_cnn_forward.1} parent=1 // pred_region
      %s68 = ssub.s32 65536, 65536
      %69 = vsyncadd [#allocation8], %s68
      %s70 = sshll.u32 [#allocation9], 4
      %s71 = int_to_ptr.vmem [resolvable:$true] %s70
      %76 = dma.hbm_to_vmem [thread:$0]  %s5, 65536, %s71, [#allocation8], 256, 256, 16
    $region25: #{chess_cnn_forward.1} parent=1 // pred_fallthru
      _
    // Predicated region
    $region26: #{chess_cnn_forward.1} parent=1 // pred_check
      _
    $region27: #{chess_cnn_forward.1} parent=1 // pred_check_branch
      %78 = sbr.rel (0) target = $region29
    $region28: #{chess_cnn_forward.1} parent=1 // pred_region
      %s80 = ssub.s32 32, 32
      %81 = vsyncadd [#allocation11], %s80
      %s83 = sshll.u32 [#allocation10], 4
      %s84 = int_to_ptr.vmem [resolvable:$true] %s83
      %86 = dma.hbm_to_vmem [thread:$0]  %s6, 32, %s84, [#allocation11]
    $region29: #{chess_cnn_forward.1} parent=1 // pred_fallthru
      _
    // Predicated region
    $region30: #{chess_cnn_forward.1} parent=1 // pred_check
      _
    $region31: #{chess_cnn_forward.1} parent=1 // pred_check_branch
      %88 = sbr.rel (0) target = $region33
    $region32: #{chess_cnn_forward.1} parent=1 // pred_region
      %s90 = ssub.s32 131072, 131072
      %91 = vsyncadd [#allocation11], %s90
      %s92 = sshll.u32 [#allocation12], 4
      %s93 = int_to_ptr.vmem [resolvable:$true] %s92
      %98 = dma.hbm_to_vmem [thread:$0]  %s7, 131072, %s93, [#allocation11], 4096, 4096, 256
    $region33: #{chess_cnn_forward.1} parent=1 // pred_fallthru
      _
    // Predicated region
    $region34: #{chess_cnn_forward.1} parent=1 // pred_check
      _
    $region35: #{chess_cnn_forward.1} parent=1 // pred_check_branch
      %100 = sbr.rel (0) target = $region37
    $region36: #{chess_cnn_forward.1} parent=1 // pred_region
      %s102 = ssub.s32 512, 512
      %103 = vsyncadd [#allocation14], %s102
      %s105 = sshll.u32 [#allocation13], 4
      %s106 = int_to_ptr.vmem [resolvable:$true] %s105
      %108 = dma.hbm_to_vmem [thread:$0]  %s8, 512, %s106, [#allocation14]
    $region37: #{chess_cnn_forward.1} parent=1 // pred_fallthru
      _
    // Predicated region
    $region38: #{chess_cnn_forward.1} parent=1 // pred_check
      _
    $region39: #{chess_cnn_forward.1} parent=1 // pred_check_branch
      %110 = sbr.rel (0) target = $region41
    $region40: #{chess_cnn_forward.1} parent=1 // pred_region
      %111 = dma.done [#allocation3], 16384
    $region41: #{chess_cnn_forward.1} parent=1 // pred_fallthru
      _
    // Predicated region
    $region42: #{chess_cnn_forward.1} parent=1 // pred_check
      _
    $region43: #{chess_cnn_forward.1} parent=1 // pred_check_branch
      %113 = sbr.rel (0) target = $region45
    $region44: #{chess_cnn_forward.1} parent=1 // pred_region
      %114 = dma.done [#allocation5], 128
    $region45: #{chess_cnn_forward.1} parent=1 // pred_fallthru
      _
    // Predicated region
    $region46: #{chess_cnn_forward.1} parent=1 // pred_check
      _
    $region47: #{chess_cnn_forward.1} parent=1 // pred_check_branch
      %116 = sbr.rel (0) target = $region49
    $region48: #{chess_cnn_forward.1} parent=1 // pred_region
      %117 = dma.done [#allocation5], 98304
    $region49: #{chess_cnn_forward.1} parent=1 // pred_fallthru
      _
    // Predicated region
    $region50: #{chess_cnn_forward.1} parent=1 // pred_check
      _
    $region51: #{chess_cnn_forward.1} parent=1 // pred_check_branch
      %119 = sbr.rel (0) target = $region53
    $region52: #{chess_cnn_forward.1} parent=1 // pred_region
      %120 = dma.done [#allocation8], 32
    $region53: #{chess_cnn_forward.1} parent=1 // pred_fallthru
      _
    // Predicated region
    $region54: #{chess_cnn_forward.1} parent=1 // pred_check
      _
    $region55: #{chess_cnn_forward.1} parent=1 // pred_check_branch
      %122 = sbr.rel (0) target = $region57
    $region56: #{chess_cnn_forward.1} parent=1 // pred_region
      %123 = dma.done [#allocation8], 65536
    $region57: #{chess_cnn_forward.1} parent=1 // pred_fallthru
      _
    // Predicated region
    $region58: #{chess_cnn_forward.1} parent=1 // pred_check
      _
    $region59: #{chess_cnn_forward.1} parent=1 // pred_check_branch
      %125 = sbr.rel (0) target = $region61
    $region60: #{chess_cnn_forward.1} parent=1 // pred_region
      %126 = dma.done [#allocation11], 32
    $region61: #{chess_cnn_forward.1} parent=1 // pred_fallthru
      _
    // Predicated region
    $region62: #{chess_cnn_forward.1} parent=1 // pred_check
      _
    $region63: #{chess_cnn_forward.1} parent=1 // pred_check_branch
      %128 = sbr.rel (0) target = $region65
    $region64: #{chess_cnn_forward.1} parent=1 // pred_region
      %129 = dma.done [#allocation11], 131072
    $region65: #{chess_cnn_forward.1} parent=1 // pred_fallthru
      _
    // Predicated region
    $region66: #{chess_cnn_forward.1} parent=1 // pred_check
      _
    $region67: #{chess_cnn_forward.1} parent=1 // pred_check_branch
      %131 = sbr.rel (0) target = $region69
    $region68: #{chess_cnn_forward.1} parent=1 // pred_region
      %132 = dma.done [#allocation14], 512
    $region69: #{chess_cnn_forward.1} parent=1 // pred_fallthru
      _
    %v133 = vld [vmem:[%s0] sm:$0xff]
    %v134 = vld [vmem:[#allocation2] sm:$0xff]
    %v135 = vld [vmem:[#allocation2 + $0x8] sm:$0xff]
    %v136 = vld [vmem:[#allocation2 + $0x10] sm:$0xff]
    %v137 = vld [vmem:[#allocation2 + $0x18] sm:$0xff]
    %v138 = vld [vmem:[#allocation2 + $0x20] sm:$0xff]
    %v139 = vld [vmem:[#allocation2 + $0x28] sm:$0xff]
    %v140 = vld [vmem:[#allocation2 + $0x30] sm:$0xff]
    %v141 = vld [vmem:[#allocation2 + $0x38] sm:$0xff]
    %v142 = vld [vmem:[#allocation2 + $0x40] sm:$0xff]
    %v143 = vld [vmem:[#allocation2 + $0x48] sm:$0xff]
    %v144 = vld [vmem:[#allocation2 + $0x50] sm:$0xff]
    %v145 = vld [vmem:[#allocation2 + $0x58] sm:$0xff]
    %v146 = vld [vmem:[#allocation2 + $0x60] sm:$0xff]
    %v147 = vld [vmem:[#allocation2 + $0x68] sm:$0xff]
    %v148 = vld [vmem:[#allocation2 + $0x70] sm:$0xff]
    %v149 = vld [vmem:[#allocation2 + $0x78] sm:$0xff]
    %v150 = vld [vmem:[#allocation2 + $0x80] sm:$0xff]
    %v151 = vld [vmem:[#allocation2 + $0x88] sm:$0xff]
    %v152 = vld [vmem:[#allocation2 + $0x90] sm:$0xff]
    %v153 = vld [vmem:[#allocation2 + $0x98] sm:$0xff]
    %v154 = vld [vmem:[#allocation2 + $0xa0] sm:$0xff]
    %v155 = vld [vmem:[#allocation2 + $0xa8] sm:$0xff]
    %v156 = vld [vmem:[#allocation2 + $0xb0] sm:$0xff]
    %v157 = vld [vmem:[#allocation2 + $0xb8] sm:$0xff]
    %v158 = vld [vmem:[#allocation2 + $0xc0] sm:$0xff]
    %v159 = vld [vmem:[#allocation2 + $0xc8] sm:$0xff]
    %v160 = vld [vmem:[#allocation2 + $0xd0] sm:$0xff]
    %v161 = vld [vmem:[#allocation2 + $0xd8] sm:$0xff]
    %v162 = vld [vmem:[#allocation2 + $0xe0] sm:$0xff]
    %v163 = vld [vmem:[#allocation2 + $0xe8] sm:$0xff]
    %v164 = vld [vmem:[#allocation2 + $0xf0] sm:$0xff]
    %v165 = vld [vmem:[#allocation2 + $0xf8] sm:$0xff]
    %v166 = vld [vmem:[#allocation2 + $0x100] sm:$0xff]
    %v167 = vld [vmem:[#allocation2 + $0x108] sm:$0xff]
    %v168 = vld [vmem:[#allocation2 + $0x110] sm:$0xff]
    %v169 = vld [vmem:[#allocation2 + $0x118] sm:$0xff]
    %v170 = vld [vmem:[#allocation2 + $0x120] sm:$0xff]
    %v171 = vld [vmem:[#allocation2 + $0x128] sm:$0xff]
    %v172 = vld [vmem:[#allocation2 + $0x130] sm:$0xff]
    %v173 = vld [vmem:[#allocation2 + $0x138] sm:$0xff]
    %v174 = vld [vmem:[#allocation2 + $0x140] sm:$0xff]
    %v175 = vld [vmem:[#allocation2 + $0x148] sm:$0xff]
    %v176 = vld [vmem:[#allocation2 + $0x150] sm:$0xff]
    %v177 = vld [vmem:[#allocation2 + $0x158] sm:$0xff]
    %v178 = vld [vmem:[#allocation2 + $0x160] sm:$0xff]
    %v179 = vld [vmem:[#allocation2 + $0x168] sm:$0xff]
    %v180 = vld [vmem:[#allocation2 + $0x170] sm:$0xff]
    %v181 = vld [vmem:[#allocation2 + $0x178] sm:$0xff]
    %v182 = vld [vmem:[#allocation2 + $0x180] sm:$0xff]
    %v183 = vld [vmem:[#allocation2 + $0x188] sm:$0xff]
    %v184 = vld [vmem:[#allocation2 + $0x190] sm:$0xff]
    %v185 = vld [vmem:[#allocation2 + $0x198] sm:$0xff]
    %v186 = vld [vmem:[#allocation2 + $0x1a0] sm:$0xff]
    %v187 = vld [vmem:[#allocation2 + $0x1a8] sm:$0xff]
    %v188 = vld [vmem:[#allocation2 + $0x1b0] sm:$0xff]
    %v189 = vld [vmem:[#allocation2 + $0x1b8] sm:$0xff]
    %v190 = vld [vmem:[#allocation2 + $0x1c0] sm:$0xff]
    %v191 = vld [vmem:[#allocation2 + $0x1c8] sm:$0xff]
    %v192 = vld [vmem:[#allocation2 + $0x1d0] sm:$0xff]
    %v193 = vld [vmem:[#allocation2 + $0x1d8] sm:$0xff]
    %v194 = vld [vmem:[#allocation2 + $0x1e0] sm:$0xff]
    %v195 = vld [vmem:[#allocation2 + $0x1e8] sm:$0xff]
    %v196 = vld [vmem:[#allocation2 + $0x1f0] sm:$0xff]
    %v197 = vld [vmem:[#allocation2 + $0x1f8] sm:$0xff]
    %v198 = vld [vmem:[#allocation2 + $0x200] sm:$0xff]
    %v199 = vld [vmem:[#allocation2 + $0x208] sm:$0xff]
    %v200 = vld [vmem:[#allocation2 + $0x210] sm:$0xff]
    %v201 = vld [vmem:[#allocation2 + $0x218] sm:$0xff]
    %v202 = vld [vmem:[#allocation2 + $0x220] sm:$0xff]
    %v203 = vld [vmem:[#allocation2 + $0x228] sm:$0xff]
    %v204 = vld [vmem:[#allocation2 + $0x230] sm:$0xff]
    %v205 = vld [vmem:[#allocation2 + $0x238] sm:$0xff]
    %v206 = vld [vmem:[#allocation2 + $0x240] sm:$0xff]
    %v207 = vld [vmem:[#allocation2 + $0x248] sm:$0xff]
    %v208 = vld [vmem:[#allocation2 + $0x250] sm:$0xff]
    %v209 = vld [vmem:[#allocation2 + $0x258] sm:$0xff]
    %v210 = vld [vmem:[#allocation2 + $0x260] sm:$0xff]
    %v211 = vld [vmem:[#allocation2 + $0x268] sm:$0xff]
    %v212 = vld [vmem:[#allocation2 + $0x270] sm:$0xff]
    %v213 = vld [vmem:[#allocation2 + $0x278] sm:$0xff]
    %v214 = vld [vmem:[#allocation2 + $0x280] sm:$0xff]
    %v215 = vld [vmem:[#allocation2 + $0x288] sm:$0xff]
    %v216 = vld [vmem:[#allocation2 + $0x290] sm:$0xff]
    %v217 = vld [vmem:[#allocation2 + $0x298] sm:$0xff]
    %v218 = vld [vmem:[#allocation2 + $0x2a0] sm:$0xff]
    %v219 = vld [vmem:[#allocation2 + $0x2a8] sm:$0xff]
    %v220 = vld [vmem:[#allocation2 + $0x2b0] sm:$0xff]
    %v221 = vld [vmem:[#allocation2 + $0x2b8] sm:$0xff]
    %v222 = vld [vmem:[#allocation2 + $0x2c0] sm:$0xff]
    %v223 = vld [vmem:[#allocation2 + $0x2c8] sm:$0xff]
    %v224 = vld [vmem:[#allocation2 + $0x2d0] sm:$0xff]
    %v225 = vld [vmem:[#allocation2 + $0x2d8] sm:$0xff]
    %v226 = vld [vmem:[#allocation2 + $0x2e0] sm:$0xff]
    %v227 = vld [vmem:[#allocation2 + $0x2e8] sm:$0xff]
    %v228 = vld [vmem:[#allocation2 + $0x2f0] sm:$0xff]
    %v229 = vld [vmem:[#allocation2 + $0x2f8] sm:$0xff]
    %v230 = vld [vmem:[#allocation2 + $0x300] sm:$0xff]
    %v231 = vld [vmem:[#allocation2 + $0x308] sm:$0xff]
    %v232 = vld [vmem:[#allocation2 + $0x310] sm:$0xff]
    %v233 = vld [vmem:[#allocation2 + $0x318] sm:$0xff]
    %v234 = vld [vmem:[#allocation2 + $0x320] sm:$0xff]
    %v235 = vld [vmem:[#allocation2 + $0x328] sm:$0xff]
    %v236 = vld [vmem:[#allocation2 + $0x330] sm:$0xff]
    %v237 = vld [vmem:[#allocation2 + $0x338] sm:$0xff]
    %v238 = vld [vmem:[#allocation2 + $0x340] sm:$0xff]
    %v239 = vld [vmem:[#allocation2 + $0x348] sm:$0xff]
    %v240 = vld [vmem:[#allocation2 + $0x350] sm:$0xff]
    %v241 = vld [vmem:[#allocation2 + $0x358] sm:$0xff]
    %v242 = vld [vmem:[#allocation2 + $0x360] sm:$0xff]
    %v243 = vld [vmem:[#allocation2 + $0x368] sm:$0xff]
    %v244 = vld [vmem:[#allocation2 + $0x370] sm:$0xff]
    %v245 = vld [vmem:[#allocation2 + $0x378] sm:$0xff]
    %v246 = vld [vmem:[#allocation2 + $0x380] sm:$0xff]
    %v247 = vld [vmem:[#allocation2 + $0x388] sm:$0xff]
    %v248 = vld [vmem:[#allocation2 + $0x390] sm:$0xff]
    %v249 = vld [vmem:[#allocation2 + $0x398] sm:$0xff]
    %v250 = vld [vmem:[#allocation2 + $0x3a0] sm:$0xff]
    %v251 = vld [vmem:[#allocation2 + $0x3a8] sm:$0xff]
    %v252 = vld [vmem:[#allocation2 + $0x3b0] sm:$0xff]
    %v253 = vld [vmem:[#allocation2 + $0x3b8] sm:$0xff]
    %v254 = vld [vmem:[#allocation2 + $0x3c0] sm:$0xff]
    %v255 = vld [vmem:[#allocation2 + $0x3c8] sm:$0xff]
    %v256 = vld [vmem:[#allocation2 + $0x3d0] sm:$0xff]
    %v257 = vld [vmem:[#allocation2 + $0x3d8] sm:$0xff]
    %v258 = vld [vmem:[#allocation2 + $0x3e0] sm:$0xff]
    %v259 = vld [vmem:[#allocation2 + $0x3e8] sm:$0xff]
    %v260 = vld [vmem:[#allocation2 + $0x3f0] sm:$0xff]
    %v261 = vld [vmem:[#allocation2 + $0x3f8] sm:$0xff]
    %v262 = vld [vmem:[#allocation4] sm:$0xff]
    %v264 = vlaneseq
    %v265 = vshrl.u32 %v264, 7
    %v266 = vsub.s32 0, %v265
    %v267 = vrot.slane %v262, %v266
    %v268 = vlaneseq
    %v269 = vshrl.u32 %v268, 7
    %v270 = vsub.s32 1, %v269
    %v271 = vrot.slane %v262, %v270
    %v272 = vlaneseq
    %v273 = vshrl.u32 %v272, 7
    %v274 = vsub.s32 2, %v273
    %v275 = vrot.slane %v262, %v274
    %v276 = vlaneseq
    %v277 = vshrl.u32 %v276, 7
    %v278 = vsub.s32 3, %v277
    %v279 = vrot.slane %v262, %v278
    %v280 = vlaneseq
    %v281 = vshrl.u32 %v280, 7
    %v282 = vsub.s32 4, %v281
    %v283 = vrot.slane %v262, %v282
    %v284 = vlaneseq
    %v285 = vshrl.u32 %v284, 7
    %v286 = vsub.s32 5, %v285
    %v287 = vrot.slane %v262, %v286
    %v288 = vlaneseq
    %v289 = vshrl.u32 %v288, 7
    %v290 = vsub.s32 6, %v289
    %v291 = vrot.slane %v262, %v290
    %v292 = vlaneseq
    %v293 = vshrl.u32 %v292, 7
    %v294 = vsub.s32 7, %v293
    %v295 = vrot.slane %v262, %v294
    %304 = vmatprep.subr.mxu0 %v135
    %305 = vmatpush1.msra.mxu0 %v134
    %306 = vmatprep.subr.mxu0 %v143
    %307 = vmatpush1.msra.mxu0 %v142
    %308 = vmatprep.subr.mxu0 %v151
    %309 = vmatpush1.msra.mxu0 %v150
    %310 = vmatprep.subr.mxu0 %v159
    %311 = vmatpush1.msra.mxu0 %v158
    %312 = vmatprep.subr.mxu0 %v167
    %313 = vmatpush1.msra.mxu0 %v166
    %314 = vmatprep.subr.mxu0 %v175
    %315 = vmatpush1.msra.mxu0 %v174
    %316 = vmatprep.subr.mxu0 %v183
    %317 = vmatpush1.msra.mxu0 %v182
    %318 = vmatprep.subr.mxu0 %v191
    %319 = vmatpush1.msra.mxu0 %v190
    %320 = vmatprep.subr.mxu0 %v199
    %321 = vmatpush1.msra.mxu0 %v198
    %322 = vmatprep.subr.mxu0 %v207
    %323 = vmatpush1.msra.mxu0 %v206
    %324 = vmatprep.subr.mxu0 %v215
    %325 = vmatpush1.msra.mxu0 %v214
    %326 = vmatprep.subr.mxu0 %v223
    %327 = vmatpush1.msra.mxu0 %v222
    %328 = vmatprep.subr.mxu0 %v231
    %329 = vmatpush1.msra.mxu0 %v230
    %330 = vmatprep.subr.mxu0 %v239
    %331 = vmatpush1.msra.mxu0 %v238
    %332 = vmatprep.subr.mxu0 %v247
    %333 = vmatpush1.msra.mxu0 %v246
    %334 = vmatprep.subr.mxu0 %v255
    %335 = vmatpush1.msra.mxu0 %v254
    %336 = vmatprep.subr.mxu0 0.0
    %337 = vmatpush1.msra.mxu0 0.0
    %338 = vmatprep.subr.mxu0 0.0
    %339 = vmatpush1.msra.mxu0 0.0
    %340 = vmatprep.subr.mxu0 0.0
    %341 = vmatpush1.msra.mxu0 0.0
    %342 = vmatprep.subr.mxu0 0.0
    %343 = vmatpush1.msra.mxu0 0.0
    %344 = vmatprep.subr.mxu0 0.0
    %345 = vmatpush1.msra.mxu0 0.0
    %346 = vmatprep.subr.mxu0 0.0
    %347 = vmatpush1.msra.mxu0 0.0
    %348 = vmatprep.subr.mxu0 0.0
    %349 = vmatpush1.msra.mxu0 0.0
    %350 = vmatprep.subr.mxu0 0.0
    %351 = vmatpush1.msra.mxu0 0.0
    %352 = vmatprep.subr.mxu0 0.0
    %353 = vmatpush1.msra.mxu0 0.0
    %354 = vmatprep.subr.mxu0 0.0
    %355 = vmatpush1.msra.mxu0 0.0
    %356 = vmatprep.subr.mxu0 0.0
    %357 = vmatpush1.msra.mxu0 0.0
    %358 = vmatprep.subr.mxu0 0.0
    %359 = vmatpush1.msra.mxu0 0.0
    %360 = vmatprep.subr.mxu0 0.0
    %361 = vmatpush1.msra.mxu0 0.0
    %362 = vmatprep.subr.mxu0 0.0
    %363 = vmatpush1.msra.mxu0 0.0
    %364 = vmatprep.subr.mxu0 0.0
    %365 = vmatpush1.msra.mxu0 0.0
    %366 = vmatprep.subr.mxu0 0.0
    %367 = vmatpush1.msra.mxu0 0.0
    %368 = vmatprep.mubr.f32.mxu0 0.0
    %369 = vmatmul.mubr.f32.gmra.mrb[0].mxu0 %v133
    %v370 = vpop.f32.mrb[0].mxu0
    %v371 = vadd.f32 %v267, %v370
    %v372 = vpop.f32.mrb[0].mxu0
    %v373 = vadd.f32 %v271, %v372
    %374 = vdwg.mxu0
    %375 = vmatprep.subr.mxu0 %v137
    %376 = vmatpush1.msra.mxu0 %v136
    %377 = vmatprep.subr.mxu0 %v145
    %378 = vmatpush1.msra.mxu0 %v144
    %379 = vmatprep.subr.mxu0 %v153
    %380 = vmatpush1.msra.mxu0 %v152
    %381 = vmatprep.subr.mxu0 %v161
    %382 = vmatpush1.msra.mxu0 %v160
    %383 = vmatprep.subr.mxu0 %v169
    %384 = vmatpush1.msra.mxu0 %v168
    %385 = vmatprep.subr.mxu0 %v177
    %386 = vmatpush1.msra.mxu0 %v176
    %387 = vmatprep.subr.mxu0 %v185
    %388 = vmatpush1.msra.mxu0 %v184
    %389 = vmatprep.subr.mxu0 %v193
    %390 = vmatpush1.msra.mxu0 %v192
    %391 = vmatprep.subr.mxu0 %v201
    %392 = vmatpush1.msra.mxu0 %v200
    %393 = vmatprep.subr.mxu0 %v209
    %394 = vmatpush1.msra.mxu0 %v208
    %395 = vmatprep.subr.mxu0 %v217
    %396 = vmatpush1.msra.mxu0 %v216
    %397 = vmatprep.subr.mxu0 %v225
    %398 = vmatpush1.msra.mxu0 %v224
    %399 = vmatprep.subr.mxu0 %v233
    %400 = vmatpush1.msra.mxu0 %v232
    %401 = vmatprep.subr.mxu0 %v241
    %402 = vmatpush1.msra.mxu0 %v240
    %403 = vmatprep.subr.mxu0 %v249
    %404 = vmatpush1.msra.mxu0 %v248
    %405 = vmatprep.subr.mxu0 %v257
    %406 = vmatpush1.msra.mxu0 %v256
    %407 = vmatprep.subr.mxu0 0.0
    %408 = vmatpush1.msra.mxu0 0.0
    %409 = vmatprep.subr.mxu0 0.0
    %410 = vmatpush1.msra.mxu0 0.0
    %411 = vmatprep.subr.mxu0 0.0
    %412 = vmatpush1.msra.mxu0 0.0
    %413 = vmatprep.subr.mxu0 0.0
    %414 = vmatpush1.msra.mxu0 0.0
    %415 = vmatprep.subr.mxu0 0.0
    %416 = vmatpush1.msra.mxu0 0.0
    %417 = vmatprep.subr.mxu0 0.0
    %418 = vmatpush1.msra.mxu0 0.0
    %419 = vmatprep.subr.mxu0 0.0
    %420 = vmatpush1.msra.mxu0 0.0
    %421 = vmatprep.subr.mxu0 0.0
    %422 = vmatpush1.msra.mxu0 0.0
    %423 = vmatprep.subr.mxu0 0.0
    %424 = vmatpush1.msra.mxu0 0.0
    %425 = vmatprep.subr.mxu0 0.0
    %426 = vmatpush1.msra.mxu0 0.0
    %427 = vmatprep.subr.mxu0 0.0
    %428 = vmatpush1.msra.mxu0 0.0
    %429 = vmatprep.subr.mxu0 0.0
    %430 = vmatpush1.msra.mxu0 0.0
    %431 = vmatprep.subr.mxu0 0.0
    %432 = vmatpush1.msra.mxu0 0.0
    %433 = vmatprep.subr.mxu0 0.0
    %434 = vmatpush1.msra.mxu0 0.0
    %435 = vmatprep.subr.mxu0 0.0
    %436 = vmatpush1.msra.mxu0 0.0
    %437 = vmatprep.subr.mxu0 0.0
    %438 = vmatpush1.msra.mxu0 0.0
    %439 = vmatprep.mubr.f32.mxu0 0.0
    %440 = vmatmul.mubr.f32.gmra.mrb[0].mxu0 %v133
    %v441 = vpop.f32.mrb[0].mxu0
    %v442 = vadd.f32 %v275, %v441
    %v443 = vpop.f32.mrb[0].mxu0
    %v444 = vadd.f32 %v279, %v443
    %445 = vdwg.mxu0
    %446 = vmatprep.subr.mxu0 %v139
    %447 = vmatpush1.msra.mxu0 %v138
    %448 = vmatprep.subr.mxu0 %v147
    %449 = vmatpush1.msra.mxu0 %v146
    %450 = vmatprep.subr.mxu0 %v155
    %451 = vmatpush1.msra.mxu0 %v154
    %452 = vmatprep.subr.mxu0 %v163
    %453 = vmatpush1.msra.mxu0 %v162
    %454 = vmatprep.subr.mxu0 %v171
    %455 = vmatpush1.msra.mxu0 %v170
    %456 = vmatprep.subr.mxu0 %v179
    %457 = vmatpush1.msra.mxu0 %v178
    %458 = vmatprep.subr.mxu0 %v187
    %459 = vmatpush1.msra.mxu0 %v186
    %460 = vmatprep.subr.mxu0 %v195
    %461 = vmatpush1.msra.mxu0 %v194
    %462 = vmatprep.subr.mxu0 %v203
    %463 = vmatpush1.msra.mxu0 %v202
    %464 = vmatprep.subr.mxu0 %v211
    %465 = vmatpush1.msra.mxu0 %v210
    %466 = vmatprep.subr.mxu0 %v219
    %467 = vmatpush1.msra.mxu0 %v218
    %468 = vmatprep.subr.mxu0 %v227
    %469 = vmatpush1.msra.mxu0 %v226
    %470 = vmatprep.subr.mxu0 %v235
    %471 = vmatpush1.msra.mxu0 %v234
    %472 = vmatprep.subr.mxu0 %v243
    %473 = vmatpush1.msra.mxu0 %v242
    %474 = vmatprep.subr.mxu0 %v251
    %475 = vmatpush1.msra.mxu0 %v250
    %476 = vmatprep.subr.mxu0 %v259
    %477 = vmatpush1.msra.mxu0 %v258
    %478 = vmatprep.subr.mxu0 0.0
    %479 = vmatpush1.msra.mxu0 0.0
    %480 = vmatprep.subr.mxu0 0.0
    %481 = vmatpush1.msra.mxu0 0.0
    %482 = vmatprep.subr.mxu0 0.0
    %483 = vmatpush1.msra.mxu0 0.0
    %484 = vmatprep.subr.mxu0 0.0
    %485 = vmatpush1.msra.mxu0 0.0
    %486 = vmatprep.subr.mxu0 0.0
    %487 = vmatpush1.msra.mxu0 0.0
    %488 = vmatprep.subr.mxu0 0.0
    %489 = vmatpush1.msra.mxu0 0.0
    %490 = vmatprep.subr.mxu0 0.0
    %491 = vmatpush1.msra.mxu0 0.0
    %492 = vmatprep.subr.mxu0 0.0
    %493 = vmatpush1.msra.mxu0 0.0
    %494 = vmatprep.subr.mxu0 0.0
    %495 = vmatpush1.msra.mxu0 0.0
    %496 = vmatprep.subr.mxu0 0.0
    %497 = vmatpush1.msra.mxu0 0.0
    %498 = vmatprep.subr.mxu0 0.0
    %499 = vmatpush1.msra.mxu0 0.0
    %500 = vmatprep.subr.mxu0 0.0
    %501 = vmatpush1.msra.mxu0 0.0
    %502 = vmatprep.subr.mxu0 0.0
    %503 = vmatpush1.msra.mxu0 0.0
    %504 = vmatprep.subr.mxu0 0.0
    %505 = vmatpush1.msra.mxu0 0.0
    %506 = vmatprep.subr.mxu0 0.0
    %507 = vmatpush1.msra.mxu0 0.0
    %508 = vmatprep.subr.mxu0 0.0
    %509 = vmatpush1.msra.mxu0 0.0
    %510 = vmatprep.mubr.f32.mxu0 0.0
    %511 = vmatmul.mubr.f32.gmra.mrb[0].mxu0 %v133
    %v512 = vpop.f32.mrb[0].mxu0
    %v513 = vadd.f32 %v283, %v512
    %v514 = vpop.f32.mrb[0].mxu0
    %v515 = vadd.f32 %v287, %v514
    %516 = vdwg.mxu0
    %517 = vmatprep.subr.mxu0 %v141
    %518 = vmatpush1.msra.mxu0 %v140
    %519 = vmatprep.subr.mxu0 %v149
    %520 = vmatpush1.msra.mxu0 %v148
    %521 = vmatprep.subr.mxu0 %v157
    %522 = vmatpush1.msra.mxu0 %v156
    %523 = vmatprep.subr.mxu0 %v165
    %524 = vmatpush1.msra.mxu0 %v164
    %525 = vmatprep.subr.mxu0 %v173
    %526 = vmatpush1.msra.mxu0 %v172
    %527 = vmatprep.subr.mxu0 %v181
    %528 = vmatpush1.msra.mxu0 %v180
    %529 = vmatprep.subr.mxu0 %v189
    %530 = vmatpush1.msra.mxu0 %v188
    %531 = vmatprep.subr.mxu0 %v197
    %532 = vmatpush1.msra.mxu0 %v196
    %533 = vmatprep.subr.mxu0 %v205
    %534 = vmatpush1.msra.mxu0 %v204
    %535 = vmatprep.subr.mxu0 %v213
    %536 = vmatpush1.msra.mxu0 %v212
    %537 = vmatprep.subr.mxu0 %v221
    %538 = vmatpush1.msra.mxu0 %v220
    %539 = vmatprep.subr.mxu0 %v229
    %540 = vmatpush1.msra.mxu0 %v228
    %541 = vmatprep.subr.mxu0 %v237
    %542 = vmatpush1.msra.mxu0 %v236
    %543 = vmatprep.subr.mxu0 %v245
    %544 = vmatpush1.msra.mxu0 %v244
    %545 = vmatprep.subr.mxu0 %v253
    %546 = vmatpush1.msra.mxu0 %v252
    %547 = vmatprep.subr.mxu0 %v261
    %548 = vmatpush1.msra.mxu0 %v260
    %549 = vmatprep.subr.mxu0 0.0
    %550 = vmatpush1.msra.mxu0 0.0
    %551 = vmatprep.subr.mxu0 0.0
    %552 = vmatpush1.msra.mxu0 0.0
    %553 = vmatprep.subr.mxu0 0.0
    %554 = vmatpush1.msra.mxu0 0.0
    %555 = vmatprep.subr.mxu0 0.0
    %556 = vmatpush1.msra.mxu0 0.0
    %557 = vmatprep.subr.mxu0 0.0
    %558 = vmatpush1.msra.mxu0 0.0
    %559 = vmatprep.subr.mxu0 0.0
    %560 = vmatpush1.msra.mxu0 0.0
    %561 = vmatprep.subr.mxu0 0.0
    %562 = vmatpush1.msra.mxu0 0.0
    %563 = vmatprep.subr.mxu0 0.0
    %564 = vmatpush1.msra.mxu0 0.0
    %565 = vmatprep.subr.mxu0 0.0
    %566 = vmatpush1.msra.mxu0 0.0
    %567 = vmatprep.subr.mxu0 0.0
    %568 = vmatpush1.msra.mxu0 0.0
    %569 = vmatprep.subr.mxu0 0.0
    %570 = vmatpush1.msra.mxu0 0.0
    %571 = vmatprep.subr.mxu0 0.0
    %572 = vmatpush1.msra.mxu0 0.0
    %573 = vmatprep.subr.mxu0 0.0
    %574 = vmatpush1.msra.mxu0 0.0
    %575 = vmatprep.subr.mxu0 0.0
    %576 = vmatpush1.msra.mxu0 0.0
    %577 = vmatprep.subr.mxu0 0.0
    %578 = vmatpush1.msra.mxu0 0.0
    %579 = vmatprep.subr.mxu0 0.0
    %580 = vmatpush1.msra.mxu0 0.0
    %581 = vmatprep.mubr.f32.mxu0 0.0
    %582 = vmatmul.mubr.f32.gmra.mrb[0].mxu0 %v133
    %v583 = vpop.f32.mrb[0].mxu0
    %v584 = vadd.f32 %v291, %v583
    %v585 = vpop.f32.mrb[0].mxu0
    %v586 = vadd.f32 %v295, %v585
    %587 = vdwg.mxu0
    %v588 = vmax.f32 %v371, 0.0
    %v589 = vmax.f32 %v373, 0.0
    %v590 = vmax.f32 %v442, 0.0
    %v591 = vmax.f32 %v444, 0.0
    %v592 = vmax.f32 %v513, 0.0
    %v593 = vmax.f32 %v515, 0.0
    %v594 = vmax.f32 %v584, 0.0
    %v595 = vmax.f32 %v586, 0.0
    %v596 = vld [vmem:[#allocation7] sm:$0x3]
    %v597 = vld [vmem:[#allocation6] sm:$0xff]
    %v598 = vld [vmem:[#allocation6 + $0x8] sm:$0xff]
    %v599 = vld [vmem:[#allocation6 + $0x10] sm:$0xff]
    %v600 = vld [vmem:[#allocation6 + $0x18] sm:$0xff]
    %v601 = vld [vmem:[#allocation6 + $0x20] sm:$0xff]
    %v602 = vld [vmem:[#allocation6 + $0x28] sm:$0xff]
    %v603 = vld [vmem:[#allocation6 + $0x30] sm:$0xff]
    %v604 = vld [vmem:[#allocation6 + $0x38] sm:$0xff]
    %v605 = vld [vmem:[#allocation6 + $0x40] sm:$0xff]
    %v606 = vld [vmem:[#allocation6 + $0x48] sm:$0xff]
    %v607 = vld [vmem:[#allocation6 + $0x50] sm:$0xff]
    %v608 = vld [vmem:[#allocation6 + $0x58] sm:$0xff]
    %v609 = vld [vmem:[#allocation6 + $0x60] sm:$0xff]
    %v610 = vld [vmem:[#allocation6 + $0x68] sm:$0xff]
    %v611 = vld [vmem:[#allocation6 + $0x70] sm:$0xff]
    %v612 = vld [vmem:[#allocation6 + $0x78] sm:$0xff]
    %v613 = vld [vmem:[#allocation6 + $0x80] sm:$0xff]
    %v614 = vld [vmem:[#allocation6 + $0x88] sm:$0xff]
    %v615 = vld [vmem:[#allocation6 + $0x90] sm:$0xff]
    %v616 = vld [vmem:[#allocation6 + $0x98] sm:$0xff]
    %v617 = vld [vmem:[#allocation6 + $0xa0] sm:$0xff]
    %v618 = vld [vmem:[#allocation6 + $0xa8] sm:$0xff]
    %v619 = vld [vmem:[#allocation6 + $0xb0] sm:$0xff]
    %v620 = vld [vmem:[#allocation6 + $0xb8] sm:$0xff]
    %v621 = vld [vmem:[#allocation6 + $0xc0] sm:$0xff]
    %v622 = vld [vmem:[#allocation6 + $0xc8] sm:$0xff]
    %v623 = vld [vmem:[#allocation6 + $0xd0] sm:$0xff]
    %v624 = vld [vmem:[#allocation6 + $0xd8] sm:$0xff]
    %v625 = vld [vmem:[#allocation6 + $0xe0] sm:$0xff]
    %v626 = vld [vmem:[#allocation6 + $0xe8] sm:$0xff]
    %v627 = vld [vmem:[#allocation6 + $0xf0] sm:$0xff]
    %v628 = vld [vmem:[#allocation6 + $0xf8] sm:$0xff]
    %v629 = vld [vmem:[#allocation6 + $0x100] sm:$0xff]
    %v630 = vld [vmem:[#allocation6 + $0x108] sm:$0xff]
    %v631 = vld [vmem:[#allocation6 + $0x110] sm:$0xff]
    %v632 = vld [vmem:[#allocation6 + $0x118] sm:$0xff]
    %v633 = vld [vmem:[#allocation6 + $0x120] sm:$0xff]
    %v634 = vld [vmem:[#allocation6 + $0x128] sm:$0xff]
    %v635 = vld [vmem:[#allocation6 + $0x130] sm:$0xff]
    %v636 = vld [vmem:[#allocation6 + $0x138] sm:$0xff]
    %v637 = vld [vmem:[#allocation6 + $0x140] sm:$0xff]
    %v638 = vld [vmem:[#allocation6 + $0x148] sm:$0xff]
    %v639 = vld [vmem:[#allocation6 + $0x150] sm:$0xff]
    %v640 = vld [vmem:[#allocation6 + $0x158] sm:$0xff]
    %v641 = vld [vmem:[#allocation6 + $0x160] sm:$0xff]
    %v642 = vld [vmem:[#allocation6 + $0x168] sm:$0xff]
    %v643 = vld [vmem:[#allocation6 + $0x170] sm:$0xff]
    %v644 = vld [vmem:[#allocation6 + $0x178] sm:$0xff]
    %v645 = vld [vmem:[#allocation6 + $0x180] sm:$0xff]
    %v646 = vld [vmem:[#allocation6 + $0x188] sm:$0xff]
    %v647 = vld [vmem:[#allocation6 + $0x190] sm:$0xff]
    %v648 = vld [vmem:[#allocation6 + $0x198] sm:$0xff]
    %v649 = vld [vmem:[#allocation6 + $0x1a0] sm:$0xff]
    %v650 = vld [vmem:[#allocation6 + $0x1a8] sm:$0xff]
    %v651 = vld [vmem:[#allocation6 + $0x1b0] sm:$0xff]
    %v652 = vld [vmem:[#allocation6 + $0x1b8] sm:$0xff]
    %v653 = vld [vmem:[#allocation6 + $0x1c0] sm:$0xff]
    %v654 = vld [vmem:[#allocation6 + $0x1c8] sm:$0xff]
    %v655 = vld [vmem:[#allocation6 + $0x1d0] sm:$0xff]
    %v656 = vld [vmem:[#allocation6 + $0x1d8] sm:$0xff]
    %v657 = vld [vmem:[#allocation6 + $0x1e0] sm:$0xff]
    %v658 = vld [vmem:[#allocation6 + $0x1e8] sm:$0xff]
    %v659 = vld [vmem:[#allocation6 + $0x1f0] sm:$0xff]
    %v660 = vld [vmem:[#allocation6 + $0x1f8] sm:$0xff]
    %v661 = vld [vmem:[#allocation6 + $0x200] sm:$0xff]
    %v662 = vld [vmem:[#allocation6 + $0x208] sm:$0xff]
    %v663 = vld [vmem:[#allocation6 + $0x210] sm:$0xff]
    %v664 = vld [vmem:[#allocation6 + $0x218] sm:$0xff]
    %v665 = vld [vmem:[#allocation6 + $0x220] sm:$0xff]
    %v666 = vld [vmem:[#allocation6 + $0x228] sm:$0xff]
    %v667 = vld [vmem:[#allocation6 + $0x230] sm:$0xff]
    %v668 = vld [vmem:[#allocation6 + $0x238] sm:$0xff]
    %v669 = vld [vmem:[#allocation6 + $0x240] sm:$0xff]
    %v670 = vld [vmem:[#allocation6 + $0x248] sm:$0xff]
    %v671 = vld [vmem:[#allocation6 + $0x250] sm:$0xff]
    %v672 = vld [vmem:[#allocation6 + $0x258] sm:$0xff]
    %v673 = vld [vmem:[#allocation6 + $0x260] sm:$0xff]
    %v674 = vld [vmem:[#allocation6 + $0x268] sm:$0xff]
    %v675 = vld [vmem:[#allocation6 + $0x270] sm:$0xff]
    %v676 = vld [vmem:[#allocation6 + $0x278] sm:$0xff]
    %v677 = vld [vmem:[#allocation6 + $0x280] sm:$0xff]
    %v678 = vld [vmem:[#allocation6 + $0x288] sm:$0xff]
    %v679 = vld [vmem:[#allocation6 + $0x290] sm:$0xff]
    %v680 = vld [vmem:[#allocation6 + $0x298] sm:$0xff]
    %v681 = vld [vmem:[#allocation6 + $0x2a0] sm:$0xff]
    %v682 = vld [vmem:[#allocation6 + $0x2a8] sm:$0xff]
    %v683 = vld [vmem:[#allocation6 + $0x2b0] sm:$0xff]
    %v684 = vld [vmem:[#allocation6 + $0x2b8] sm:$0xff]
    %v685 = vld [vmem:[#allocation6 + $0x2c0] sm:$0xff]
    %v686 = vld [vmem:[#allocation6 + $0x2c8] sm:$0xff]
    %v687 = vld [vmem:[#allocation6 + $0x2d0] sm:$0xff]
    %v688 = vld [vmem:[#allocation6 + $0x2d8] sm:$0xff]
    %v689 = vld [vmem:[#allocation6 + $0x2e0] sm:$0xff]
    %v690 = vld [vmem:[#allocation6 + $0x2e8] sm:$0xff]
    %v691 = vld [vmem:[#allocation6 + $0x2f0] sm:$0xff]
    %v692 = vld [vmem:[#allocation6 + $0x2f8] sm:$0xff]
    %v694 = vlaneseq
    %v695 = vshrl.u32 %v694, 7
    %v696 = vsub.s32 0, %v695
    %v697 = vrot.slane %v596, %v696
    %v698 = vlaneseq
    %v699 = vshrl.u32 %v698, 7
    %v700 = vsub.s32 1, %v699
    %v701 = vrot.slane %v596, %v700
    %704 = vmatprep.subr.mxu0 %v598
    %705 = vmatpush1.msra.mxu0 %v597
    %706 = vmatprep.subr.mxu0 %v600
    %707 = vmatpush1.msra.mxu0 %v599
    %708 = vmatprep.subr.mxu0 %v602
    %709 = vmatpush1.msra.mxu0 %v601
    %710 = vmatprep.subr.mxu0 %v604
    %711 = vmatpush1.msra.mxu0 %v603
    %712 = vmatprep.subr.mxu0 %v606
    %713 = vmatpush1.msra.mxu0 %v605
    %714 = vmatprep.subr.mxu0 %v608
    %715 = vmatpush1.msra.mxu0 %v607
    %716 = vmatprep.subr.mxu0 %v610
    %717 = vmatpush1.msra.mxu0 %v609
    %718 = vmatprep.subr.mxu0 %v612
    %719 = vmatpush1.msra.mxu0 %v611
    %720 = vmatprep.subr.mxu0 %v614
    %721 = vmatpush1.msra.mxu0 %v613
    %722 = vmatprep.subr.mxu0 %v616
    %723 = vmatpush1.msra.mxu0 %v615
    %724 = vmatprep.subr.mxu0 %v618
    %725 = vmatpush1.msra.mxu0 %v617
    %726 = vmatprep.subr.mxu0 %v620
    %727 = vmatpush1.msra.mxu0 %v619
    %728 = vmatprep.subr.mxu0 %v622
    %729 = vmatpush1.msra.mxu0 %v621
    %730 = vmatprep.subr.mxu0 %v624
    %731 = vmatpush1.msra.mxu0 %v623
    %732 = vmatprep.subr.mxu0 %v626
    %733 = vmatpush1.msra.mxu0 %v625
    %734 = vmatprep.subr.mxu0 %v628
    %735 = vmatpush1.msra.mxu0 %v627
    %736 = vmatprep.subr.mxu0 %v630
    %737 = vmatpush1.msra.mxu0 %v629
    %738 = vmatprep.subr.mxu0 %v632
    %739 = vmatpush1.msra.mxu0 %v631
    %740 = vmatprep.subr.mxu0 %v634
    %741 = vmatpush1.msra.mxu0 %v633
    %742 = vmatprep.subr.mxu0 %v636
    %743 = vmatpush1.msra.mxu0 %v635
    %744 = vmatprep.subr.mxu0 %v638
    %745 = vmatpush1.msra.mxu0 %v637
    %746 = vmatprep.subr.mxu0 %v640
    %747 = vmatpush1.msra.mxu0 %v639
    %748 = vmatprep.subr.mxu0 %v642
    %749 = vmatpush1.msra.mxu0 %v641
    %750 = vmatprep.subr.mxu0 %v644
    %751 = vmatpush1.msra.mxu0 %v643
    %752 = vmatprep.subr.mxu0 %v646
    %753 = vmatpush1.msra.mxu0 %v645
    %754 = vmatprep.subr.mxu0 %v648
    %755 = vmatpush1.msra.mxu0 %v647
    %756 = vmatprep.subr.mxu0 %v650
    %757 = vmatpush1.msra.mxu0 %v649
    %758 = vmatprep.subr.mxu0 %v652
    %759 = vmatpush1.msra.mxu0 %v651
    %760 = vmatprep.subr.mxu0 %v654
    %761 = vmatpush1.msra.mxu0 %v653
    %762 = vmatprep.subr.mxu0 %v656
    %763 = vmatpush1.msra.mxu0 %v655
    %764 = vmatprep.subr.mxu0 %v658
    %765 = vmatpush1.msra.mxu0 %v657
    %766 = vmatprep.subr.mxu0 %v660
    %767 = vmatpush1.msra.mxu0 %v659
    %768 = vmatprep.mubr.f32.mxu0 %v589
    %769 = vmatmul.mubr.f32.gmra.mrb[0].mxu0 %v588
    %v770 = vpop.f32.mrb[0].mxu0
    %v771 = vadd.f32 %v697, %v770
    %v772 = vpop.f32.mrb[0].mxu0
    %v773 = vadd.f32 %v701, %v772
    %774 = vdwg.mxu0
    %775 = vmatprep.subr.mxu0 %v662
    %776 = vmatpush1.msra.mxu0 %v661
    %777 = vmatprep.subr.mxu0 %v664
    %778 = vmatpush1.msra.mxu0 %v663
    %779 = vmatprep.subr.mxu0 %v666
    %780 = vmatpush1.msra.mxu0 %v665
    %781 = vmatprep.subr.mxu0 %v668
    %782 = vmatpush1.msra.mxu0 %v667
    %783 = vmatprep.subr.mxu0 %v670
    %784 = vmatpush1.msra.mxu0 %v669
    %785 = vmatprep.subr.mxu0 %v672
    %786 = vmatpush1.msra.mxu0 %v671
    %787 = vmatprep.subr.mxu0 %v674
    %788 = vmatpush1.msra.mxu0 %v673
    %789 = vmatprep.subr.mxu0 %v676
    %790 = vmatpush1.msra.mxu0 %v675
    %791 = vmatprep.subr.mxu0 %v678
    %792 = vmatpush1.msra.mxu0 %v677
    %793 = vmatprep.subr.mxu0 %v680
    %794 = vmatpush1.msra.mxu0 %v679
    %795 = vmatprep.subr.mxu0 %v682
    %796 = vmatpush1.msra.mxu0 %v681
    %797 = vmatprep.subr.mxu0 %v684
    %798 = vmatpush1.msra.mxu0 %v683
    %799 = vmatprep.subr.mxu0 %v686
    %800 = vmatpush1.msra.mxu0 %v685
    %801 = vmatprep.subr.mxu0 %v688
    %802 = vmatpush1.msra.mxu0 %v687
    %803 = vmatprep.subr.mxu0 %v690
    %804 = vmatpush1.msra.mxu0 %v689
    %805 = vmatprep.subr.mxu0 %v692
    %806 = vmatpush1.msra.mxu0 %v691
    %807 = vmatprep.subr.mxu0 0.0
    %808 = vmatpush1.msra.mxu0 0.0
    %809 = vmatprep.subr.mxu0 0.0
    %810 = vmatpush1.msra.mxu0 0.0
    %811 = vmatprep.subr.mxu0 0.0
    %812 = vmatpush1.msra.mxu0 0.0
    %813 = vmatprep.subr.mxu0 0.0
    %814 = vmatpush1.msra.mxu0 0.0
    %815 = vmatprep.subr.mxu0 0.0
    %816 = vmatpush1.msra.mxu0 0.0
    %817 = vmatprep.subr.mxu0 0.0
    %818 = vmatpush1.msra.mxu0 0.0
    %819 = vmatprep.subr.mxu0 0.0
    %820 = vmatpush1.msra.mxu0 0.0
    %821 = vmatprep.subr.mxu0 0.0
    %822 = vmatpush1.msra.mxu0 0.0
    %823 = vmatprep.subr.mxu0 0.0
    %824 = vmatpush1.msra.mxu0 0.0
    %825 = vmatprep.subr.mxu0 0.0
    %826 = vmatpush1.msra.mxu0 0.0
    %827 = vmatprep.subr.mxu0 0.0
    %828 = vmatpush1.msra.mxu0 0.0
    %829 = vmatprep.subr.mxu0 0.0
    %830 = vmatpush1.msra.mxu0 0.0
    %831 = vmatprep.subr.mxu0 0.0
    %832 = vmatpush1.msra.mxu0 0.0
    %833 = vmatprep.subr.mxu0 0.0
    %834 = vmatpush1.msra.mxu0 0.0
    %835 = vmatprep.subr.mxu0 0.0
    %836 = vmatpush1.msra.mxu0 0.0
    %837 = vmatprep.subr.mxu0 0.0
    %838 = vmatpush1.msra.mxu0 0.0
    %839 = vmatprep.mubr.f32.mxu0 0.0
    %840 = vmatmul.mubr.f32.gmra.mrb[0].mxu0 %v590
    %v841 = vpop.f32.mrb[0].mxu0
    %v842 = vadd.f32 %v771, %v841
    %v843 = vpop.f32.mrb[0].mxu0
    %v844 = vadd.f32 %v773, %v843
    %845 = vdwg.mxu0
    %v846 = vmax.f32 %v842, 0.0
    %v847 = vmax.f32 %v844, 0.0
    %v848 = vld [vmem:[#allocation9] sm:$0xff]
    %v849 = vld [vmem:[#allocation9 + $0x8] sm:$0xff]
    %v850 = vld [vmem:[#allocation9 + $0x10] sm:$0xff]
    %v851 = vld [vmem:[#allocation9 + $0x18] sm:$0xff]
    %v852 = vld [vmem:[#allocation9 + $0x20] sm:$0xff]
    %v853 = vld [vmem:[#allocation9 + $0x28] sm:$0xff]
    %v854 = vld [vmem:[#allocation9 + $0x30] sm:$0xff]
    %v855 = vld [vmem:[#allocation9 + $0x38] sm:$0xff]
    %v856 = vld [vmem:[#allocation9 + $0x40] sm:$0xff]
    %v857 = vld [vmem:[#allocation9 + $0x48] sm:$0xff]
    %v858 = vld [vmem:[#allocation9 + $0x50] sm:$0xff]
    %v859 = vld [vmem:[#allocation9 + $0x58] sm:$0xff]
    %v860 = vld [vmem:[#allocation9 + $0x60] sm:$0xff]
    %v861 = vld [vmem:[#allocation9 + $0x68] sm:$0xff]
    %v862 = vld [vmem:[#allocation9 + $0x70] sm:$0xff]
    %v863 = vld [vmem:[#allocation9 + $0x78] sm:$0xff]
    %v864 = vld [vmem:[#allocation9 + $0x80] sm:$0xff]
    %v865 = vld [vmem:[#allocation9 + $0x88] sm:$0xff]
    %v866 = vld [vmem:[#allocation9 + $0x90] sm:$0xff]
    %v867 = vld [vmem:[#allocation9 + $0x98] sm:$0xff]
    %v868 = vld [vmem:[#allocation9 + $0xa0] sm:$0xff]
    %v869 = vld [vmem:[#allocation9 + $0xa8] sm:$0xff]
    %v870 = vld [vmem:[#allocation9 + $0xb0] sm:$0xff]
    %v871 = vld [vmem:[#allocation9 + $0xb8] sm:$0xff]
    %v872 = vld [vmem:[#allocation9 + $0xc0] sm:$0xff]
    %v873 = vld [vmem:[#allocation9 + $0xc8] sm:$0xff]
    %v874 = vld [vmem:[#allocation9 + $0xd0] sm:$0xff]
    %v875 = vld [vmem:[#allocation9 + $0xd8] sm:$0xff]
    %v876 = vld [vmem:[#allocation9 + $0xe0] sm:$0xff]
    %v877 = vld [vmem:[#allocation9 + $0xe8] sm:$0xff]
    %v878 = vld [vmem:[#allocation9 + $0xf0] sm:$0xff]
    %v879 = vld [vmem:[#allocation9 + $0xf8] sm:$0xff]
    %v880 = vld [vmem:[#allocation9 + $0x100] sm:$0xff]
    %v881 = vld [vmem:[#allocation9 + $0x108] sm:$0xff]
    %v882 = vld [vmem:[#allocation9 + $0x110] sm:$0xff]
    %v883 = vld [vmem:[#allocation9 + $0x118] sm:$0xff]
    %v884 = vld [vmem:[#allocation9 + $0x120] sm:$0xff]
    %v885 = vld [vmem:[#allocation9 + $0x128] sm:$0xff]
    %v886 = vld [vmem:[#allocation9 + $0x130] sm:$0xff]
    %v887 = vld [vmem:[#allocation9 + $0x138] sm:$0xff]
    %v888 = vld [vmem:[#allocation9 + $0x140] sm:$0xff]
    %v889 = vld [vmem:[#allocation9 + $0x148] sm:$0xff]
    %v890 = vld [vmem:[#allocation9 + $0x150] sm:$0xff]
    %v891 = vld [vmem:[#allocation9 + $0x158] sm:$0xff]
    %v892 = vld [vmem:[#allocation9 + $0x160] sm:$0xff]
    %v893 = vld [vmem:[#allocation9 + $0x168] sm:$0xff]
    %v894 = vld [vmem:[#allocation9 + $0x170] sm:$0xff]
    %v895 = vld [vmem:[#allocation9 + $0x178] sm:$0xff]
    %v896 = vld [vmem:[#allocation9 + $0x180] sm:$0xff]
    %v897 = vld [vmem:[#allocation9 + $0x188] sm:$0xff]
    %v898 = vld [vmem:[#allocation9 + $0x190] sm:$0xff]
    %v899 = vld [vmem:[#allocation9 + $0x198] sm:$0xff]
    %v900 = vld [vmem:[#allocation9 + $0x1a0] sm:$0xff]
    %v901 = vld [vmem:[#allocation9 + $0x1a8] sm:$0xff]
    %v902 = vld [vmem:[#allocation9 + $0x1b0] sm:$0xff]
    %v903 = vld [vmem:[#allocation9 + $0x1b8] sm:$0xff]
    %v904 = vld [vmem:[#allocation9 + $0x1c0] sm:$0xff]
    %v905 = vld [vmem:[#allocation9 + $0x1c8] sm:$0xff]
    %v906 = vld [vmem:[#allocation9 + $0x1d0] sm:$0xff]
    %v907 = vld [vmem:[#allocation9 + $0x1d8] sm:$0xff]
    %v908 = vld [vmem:[#allocation9 + $0x1e0] sm:$0xff]
    %v909 = vld [vmem:[#allocation9 + $0x1e8] sm:$0xff]
    %v910 = vld [vmem:[#allocation9 + $0x1f0] sm:$0xff]
    %v911 = vld [vmem:[#allocation9 + $0x1f8] sm:$0xff]
    %s912 = scalar_lea.vmem [#allocation6], 768
    %v913 = vld [vmem:[%s912] sm:$0xff]
    %v914 = vld [vmem:[%s912 + $0x8] sm:$0xff]
    %v915 = vld [vmem:[%s912 + $0x10] sm:$0xff]
    %v916 = vld [vmem:[%s912 + $0x18] sm:$0xff]
    %v917 = vld [vmem:[%s912 + $0x20] sm:$0xff]
    %v918 = vld [vmem:[%s912 + $0x28] sm:$0xff]
    %v919 = vld [vmem:[%s912 + $0x30] sm:$0xff]
    %v920 = vld [vmem:[%s912 + $0x38] sm:$0xff]
    %v921 = vld [vmem:[%s912 + $0x40] sm:$0xff]
    %v922 = vld [vmem:[%s912 + $0x48] sm:$0xff]
    %v923 = vld [vmem:[%s912 + $0x50] sm:$0xff]
    %v924 = vld [vmem:[%s912 + $0x58] sm:$0xff]
    %v925 = vld [vmem:[%s912 + $0x60] sm:$0xff]
    %v926 = vld [vmem:[%s912 + $0x68] sm:$0xff]
    %v927 = vld [vmem:[%s912 + $0x70] sm:$0xff]
    %v928 = vld [vmem:[%s912 + $0x78] sm:$0xff]
    %v929 = vld [vmem:[%s912 + $0x80] sm:$0xff]
    %v930 = vld [vmem:[%s912 + $0x88] sm:$0xff]
    %v931 = vld [vmem:[%s912 + $0x90] sm:$0xff]
    %v932 = vld [vmem:[%s912 + $0x98] sm:$0xff]
    %v933 = vld [vmem:[%s912 + $0xa0] sm:$0xff]
    %v934 = vld [vmem:[%s912 + $0xa8] sm:$0xff]
    %v935 = vld [vmem:[%s912 + $0xb0] sm:$0xff]
    %v936 = vld [vmem:[%s912 + $0xb8] sm:$0xff]
    %v937 = vld [vmem:[%s912 + $0xc0] sm:$0xff]
    %v938 = vld [vmem:[%s912 + $0xc8] sm:$0xff]
    %v939 = vld [vmem:[%s912 + $0xd0] sm:$0xff]
    %v940 = vld [vmem:[%s912 + $0xd8] sm:$0xff]
    %v941 = vld [vmem:[%s912 + $0xe0] sm:$0xff]
    %v942 = vld [vmem:[%s912 + $0xe8] sm:$0xff]
    %v943 = vld [vmem:[%s912 + $0xf0] sm:$0xff]
    %v944 = vld [vmem:[%s912 + $0xf8] sm:$0xff]
    %v945 = vld [vmem:[%s912 + $0x100] sm:$0xff]
    %v946 = vld [vmem:[%s912 + $0x108] sm:$0xff]
    %v947 = vld [vmem:[%s912 + $0x110] sm:$0xff]
    %v948 = vld [vmem:[%s912 + $0x118] sm:$0xff]
    %v949 = vld [vmem:[%s912 + $0x120] sm:$0xff]
    %v950 = vld [vmem:[%s912 + $0x128] sm:$0xff]
    %v951 = vld [vmem:[%s912 + $0x130] sm:$0xff]
    %v952 = vld [vmem:[%s912 + $0x138] sm:$0xff]
    %v953 = vld [vmem:[%s912 + $0x140] sm:$0xff]
    %v954 = vld [vmem:[%s912 + $0x148] sm:$0xff]
    %v955 = vld [vmem:[%s912 + $0x150] sm:$0xff]
    %v956 = vld [vmem:[%s912 + $0x158] sm:$0xff]
    %v957 = vld [vmem:[%s912 + $0x160] sm:$0xff]
    %v958 = vld [vmem:[%s912 + $0x168] sm:$0xff]
    %v959 = vld [vmem:[%s912 + $0x170] sm:$0xff]
    %v960 = vld [vmem:[%s912 + $0x178] sm:$0xff]
    %v961 = vld [vmem:[%s912 + $0x180] sm:$0xff]
    %v962 = vld [vmem:[%s912 + $0x188] sm:$0xff]
    %v963 = vld [vmem:[%s912 + $0x190] sm:$0xff]
    %v964 = vld [vmem:[%s912 + $0x198] sm:$0xff]
    %v965 = vld [vmem:[%s912 + $0x1a0] sm:$0xff]
    %v966 = vld [vmem:[%s912 + $0x1a8] sm:$0xff]
    %v967 = vld [vmem:[%s912 + $0x1b0] sm:$0xff]
    %v968 = vld [vmem:[%s912 + $0x1b8] sm:$0xff]
    %v969 = vld [vmem:[%s912 + $0x1c0] sm:$0xff]
    %v970 = vld [vmem:[%s912 + $0x1c8] sm:$0xff]
    %v971 = vld [vmem:[%s912 + $0x1d0] sm:$0xff]
    %v972 = vld [vmem:[%s912 + $0x1d8] sm:$0xff]
    %v973 = vld [vmem:[%s912 + $0x1e0] sm:$0xff]
    %v974 = vld [vmem:[%s912 + $0x1e8] sm:$0xff]
    %v975 = vld [vmem:[%s912 + $0x1f0] sm:$0xff]
    %v976 = vld [vmem:[%s912 + $0x1f8] sm:$0xff]
    %v977 = vld [vmem:[%s912 + $0x200] sm:$0xff]
    %v978 = vld [vmem:[%s912 + $0x208] sm:$0xff]
    %v979 = vld [vmem:[%s912 + $0x210] sm:$0xff]
    %v980 = vld [vmem:[%s912 + $0x218] sm:$0xff]
    %v981 = vld [vmem:[%s912 + $0x220] sm:$0xff]
    %v982 = vld [vmem:[%s912 + $0x228] sm:$0xff]
    %v983 = vld [vmem:[%s912 + $0x230] sm:$0xff]
    %v984 = vld [vmem:[%s912 + $0x238] sm:$0xff]
    %v985 = vld [vmem:[%s912 + $0x240] sm:$0xff]
    %v986 = vld [vmem:[%s912 + $0x248] sm:$0xff]
    %v987 = vld [vmem:[%s912 + $0x250] sm:$0xff]
    %v988 = vld [vmem:[%s912 + $0x258] sm:$0xff]
    %v989 = vld [vmem:[%s912 + $0x260] sm:$0xff]
    %v990 = vld [vmem:[%s912 + $0x268] sm:$0xff]
    %v991 = vld [vmem:[%s912 + $0x270] sm:$0xff]
    %v992 = vld [vmem:[%s912 + $0x278] sm:$0xff]
    %v993 = vld [vmem:[%s912 + $0x280] sm:$0xff]
    %v994 = vld [vmem:[%s912 + $0x288] sm:$0xff]
    %v995 = vld [vmem:[%s912 + $0x290] sm:$0xff]
    %v996 = vld [vmem:[%s912 + $0x298] sm:$0xff]
    %v997 = vld [vmem:[%s912 + $0x2a0] sm:$0xff]
    %v998 = vld [vmem:[%s912 + $0x2a8] sm:$0xff]
    %v999 = vld [vmem:[%s912 + $0x2b0] sm:$0xff]
    %v1000 = vld [vmem:[%s912 + $0x2b8] sm:$0xff]
    %v1001 = vld [vmem:[%s912 + $0x2c0] sm:$0xff]
    %v1002 = vld [vmem:[%s912 + $0x2c8] sm:$0xff]
    %v1003 = vld [vmem:[%s912 + $0x2d0] sm:$0xff]
    %v1004 = vld [vmem:[%s912 + $0x2d8] sm:$0xff]
    %v1005 = vld [vmem:[%s912 + $0x2e0] sm:$0xff]
    %v1006 = vld [vmem:[%s912 + $0x2e8] sm:$0xff]
    %v1007 = vld [vmem:[%s912 + $0x2f0] sm:$0xff]
    %v1008 = vld [vmem:[%s912 + $0x2f8] sm:$0xff]
    %1009 = vmatprep.subr.mxu0 %v914
    %1010 = vmatpush1.msra.mxu0 %v913
    %1011 = vmatprep.subr.mxu0 %v916
    %1012 = vmatpush1.msra.mxu0 %v915
    %1013 = vmatprep.subr.mxu0 %v918
    %1014 = vmatpush1.msra.mxu0 %v917
    %1015 = vmatprep.subr.mxu0 %v920
    %1016 = vmatpush1.msra.mxu0 %v919
    %1017 = vmatprep.subr.mxu0 %v922
    %1018 = vmatpush1.msra.mxu0 %v921
    %1019 = vmatprep.subr.mxu0 %v924
    %1020 = vmatpush1.msra.mxu0 %v923
    %1021 = vmatprep.subr.mxu0 %v926
    %1022 = vmatpush1.msra.mxu0 %v925
    %1023 = vmatprep.subr.mxu0 %v928
    %1024 = vmatpush1.msra.mxu0 %v927
    %1025 = vmatprep.subr.mxu0 %v930
    %1026 = vmatpush1.msra.mxu0 %v929
    %1027 = vmatprep.subr.mxu0 %v932
    %1028 = vmatpush1.msra.mxu0 %v931
    %1029 = vmatprep.subr.mxu0 %v934
    %1030 = vmatpush1.msra.mxu0 %v933
    %1031 = vmatprep.subr.mxu0 %v936
    %1032 = vmatpush1.msra.mxu0 %v935
    %1033 = vmatprep.subr.mxu0 %v938
    %1034 = vmatpush1.msra.mxu0 %v937
    %1035 = vmatprep.subr.mxu0 %v940
    %1036 = vmatpush1.msra.mxu0 %v939
    %1037 = vmatprep.subr.mxu0 %v942
    %1038 = vmatpush1.msra.mxu0 %v941
    %1039 = vmatprep.subr.mxu0 %v944
    %1040 = vmatpush1.msra.mxu0 %v943
    %1041 = vmatprep.subr.mxu0 %v946
    %1042 = vmatpush1.msra.mxu0 %v945
    %1043 = vmatprep.subr.mxu0 %v948
    %1044 = vmatpush1.msra.mxu0 %v947
    %1045 = vmatprep.subr.mxu0 %v950
    %1046 = vmatpush1.msra.mxu0 %v949
    %1047 = vmatprep.subr.mxu0 %v952
    %1048 = vmatpush1.msra.mxu0 %v951
    %1049 = vmatprep.subr.mxu0 %v954
    %1050 = vmatpush1.msra.mxu0 %v953
    %1051 = vmatprep.subr.mxu0 %v956
    %1052 = vmatpush1.msra.mxu0 %v955
    %1053 = vmatprep.subr.mxu0 %v958
    %1054 = vmatpush1.msra.mxu0 %v957
    %1055 = vmatprep.subr.mxu0 %v960
    %1056 = vmatpush1.msra.mxu0 %v959
    %1057 = vmatprep.subr.mxu0 %v962
    %1058 = vmatpush1.msra.mxu0 %v961
    %1059 = vmatprep.subr.mxu0 %v964
    %1060 = vmatpush1.msra.mxu0 %v963
    %1061 = vmatprep.subr.mxu0 %v966
    %1062 = vmatpush1.msra.mxu0 %v965
    %1063 = vmatprep.subr.mxu0 %v968
    %1064 = vmatpush1.msra.mxu0 %v967
    %1065 = vmatprep.subr.mxu0 %v970
    %1066 = vmatpush1.msra.mxu0 %v969
    %1067 = vmatprep.subr.mxu0 %v972
    %1068 = vmatpush1.msra.mxu0 %v971
    %1069 = vmatprep.subr.mxu0 %v974
    %1070 = vmatpush1.msra.mxu0 %v973
    %1071 = vmatprep.subr.mxu0 %v976
    %1072 = vmatpush1.msra.mxu0 %v975
    %1073 = vmatprep.mubr.f32.mxu0 %v589
    %1074 = vmatmul.mubr.f32.gmra.mrb[0].mxu0 %v588
    %v1075 = vpop.f32.mrb[0].mxu0
    %v1076 = vadd.f32 %v697, %v1075
    %v1077 = vpop.f32.mrb[0].mxu0
    %v1078 = vadd.f32 %v701, %v1077
    %1079 = vdwg.mxu0
    %1080 = vmatprep.subr.mxu0 %v978
    %1081 = vmatpush1.msra.mxu0 %v977
    %1082 = vmatprep.subr.mxu0 %v980
    %1083 = vmatpush1.msra.mxu0 %v979
    %1084 = vmatprep.subr.mxu0 %v982
    %1085 = vmatpush1.msra.mxu0 %v981
    %1086 = vmatprep.subr.mxu0 %v984
    %1087 = vmatpush1.msra.mxu0 %v983
    %1088 = vmatprep.subr.mxu0 %v986
    %1089 = vmatpush1.msra.mxu0 %v985
    %1090 = vmatprep.subr.mxu0 %v988
    %1091 = vmatpush1.msra.mxu0 %v987
    %1092 = vmatprep.subr.mxu0 %v990
    %1093 = vmatpush1.msra.mxu0 %v989
    %1094 = vmatprep.subr.mxu0 %v992
    %1095 = vmatpush1.msra.mxu0 %v991
    %1096 = vmatprep.subr.mxu0 %v994
    %1097 = vmatpush1.msra.mxu0 %v993
    %1098 = vmatprep.subr.mxu0 %v996
    %1099 = vmatpush1.msra.mxu0 %v995
    %1100 = vmatprep.subr.mxu0 %v998
    %1101 = vmatpush1.msra.mxu0 %v997
    %1102 = vmatprep.subr.mxu0 %v1000
    %1103 = vmatpush1.msra.mxu0 %v999
    %1104 = vmatprep.subr.mxu0 %v1002
    %1105 = vmatpush1.msra.mxu0 %v1001
    %1106 = vmatprep.subr.mxu0 %v1004
    %1107 = vmatpush1.msra.mxu0 %v1003
    %1108 = vmatprep.subr.mxu0 %v1006
    %1109 = vmatpush1.msra.mxu0 %v1005
    %1110 = vmatprep.subr.mxu0 %v1008
    %1111 = vmatpush1.msra.mxu0 %v1007
    %1112 = vmatprep.subr.mxu0 0.0
    %1113 = vmatpush1.msra.mxu0 0.0
    %1114 = vmatprep.subr.mxu0 0.0
    %1115 = vmatpush1.msra.mxu0 0.0
    %1116 = vmatprep.subr.mxu0 0.0
    %1117 = vmatpush1.msra.mxu0 0.0
    %1118 = vmatprep.subr.mxu0 0.0
    %1119 = vmatpush1.msra.mxu0 0.0
    %1120 = vmatprep.subr.mxu0 0.0
    %1121 = vmatpush1.msra.mxu0 0.0
    %1122 = vmatprep.subr.mxu0 0.0
    %1123 = vmatpush1.msra.mxu0 0.0
    %1124 = vmatprep.subr.mxu0 0.0
    %1125 = vmatpush1.msra.mxu0 0.0
    %1126 = vmatprep.subr.mxu0 0.0
    %1127 = vmatpush1.msra.mxu0 0.0
    %1128 = vmatprep.subr.mxu0 0.0
    %1129 = vmatpush1.msra.mxu0 0.0
    %1130 = vmatprep.subr.mxu0 0.0
    %1131 = vmatpush1.msra.mxu0 0.0
    %1132 = vmatprep.subr.mxu0 0.0
    %1133 = vmatpush1.msra.mxu0 0.0
    %1134 = vmatprep.subr.mxu0 0.0
    %1135 = vmatpush1.msra.mxu0 0.0
    %1136 = vmatprep.subr.mxu0 0.0
    %1137 = vmatpush1.msra.mxu0 0.0
    %1138 = vmatprep.subr.mxu0 0.0
    %1139 = vmatpush1.msra.mxu0 0.0
    %1140 = vmatprep.subr.mxu0 0.0
    %1141 = vmatpush1.msra.mxu0 0.0
    %1142 = vmatprep.subr.mxu0 0.0
    %1143 = vmatpush1.msra.mxu0 0.0
    %1144 = vmatprep.mubr.f32.mxu0 0.0
    %1145 = vmatmul.mubr.f32.gmra.mrb[0].mxu0 %v590
    %v1146 = vpop.f32.mrb[0].mxu0
    %v1147 = vadd.f32 %v1076, %v1146
    %v1148 = vpop.f32.mrb[0].mxu0
    %v1149 = vadd.f32 %v1078, %v1148
    %1150 = vdwg.mxu0
    %v1151 = vmax.f32 %v1147, 0.0
    %v1152 = vmax.f32 %v1149, 0.0
    %s1153 = scalar_lea.vmem [#allocation9], 512
    %v1154 = vld [vmem:[%s1153] sm:$0xff]
    %v1155 = vld [vmem:[%s1153 + $0x8] sm:$0xff]
    %v1156 = vld [vmem:[%s1153 + $0x10] sm:$0xff]
    %v1157 = vld [vmem:[%s1153 + $0x18] sm:$0xff]
    %v1158 = vld [vmem:[%s1153 + $0x20] sm:$0xff]
    %v1159 = vld [vmem:[%s1153 + $0x28] sm:$0xff]
    %v1160 = vld [vmem:[%s1153 + $0x30] sm:$0xff]
    %v1161 = vld [vmem:[%s1153 + $0x38] sm:$0xff]
    %v1162 = vld [vmem:[%s1153 + $0x40] sm:$0xff]
    %v1163 = vld [vmem:[%s1153 + $0x48] sm:$0xff]
    %v1164 = vld [vmem:[%s1153 + $0x50] sm:$0xff]
    %v1165 = vld [vmem:[%s1153 + $0x58] sm:$0xff]
    %v1166 = vld [vmem:[%s1153 + $0x60] sm:$0xff]
    %v1167 = vld [vmem:[%s1153 + $0x68] sm:$0xff]
    %v1168 = vld [vmem:[%s1153 + $0x70] sm:$0xff]
    %v1169 = vld [vmem:[%s1153 + $0x78] sm:$0xff]
    %v1170 = vld [vmem:[%s1153 + $0x80] sm:$0xff]
    %v1171 = vld [vmem:[%s1153 + $0x88] sm:$0xff]
    %v1172 = vld [vmem:[%s1153 + $0x90] sm:$0xff]
    %v1173 = vld [vmem:[%s1153 + $0x98] sm:$0xff]
    %v1174 = vld [vmem:[%s1153 + $0xa0] sm:$0xff]
    %v1175 = vld [vmem:[%s1153 + $0xa8] sm:$0xff]
    %v1176 = vld [vmem:[%s1153 + $0xb0] sm:$0xff]
    %v1177 = vld [vmem:[%s1153 + $0xb8] sm:$0xff]
    %v1178 = vld [vmem:[%s1153 + $0xc0] sm:$0xff]
    %v1179 = vld [vmem:[%s1153 + $0xc8] sm:$0xff]
    %v1180 = vld [vmem:[%s1153 + $0xd0] sm:$0xff]
    %v1181 = vld [vmem:[%s1153 + $0xd8] sm:$0xff]
    %v1182 = vld [vmem:[%s1153 + $0xe0] sm:$0xff]
    %v1183 = vld [vmem:[%s1153 + $0xe8] sm:$0xff]
    %v1184 = vld [vmem:[%s1153 + $0xf0] sm:$0xff]
    %v1185 = vld [vmem:[%s1153 + $0xf8] sm:$0xff]
    %v1186 = vld [vmem:[%s1153 + $0x100] sm:$0xff]
    %v1187 = vld [vmem:[%s1153 + $0x108] sm:$0xff]
    %v1188 = vld [vmem:[%s1153 + $0x110] sm:$0xff]
    %v1189 = vld [vmem:[%s1153 + $0x118] sm:$0xff]
    %v1190 = vld [vmem:[%s1153 + $0x120] sm:$0xff]
    %v1191 = vld [vmem:[%s1153 + $0x128] sm:$0xff]
    %v1192 = vld [vmem:[%s1153 + $0x130] sm:$0xff]
    %v1193 = vld [vmem:[%s1153 + $0x138] sm:$0xff]
    %v1194 = vld [vmem:[%s1153 + $0x140] sm:$0xff]
    %v1195 = vld [vmem:[%s1153 + $0x148] sm:$0xff]
    %v1196 = vld [vmem:[%s1153 + $0x150] sm:$0xff]
    %v1197 = vld [vmem:[%s1153 + $0x158] sm:$0xff]
    %v1198 = vld [vmem:[%s1153 + $0x160] sm:$0xff]
    %v1199 = vld [vmem:[%s1153 + $0x168] sm:$0xff]
    %v1200 = vld [vmem:[%s1153 + $0x170] sm:$0xff]
    %v1201 = vld [vmem:[%s1153 + $0x178] sm:$0xff]
    %v1202 = vld [vmem:[%s1153 + $0x180] sm:$0xff]
    %v1203 = vld [vmem:[%s1153 + $0x188] sm:$0xff]
    %v1204 = vld [vmem:[%s1153 + $0x190] sm:$0xff]
    %v1205 = vld [vmem:[%s1153 + $0x198] sm:$0xff]
    %v1206 = vld [vmem:[%s1153 + $0x1a0] sm:$0xff]
    %v1207 = vld [vmem:[%s1153 + $0x1a8] sm:$0xff]
    %v1208 = vld [vmem:[%s1153 + $0x1b0] sm:$0xff]
    %v1209 = vld [vmem:[%s1153 + $0x1b8] sm:$0xff]
    %v1210 = vld [vmem:[%s1153 + $0x1c0] sm:$0xff]
    %v1211 = vld [vmem:[%s1153 + $0x1c8] sm:$0xff]
    %v1212 = vld [vmem:[%s1153 + $0x1d0] sm:$0xff]
    %v1213 = vld [vmem:[%s1153 + $0x1d8] sm:$0xff]
    %v1214 = vld [vmem:[%s1153 + $0x1e0] sm:$0xff]
    %v1215 = vld [vmem:[%s1153 + $0x1e8] sm:$0xff]
    %v1216 = vld [vmem:[%s1153 + $0x1f0] sm:$0xff]
    %v1217 = vld [vmem:[%s1153 + $0x1f8] sm:$0xff]
    %1218 = vmatprep.subr.mxu0 %v1155
    %1219 = vmatpush1.msra.mxu0 %v1154
    %1220 = vmatprep.subr.mxu0 %v1157
    %1221 = vmatpush1.msra.mxu0 %v1156
    %1222 = vmatprep.subr.mxu0 %v1159
    %1223 = vmatpush1.msra.mxu0 %v1158
    %1224 = vmatprep.subr.mxu0 %v1161
    %1225 = vmatpush1.msra.mxu0 %v1160
    %1226 = vmatprep.subr.mxu0 %v1163
    %1227 = vmatpush1.msra.mxu0 %v1162
    %1228 = vmatprep.subr.mxu0 %v1165
    %1229 = vmatpush1.msra.mxu0 %v1164
    %1230 = vmatprep.subr.mxu0 %v1167
    %1231 = vmatpush1.msra.mxu0 %v1166
    %1232 = vmatprep.subr.mxu0 %v1169
    %1233 = vmatpush1.msra.mxu0 %v1168
    %1234 = vmatprep.subr.mxu0 %v1171
    %1235 = vmatpush1.msra.mxu0 %v1170
    %1236 = vmatprep.subr.mxu0 %v1173
    %1237 = vmatpush1.msra.mxu0 %v1172
    %1238 = vmatprep.subr.mxu0 %v1175
    %1239 = vmatpush1.msra.mxu0 %v1174
    %1240 = vmatprep.subr.mxu0 %v1177
    %1241 = vmatpush1.msra.mxu0 %v1176
    %1242 = vmatprep.subr.mxu0 %v1179
    %1243 = vmatpush1.msra.mxu0 %v1178
    %1244 = vmatprep.subr.mxu0 %v1181
    %1245 = vmatpush1.msra.mxu0 %v1180
    %1246 = vmatprep.subr.mxu0 %v1183
    %1247 = vmatpush1.msra.mxu0 %v1182
    %1248 = vmatprep.subr.mxu0 %v1185
    %1249 = vmatpush1.msra.mxu0 %v1184
    %1250 = vmatprep.subr.mxu0 %v1187
    %1251 = vmatpush1.msra.mxu0 %v1186
    %1252 = vmatprep.subr.mxu0 %v1189
    %1253 = vmatpush1.msra.mxu0 %v1188
    %1254 = vmatprep.subr.mxu0 %v1191
    %1255 = vmatpush1.msra.mxu0 %v1190
    %1256 = vmatprep.subr.mxu0 %v1193
    %1257 = vmatpush1.msra.mxu0 %v1192
    %1258 = vmatprep.subr.mxu0 %v1195
    %1259 = vmatpush1.msra.mxu0 %v1194
    %1260 = vmatprep.subr.mxu0 %v1197
    %1261 = vmatpush1.msra.mxu0 %v1196
    %1262 = vmatprep.subr.mxu0 %v1199
    %1263 = vmatpush1.msra.mxu0 %v1198
    %1264 = vmatprep.subr.mxu0 %v1201
    %1265 = vmatpush1.msra.mxu0 %v1200
    %1266 = vmatprep.subr.mxu0 %v1203
    %1267 = vmatpush1.msra.mxu0 %v1202
    %1268 = vmatprep.subr.mxu0 %v1205
    %1269 = vmatpush1.msra.mxu0 %v1204
    %1270 = vmatprep.subr.mxu0 %v1207
    %1271 = vmatpush1.msra.mxu0 %v1206
    %1272 = vmatprep.subr.mxu0 %v1209
    %1273 = vmatpush1.msra.mxu0 %v1208
    %1274 = vmatprep.subr.mxu0 %v1211
    %1275 = vmatpush1.msra.mxu0 %v1210
    %1276 = vmatprep.subr.mxu0 %v1213
    %1277 = vmatpush1.msra.mxu0 %v1212
    %1278 = vmatprep.subr.mxu0 %v1215
    %1279 = vmatpush1.msra.mxu0 %v1214
    %1280 = vmatprep.subr.mxu0 %v1217
    %1281 = vmatpush1.msra.mxu0 %v1216
    %1282 = vmatprep.mubr.f32.mxu0 %v1152
    %1283 = vmatmul.mubr.f32.gmra.mrb[0].mxu0 %v1151
    %v1284 = vpop.f32.mrb[0].mxu0
    %v1285 = vadd.f32 0.0, %v1284
    %v1286 = vpop.f32.mrb[0].mxu0
    %v1287 = vadd.f32 0.0, %v1286
    %1288 = vdwg.mxu0
    %1289 = vmatprep.subr.mxu0 %v849
    %1290 = vmatpush1.msra.mxu0 %v848
    %1291 = vmatprep.subr.mxu0 %v851
    %1292 = vmatpush1.msra.mxu0 %v850
    %1293 = vmatprep.subr.mxu0 %v853
    %1294 = vmatpush1.msra.mxu0 %v852
    %1295 = vmatprep.subr.mxu0 %v855
    %1296 = vmatpush1.msra.mxu0 %v854
    %1297 = vmatprep.subr.mxu0 %v857
    %1298 = vmatpush1.msra.mxu0 %v856
    %1299 = vmatprep.subr.mxu0 %v859
    %1300 = vmatpush1.msra.mxu0 %v858
    %1301 = vmatprep.subr.mxu0 %v861
    %1302 = vmatpush1.msra.mxu0 %v860
    %1303 = vmatprep.subr.mxu0 %v863
    %1304 = vmatpush1.msra.mxu0 %v862
    %1305 = vmatprep.subr.mxu0 %v865
    %1306 = vmatpush1.msra.mxu0 %v864
    %1307 = vmatprep.subr.mxu0 %v867
    %1308 = vmatpush1.msra.mxu0 %v866
    %1309 = vmatprep.subr.mxu0 %v869
    %1310 = vmatpush1.msra.mxu0 %v868
    %1311 = vmatprep.subr.mxu0 %v871
    %1312 = vmatpush1.msra.mxu0 %v870
    %1313 = vmatprep.subr.mxu0 %v873
    %1314 = vmatpush1.msra.mxu0 %v872
    %1315 = vmatprep.subr.mxu0 %v875
    %1316 = vmatpush1.msra.mxu0 %v874
    %1317 = vmatprep.subr.mxu0 %v877
    %1318 = vmatpush1.msra.mxu0 %v876
    %1319 = vmatprep.subr.mxu0 %v879
    %1320 = vmatpush1.msra.mxu0 %v878
    %1321 = vmatprep.subr.mxu0 %v881
    %1322 = vmatpush1.msra.mxu0 %v880
    %1323 = vmatprep.subr.mxu0 %v883
    %1324 = vmatpush1.msra.mxu0 %v882
    %1325 = vmatprep.subr.mxu0 %v885
    %1326 = vmatpush1.msra.mxu0 %v884
    %1327 = vmatprep.subr.mxu0 %v887
    %1328 = vmatpush1.msra.mxu0 %v886
    %1329 = vmatprep.subr.mxu0 %v889
    %1330 = vmatpush1.msra.mxu0 %v888
    %1331 = vmatprep.subr.mxu0 %v891
    %1332 = vmatpush1.msra.mxu0 %v890
    %1333 = vmatprep.subr.mxu0 %v893
    %1334 = vmatpush1.msra.mxu0 %v892
    %1335 = vmatprep.subr.mxu0 %v895
    %1336 = vmatpush1.msra.mxu0 %v894
    %1337 = vmatprep.subr.mxu0 %v897
    %1338 = vmatpush1.msra.mxu0 %v896
    %1339 = vmatprep.subr.mxu0 %v899
    %1340 = vmatpush1.msra.mxu0 %v898
    %1341 = vmatprep.subr.mxu0 %v901
    %1342 = vmatpush1.msra.mxu0 %v900
    %1343 = vmatprep.subr.mxu0 %v903
    %1344 = vmatpush1.msra.mxu0 %v902
    %1345 = vmatprep.subr.mxu0 %v905
    %1346 = vmatpush1.msra.mxu0 %v904
    %1347 = vmatprep.subr.mxu0 %v907
    %1348 = vmatpush1.msra.mxu0 %v906
    %1349 = vmatprep.subr.mxu0 %v909
    %1350 = vmatpush1.msra.mxu0 %v908
    %1351 = vmatprep.subr.mxu0 %v911
    %1352 = vmatpush1.msra.mxu0 %v910
    %1353 = vmatprep.mubr.f32.mxu0 %v847
    %1354 = vmatmul.mubr.f32.gmra.mrb[0].mxu0 %v846
    %v1355 = vpop.f32.mrb[0].mxu0
    %v1356 = vadd.f32 %v1285, %v1355
    %v1357 = vpop.f32.mrb[0].mxu0
    %v1358 = vadd.f32 %v1287, %v1357
    %1359 = vdwg.mxu0
    %s1360 = scalar_lea.vmem [#allocation6], 1536
    %v1361 = vld [vmem:[%s1360] sm:$0xff]
    %v1362 = vld [vmem:[%s1360 + $0x8] sm:$0xff]
    %v1363 = vld [vmem:[%s1360 + $0x10] sm:$0xff]
    %v1364 = vld [vmem:[%s1360 + $0x18] sm:$0xff]
    %v1365 = vld [vmem:[%s1360 + $0x20] sm:$0xff]
    %v1366 = vld [vmem:[%s1360 + $0x28] sm:$0xff]
    %v1367 = vld [vmem:[%s1360 + $0x30] sm:$0xff]
    %v1368 = vld [vmem:[%s1360 + $0x38] sm:$0xff]
    %v1369 = vld [vmem:[%s1360 + $0x40] sm:$0xff]
    %v1370 = vld [vmem:[%s1360 + $0x48] sm:$0xff]
    %v1371 = vld [vmem:[%s1360 + $0x50] sm:$0xff]
    %v1372 = vld [vmem:[%s1360 + $0x58] sm:$0xff]
    %v1373 = vld [vmem:[%s1360 + $0x60] sm:$0xff]
    %v1374 = vld [vmem:[%s1360 + $0x68] sm:$0xff]
    %v1375 = vld [vmem:[%s1360 + $0x70] sm:$0xff]
    %v1376 = vld [vmem:[%s1360 + $0x78] sm:$0xff]
    %v1377 = vld [vmem:[%s1360 + $0x80] sm:$0xff]
    %v1378 = vld [vmem:[%s1360 + $0x88] sm:$0xff]
    %v1379 = vld [vmem:[%s1360 + $0x90] sm:$0xff]
    %v1380 = vld [vmem:[%s1360 + $0x98] sm:$0xff]
    %v1381 = vld [vmem:[%s1360 + $0xa0] sm:$0xff]
    %v1382 = vld [vmem:[%s1360 + $0xa8] sm:$0xff]
    %v1383 = vld [vmem:[%s1360 + $0xb0] sm:$0xff]
    %v1384 = vld [vmem:[%s1360 + $0xb8] sm:$0xff]
    %v1385 = vld [vmem:[%s1360 + $0xc0] sm:$0xff]
    %v1386 = vld [vmem:[%s1360 + $0xc8] sm:$0xff]
    %v1387 = vld [vmem:[%s1360 + $0xd0] sm:$0xff]
    %v1388 = vld [vmem:[%s1360 + $0xd8] sm:$0xff]
    %v1389 = vld [vmem:[%s1360 + $0xe0] sm:$0xff]
    %v1390 = vld [vmem:[%s1360 + $0xe8] sm:$0xff]
    %v1391 = vld [vmem:[%s1360 + $0xf0] sm:$0xff]
    %v1392 = vld [vmem:[%s1360 + $0xf8] sm:$0xff]
    %v1393 = vld [vmem:[%s1360 + $0x100] sm:$0xff]
    %v1394 = vld [vmem:[%s1360 + $0x108] sm:$0xff]
    %v1395 = vld [vmem:[%s1360 + $0x110] sm:$0xff]
    %v1396 = vld [vmem:[%s1360 + $0x118] sm:$0xff]
    %v1397 = vld [vmem:[%s1360 + $0x120] sm:$0xff]
    %v1398 = vld [vmem:[%s1360 + $0x128] sm:$0xff]
    %v1399 = vld [vmem:[%s1360 + $0x130] sm:$0xff]
    %v1400 = vld [vmem:[%s1360 + $0x138] sm:$0xff]
    %v1401 = vld [vmem:[%s1360 + $0x140] sm:$0xff]
    %v1402 = vld [vmem:[%s1360 + $0x148] sm:$0xff]
    %v1403 = vld [vmem:[%s1360 + $0x150] sm:$0xff]
    %v1404 = vld [vmem:[%s1360 + $0x158] sm:$0xff]
    %v1405 = vld [vmem:[%s1360 + $0x160] sm:$0xff]
    %v1406 = vld [vmem:[%s1360 + $0x168] sm:$0xff]
    %v1407 = vld [vmem:[%s1360 + $0x170] sm:$0xff]
    %v1408 = vld [vmem:[%s1360 + $0x178] sm:$0xff]
    %v1409 = vld [vmem:[%s1360 + $0x180] sm:$0xff]
    %v1410 = vld [vmem:[%s1360 + $0x188] sm:$0xff]
    %v1411 = vld [vmem:[%s1360 + $0x190] sm:$0xff]
    %v1412 = vld [vmem:[%s1360 + $0x198] sm:$0xff]
    %v1413 = vld [vmem:[%s1360 + $0x1a0] sm:$0xff]
    %v1414 = vld [vmem:[%s1360 + $0x1a8] sm:$0xff]
    %v1415 = vld [vmem:[%s1360 + $0x1b0] sm:$0xff]
    %v1416 = vld [vmem:[%s1360 + $0x1b8] sm:$0xff]
    %v1417 = vld [vmem:[%s1360 + $0x1c0] sm:$0xff]
    %v1418 = vld [vmem:[%s1360 + $0x1c8] sm:$0xff]
    %v1419 = vld [vmem:[%s1360 + $0x1d0] sm:$0xff]
    %v1420 = vld [vmem:[%s1360 + $0x1d8] sm:$0xff]
    %v1421 = vld [vmem:[%s1360 + $0x1e0] sm:$0xff]
    %v1422 = vld [vmem:[%s1360 + $0x1e8] sm:$0xff]
    %v1423 = vld [vmem:[%s1360 + $0x1f0] sm:$0xff]
    %v1424 = vld [vmem:[%s1360 + $0x1f8] sm:$0xff]
    %v1425 = vld [vmem:[%s1360 + $0x200] sm:$0xff]
    %v1426 = vld [vmem:[%s1360 + $0x208] sm:$0xff]
    %v1427 = vld [vmem:[%s1360 + $0x210] sm:$0xff]
    %v1428 = vld [vmem:[%s1360 + $0x218] sm:$0xff]
    %v1429 = vld [vmem:[%s1360 + $0x220] sm:$0xff]
    %v1430 = vld [vmem:[%s1360 + $0x228] sm:$0xff]
    %v1431 = vld [vmem:[%s1360 + $0x230] sm:$0xff]
    %v1432 = vld [vmem:[%s1360 + $0x238] sm:$0xff]
    %v1433 = vld [vmem:[%s1360 + $0x240] sm:$0xff]
    %v1434 = vld [vmem:[%s1360 + $0x248] sm:$0xff]
    %v1435 = vld [vmem:[%s1360 + $0x250] sm:$0xff]
    %v1436 = vld [vmem:[%s1360 + $0x258] sm:$0xff]
    %v1437 = vld [vmem:[%s1360 + $0x260] sm:$0xff]
    %v1438 = vld [vmem:[%s1360 + $0x268] sm:$0xff]
    %v1439 = vld [vmem:[%s1360 + $0x270] sm:$0xff]
    %v1440 = vld [vmem:[%s1360 + $0x278] sm:$0xff]
    %v1441 = vld [vmem:[%s1360 + $0x280] sm:$0xff]
    %v1442 = vld [vmem:[%s1360 + $0x288] sm:$0xff]
    %v1443 = vld [vmem:[%s1360 + $0x290] sm:$0xff]
    %v1444 = vld [vmem:[%s1360 + $0x298] sm:$0xff]
    %v1445 = vld [vmem:[%s1360 + $0x2a0] sm:$0xff]
    %v1446 = vld [vmem:[%s1360 + $0x2a8] sm:$0xff]
    %v1447 = vld [vmem:[%s1360 + $0x2b0] sm:$0xff]
    %v1448 = vld [vmem:[%s1360 + $0x2b8] sm:$0xff]
    %v1449 = vld [vmem:[%s1360 + $0x2c0] sm:$0xff]
    %v1450 = vld [vmem:[%s1360 + $0x2c8] sm:$0xff]
    %v1451 = vld [vmem:[%s1360 + $0x2d0] sm:$0xff]
    %v1452 = vld [vmem:[%s1360 + $0x2d8] sm:$0xff]
    %v1453 = vld [vmem:[%s1360 + $0x2e0] sm:$0xff]
    %v1454 = vld [vmem:[%s1360 + $0x2e8] sm:$0xff]
    %v1455 = vld [vmem:[%s1360 + $0x2f0] sm:$0xff]
    %v1456 = vld [vmem:[%s1360 + $0x2f8] sm:$0xff]
    %1457 = vmatprep.subr.mxu0 %v1362
    %1458 = vmatpush1.msra.mxu0 %v1361
    %1459 = vmatprep.subr.mxu0 %v1364
    %1460 = vmatpush1.msra.mxu0 %v1363
    %1461 = vmatprep.subr.mxu0 %v1366
    %1462 = vmatpush1.msra.mxu0 %v1365
    %1463 = vmatprep.subr.mxu0 %v1368
    %1464 = vmatpush1.msra.mxu0 %v1367
    %1465 = vmatprep.subr.mxu0 %v1370
    %1466 = vmatpush1.msra.mxu0 %v1369
    %1467 = vmatprep.subr.mxu0 %v1372
    %1468 = vmatpush1.msra.mxu0 %v1371
    %1469 = vmatprep.subr.mxu0 %v1374
    %1470 = vmatpush1.msra.mxu0 %v1373
    %1471 = vmatprep.subr.mxu0 %v1376
    %1472 = vmatpush1.msra.mxu0 %v1375
    %1473 = vmatprep.subr.mxu0 %v1378
    %1474 = vmatpush1.msra.mxu0 %v1377
    %1475 = vmatprep.subr.mxu0 %v1380
    %1476 = vmatpush1.msra.mxu0 %v1379
    %1477 = vmatprep.subr.mxu0 %v1382
    %1478 = vmatpush1.msra.mxu0 %v1381
    %1479 = vmatprep.subr.mxu0 %v1384
    %1480 = vmatpush1.msra.mxu0 %v1383
    %1481 = vmatprep.subr.mxu0 %v1386
    %1482 = vmatpush1.msra.mxu0 %v1385
    %1483 = vmatprep.subr.mxu0 %v1388
    %1484 = vmatpush1.msra.mxu0 %v1387
    %1485 = vmatprep.subr.mxu0 %v1390
    %1486 = vmatpush1.msra.mxu0 %v1389
    %1487 = vmatprep.subr.mxu0 %v1392
    %1488 = vmatpush1.msra.mxu0 %v1391
    %1489 = vmatprep.subr.mxu0 %v1394
    %1490 = vmatpush1.msra.mxu0 %v1393
    %1491 = vmatprep.subr.mxu0 %v1396
    %1492 = vmatpush1.msra.mxu0 %v1395
    %1493 = vmatprep.subr.mxu0 %v1398
    %1494 = vmatpush1.msra.mxu0 %v1397
    %1495 = vmatprep.subr.mxu0 %v1400
    %1496 = vmatpush1.msra.mxu0 %v1399
    %1497 = vmatprep.subr.mxu0 %v1402
    %1498 = vmatpush1.msra.mxu0 %v1401
    %1499 = vmatprep.subr.mxu0 %v1404
    %1500 = vmatpush1.msra.mxu0 %v1403
    %1501 = vmatprep.subr.mxu0 %v1406
    %1502 = vmatpush1.msra.mxu0 %v1405
    %1503 = vmatprep.subr.mxu0 %v1408
    %1504 = vmatpush1.msra.mxu0 %v1407
    %1505 = vmatprep.subr.mxu0 %v1410
    %1506 = vmatpush1.msra.mxu0 %v1409
    %1507 = vmatprep.subr.mxu0 %v1412
    %1508 = vmatpush1.msra.mxu0 %v1411
    %1509 = vmatprep.subr.mxu0 %v1414
    %1510 = vmatpush1.msra.mxu0 %v1413
    %1511 = vmatprep.subr.mxu0 %v1416
    %1512 = vmatpush1.msra.mxu0 %v1415
    %1513 = vmatprep.subr.mxu0 %v1418
    %1514 = vmatpush1.msra.mxu0 %v1417
    %1515 = vmatprep.subr.mxu0 %v1420
    %1516 = vmatpush1.msra.mxu0 %v1419
    %1517 = vmatprep.subr.mxu0 %v1422
    %1518 = vmatpush1.msra.mxu0 %v1421
    %1519 = vmatprep.subr.mxu0 %v1424
    %1520 = vmatpush1.msra.mxu0 %v1423
    %1521 = vmatprep.mubr.f32.mxu0 %v590
    %1522 = vmatmul.mubr.f32.gmra.mrb[0].mxu0 %v589
    %v1523 = vpop.f32.mrb[0].mxu0
    %v1524 = vadd.f32 %v697, %v1523
    %v1525 = vpop.f32.mrb[0].mxu0
    %v1526 = vadd.f32 %v701, %v1525
    %1527 = vdwg.mxu0
    %1528 = vmatprep.subr.mxu0 %v1426
    %1529 = vmatpush1.msra.mxu0 %v1425
    %1530 = vmatprep.subr.mxu0 %v1428
    %1531 = vmatpush1.msra.mxu0 %v1427
    %1532 = vmatprep.subr.mxu0 %v1430
    %1533 = vmatpush1.msra.mxu0 %v1429
    %1534 = vmatprep.subr.mxu0 %v1432
    %1535 = vmatpush1.msra.mxu0 %v1431
    %1536 = vmatprep.subr.mxu0 %v1434
    %1537 = vmatpush1.msra.mxu0 %v1433
    %1538 = vmatprep.subr.mxu0 %v1436
    %1539 = vmatpush1.msra.mxu0 %v1435
    %1540 = vmatprep.subr.mxu0 %v1438
    %1541 = vmatpush1.msra.mxu0 %v1437
    %1542 = vmatprep.subr.mxu0 %v1440
    %1543 = vmatpush1.msra.mxu0 %v1439
    %1544 = vmatprep.subr.mxu0 %v1442
    %1545 = vmatpush1.msra.mxu0 %v1441
    %1546 = vmatprep.subr.mxu0 %v1444
    %1547 = vmatpush1.msra.mxu0 %v1443
    %1548 = vmatprep.subr.mxu0 %v1446
    %1549 = vmatpush1.msra.mxu0 %v1445
    %1550 = vmatprep.subr.mxu0 %v1448
    %1551 = vmatpush1.msra.mxu0 %v1447
    %1552 = vmatprep.subr.mxu0 %v1450
    %1553 = vmatpush1.msra.mxu0 %v1449
    %1554 = vmatprep.subr.mxu0 %v1452
    %1555 = vmatpush1.msra.mxu0 %v1451
    %1556 = vmatprep.subr.mxu0 %v1454
    %1557 = vmatpush1.msra.mxu0 %v1453
    %1558 = vmatprep.subr.mxu0 %v1456
    %1559 = vmatpush1.msra.mxu0 %v1455
    %1560 = vmatprep.subr.mxu0 0.0
    %1561 = vmatpush1.msra.mxu0 0.0
    %1562 = vmatprep.subr.mxu0 0.0
    %1563 = vmatpush1.msra.mxu0 0.0
    %1564 = vmatprep.subr.mxu0 0.0
    %1565 = vmatpush1.msra.mxu0 0.0
    %1566 = vmatprep.subr.mxu0 0.0
    %1567 = vmatpush1.msra.mxu0 0.0
    %1568 = vmatprep.subr.mxu0 0.0
    %1569 = vmatpush1.msra.mxu0 0.0
    %1570 = vmatprep.subr.mxu0 0.0
    %1571 = vmatpush1.msra.mxu0 0.0
    %1572 = vmatprep.subr.mxu0 0.0
    %1573 = vmatpush1.msra.mxu0 0.0
    %1574 = vmatprep.subr.mxu0 0.0
    %1575 = vmatpush1.msra.mxu0 0.0
    %1576 = vmatprep.subr.mxu0 0.0
    %1577 = vmatpush1.msra.mxu0 0.0
    %1578 = vmatprep.subr.mxu0 0.0
    %1579 = vmatpush1.msra.mxu0 0.0
    %1580 = vmatprep.subr.mxu0 0.0
    %1581 = vmatpush1.msra.mxu0 0.0
    %1582 = vmatprep.subr.mxu0 0.0
    %1583 = vmatpush1.msra.mxu0 0.0
    %1584 = vmatprep.subr.mxu0 0.0
    %1585 = vmatpush1.msra.mxu0 0.0
    %1586 = vmatprep.subr.mxu0 0.0
    %1587 = vmatpush1.msra.mxu0 0.0
    %1588 = vmatprep.subr.mxu0 0.0
    %1589 = vmatpush1.msra.mxu0 0.0
    %1590 = vmatprep.subr.mxu0 0.0
    %1591 = vmatpush1.msra.mxu0 0.0
    %1592 = vmatprep.mubr.f32.mxu0 0.0
    %1593 = vmatmul.mubr.f32.gmra.mrb[0].mxu0 %v591
    %v1594 = vpop.f32.mrb[0].mxu0
    %v1595 = vadd.f32 %v1524, %v1594
    %v1596 = vpop.f32.mrb[0].mxu0
    %v1597 = vadd.f32 %v1526, %v1596
    %1598 = vdwg.mxu0
    %v1599 = vmax.f32 %v1595, 0.0
    %v1600 = vmax.f32 %v1597, 0.0
    %s1601 = scalar_lea.vmem [#allocation9], 1024
    %v1602 = vld [vmem:[%s1601] sm:$0xff]
    %v1603 = vld [vmem:[%s1601 + $0x8] sm:$0xff]
    %v1604 = vld [vmem:[%s1601 + $0x10] sm:$0xff]
    %v1605 = vld [vmem:[%s1601 + $0x18] sm:$0xff]
    %v1606 = vld [vmem:[%s1601 + $0x20] sm:$0xff]
    %v1607 = vld [vmem:[%s1601 + $0x28] sm:$0xff]
    %v1608 = vld [vmem:[%s1601 + $0x30] sm:$0xff]
    %v1609 = vld [vmem:[%s1601 + $0x38] sm:$0xff]
    %v1610 = vld [vmem:[%s1601 + $0x40] sm:$0xff]
    %v1611 = vld [vmem:[%s1601 + $0x48] sm:$0xff]
    %v1612 = vld [vmem:[%s1601 + $0x50] sm:$0xff]
    %v1613 = vld [vmem:[%s1601 + $0x58] sm:$0xff]
    %v1614 = vld [vmem:[%s1601 + $0x60] sm:$0xff]
    %v1615 = vld [vmem:[%s1601 + $0x68] sm:$0xff]
    %v1616 = vld [vmem:[%s1601 + $0x70] sm:$0xff]
    %v1617 = vld [vmem:[%s1601 + $0x78] sm:$0xff]
    %v1618 = vld [vmem:[%s1601 + $0x80] sm:$0xff]
    %v1619 = vld [vmem:[%s1601 + $0x88] sm:$0xff]
    %v1620 = vld [vmem:[%s1601 + $0x90] sm:$0xff]
    %v1621 = vld [vmem:[%s1601 + $0x98] sm:$0xff]
    %v1622 = vld [vmem:[%s1601 + $0xa0] sm:$0xff]
    %v1623 = vld [vmem:[%s1601 + $0xa8] sm:$0xff]
    %v1624 = vld [vmem:[%s1601 + $0xb0] sm:$0xff]
    %v1625 = vld [vmem:[%s1601 + $0xb8] sm:$0xff]
    %v1626 = vld [vmem:[%s1601 + $0xc0] sm:$0xff]
    %v1627 = vld [vmem:[%s1601 + $0xc8] sm:$0xff]
    %v1628 = vld [vmem:[%s1601 + $0xd0] sm:$0xff]
    %v1629 = vld [vmem:[%s1601 + $0xd8] sm:$0xff]
    %v1630 = vld [vmem:[%s1601 + $0xe0] sm:$0xff]
    %v1631 = vld [vmem:[%s1601 + $0xe8] sm:$0xff]
    %v1632 = vld [vmem:[%s1601 + $0xf0] sm:$0xff]
    %v1633 = vld [vmem:[%s1601 + $0xf8] sm:$0xff]
    %v1634 = vld [vmem:[%s1601 + $0x100] sm:$0xff]
    %v1635 = vld [vmem:[%s1601 + $0x108] sm:$0xff]
    %v1636 = vld [vmem:[%s1601 + $0x110] sm:$0xff]
    %v1637 = vld [vmem:[%s1601 + $0x118] sm:$0xff]
    %v1638 = vld [vmem:[%s1601 + $0x120] sm:$0xff]
    %v1639 = vld [vmem:[%s1601 + $0x128] sm:$0xff]
    %v1640 = vld [vmem:[%s1601 + $0x130] sm:$0xff]
    %v1641 = vld [vmem:[%s1601 + $0x138] sm:$0xff]
    %v1642 = vld [vmem:[%s1601 + $0x140] sm:$0xff]
    %v1643 = vld [vmem:[%s1601 + $0x148] sm:$0xff]
    %v1644 = vld [vmem:[%s1601 + $0x150] sm:$0xff]
    %v1645 = vld [vmem:[%s1601 + $0x158] sm:$0xff]
    %v1646 = vld [vmem:[%s1601 + $0x160] sm:$0xff]
    %v1647 = vld [vmem:[%s1601 + $0x168] sm:$0xff]
    %v1648 = vld [vmem:[%s1601 + $0x170] sm:$0xff]
    %v1649 = vld [vmem:[%s1601 + $0x178] sm:$0xff]
    %v1650 = vld [vmem:[%s1601 + $0x180] sm:$0xff]
    %v1651 = vld [vmem:[%s1601 + $0x188] sm:$0xff]
    %v1652 = vld [vmem:[%s1601 + $0x190] sm:$0xff]
    %v1653 = vld [vmem:[%s1601 + $0x198] sm:$0xff]
    %v1654 = vld [vmem:[%s1601 + $0x1a0] sm:$0xff]
    %v1655 = vld [vmem:[%s1601 + $0x1a8] sm:$0xff]
    %v1656 = vld [vmem:[%s1601 + $0x1b0] sm:$0xff]
    %v1657 = vld [vmem:[%s1601 + $0x1b8] sm:$0xff]
    %v1658 = vld [vmem:[%s1601 + $0x1c0] sm:$0xff]
    %v1659 = vld [vmem:[%s1601 + $0x1c8] sm:$0xff]
    %v1660 = vld [vmem:[%s1601 + $0x1d0] sm:$0xff]
    %v1661 = vld [vmem:[%s1601 + $0x1d8] sm:$0xff]
    %v1662 = vld [vmem:[%s1601 + $0x1e0] sm:$0xff]
    %v1663 = vld [vmem:[%s1601 + $0x1e8] sm:$0xff]
    %v1664 = vld [vmem:[%s1601 + $0x1f0] sm:$0xff]
    %v1665 = vld [vmem:[%s1601 + $0x1f8] sm:$0xff]
    %1666 = vmatprep.subr.mxu0 %v1603
    %1667 = vmatpush1.msra.mxu0 %v1602
    %1668 = vmatprep.subr.mxu0 %v1605
    %1669 = vmatpush1.msra.mxu0 %v1604
    %1670 = vmatprep.subr.mxu0 %v1607
    %1671 = vmatpush1.msra.mxu0 %v1606
    %1672 = vmatprep.subr.mxu0 %v1609
    %1673 = vmatpush1.msra.mxu0 %v1608
    %1674 = vmatprep.subr.mxu0 %v1611
    %1675 = vmatpush1.msra.mxu0 %v1610
    %1676 = vmatprep.subr.mxu0 %v1613
    %1677 = vmatpush1.msra.mxu0 %v1612
    %1678 = vmatprep.subr.mxu0 %v1615
    %1679 = vmatpush1.msra.mxu0 %v1614
    %1680 = vmatprep.subr.mxu0 %v1617
    %1681 = vmatpush1.msra.mxu0 %v1616
    %1682 = vmatprep.subr.mxu0 %v1619
    %1683 = vmatpush1.msra.mxu0 %v1618
    %1684 = vmatprep.subr.mxu0 %v1621
    %1685 = vmatpush1.msra.mxu0 %v1620
    %1686 = vmatprep.subr.mxu0 %v1623
    %1687 = vmatpush1.msra.mxu0 %v1622
    %1688 = vmatprep.subr.mxu0 %v1625
    %1689 = vmatpush1.msra.mxu0 %v1624
    %1690 = vmatprep.subr.mxu0 %v1627
    %1691 = vmatpush1.msra.mxu0 %v1626
    %1692 = vmatprep.subr.mxu0 %v1629
    %1693 = vmatpush1.msra.mxu0 %v1628
    %1694 = vmatprep.subr.mxu0 %v1631
    %1695 = vmatpush1.msra.mxu0 %v1630
    %1696 = vmatprep.subr.mxu0 %v1633
    %1697 = vmatpush1.msra.mxu0 %v1632
    %1698 = vmatprep.subr.mxu0 %v1635
    %1699 = vmatpush1.msra.mxu0 %v1634
    %1700 = vmatprep.subr.mxu0 %v1637
    %1701 = vmatpush1.msra.mxu0 %v1636
    %1702 = vmatprep.subr.mxu0 %v1639
    %1703 = vmatpush1.msra.mxu0 %v1638
    %1704 = vmatprep.subr.mxu0 %v1641
    %1705 = vmatpush1.msra.mxu0 %v1640
    %1706 = vmatprep.subr.mxu0 %v1643
    %1707 = vmatpush1.msra.mxu0 %v1642
    %1708 = vmatprep.subr.mxu0 %v1645
    %1709 = vmatpush1.msra.mxu0 %v1644
    %1710 = vmatprep.subr.mxu0 %v1647
    %1711 = vmatpush1.msra.mxu0 %v1646
    %1712 = vmatprep.subr.mxu0 %v1649
    %1713 = vmatpush1.msra.mxu0 %v1648
    %1714 = vmatprep.subr.mxu0 %v1651
    %1715 = vmatpush1.msra.mxu0 %v1650
    %1716 = vmatprep.subr.mxu0 %v1653
    %1717 = vmatpush1.msra.mxu0 %v1652
    %1718 = vmatprep.subr.mxu0 %v1655
    %1719 = vmatpush1.msra.mxu0 %v1654
    %1720 = vmatprep.subr.mxu0 %v1657
    %1721 = vmatpush1.msra.mxu0 %v1656
    %1722 = vmatprep.subr.mxu0 %v1659
    %1723 = vmatpush1.msra.mxu0 %v1658
    %1724 = vmatprep.subr.mxu0 %v1661
    %1725 = vmatpush1.msra.mxu0 %v1660
    %1726 = vmatprep.subr.mxu0 %v1663
    %1727 = vmatpush1.msra.mxu0 %v1662
    %1728 = vmatprep.subr.mxu0 %v1665
    %1729 = vmatpush1.msra.mxu0 %v1664
    %1730 = vmatprep.mubr.f32.mxu0 %v1600
    %1731 = vmatmul.mubr.f32.gmra.mrb[0].mxu0 %v1599
    %v1732 = vpop.f32.mrb[0].mxu0
    %v1733 = vadd.f32 0.0, %v1732
    %v1734 = vpop.f32.mrb[0].mxu0
    %v1735 = vadd.f32 0.0, %v1734
    %1736 = vdwg.mxu0
    %v1737 = vadd.f32 %v1356, %v1733
    %v1738 = vadd.f32 %v1358, %v1735
    %s1739 = scalar_lea.vmem [#allocation6], 2304
    %v1740 = vld [vmem:[%s1739] sm:$0xff]
    %v1741 = vld [vmem:[%s1739 + $0x8] sm:$0xff]
    %v1742 = vld [vmem:[%s1739 + $0x10] sm:$0xff]
    %v1743 = vld [vmem:[%s1739 + $0x18] sm:$0xff]
    %v1744 = vld [vmem:[%s1739 + $0x20] sm:$0xff]
    %v1745 = vld [vmem:[%s1739 + $0x28] sm:$0xff]
    %v1746 = vld [vmem:[%s1739 + $0x30] sm:$0xff]
    %v1747 = vld [vmem:[%s1739 + $0x38] sm:$0xff]
    %v1748 = vld [vmem:[%s1739 + $0x40] sm:$0xff]
    %v1749 = vld [vmem:[%s1739 + $0x48] sm:$0xff]
    %v1750 = vld [vmem:[%s1739 + $0x50] sm:$0xff]
    %v1751 = vld [vmem:[%s1739 + $0x58] sm:$0xff]
    %v1752 = vld [vmem:[%s1739 + $0x60] sm:$0xff]
    %v1753 = vld [vmem:[%s1739 + $0x68] sm:$0xff]
    %v1754 = vld [vmem:[%s1739 + $0x70] sm:$0xff]
    %v1755 = vld [vmem:[%s1739 + $0x78] sm:$0xff]
    %v1756 = vld [vmem:[%s1739 + $0x80] sm:$0xff]
    %v1757 = vld [vmem:[%s1739 + $0x88] sm:$0xff]
    %v1758 = vld [vmem:[%s1739 + $0x90] sm:$0xff]
    %v1759 = vld [vmem:[%s1739 + $0x98] sm:$0xff]
    %v1760 = vld [vmem:[%s1739 + $0xa0] sm:$0xff]
    %v1761 = vld [vmem:[%s1739 + $0xa8] sm:$0xff]
    %v1762 = vld [vmem:[%s1739 + $0xb0] sm:$0xff]
    %v1763 = vld [vmem:[%s1739 + $0xb8] sm:$0xff]
    %v1764 = vld [vmem:[%s1739 + $0xc0] sm:$0xff]
    %v1765 = vld [vmem:[%s1739 + $0xc8] sm:$0xff]
    %v1766 = vld [vmem:[%s1739 + $0xd0] sm:$0xff]
    %v1767 = vld [vmem:[%s1739 + $0xd8] sm:$0xff]
    %v1768 = vld [vmem:[%s1739 + $0xe0] sm:$0xff]
    %v1769 = vld [vmem:[%s1739 + $0xe8] sm:$0xff]
    %v1770 = vld [vmem:[%s1739 + $0xf0] sm:$0xff]
    %v1771 = vld [vmem:[%s1739 + $0xf8] sm:$0xff]
    %v1772 = vld [vmem:[%s1739 + $0x100] sm:$0xff]
    %v1773 = vld [vmem:[%s1739 + $0x108] sm:$0xff]
    %v1774 = vld [vmem:[%s1739 + $0x110] sm:$0xff]
    %v1775 = vld [vmem:[%s1739 + $0x118] sm:$0xff]
    %v1776 = vld [vmem:[%s1739 + $0x120] sm:$0xff]
    %v1777 = vld [vmem:[%s1739 + $0x128] sm:$0xff]
    %v1778 = vld [vmem:[%s1739 + $0x130] sm:$0xff]
    %v1779 = vld [vmem:[%s1739 + $0x138] sm:$0xff]
    %v1780 = vld [vmem:[%s1739 + $0x140] sm:$0xff]
    %v1781 = vld [vmem:[%s1739 + $0x148] sm:$0xff]
    %v1782 = vld [vmem:[%s1739 + $0x150] sm:$0xff]
    %v1783 = vld [vmem:[%s1739 + $0x158] sm:$0xff]
    %v1784 = vld [vmem:[%s1739 + $0x160] sm:$0xff]
    %v1785 = vld [vmem:[%s1739 + $0x168] sm:$0xff]
    %v1786 = vld [vmem:[%s1739 + $0x170] sm:$0xff]
    %v1787 = vld [vmem:[%s1739 + $0x178] sm:$0xff]
    %v1788 = vld [vmem:[%s1739 + $0x180] sm:$0xff]
    %v1789 = vld [vmem:[%s1739 + $0x188] sm:$0xff]
    %v1790 = vld [vmem:[%s1739 + $0x190] sm:$0xff]
    %v1791 = vld [vmem:[%s1739 + $0x198] sm:$0xff]
    %v1792 = vld [vmem:[%s1739 + $0x1a0] sm:$0xff]
    %v1793 = vld [vmem:[%s1739 + $0x1a8] sm:$0xff]
    %v1794 = vld [vmem:[%s1739 + $0x1b0] sm:$0xff]
    %v1795 = vld [vmem:[%s1739 + $0x1b8] sm:$0xff]
    %v1796 = vld [vmem:[%s1739 + $0x1c0] sm:$0xff]
    %v1797 = vld [vmem:[%s1739 + $0x1c8] sm:$0xff]
    %v1798 = vld [vmem:[%s1739 + $0x1d0] sm:$0xff]
    %v1799 = vld [vmem:[%s1739 + $0x1d8] sm:$0xff]
    %v1800 = vld [vmem:[%s1739 + $0x1e0] sm:$0xff]
    %v1801 = vld [vmem:[%s1739 + $0x1e8] sm:$0xff]
    %v1802 = vld [vmem:[%s1739 + $0x1f0] sm:$0xff]
    %v1803 = vld [vmem:[%s1739 + $0x1f8] sm:$0xff]
    %v1804 = vld [vmem:[%s1739 + $0x200] sm:$0xff]
    %v1805 = vld [vmem:[%s1739 + $0x208] sm:$0xff]
    %v1806 = vld [vmem:[%s1739 + $0x210] sm:$0xff]
    %v1807 = vld [vmem:[%s1739 + $0x218] sm:$0xff]
    %v1808 = vld [vmem:[%s1739 + $0x220] sm:$0xff]
    %v1809 = vld [vmem:[%s1739 + $0x228] sm:$0xff]
    %v1810 = vld [vmem:[%s1739 + $0x230] sm:$0xff]
    %v1811 = vld [vmem:[%s1739 + $0x238] sm:$0xff]
    %v1812 = vld [vmem:[%s1739 + $0x240] sm:$0xff]
    %v1813 = vld [vmem:[%s1739 + $0x248] sm:$0xff]
    %v1814 = vld [vmem:[%s1739 + $0x250] sm:$0xff]
    %v1815 = vld [vmem:[%s1739 + $0x258] sm:$0xff]
    %v1816 = vld [vmem:[%s1739 + $0x260] sm:$0xff]
    %v1817 = vld [vmem:[%s1739 + $0x268] sm:$0xff]
    %v1818 = vld [vmem:[%s1739 + $0x270] sm:$0xff]
    %v1819 = vld [vmem:[%s1739 + $0x278] sm:$0xff]
    %v1820 = vld [vmem:[%s1739 + $0x280] sm:$0xff]
    %v1821 = vld [vmem:[%s1739 + $0x288] sm:$0xff]
    %v1822 = vld [vmem:[%s1739 + $0x290] sm:$0xff]
    %v1823 = vld [vmem:[%s1739 + $0x298] sm:$0xff]
    %v1824 = vld [vmem:[%s1739 + $0x2a0] sm:$0xff]
    %v1825 = vld [vmem:[%s1739 + $0x2a8] sm:$0xff]
    %v1826 = vld [vmem:[%s1739 + $0x2b0] sm:$0xff]
    %v1827 = vld [vmem:[%s1739 + $0x2b8] sm:$0xff]
    %v1828 = vld [vmem:[%s1739 + $0x2c0] sm:$0xff]
    %v1829 = vld [vmem:[%s1739 + $0x2c8] sm:$0xff]
    %v1830 = vld [vmem:[%s1739 + $0x2d0] sm:$0xff]
    %v1831 = vld [vmem:[%s1739 + $0x2d8] sm:$0xff]
    %v1832 = vld [vmem:[%s1739 + $0x2e0] sm:$0xff]
    %v1833 = vld [vmem:[%s1739 + $0x2e8] sm:$0xff]
    %v1834 = vld [vmem:[%s1739 + $0x2f0] sm:$0xff]
    %v1835 = vld [vmem:[%s1739 + $0x2f8] sm:$0xff]
    %1836 = vmatprep.subr.mxu0 %v1741
    %1837 = vmatpush1.msra.mxu0 %v1740
    %1838 = vmatprep.subr.mxu0 %v1743
    %1839 = vmatpush1.msra.mxu0 %v1742
    %1840 = vmatprep.subr.mxu0 %v1745
    %1841 = vmatpush1.msra.mxu0 %v1744
    %1842 = vmatprep.subr.mxu0 %v1747
    %1843 = vmatpush1.msra.mxu0 %v1746
    %1844 = vmatprep.subr.mxu0 %v1749
    %1845 = vmatpush1.msra.mxu0 %v1748
    %1846 = vmatprep.subr.mxu0 %v1751
    %1847 = vmatpush1.msra.mxu0 %v1750
    %1848 = vmatprep.subr.mxu0 %v1753
    %1849 = vmatpush1.msra.mxu0 %v1752
    %1850 = vmatprep.subr.mxu0 %v1755
    %1851 = vmatpush1.msra.mxu0 %v1754
    %1852 = vmatprep.subr.mxu0 %v1757
    %1853 = vmatpush1.msra.mxu0 %v1756
    %1854 = vmatprep.subr.mxu0 %v1759
    %1855 = vmatpush1.msra.mxu0 %v1758
    %1856 = vmatprep.subr.mxu0 %v1761
    %1857 = vmatpush1.msra.mxu0 %v1760
    %1858 = vmatprep.subr.mxu0 %v1763
    %1859 = vmatpush1.msra.mxu0 %v1762
    %1860 = vmatprep.subr.mxu0 %v1765
    %1861 = vmatpush1.msra.mxu0 %v1764
    %1862 = vmatprep.subr.mxu0 %v1767
    %1863 = vmatpush1.msra.mxu0 %v1766
    %1864 = vmatprep.subr.mxu0 %v1769
    %1865 = vmatpush1.msra.mxu0 %v1768
    %1866 = vmatprep.subr.mxu0 %v1771
    %1867 = vmatpush1.msra.mxu0 %v1770
    %1868 = vmatprep.subr.mxu0 %v1773
    %1869 = vmatpush1.msra.mxu0 %v1772
    %1870 = vmatprep.subr.mxu0 %v1775
    %1871 = vmatpush1.msra.mxu0 %v1774
    %1872 = vmatprep.subr.mxu0 %v1777
    %1873 = vmatpush1.msra.mxu0 %v1776
    %1874 = vmatprep.subr.mxu0 %v1779
    %1875 = vmatpush1.msra.mxu0 %v1778
    %1876 = vmatprep.subr.mxu0 %v1781
    %1877 = vmatpush1.msra.mxu0 %v1780
    %1878 = vmatprep.subr.mxu0 %v1783
    %1879 = vmatpush1.msra.mxu0 %v1782
    %1880 = vmatprep.subr.mxu0 %v1785
    %1881 = vmatpush1.msra.mxu0 %v1784
    %1882 = vmatprep.subr.mxu0 %v1787
    %1883 = vmatpush1.msra.mxu0 %v1786
    %1884 = vmatprep.subr.mxu0 %v1789
    %1885 = vmatpush1.msra.mxu0 %v1788
    %1886 = vmatprep.subr.mxu0 %v1791
    %1887 = vmatpush1.msra.mxu0 %v1790
    %1888 = vmatprep.subr.mxu0 %v1793
    %1889 = vmatpush1.msra.mxu0 %v1792
    %1890 = vmatprep.subr.mxu0 %v1795
    %1891 = vmatpush1.msra.mxu0 %v1794
    %1892 = vmatprep.subr.mxu0 %v1797
    %1893 = vmatpush1.msra.mxu0 %v1796
    %1894 = vmatprep.subr.mxu0 %v1799
    %1895 = vmatpush1.msra.mxu0 %v1798
    %1896 = vmatprep.subr.mxu0 %v1801
    %1897 = vmatpush1.msra.mxu0 %v1800
    %1898 = vmatprep.subr.mxu0 %v1803
    %1899 = vmatpush1.msra.mxu0 %v1802
    %1900 = vmatprep.mubr.f32.mxu0 %v591
    %1901 = vmatmul.mubr.f32.gmra.mrb[0].mxu0 %v590
    %v1902 = vpop.f32.mrb[0].mxu0
    %v1903 = vadd.f32 %v697, %v1902
    %v1904 = vpop.f32.mrb[0].mxu0
    %v1905 = vadd.f32 %v701, %v1904
    %1906 = vdwg.mxu0
    %1907 = vmatprep.subr.mxu0 %v1805
    %1908 = vmatpush1.msra.mxu0 %v1804
    %1909 = vmatprep.subr.mxu0 %v1807
    %1910 = vmatpush1.msra.mxu0 %v1806
    %1911 = vmatprep.subr.mxu0 %v1809
    %1912 = vmatpush1.msra.mxu0 %v1808
    %1913 = vmatprep.subr.mxu0 %v1811
    %1914 = vmatpush1.msra.mxu0 %v1810
    %1915 = vmatprep.subr.mxu0 %v1813
    %1916 = vmatpush1.msra.mxu0 %v1812
    %1917 = vmatprep.subr.mxu0 %v1815
    %1918 = vmatpush1.msra.mxu0 %v1814
    %1919 = vmatprep.subr.mxu0 %v1817
    %1920 = vmatpush1.msra.mxu0 %v1816
    %1921 = vmatprep.subr.mxu0 %v1819
    %1922 = vmatpush1.msra.mxu0 %v1818
    %1923 = vmatprep.subr.mxu0 %v1821
    %1924 = vmatpush1.msra.mxu0 %v1820
    %1925 = vmatprep.subr.mxu0 %v1823
    %1926 = vmatpush1.msra.mxu0 %v1822
    %1927 = vmatprep.subr.mxu0 %v1825
    %1928 = vmatpush1.msra.mxu0 %v1824
    %1929 = vmatprep.subr.mxu0 %v1827
    %1930 = vmatpush1.msra.mxu0 %v1826
    %1931 = vmatprep.subr.mxu0 %v1829
    %1932 = vmatpush1.msra.mxu0 %v1828
    %1933 = vmatprep.subr.mxu0 %v1831
    %1934 = vmatpush1.msra.mxu0 %v1830
    %1935 = vmatprep.subr.mxu0 %v1833
    %1936 = vmatpush1.msra.mxu0 %v1832
    %1937 = vmatprep.subr.mxu0 %v1835
    %1938 = vmatpush1.msra.mxu0 %v1834
    %1939 = vmatprep.subr.mxu0 0.0
    %1940 = vmatpush1.msra.mxu0 0.0
    %1941 = vmatprep.subr.mxu0 0.0
    %1942 = vmatpush1.msra.mxu0 0.0
    %1943 = vmatprep.subr.mxu0 0.0
    %1944 = vmatpush1.msra.mxu0 0.0
    %1945 = vmatprep.subr.mxu0 0.0
    %1946 = vmatpush1.msra.mxu0 0.0
    %1947 = vmatprep.subr.mxu0 0.0
    %1948 = vmatpush1.msra.mxu0 0.0
    %1949 = vmatprep.subr.mxu0 0.0
    %1950 = vmatpush1.msra.mxu0 0.0
    %1951 = vmatprep.subr.mxu0 0.0
    %1952 = vmatpush1.msra.mxu0 0.0
    %1953 = vmatprep.subr.mxu0 0.0
    %1954 = vmatpush1.msra.mxu0 0.0
    %1955 = vmatprep.subr.mxu0 0.0
    %1956 = vmatpush1.msra.mxu0 0.0
    %1957 = vmatprep.subr.mxu0 0.0
    %1958 = vmatpush1.msra.mxu0 0.0
    %1959 = vmatprep.subr.mxu0 0.0
    %1960 = vmatpush1.msra.mxu0 0.0
    %1961 = vmatprep.subr.mxu0 0.0
    %1962 = vmatpush1.msra.mxu0 0.0
    %1963 = vmatprep.subr.mxu0 0.0
    %1964 = vmatpush1.msra.mxu0 0.0
    %1965 = vmatprep.subr.mxu0 0.0
    %1966 = vmatpush1.msra.mxu0 0.0
    %1967 = vmatprep.subr.mxu0 0.0
    %1968 = vmatpush1.msra.mxu0 0.0
    %1969 = vmatprep.subr.mxu0 0.0
    %1970 = vmatpush1.msra.mxu0 0.0
    %1971 = vmatprep.mubr.f32.mxu0 0.0
    %1972 = vmatmul.mubr.f32.gmra.mrb[0].mxu0 %v592
    %v1973 = vpop.f32.mrb[0].mxu0
    %v1974 = vadd.f32 %v1903, %v1973
    %v1975 = vpop.f32.mrb[0].mxu0
    %v1976 = vadd.f32 %v1905, %v1975
    %1977 = vdwg.mxu0
    %v1978 = vmax.f32 %v1974, 0.0
    %v1979 = vmax.f32 %v1976, 0.0
    %s1980 = scalar_lea.vmem [#allocation9], 1536
    %v1981 = vld [vmem:[%s1980] sm:$0xff]
    %v1982 = vld [vmem:[%s1980 + $0x8] sm:$0xff]
    %v1983 = vld [vmem:[%s1980 + $0x10] sm:$0xff]
    %v1984 = vld [vmem:[%s1980 + $0x18] sm:$0xff]
    %v1985 = vld [vmem:[%s1980 + $0x20] sm:$0xff]
    %v1986 = vld [vmem:[%s1980 + $0x28] sm:$0xff]
    %v1987 = vld [vmem:[%s1980 + $0x30] sm:$0xff]
    %v1988 = vld [vmem:[%s1980 + $0x38] sm:$0xff]
    %v1989 = vld [vmem:[%s1980 + $0x40] sm:$0xff]
    %v1990 = vld [vmem:[%s1980 + $0x48] sm:$0xff]
    %v1991 = vld [vmem:[%s1980 + $0x50] sm:$0xff]
    %v1992 = vld [vmem:[%s1980 + $0x58] sm:$0xff]
    %v1993 = vld [vmem:[%s1980 + $0x60] sm:$0xff]
    %v1994 = vld [vmem:[%s1980 + $0x68] sm:$0xff]
    %v1995 = vld [vmem:[%s1980 + $0x70] sm:$0xff]
    %v1996 = vld [vmem:[%s1980 + $0x78] sm:$0xff]
    %v1997 = vld [vmem:[%s1980 + $0x80] sm:$0xff]
    %v1998 = vld [vmem:[%s1980 + $0x88] sm:$0xff]
    %v1999 = vld [vmem:[%s1980 + $0x90] sm:$0xff]
    %v2000 = vld [vmem:[%s1980 + $0x98] sm:$0xff]
    %v2001 = vld [vmem:[%s1980 + $0xa0] sm:$0xff]
    %v2002 = vld [vmem:[%s1980 + $0xa8] sm:$0xff]
    %v2003 = vld [vmem:[%s1980 + $0xb0] sm:$0xff]
    %v2004 = vld [vmem:[%s1980 + $0xb8] sm:$0xff]
    %v2005 = vld [vmem:[%s1980 + $0xc0] sm:$0xff]
    %v2006 = vld [vmem:[%s1980 + $0xc8] sm:$0xff]
    %v2007 = vld [vmem:[%s1980 + $0xd0] sm:$0xff]
    %v2008 = vld [vmem:[%s1980 + $0xd8] sm:$0xff]
    %v2009 = vld [vmem:[%s1980 + $0xe0] sm:$0xff]
    %v2010 = vld [vmem:[%s1980 + $0xe8] sm:$0xff]
    %v2011 = vld [vmem:[%s1980 + $0xf0] sm:$0xff]
    %v2012 = vld [vmem:[%s1980 + $0xf8] sm:$0xff]
    %v2013 = vld [vmem:[%s1980 + $0x100] sm:$0xff]
    %v2014 = vld [vmem:[%s1980 + $0x108] sm:$0xff]
    %v2015 = vld [vmem:[%s1980 + $0x110] sm:$0xff]
    %v2016 = vld [vmem:[%s1980 + $0x118] sm:$0xff]
    %v2017 = vld [vmem:[%s1980 + $0x120] sm:$0xff]
    %v2018 = vld [vmem:[%s1980 + $0x128] sm:$0xff]
    %v2019 = vld [vmem:[%s1980 + $0x130] sm:$0xff]
    %v2020 = vld [vmem:[%s1980 + $0x138] sm:$0xff]
    %v2021 = vld [vmem:[%s1980 + $0x140] sm:$0xff]
    %v2022 = vld [vmem:[%s1980 + $0x148] sm:$0xff]
    %v2023 = vld [vmem:[%s1980 + $0x150] sm:$0xff]
    %v2024 = vld [vmem:[%s1980 + $0x158] sm:$0xff]
    %v2025 = vld [vmem:[%s1980 + $0x160] sm:$0xff]
    %v2026 = vld [vmem:[%s1980 + $0x168] sm:$0xff]
    %v2027 = vld [vmem:[%s1980 + $0x170] sm:$0xff]
    %v2028 = vld [vmem:[%s1980 + $0x178] sm:$0xff]
    %v2029 = vld [vmem:[%s1980 + $0x180] sm:$0xff]
    %v2030 = vld [vmem:[%s1980 + $0x188] sm:$0xff]
    %v2031 = vld [vmem:[%s1980 + $0x190] sm:$0xff]
    %v2032 = vld [vmem:[%s1980 + $0x198] sm:$0xff]
    %v2033 = vld [vmem:[%s1980 + $0x1a0] sm:$0xff]
    %v2034 = vld [vmem:[%s1980 + $0x1a8] sm:$0xff]
    %v2035 = vld [vmem:[%s1980 + $0x1b0] sm:$0xff]
    %v2036 = vld [vmem:[%s1980 + $0x1b8] sm:$0xff]
    %v2037 = vld [vmem:[%s1980 + $0x1c0] sm:$0xff]
    %v2038 = vld [vmem:[%s1980 + $0x1c8] sm:$0xff]
    %v2039 = vld [vmem:[%s1980 + $0x1d0] sm:$0xff]
    %v2040 = vld [vmem:[%s1980 + $0x1d8] sm:$0xff]
    %v2041 = vld [vmem:[%s1980 + $0x1e0] sm:$0xff]
    %v2042 = vld [vmem:[%s1980 + $0x1e8] sm:$0xff]
    %v2043 = vld [vmem:[%s1980 + $0x1f0] sm:$0xff]
    %v2044 = vld [vmem:[%s1980 + $0x1f8] sm:$0xff]
    %2045 = vmatprep.subr.mxu0 %v1982
    %2046 = vmatpush1.msra.mxu0 %v1981
    %2047 = vmatprep.subr.mxu0 %v1984
    %2048 = vmatpush1.msra.mxu0 %v1983
    %2049 = vmatprep.subr.mxu0 %v1986
    %2050 = vmatpush1.msra.mxu0 %v1985
    %2051 = vmatprep.subr.mxu0 %v1988
    %2052 = vmatpush1.msra.mxu0 %v1987
    %2053 = vmatprep.subr.mxu0 %v1990
    %2054 = vmatpush1.msra.mxu0 %v1989
    %2055 = vmatprep.subr.mxu0 %v1992
    %2056 = vmatpush1.msra.mxu0 %v1991
    %2057 = vmatprep.subr.mxu0 %v1994
    %2058 = vmatpush1.msra.mxu0 %v1993
    %2059 = vmatprep.subr.mxu0 %v1996
    %2060 = vmatpush1.msra.mxu0 %v1995
    %2061 = vmatprep.subr.mxu0 %v1998
    %2062 = vmatpush1.msra.mxu0 %v1997
    %2063 = vmatprep.subr.mxu0 %v2000
    %2064 = vmatpush1.msra.mxu0 %v1999
    %2065 = vmatprep.subr.mxu0 %v2002
    %2066 = vmatpush1.msra.mxu0 %v2001
    %2067 = vmatprep.subr.mxu0 %v2004
    %2068 = vmatpush1.msra.mxu0 %v2003
    %2069 = vmatprep.subr.mxu0 %v2006
    %2070 = vmatpush1.msra.mxu0 %v2005
    %2071 = vmatprep.subr.mxu0 %v2008
    %2072 = vmatpush1.msra.mxu0 %v2007
    %2073 = vmatprep.subr.mxu0 %v2010
    %2074 = vmatpush1.msra.mxu0 %v2009
    %2075 = vmatprep.subr.mxu0 %v2012
    %2076 = vmatpush1.msra.mxu0 %v2011
    %2077 = vmatprep.subr.mxu0 %v2014
    %2078 = vmatpush1.msra.mxu0 %v2013
    %2079 = vmatprep.subr.mxu0 %v2016
    %2080 = vmatpush1.msra.mxu0 %v2015
    %2081 = vmatprep.subr.mxu0 %v2018
    %2082 = vmatpush1.msra.mxu0 %v2017
    %2083 = vmatprep.subr.mxu0 %v2020
    %2084 = vmatpush1.msra.mxu0 %v2019
    %2085 = vmatprep.subr.mxu0 %v2022
    %2086 = vmatpush1.msra.mxu0 %v2021
    %2087 = vmatprep.subr.mxu0 %v2024
    %2088 = vmatpush1.msra.mxu0 %v2023
    %2089 = vmatprep.subr.mxu0 %v2026
    %2090 = vmatpush1.msra.mxu0 %v2025
    %2091 = vmatprep.subr.mxu0 %v2028
    %2092 = vmatpush1.msra.mxu0 %v2027
    %2093 = vmatprep.subr.mxu0 %v2030
    %2094 = vmatpush1.msra.mxu0 %v2029
    %2095 = vmatprep.subr.mxu0 %v2032
    %2096 = vmatpush1.msra.mxu0 %v2031
    %2097 = vmatprep.subr.mxu0 %v2034
    %2098 = vmatpush1.msra.mxu0 %v2033
    %2099 = vmatprep.subr.mxu0 %v2036
    %2100 = vmatpush1.msra.mxu0 %v2035
    %2101 = vmatprep.subr.mxu0 %v2038
    %2102 = vmatpush1.msra.mxu0 %v2037
    %2103 = vmatprep.subr.mxu0 %v2040
    %2104 = vmatpush1.msra.mxu0 %v2039
    %2105 = vmatprep.subr.mxu0 %v2042
    %2106 = vmatpush1.msra.mxu0 %v2041
    %2107 = vmatprep.subr.mxu0 %v2044
    %2108 = vmatpush1.msra.mxu0 %v2043
    %2109 = vmatprep.mubr.f32.mxu0 %v1979
    %2110 = vmatmul.mubr.f32.gmra.mrb[0].mxu0 %v1978
    %v2111 = vpop.f32.mrb[0].mxu0
    %v2112 = vadd.f32 0.0, %v2111
    %v2113 = vpop.f32.mrb[0].mxu0
    %v2114 = vadd.f32 0.0, %v2113
    %2115 = vdwg.mxu0
    %v2116 = vadd.f32 %v1737, %v2112
    %v2117 = vadd.f32 %v1738, %v2114
    %s2118 = scalar_lea.vmem [#allocation6], 3072
    %v2119 = vld [vmem:[%s2118] sm:$0xff]
    %v2120 = vld [vmem:[%s2118 + $0x8] sm:$0xff]
    %v2121 = vld [vmem:[%s2118 + $0x10] sm:$0xff]
    %v2122 = vld [vmem:[%s2118 + $0x18] sm:$0xff]
    %v2123 = vld [vmem:[%s2118 + $0x20] sm:$0xff]
    %v2124 = vld [vmem:[%s2118 + $0x28] sm:$0xff]
    %v2125 = vld [vmem:[%s2118 + $0x30] sm:$0xff]
    %v2126 = vld [vmem:[%s2118 + $0x38] sm:$0xff]
    %v2127 = vld [vmem:[%s2118 + $0x40] sm:$0xff]
    %v2128 = vld [vmem:[%s2118 + $0x48] sm:$0xff]
    %v2129 = vld [vmem:[%s2118 + $0x50] sm:$0xff]
    %v2130 = vld [vmem:[%s2118 + $0x58] sm:$0xff]
    %v2131 = vld [vmem:[%s2118 + $0x60] sm:$0xff]
    %v2132 = vld [vmem:[%s2118 + $0x68] sm:$0xff]
    %v2133 = vld [vmem:[%s2118 + $0x70] sm:$0xff]
    %v2134 = vld [vmem:[%s2118 + $0x78] sm:$0xff]
    %v2135 = vld [vmem:[%s2118 + $0x80] sm:$0xff]
    %v2136 = vld [vmem:[%s2118 + $0x88] sm:$0xff]
    %v2137 = vld [vmem:[%s2118 + $0x90] sm:$0xff]
    %v2138 = vld [vmem:[%s2118 + $0x98] sm:$0xff]
    %v2139 = vld [vmem:[%s2118 + $0xa0] sm:$0xff]
    %v2140 = vld [vmem:[%s2118 + $0xa8] sm:$0xff]
    %v2141 = vld [vmem:[%s2118 + $0xb0] sm:$0xff]
    %v2142 = vld [vmem:[%s2118 + $0xb8] sm:$0xff]
    %v2143 = vld [vmem:[%s2118 + $0xc0] sm:$0xff]
    %v2144 = vld [vmem:[%s2118 + $0xc8] sm:$0xff]
    %v2145 = vld [vmem:[%s2118 + $0xd0] sm:$0xff]
    %v2146 = vld [vmem:[%s2118 + $0xd8] sm:$0xff]
    %v2147 = vld [vmem:[%s2118 + $0xe0] sm:$0xff]
    %v2148 = vld [vmem:[%s2118 + $0xe8] sm:$0xff]
    %v2149 = vld [vmem:[%s2118 + $0xf0] sm:$0xff]
    %v2150 = vld [vmem:[%s2118 + $0xf8] sm:$0xff]
    %v2151 = vld [vmem:[%s2118 + $0x100] sm:$0xff]
    %v2152 = vld [vmem:[%s2118 + $0x108] sm:$0xff]
    %v2153 = vld [vmem:[%s2118 + $0x110] sm:$0xff]
    %v2154 = vld [vmem:[%s2118 + $0x118] sm:$0xff]
    %v2155 = vld [vmem:[%s2118 + $0x120] sm:$0xff]
    %v2156 = vld [vmem:[%s2118 + $0x128] sm:$0xff]
    %v2157 = vld [vmem:[%s2118 + $0x130] sm:$0xff]
    %v2158 = vld [vmem:[%s2118 + $0x138] sm:$0xff]
    %v2159 = vld [vmem:[%s2118 + $0x140] sm:$0xff]
    %v2160 = vld [vmem:[%s2118 + $0x148] sm:$0xff]
    %v2161 = vld [vmem:[%s2118 + $0x150] sm:$0xff]
    %v2162 = vld [vmem:[%s2118 + $0x158] sm:$0xff]
    %v2163 = vld [vmem:[%s2118 + $0x160] sm:$0xff]
    %v2164 = vld [vmem:[%s2118 + $0x168] sm:$0xff]
    %v2165 = vld [vmem:[%s2118 + $0x170] sm:$0xff]
    %v2166 = vld [vmem:[%s2118 + $0x178] sm:$0xff]
    %v2167 = vld [vmem:[%s2118 + $0x180] sm:$0xff]
    %v2168 = vld [vmem:[%s2118 + $0x188] sm:$0xff]
    %v2169 = vld [vmem:[%s2118 + $0x190] sm:$0xff]
    %v2170 = vld [vmem:[%s2118 + $0x198] sm:$0xff]
    %v2171 = vld [vmem:[%s2118 + $0x1a0] sm:$0xff]
    %v2172 = vld [vmem:[%s2118 + $0x1a8] sm:$0xff]
    %v2173 = vld [vmem:[%s2118 + $0x1b0] sm:$0xff]
    %v2174 = vld [vmem:[%s2118 + $0x1b8] sm:$0xff]
    %v2175 = vld [vmem:[%s2118 + $0x1c0] sm:$0xff]
    %v2176 = vld [vmem:[%s2118 + $0x1c8] sm:$0xff]
    %v2177 = vld [vmem:[%s2118 + $0x1d0] sm:$0xff]
    %v2178 = vld [vmem:[%s2118 + $0x1d8] sm:$0xff]
    %v2179 = vld [vmem:[%s2118 + $0x1e0] sm:$0xff]
    %v2180 = vld [vmem:[%s2118 + $0x1e8] sm:$0xff]
    %v2181 = vld [vmem:[%s2118 + $0x1f0] sm:$0xff]
    %v2182 = vld [vmem:[%s2118 + $0x1f8] sm:$0xff]
    %v2183 = vld [vmem:[%s2118 + $0x200] sm:$0xff]
    %v2184 = vld [vmem:[%s2118 + $0x208] sm:$0xff]
    %v2185 = vld [vmem:[%s2118 + $0x210] sm:$0xff]
    %v2186 = vld [vmem:[%s2118 + $0x218] sm:$0xff]
    %v2187 = vld [vmem:[%s2118 + $0x220] sm:$0xff]
    %v2188 = vld [vmem:[%s2118 + $0x228] sm:$0xff]
    %v2189 = vld [vmem:[%s2118 + $0x230] sm:$0xff]
    %v2190 = vld [vmem:[%s2118 + $0x238] sm:$0xff]
    %v2191 = vld [vmem:[%s2118 + $0x240] sm:$0xff]
    %v2192 = vld [vmem:[%s2118 + $0x248] sm:$0xff]
    %v2193 = vld [vmem:[%s2118 + $0x250] sm:$0xff]
    %v2194 = vld [vmem:[%s2118 + $0x258] sm:$0xff]
    %v2195 = vld [vmem:[%s2118 + $0x260] sm:$0xff]
    %v2196 = vld [vmem:[%s2118 + $0x268] sm:$0xff]
    %v2197 = vld [vmem:[%s2118 + $0x270] sm:$0xff]
    %v2198 = vld [vmem:[%s2118 + $0x278] sm:$0xff]
    %v2199 = vld [vmem:[%s2118 + $0x280] sm:$0xff]
    %v2200 = vld [vmem:[%s2118 + $0x288] sm:$0xff]
    %v2201 = vld [vmem:[%s2118 + $0x290] sm:$0xff]
    %v2202 = vld [vmem:[%s2118 + $0x298] sm:$0xff]
    %v2203 = vld [vmem:[%s2118 + $0x2a0] sm:$0xff]
    %v2204 = vld [vmem:[%s2118 + $0x2a8] sm:$0xff]
    %v2205 = vld [vmem:[%s2118 + $0x2b0] sm:$0xff]
    %v2206 = vld [vmem:[%s2118 + $0x2b8] sm:$0xff]
    %v2207 = vld [vmem:[%s2118 + $0x2c0] sm:$0xff]
    %v2208 = vld [vmem:[%s2118 + $0x2c8] sm:$0xff]
    %v2209 = vld [vmem:[%s2118 + $0x2d0] sm:$0xff]
    %v2210 = vld [vmem:[%s2118 + $0x2d8] sm:$0xff]
    %v2211 = vld [vmem:[%s2118 + $0x2e0] sm:$0xff]
    %v2212 = vld [vmem:[%s2118 + $0x2e8] sm:$0xff]
    %v2213 = vld [vmem:[%s2118 + $0x2f0] sm:$0xff]
    %v2214 = vld [vmem:[%s2118 + $0x2f8] sm:$0xff]
    %2215 = vmatprep.subr.mxu0 %v2120
    %2216 = vmatpush1.msra.mxu0 %v2119
    %2217 = vmatprep.subr.mxu0 %v2122
    %2218 = vmatpush1.msra.mxu0 %v2121
    %2219 = vmatprep.subr.mxu0 %v2124
    %2220 = vmatpush1.msra.mxu0 %v2123
    %2221 = vmatprep.subr.mxu0 %v2126
    %2222 = vmatpush1.msra.mxu0 %v2125
    %2223 = vmatprep.subr.mxu0 %v2128
    %2224 = vmatpush1.msra.mxu0 %v2127
    %2225 = vmatprep.subr.mxu0 %v2130
    %2226 = vmatpush1.msra.mxu0 %v2129
    %2227 = vmatprep.subr.mxu0 %v2132
    %2228 = vmatpush1.msra.mxu0 %v2131
    %2229 = vmatprep.subr.mxu0 %v2134
    %2230 = vmatpush1.msra.mxu0 %v2133
    %2231 = vmatprep.subr.mxu0 %v2136
    %2232 = vmatpush1.msra.mxu0 %v2135
    %2233 = vmatprep.subr.mxu0 %v2138
    %2234 = vmatpush1.msra.mxu0 %v2137
    %2235 = vmatprep.subr.mxu0 %v2140
    %2236 = vmatpush1.msra.mxu0 %v2139
    %2237 = vmatprep.subr.mxu0 %v2142
    %2238 = vmatpush1.msra.mxu0 %v2141
    %2239 = vmatprep.subr.mxu0 %v2144
    %2240 = vmatpush1.msra.mxu0 %v2143
    %2241 = vmatprep.subr.mxu0 %v2146
    %2242 = vmatpush1.msra.mxu0 %v2145
    %2243 = vmatprep.subr.mxu0 %v2148
    %2244 = vmatpush1.msra.mxu0 %v2147
    %2245 = vmatprep.subr.mxu0 %v2150
    %2246 = vmatpush1.msra.mxu0 %v2149
    %2247 = vmatprep.subr.mxu0 %v2152
    %2248 = vmatpush1.msra.mxu0 %v2151
    %2249 = vmatprep.subr.mxu0 %v2154
    %2250 = vmatpush1.msra.mxu0 %v2153
    %2251 = vmatprep.subr.mxu0 %v2156
    %2252 = vmatpush1.msra.mxu0 %v2155
    %2253 = vmatprep.subr.mxu0 %v2158
    %2254 = vmatpush1.msra.mxu0 %v2157
    %2255 = vmatprep.subr.mxu0 %v2160
    %2256 = vmatpush1.msra.mxu0 %v2159
    %2257 = vmatprep.subr.mxu0 %v2162
    %2258 = vmatpush1.msra.mxu0 %v2161
    %2259 = vmatprep.subr.mxu0 %v2164
    %2260 = vmatpush1.msra.mxu0 %v2163
    %2261 = vmatprep.subr.mxu0 %v2166
    %2262 = vmatpush1.msra.mxu0 %v2165
    %2263 = vmatprep.subr.mxu0 %v2168
    %2264 = vmatpush1.msra.mxu0 %v2167
    %2265 = vmatprep.subr.mxu0 %v2170
    %2266 = vmatpush1.msra.mxu0 %v2169
    %2267 = vmatprep.subr.mxu0 %v2172
    %2268 = vmatpush1.msra.mxu0 %v2171
    %2269 = vmatprep.subr.mxu0 %v2174
    %2270 = vmatpush1.msra.mxu0 %v2173
    %2271 = vmatprep.subr.mxu0 %v2176
    %2272 = vmatpush1.msra.mxu0 %v2175
    %2273 = vmatprep.subr.mxu0 %v2178
    %2274 = vmatpush1.msra.mxu0 %v2177
    %2275 = vmatprep.subr.mxu0 %v2180
    %2276 = vmatpush1.msra.mxu0 %v2179
    %2277 = vmatprep.subr.mxu0 %v2182
    %2278 = vmatpush1.msra.mxu0 %v2181
    %2279 = vmatprep.mubr.f32.mxu0 %v592
    %2280 = vmatmul.mubr.f32.gmra.mrb[0].mxu0 %v591
    %v2281 = vpop.f32.mrb[0].mxu0
    %v2282 = vadd.f32 %v697, %v2281
    %v2283 = vpop.f32.mrb[0].mxu0
    %v2284 = vadd.f32 %v701, %v2283
    %2285 = vdwg.mxu0
    %2286 = vmatprep.subr.mxu0 %v2184
    %2287 = vmatpush1.msra.mxu0 %v2183
    %2288 = vmatprep.subr.mxu0 %v2186
    %2289 = vmatpush1.msra.mxu0 %v2185
    %2290 = vmatprep.subr.mxu0 %v2188
    %2291 = vmatpush1.msra.mxu0 %v2187
    %2292 = vmatprep.subr.mxu0 %v2190
    %2293 = vmatpush1.msra.mxu0 %v2189
    %2294 = vmatprep.subr.mxu0 %v2192
    %2295 = vmatpush1.msra.mxu0 %v2191
    %2296 = vmatprep.subr.mxu0 %v2194
    %2297 = vmatpush1.msra.mxu0 %v2193
    %2298 = vmatprep.subr.mxu0 %v2196
    %2299 = vmatpush1.msra.mxu0 %v2195
    %2300 = vmatprep.subr.mxu0 %v2198
    %2301 = vmatpush1.msra.mxu0 %v2197
    %2302 = vmatprep.subr.mxu0 %v2200
    %2303 = vmatpush1.msra.mxu0 %v2199
    %2304 = vmatprep.subr.mxu0 %v2202
    %2305 = vmatpush1.msra.mxu0 %v2201
    %2306 = vmatprep.subr.mxu0 %v2204
    %2307 = vmatpush1.msra.mxu0 %v2203
    %2308 = vmatprep.subr.mxu0 %v2206
    %2309 = vmatpush1.msra.mxu0 %v2205
    %2310 = vmatprep.subr.mxu0 %v2208
    %2311 = vmatpush1.msra.mxu0 %v2207
    %2312 = vmatprep.subr.mxu0 %v2210
    %2313 = vmatpush1.msra.mxu0 %v2209
    %2314 = vmatprep.subr.mxu0 %v2212
    %2315 = vmatpush1.msra.mxu0 %v2211
    %2316 = vmatprep.subr.mxu0 %v2214
    %2317 = vmatpush1.msra.mxu0 %v2213
    %2318 = vmatprep.subr.mxu0 0.0
    %2319 = vmatpush1.msra.mxu0 0.0
    %2320 = vmatprep.subr.mxu0 0.0
    %2321 = vmatpush1.msra.mxu0 0.0
    %2322 = vmatprep.subr.mxu0 0.0
    %2323 = vmatpush1.msra.mxu0 0.0
    %2324 = vmatprep.subr.mxu0 0.0
    %2325 = vmatpush1.msra.mxu0 0.0
    %2326 = vmatprep.subr.mxu0 0.0
    %2327 = vmatpush1.msra.mxu0 0.0
    %2328 = vmatprep.subr.mxu0 0.0
    %2329 = vmatpush1.msra.mxu0 0.0
    %2330 = vmatprep.subr.mxu0 0.0
    %2331 = vmatpush1.msra.mxu0 0.0
    %2332 = vmatprep.subr.mxu0 0.0
    %2333 = vmatpush1.msra.mxu0 0.0
    %2334 = vmatprep.subr.mxu0 0.0
    %2335 = vmatpush1.msra.mxu0 0.0
    %2336 = vmatprep.subr.mxu0 0.0
    %2337 = vmatpush1.msra.mxu0 0.0
    %2338 = vmatprep.subr.mxu0 0.0
    %2339 = vmatpush1.msra.mxu0 0.0
    %2340 = vmatprep.subr.mxu0 0.0
    %2341 = vmatpush1.msra.mxu0 0.0
    %2342 = vmatprep.subr.mxu0 0.0
    %2343 = vmatpush1.msra.mxu0 0.0
    %2344 = vmatprep.subr.mxu0 0.0
    %2345 = vmatpush1.msra.mxu0 0.0
    %2346 = vmatprep.subr.mxu0 0.0
    %2347 = vmatpush1.msra.mxu0 0.0
    %2348 = vmatprep.subr.mxu0 0.0
    %2349 = vmatpush1.msra.mxu0 0.0
    %2350 = vmatprep.mubr.f32.mxu0 0.0
    %2351 = vmatmul.mubr.f32.gmra.mrb[0].mxu0 %v593
    %v2352 = vpop.f32.mrb[0].mxu0
    %v2353 = vadd.f32 %v2282, %v2352
    %v2354 = vpop.f32.mrb[0].mxu0
    %v2355 = vadd.f32 %v2284, %v2354
    %2356 = vdwg.mxu0
    %v2357 = vmax.f32 %v2353, 0.0
    %v2358 = vmax.f32 %v2355, 0.0
    %s2359 = scalar_lea.vmem [#allocation9], 2048
    %v2360 = vld [vmem:[%s2359] sm:$0xff]
    %v2361 = vld [vmem:[%s2359 + $0x8] sm:$0xff]
    %v2362 = vld [vmem:[%s2359 + $0x10] sm:$0xff]
    %v2363 = vld [vmem:[%s2359 + $0x18] sm:$0xff]
    %v2364 = vld [vmem:[%s2359 + $0x20] sm:$0xff]
    %v2365 = vld [vmem:[%s2359 + $0x28] sm:$0xff]
    %v2366 = vld [vmem:[%s2359 + $0x30] sm:$0xff]
    %v2367 = vld [vmem:[%s2359 + $0x38] sm:$0xff]
    %v2368 = vld [vmem:[%s2359 + $0x40] sm:$0xff]
    %v2369 = vld [vmem:[%s2359 + $0x48] sm:$0xff]
    %v2370 = vld [vmem:[%s2359 + $0x50] sm:$0xff]
    %v2371 = vld [vmem:[%s2359 + $0x58] sm:$0xff]
    %v2372 = vld [vmem:[%s2359 + $0x60] sm:$0xff]
    %v2373 = vld [vmem:[%s2359 + $0x68] sm:$0xff]
    %v2374 = vld [vmem:[%s2359 + $0x70] sm:$0xff]
    %v2375 = vld [vmem:[%s2359 + $0x78] sm:$0xff]
    %v2376 = vld [vmem:[%s2359 + $0x80] sm:$0xff]
    %v2377 = vld [vmem:[%s2359 + $0x88] sm:$0xff]
    %v2378 = vld [vmem:[%s2359 + $0x90] sm:$0xff]
    %v2379 = vld [vmem:[%s2359 + $0x98] sm:$0xff]
    %v2380 = vld [vmem:[%s2359 + $0xa0] sm:$0xff]
    %v2381 = vld [vmem:[%s2359 + $0xa8] sm:$0xff]
    %v2382 = vld [vmem:[%s2359 + $0xb0] sm:$0xff]
    %v2383 = vld [vmem:[%s2359 + $0xb8] sm:$0xff]
    %v2384 = vld [vmem:[%s2359 + $0xc0] sm:$0xff]
    %v2385 = vld [vmem:[%s2359 + $0xc8] sm:$0xff]
    %v2386 = vld [vmem:[%s2359 + $0xd0] sm:$0xff]
    %v2387 = vld [vmem:[%s2359 + $0xd8] sm:$0xff]
    %v2388 = vld [vmem:[%s2359 + $0xe0] sm:$0xff]
    %v2389 = vld [vmem:[%s2359 + $0xe8] sm:$0xff]
    %v2390 = vld [vmem:[%s2359 + $0xf0] sm:$0xff]
    %v2391 = vld [vmem:[%s2359 + $0xf8] sm:$0xff]
    %v2392 = vld [vmem:[%s2359 + $0x100] sm:$0xff]
    %v2393 = vld [vmem:[%s2359 + $0x108] sm:$0xff]
    %v2394 = vld [vmem:[%s2359 + $0x110] sm:$0xff]
    %v2395 = vld [vmem:[%s2359 + $0x118] sm:$0xff]
    %v2396 = vld [vmem:[%s2359 + $0x120] sm:$0xff]
    %v2397 = vld [vmem:[%s2359 + $0x128] sm:$0xff]
    %v2398 = vld [vmem:[%s2359 + $0x130] sm:$0xff]
    %v2399 = vld [vmem:[%s2359 + $0x138] sm:$0xff]
    %v2400 = vld [vmem:[%s2359 + $0x140] sm:$0xff]
    %v2401 = vld [vmem:[%s2359 + $0x148] sm:$0xff]
    %v2402 = vld [vmem:[%s2359 + $0x150] sm:$0xff]
    %v2403 = vld [vmem:[%s2359 + $0x158] sm:$0xff]
    %v2404 = vld [vmem:[%s2359 + $0x160] sm:$0xff]
    %v2405 = vld [vmem:[%s2359 + $0x168] sm:$0xff]
    %v2406 = vld [vmem:[%s2359 + $0x170] sm:$0xff]
    %v2407 = vld [vmem:[%s2359 + $0x178] sm:$0xff]
    %v2408 = vld [vmem:[%s2359 + $0x180] sm:$0xff]
    %v2409 = vld [vmem:[%s2359 + $0x188] sm:$0xff]
    %v2410 = vld [vmem:[%s2359 + $0x190] sm:$0xff]
    %v2411 = vld [vmem:[%s2359 + $0x198] sm:$0xff]
    %v2412 = vld [vmem:[%s2359 + $0x1a0] sm:$0xff]
    %v2413 = vld [vmem:[%s2359 + $0x1a8] sm:$0xff]
    %v2414 = vld [vmem:[%s2359 + $0x1b0] sm:$0xff]
    %v2415 = vld [vmem:[%s2359 + $0x1b8] sm:$0xff]
    %v2416 = vld [vmem:[%s2359 + $0x1c0] sm:$0xff]
    %v2417 = vld [vmem:[%s2359 + $0x1c8] sm:$0xff]
    %v2418 = vld [vmem:[%s2359 + $0x1d0] sm:$0xff]
    %v2419 = vld [vmem:[%s2359 + $0x1d8] sm:$0xff]
    %v2420 = vld [vmem:[%s2359 + $0x1e0] sm:$0xff]
    %v2421 = vld [vmem:[%s2359 + $0x1e8] sm:$0xff]
    %v2422 = vld [vmem:[%s2359 + $0x1f0] sm:$0xff]
    %v2423 = vld [vmem:[%s2359 + $0x1f8] sm:$0xff]
    %2424 = vmatprep.subr.mxu0 %v2361
    %2425 = vmatpush1.msra.mxu0 %v2360
    %2426 = vmatprep.subr.mxu0 %v2363
    %2427 = vmatpush1.msra.mxu0 %v2362
    %2428 = vmatprep.subr.mxu0 %v2365
    %2429 = vmatpush1.msra.mxu0 %v2364
    %2430 = vmatprep.subr.mxu0 %v2367
    %2431 = vmatpush1.msra.mxu0 %v2366
    %2432 = vmatprep.subr.mxu0 %v2369
    %2433 = vmatpush1.msra.mxu0 %v2368
    %2434 = vmatprep.subr.mxu0 %v2371
    %2435 = vmatpush1.msra.mxu0 %v2370
    %2436 = vmatprep.subr.mxu0 %v2373
    %2437 = vmatpush1.msra.mxu0 %v2372
    %2438 = vmatprep.subr.mxu0 %v2375
    %2439 = vmatpush1.msra.mxu0 %v2374
    %2440 = vmatprep.subr.mxu0 %v2377
    %2441 = vmatpush1.msra.mxu0 %v2376
    %2442 = vmatprep.subr.mxu0 %v2379
    %2443 = vmatpush1.msra.mxu0 %v2378
    %2444 = vmatprep.subr.mxu0 %v2381
    %2445 = vmatpush1.msra.mxu0 %v2380
    %2446 = vmatprep.subr.mxu0 %v2383
    %2447 = vmatpush1.msra.mxu0 %v2382
    %2448 = vmatprep.subr.mxu0 %v2385
    %2449 = vmatpush1.msra.mxu0 %v2384
    %2450 = vmatprep.subr.mxu0 %v2387
    %2451 = vmatpush1.msra.mxu0 %v2386
    %2452 = vmatprep.subr.mxu0 %v2389
    %2453 = vmatpush1.msra.mxu0 %v2388
    %2454 = vmatprep.subr.mxu0 %v2391
    %2455 = vmatpush1.msra.mxu0 %v2390
    %2456 = vmatprep.subr.mxu0 %v2393
    %2457 = vmatpush1.msra.mxu0 %v2392
    %2458 = vmatprep.subr.mxu0 %v2395
    %2459 = vmatpush1.msra.mxu0 %v2394
    %2460 = vmatprep.subr.mxu0 %v2397
    %2461 = vmatpush1.msra.mxu0 %v2396
    %2462 = vmatprep.subr.mxu0 %v2399
    %2463 = vmatpush1.msra.mxu0 %v2398
    %2464 = vmatprep.subr.mxu0 %v2401
    %2465 = vmatpush1.msra.mxu0 %v2400
    %2466 = vmatprep.subr.mxu0 %v2403
    %2467 = vmatpush1.msra.mxu0 %v2402
    %2468 = vmatprep.subr.mxu0 %v2405
    %2469 = vmatpush1.msra.mxu0 %v2404
    %2470 = vmatprep.subr.mxu0 %v2407
    %2471 = vmatpush1.msra.mxu0 %v2406
    %2472 = vmatprep.subr.mxu0 %v2409
    %2473 = vmatpush1.msra.mxu0 %v2408
    %2474 = vmatprep.subr.mxu0 %v2411
    %2475 = vmatpush1.msra.mxu0 %v2410
    %2476 = vmatprep.subr.mxu0 %v2413
    %2477 = vmatpush1.msra.mxu0 %v2412
    %2478 = vmatprep.subr.mxu0 %v2415
    %2479 = vmatpush1.msra.mxu0 %v2414
    %2480 = vmatprep.subr.mxu0 %v2417
    %2481 = vmatpush1.msra.mxu0 %v2416
    %2482 = vmatprep.subr.mxu0 %v2419
    %2483 = vmatpush1.msra.mxu0 %v2418
    %2484 = vmatprep.subr.mxu0 %v2421
    %2485 = vmatpush1.msra.mxu0 %v2420
    %2486 = vmatprep.subr.mxu0 %v2423
    %2487 = vmatpush1.msra.mxu0 %v2422
    %2488 = vmatprep.mubr.f32.mxu0 %v2358
    %2489 = vmatmul.mubr.f32.gmra.mrb[0].mxu0 %v2357
    %v2490 = vpop.f32.mrb[0].mxu0
    %v2491 = vadd.f32 0.0, %v2490
    %v2492 = vpop.f32.mrb[0].mxu0
    %v2493 = vadd.f32 0.0, %v2492
    %2494 = vdwg.mxu0
    %v2495 = vadd.f32 %v2116, %v2491
    %v2496 = vadd.f32 %v2117, %v2493
    %s2497 = scalar_lea.vmem [#allocation6], 3840
    %v2498 = vld [vmem:[%s2497] sm:$0xff]
    %v2499 = vld [vmem:[%s2497 + $0x8] sm:$0xff]
    %v2500 = vld [vmem:[%s2497 + $0x10] sm:$0xff]
    %v2501 = vld [vmem:[%s2497 + $0x18] sm:$0xff]
    %v2502 = vld [vmem:[%s2497 + $0x20] sm:$0xff]
    %v2503 = vld [vmem:[%s2497 + $0x28] sm:$0xff]
    %v2504 = vld [vmem:[%s2497 + $0x30] sm:$0xff]
    %v2505 = vld [vmem:[%s2497 + $0x38] sm:$0xff]
    %v2506 = vld [vmem:[%s2497 + $0x40] sm:$0xff]
    %v2507 = vld [vmem:[%s2497 + $0x48] sm:$0xff]
    %v2508 = vld [vmem:[%s2497 + $0x50] sm:$0xff]
    %v2509 = vld [vmem:[%s2497 + $0x58] sm:$0xff]
    %v2510 = vld [vmem:[%s2497 + $0x60] sm:$0xff]
    %v2511 = vld [vmem:[%s2497 + $0x68] sm:$0xff]
    %v2512 = vld [vmem:[%s2497 + $0x70] sm:$0xff]
    %v2513 = vld [vmem:[%s2497 + $0x78] sm:$0xff]
    %v2514 = vld [vmem:[%s2497 + $0x80] sm:$0xff]
    %v2515 = vld [vmem:[%s2497 + $0x88] sm:$0xff]
    %v2516 = vld [vmem:[%s2497 + $0x90] sm:$0xff]
    %v2517 = vld [vmem:[%s2497 + $0x98] sm:$0xff]
    %v2518 = vld [vmem:[%s2497 + $0xa0] sm:$0xff]
    %v2519 = vld [vmem:[%s2497 + $0xa8] sm:$0xff]
    %v2520 = vld [vmem:[%s2497 + $0xb0] sm:$0xff]
    %v2521 = vld [vmem:[%s2497 + $0xb8] sm:$0xff]
    %v2522 = vld [vmem:[%s2497 + $0xc0] sm:$0xff]
    %v2523 = vld [vmem:[%s2497 + $0xc8] sm:$0xff]
    %v2524 = vld [vmem:[%s2497 + $0xd0] sm:$0xff]
    %v2525 = vld [vmem:[%s2497 + $0xd8] sm:$0xff]
    %v2526 = vld [vmem:[%s2497 + $0xe0] sm:$0xff]
    %v2527 = vld [vmem:[%s2497 + $0xe8] sm:$0xff]
    %v2528 = vld [vmem:[%s2497 + $0xf0] sm:$0xff]
    %v2529 = vld [vmem:[%s2497 + $0xf8] sm:$0xff]
    %v2530 = vld [vmem:[%s2497 + $0x100] sm:$0xff]
    %v2531 = vld [vmem:[%s2497 + $0x108] sm:$0xff]
    %v2532 = vld [vmem:[%s2497 + $0x110] sm:$0xff]
    %v2533 = vld [vmem:[%s2497 + $0x118] sm:$0xff]
    %v2534 = vld [vmem:[%s2497 + $0x120] sm:$0xff]
    %v2535 = vld [vmem:[%s2497 + $0x128] sm:$0xff]
    %v2536 = vld [vmem:[%s2497 + $0x130] sm:$0xff]
    %v2537 = vld [vmem:[%s2497 + $0x138] sm:$0xff]
    %v2538 = vld [vmem:[%s2497 + $0x140] sm:$0xff]
    %v2539 = vld [vmem:[%s2497 + $0x148] sm:$0xff]
    %v2540 = vld [vmem:[%s2497 + $0x150] sm:$0xff]
    %v2541 = vld [vmem:[%s2497 + $0x158] sm:$0xff]
    %v2542 = vld [vmem:[%s2497 + $0x160] sm:$0xff]
    %v2543 = vld [vmem:[%s2497 + $0x168] sm:$0xff]
    %v2544 = vld [vmem:[%s2497 + $0x170] sm:$0xff]
    %v2545 = vld [vmem:[%s2497 + $0x178] sm:$0xff]
    %v2546 = vld [vmem:[%s2497 + $0x180] sm:$0xff]
    %v2547 = vld [vmem:[%s2497 + $0x188] sm:$0xff]
    %v2548 = vld [vmem:[%s2497 + $0x190] sm:$0xff]
    %v2549 = vld [vmem:[%s2497 + $0x198] sm:$0xff]
    %v2550 = vld [vmem:[%s2497 + $0x1a0] sm:$0xff]
    %v2551 = vld [vmem:[%s2497 + $0x1a8] sm:$0xff]
    %v2552 = vld [vmem:[%s2497 + $0x1b0] sm:$0xff]
    %v2553 = vld [vmem:[%s2497 + $0x1b8] sm:$0xff]
    %v2554 = vld [vmem:[%s2497 + $0x1c0] sm:$0xff]
    %v2555 = vld [vmem:[%s2497 + $0x1c8] sm:$0xff]
    %v2556 = vld [vmem:[%s2497 + $0x1d0] sm:$0xff]
    %v2557 = vld [vmem:[%s2497 + $0x1d8] sm:$0xff]
    %v2558 = vld [vmem:[%s2497 + $0x1e0] sm:$0xff]
    %v2559 = vld [vmem:[%s2497 + $0x1e8] sm:$0xff]
    %v2560 = vld [vmem:[%s2497 + $0x1f0] sm:$0xff]
    %v2561 = vld [vmem:[%s2497 + $0x1f8] sm:$0xff]
    %v2562 = vld [vmem:[%s2497 + $0x200] sm:$0xff]
    %v2563 = vld [vmem:[%s2497 + $0x208] sm:$0xff]
    %v2564 = vld [vmem:[%s2497 + $0x210] sm:$0xff]
    %v2565 = vld [vmem:[%s2497 + $0x218] sm:$0xff]
    %v2566 = vld [vmem:[%s2497 + $0x220] sm:$0xff]
    %v2567 = vld [vmem:[%s2497 + $0x228] sm:$0xff]
    %v2568 = vld [vmem:[%s2497 + $0x230] sm:$0xff]
    %v2569 = vld [vmem:[%s2497 + $0x238] sm:$0xff]
    %v2570 = vld [vmem:[%s2497 + $0x240] sm:$0xff]
    %v2571 = vld [vmem:[%s2497 + $0x248] sm:$0xff]
    %v2572 = vld [vmem:[%s2497 + $0x250] sm:$0xff]
    %v2573 = vld [vmem:[%s2497 + $0x258] sm:$0xff]
    %v2574 = vld [vmem:[%s2497 + $0x260] sm:$0xff]
    %v2575 = vld [vmem:[%s2497 + $0x268] sm:$0xff]
    %v2576 = vld [vmem:[%s2497 + $0x270] sm:$0xff]
    %v2577 = vld [vmem:[%s2497 + $0x278] sm:$0xff]
    %v2578 = vld [vmem:[%s2497 + $0x280] sm:$0xff]
    %v2579 = vld [vmem:[%s2497 + $0x288] sm:$0xff]
    %v2580 = vld [vmem:[%s2497 + $0x290] sm:$0xff]
    %v2581 = vld [vmem:[%s2497 + $0x298] sm:$0xff]
    %v2582 = vld [vmem:[%s2497 + $0x2a0] sm:$0xff]
    %v2583 = vld [vmem:[%s2497 + $0x2a8] sm:$0xff]
    %v2584 = vld [vmem:[%s2497 + $0x2b0] sm:$0xff]
    %v2585 = vld [vmem:[%s2497 + $0x2b8] sm:$0xff]
    %v2586 = vld [vmem:[%s2497 + $0x2c0] sm:$0xff]
    %v2587 = vld [vmem:[%s2497 + $0x2c8] sm:$0xff]
    %v2588 = vld [vmem:[%s2497 + $0x2d0] sm:$0xff]
    %v2589 = vld [vmem:[%s2497 + $0x2d8] sm:$0xff]
    %v2590 = vld [vmem:[%s2497 + $0x2e0] sm:$0xff]
    %v2591 = vld [vmem:[%s2497 + $0x2e8] sm:$0xff]
    %v2592 = vld [vmem:[%s2497 + $0x2f0] sm:$0xff]
    %v2593 = vld [vmem:[%s2497 + $0x2f8] sm:$0xff]
    %2594 = vmatprep.subr.mxu0 %v2499
    %2595 = vmatpush1.msra.mxu0 %v2498
    %2596 = vmatprep.subr.mxu0 %v2501
    %2597 = vmatpush1.msra.mxu0 %v2500
    %2598 = vmatprep.subr.mxu0 %v2503
    %2599 = vmatpush1.msra.mxu0 %v2502
    %2600 = vmatprep.subr.mxu0 %v2505
    %2601 = vmatpush1.msra.mxu0 %v2504
    %2602 = vmatprep.subr.mxu0 %v2507
    %2603 = vmatpush1.msra.mxu0 %v2506
    %2604 = vmatprep.subr.mxu0 %v2509
    %2605 = vmatpush1.msra.mxu0 %v2508
    %2606 = vmatprep.subr.mxu0 %v2511
    %2607 = vmatpush1.msra.mxu0 %v2510
    %2608 = vmatprep.subr.mxu0 %v2513
    %2609 = vmatpush1.msra.mxu0 %v2512
    %2610 = vmatprep.subr.mxu0 %v2515
    %2611 = vmatpush1.msra.mxu0 %v2514
    %2612 = vmatprep.subr.mxu0 %v2517
    %2613 = vmatpush1.msra.mxu0 %v2516
    %2614 = vmatprep.subr.mxu0 %v2519
    %2615 = vmatpush1.msra.mxu0 %v2518
    %2616 = vmatprep.subr.mxu0 %v2521
    %2617 = vmatpush1.msra.mxu0 %v2520
    %2618 = vmatprep.subr.mxu0 %v2523
    %2619 = vmatpush1.msra.mxu0 %v2522
    %2620 = vmatprep.subr.mxu0 %v2525
    %2621 = vmatpush1.msra.mxu0 %v2524
    %2622 = vmatprep.subr.mxu0 %v2527
    %2623 = vmatpush1.msra.mxu0 %v2526
    %2624 = vmatprep.subr.mxu0 %v2529
    %2625 = vmatpush1.msra.mxu0 %v2528
    %2626 = vmatprep.subr.mxu0 %v2531
    %2627 = vmatpush1.msra.mxu0 %v2530
    %2628 = vmatprep.subr.mxu0 %v2533
    %2629 = vmatpush1.msra.mxu0 %v2532
    %2630 = vmatprep.subr.mxu0 %v2535
    %2631 = vmatpush1.msra.mxu0 %v2534
    %2632 = vmatprep.subr.mxu0 %v2537
    %2633 = vmatpush1.msra.mxu0 %v2536
    %2634 = vmatprep.subr.mxu0 %v2539
    %2635 = vmatpush1.msra.mxu0 %v2538
    %2636 = vmatprep.subr.mxu0 %v2541
    %2637 = vmatpush1.msra.mxu0 %v2540
    %2638 = vmatprep.subr.mxu0 %v2543
    %2639 = vmatpush1.msra.mxu0 %v2542
    %2640 = vmatprep.subr.mxu0 %v2545
    %2641 = vmatpush1.msra.mxu0 %v2544
    %2642 = vmatprep.subr.mxu0 %v2547
    %2643 = vmatpush1.msra.mxu0 %v2546
    %2644 = vmatprep.subr.mxu0 %v2549
    %2645 = vmatpush1.msra.mxu0 %v2548
    %2646 = vmatprep.subr.mxu0 %v2551
    %2647 = vmatpush1.msra.mxu0 %v2550
    %2648 = vmatprep.subr.mxu0 %v2553
    %2649 = vmatpush1.msra.mxu0 %v2552
    %2650 = vmatprep.subr.mxu0 %v2555
    %2651 = vmatpush1.msra.mxu0 %v2554
    %2652 = vmatprep.subr.mxu0 %v2557
    %2653 = vmatpush1.msra.mxu0 %v2556
    %2654 = vmatprep.subr.mxu0 %v2559
    %2655 = vmatpush1.msra.mxu0 %v2558
    %2656 = vmatprep.subr.mxu0 %v2561
    %2657 = vmatpush1.msra.mxu0 %v2560
    %2658 = vmatprep.mubr.f32.mxu0 %v593
    %2659 = vmatmul.mubr.f32.gmra.mrb[0].mxu0 %v592
    %v2660 = vpop.f32.mrb[0].mxu0
    %v2661 = vadd.f32 %v697, %v2660
    %v2662 = vpop.f32.mrb[0].mxu0
    %v2663 = vadd.f32 %v701, %v2662
    %2664 = vdwg.mxu0
    %2665 = vmatprep.subr.mxu0 %v2563
    %2666 = vmatpush1.msra.mxu0 %v2562
    %2667 = vmatprep.subr.mxu0 %v2565
    %2668 = vmatpush1.msra.mxu0 %v2564
    %2669 = vmatprep.subr.mxu0 %v2567
    %2670 = vmatpush1.msra.mxu0 %v2566
    %2671 = vmatprep.subr.mxu0 %v2569
    %2672 = vmatpush1.msra.mxu0 %v2568
    %2673 = vmatprep.subr.mxu0 %v2571
    %2674 = vmatpush1.msra.mxu0 %v2570
    %2675 = vmatprep.subr.mxu0 %v2573
    %2676 = vmatpush1.msra.mxu0 %v2572
    %2677 = vmatprep.subr.mxu0 %v2575
    %2678 = vmatpush1.msra.mxu0 %v2574
    %2679 = vmatprep.subr.mxu0 %v2577
    %2680 = vmatpush1.msra.mxu0 %v2576
    %2681 = vmatprep.subr.mxu0 %v2579
    %2682 = vmatpush1.msra.mxu0 %v2578
    %2683 = vmatprep.subr.mxu0 %v2581
    %2684 = vmatpush1.msra.mxu0 %v2580
    %2685 = vmatprep.subr.mxu0 %v2583
    %2686 = vmatpush1.msra.mxu0 %v2582
    %2687 = vmatprep.subr.mxu0 %v2585
    %2688 = vmatpush1.msra.mxu0 %v2584
    %2689 = vmatprep.subr.mxu0 %v2587
    %2690 = vmatpush1.msra.mxu0 %v2586
    %2691 = vmatprep.subr.mxu0 %v2589
    %2692 = vmatpush1.msra.mxu0 %v2588
    %2693 = vmatprep.subr.mxu0 %v2591
    %2694 = vmatpush1.msra.mxu0 %v2590
    %2695 = vmatprep.subr.mxu0 %v2593
    %2696 = vmatpush1.msra.mxu0 %v2592
    %2697 = vmatprep.subr.mxu0 0.0
    %2698 = vmatpush1.msra.mxu0 0.0
    %2699 = vmatprep.subr.mxu0 0.0
    %2700 = vmatpush1.msra.mxu0 0.0
    %2701 = vmatprep.subr.mxu0 0.0
    %2702 = vmatpush1.msra.mxu0 0.0
    %2703 = vmatprep.subr.mxu0 0.0
    %2704 = vmatpush1.msra.mxu0 0.0
    %2705 = vmatprep.subr.mxu0 0.0
    %2706 = vmatpush1.msra.mxu0 0.0
    %2707 = vmatprep.subr.mxu0 0.0
    %2708 = vmatpush1.msra.mxu0 0.0
    %2709 = vmatprep.subr.mxu0 0.0
    %2710 = vmatpush1.msra.mxu0 0.0
    %2711 = vmatprep.subr.mxu0 0.0
    %2712 = vmatpush1.msra.mxu0 0.0
    %2713 = vmatprep.subr.mxu0 0.0
    %2714 = vmatpush1.msra.mxu0 0.0
    %2715 = vmatprep.subr.mxu0 0.0
    %2716 = vmatpush1.msra.mxu0 0.0
    %2717 = vmatprep.subr.mxu0 0.0
    %2718 = vmatpush1.msra.mxu0 0.0
    %2719 = vmatprep.subr.mxu0 0.0
    %2720 = vmatpush1.msra.mxu0 0.0
    %2721 = vmatprep.subr.mxu0 0.0
    %2722 = vmatpush1.msra.mxu0 0.0
    %2723 = vmatprep.subr.mxu0 0.0
    %2724 = vmatpush1.msra.mxu0 0.0
    %2725 = vmatprep.subr.mxu0 0.0
    %2726 = vmatpush1.msra.mxu0 0.0
    %2727 = vmatprep.subr.mxu0 0.0
    %2728 = vmatpush1.msra.mxu0 0.0
    %2729 = vmatprep.mubr.f32.mxu0 0.0
    %2730 = vmatmul.mubr.f32.gmra.mrb[0].mxu0 %v594
    %v2731 = vpop.f32.mrb[0].mxu0
    %v2732 = vadd.f32 %v2661, %v2731
    %v2733 = vpop.f32.mrb[0].mxu0
    %v2734 = vadd.f32 %v2663, %v2733
    %2735 = vdwg.mxu0
    %v2736 = vmax.f32 %v2732, 0.0
    %v2737 = vmax.f32 %v2734, 0.0
    %s2738 = scalar_lea.vmem [#allocation9], 2560
    %v2739 = vld [vmem:[%s2738] sm:$0xff]
    %v2740 = vld [vmem:[%s2738 + $0x8] sm:$0xff]
    %v2741 = vld [vmem:[%s2738 + $0x10] sm:$0xff]
    %v2742 = vld [vmem:[%s2738 + $0x18] sm:$0xff]
    %v2743 = vld [vmem:[%s2738 + $0x20] sm:$0xff]
    %v2744 = vld [vmem:[%s2738 + $0x28] sm:$0xff]
    %v2745 = vld [vmem:[%s2738 + $0x30] sm:$0xff]
    %v2746 = vld [vmem:[%s2738 + $0x38] sm:$0xff]
    %v2747 = vld [vmem:[%s2738 + $0x40] sm:$0xff]
    %v2748 = vld [vmem:[%s2738 + $0x48] sm:$0xff]
    %v2749 = vld [vmem:[%s2738 + $0x50] sm:$0xff]
    %v2750 = vld [vmem:[%s2738 + $0x58] sm:$0xff]
    %v2751 = vld [vmem:[%s2738 + $0x60] sm:$0xff]
    %v2752 = vld [vmem:[%s2738 + $0x68] sm:$0xff]
    %v2753 = vld [vmem:[%s2738 + $0x70] sm:$0xff]
    %v2754 = vld [vmem:[%s2738 + $0x78] sm:$0xff]
    %v2755 = vld [vmem:[%s2738 + $0x80] sm:$0xff]
    %v2756 = vld [vmem:[%s2738 + $0x88] sm:$0xff]
    %v2757 = vld [vmem:[%s2738 + $0x90] sm:$0xff]
    %v2758 = vld [vmem:[%s2738 + $0x98] sm:$0xff]
    %v2759 = vld [vmem:[%s2738 + $0xa0] sm:$0xff]
    %v2760 = vld [vmem:[%s2738 + $0xa8] sm:$0xff]
    %v2761 = vld [vmem:[%s2738 + $0xb0] sm:$0xff]
    %v2762 = vld [vmem:[%s2738 + $0xb8] sm:$0xff]
    %v2763 = vld [vmem:[%s2738 + $0xc0] sm:$0xff]
    %v2764 = vld [vmem:[%s2738 + $0xc8] sm:$0xff]
    %v2765 = vld [vmem:[%s2738 + $0xd0] sm:$0xff]
    %v2766 = vld [vmem:[%s2738 + $0xd8] sm:$0xff]
    %v2767 = vld [vmem:[%s2738 + $0xe0] sm:$0xff]
    %v2768 = vld [vmem:[%s2738 + $0xe8] sm:$0xff]
    %v2769 = vld [vmem:[%s2738 + $0xf0] sm:$0xff]
    %v2770 = vld [vmem:[%s2738 + $0xf8] sm:$0xff]
    %v2771 = vld [vmem:[%s2738 + $0x100] sm:$0xff]
    %v2772 = vld [vmem:[%s2738 + $0x108] sm:$0xff]
    %v2773 = vld [vmem:[%s2738 + $0x110] sm:$0xff]
    %v2774 = vld [vmem:[%s2738 + $0x118] sm:$0xff]
    %v2775 = vld [vmem:[%s2738 + $0x120] sm:$0xff]
    %v2776 = vld [vmem:[%s2738 + $0x128] sm:$0xff]
    %v2777 = vld [vmem:[%s2738 + $0x130] sm:$0xff]
    %v2778 = vld [vmem:[%s2738 + $0x138] sm:$0xff]
    %v2779 = vld [vmem:[%s2738 + $0x140] sm:$0xff]
    %v2780 = vld [vmem:[%s2738 + $0x148] sm:$0xff]
    %v2781 = vld [vmem:[%s2738 + $0x150] sm:$0xff]
    %v2782 = vld [vmem:[%s2738 + $0x158] sm:$0xff]
    %v2783 = vld [vmem:[%s2738 + $0x160] sm:$0xff]
    %v2784 = vld [vmem:[%s2738 + $0x168] sm:$0xff]
    %v2785 = vld [vmem:[%s2738 + $0x170] sm:$0xff]
    %v2786 = vld [vmem:[%s2738 + $0x178] sm:$0xff]
    %v2787 = vld [vmem:[%s2738 + $0x180] sm:$0xff]
    %v2788 = vld [vmem:[%s2738 + $0x188] sm:$0xff]
    %v2789 = vld [vmem:[%s2738 + $0x190] sm:$0xff]
    %v2790 = vld [vmem:[%s2738 + $0x198] sm:$0xff]
    %v2791 = vld [vmem:[%s2738 + $0x1a0] sm:$0xff]
    %v2792 = vld [vmem:[%s2738 + $0x1a8] sm:$0xff]
    %v2793 = vld [vmem:[%s2738 + $0x1b0] sm:$0xff]
    %v2794 = vld [vmem:[%s2738 + $0x1b8] sm:$0xff]
    %v2795 = vld [vmem:[%s2738 + $0x1c0] sm:$0xff]
    %v2796 = vld [vmem:[%s2738 + $0x1c8] sm:$0xff]
    %v2797 = vld [vmem:[%s2738 + $0x1d0] sm:$0xff]
    %v2798 = vld [vmem:[%s2738 + $0x1d8] sm:$0xff]
    %v2799 = vld [vmem:[%s2738 + $0x1e0] sm:$0xff]
    %v2800 = vld [vmem:[%s2738 + $0x1e8] sm:$0xff]
    %v2801 = vld [vmem:[%s2738 + $0x1f0] sm:$0xff]
    %v2802 = vld [vmem:[%s2738 + $0x1f8] sm:$0xff]
    %2803 = vmatprep.subr.mxu0 %v2740
    %2804 = vmatpush1.msra.mxu0 %v2739
    %2805 = vmatprep.subr.mxu0 %v2742
    %2806 = vmatpush1.msra.mxu0 %v2741
    %2807 = vmatprep.subr.mxu0 %v2744
    %2808 = vmatpush1.msra.mxu0 %v2743
    %2809 = vmatprep.subr.mxu0 %v2746
    %2810 = vmatpush1.msra.mxu0 %v2745
    %2811 = vmatprep.subr.mxu0 %v2748
    %2812 = vmatpush1.msra.mxu0 %v2747
    %2813 = vmatprep.subr.mxu0 %v2750
    %2814 = vmatpush1.msra.mxu0 %v2749
    %2815 = vmatprep.subr.mxu0 %v2752
    %2816 = vmatpush1.msra.mxu0 %v2751
    %2817 = vmatprep.subr.mxu0 %v2754
    %2818 = vmatpush1.msra.mxu0 %v2753
    %2819 = vmatprep.subr.mxu0 %v2756
    %2820 = vmatpush1.msra.mxu0 %v2755
    %2821 = vmatprep.subr.mxu0 %v2758
    %2822 = vmatpush1.msra.mxu0 %v2757
    %2823 = vmatprep.subr.mxu0 %v2760
    %2824 = vmatpush1.msra.mxu0 %v2759
    %2825 = vmatprep.subr.mxu0 %v2762
    %2826 = vmatpush1.msra.mxu0 %v2761
    %2827 = vmatprep.subr.mxu0 %v2764
    %2828 = vmatpush1.msra.mxu0 %v2763
    %2829 = vmatprep.subr.mxu0 %v2766
    %2830 = vmatpush1.msra.mxu0 %v2765
    %2831 = vmatprep.subr.mxu0 %v2768
    %2832 = vmatpush1.msra.mxu0 %v2767
    %2833 = vmatprep.subr.mxu0 %v2770
    %2834 = vmatpush1.msra.mxu0 %v2769
    %2835 = vmatprep.subr.mxu0 %v2772
    %2836 = vmatpush1.msra.mxu0 %v2771
    %2837 = vmatprep.subr.mxu0 %v2774
    %2838 = vmatpush1.msra.mxu0 %v2773
    %2839 = vmatprep.subr.mxu0 %v2776
    %2840 = vmatpush1.msra.mxu0 %v2775
    %2841 = vmatprep.subr.mxu0 %v2778
    %2842 = vmatpush1.msra.mxu0 %v2777
    %2843 = vmatprep.subr.mxu0 %v2780
    %2844 = vmatpush1.msra.mxu0 %v2779
    %2845 = vmatprep.subr.mxu0 %v2782
    %2846 = vmatpush1.msra.mxu0 %v2781
    %2847 = vmatprep.subr.mxu0 %v2784
    %2848 = vmatpush1.msra.mxu0 %v2783
    %2849 = vmatprep.subr.mxu0 %v2786
    %2850 = vmatpush1.msra.mxu0 %v2785
    %2851 = vmatprep.subr.mxu0 %v2788
    %2852 = vmatpush1.msra.mxu0 %v2787
    %2853 = vmatprep.subr.mxu0 %v2790
    %2854 = vmatpush1.msra.mxu0 %v2789
    %2855 = vmatprep.subr.mxu0 %v2792
    %2856 = vmatpush1.msra.mxu0 %v2791
    %2857 = vmatprep.subr.mxu0 %v2794
    %2858 = vmatpush1.msra.mxu0 %v2793
    %2859 = vmatprep.subr.mxu0 %v2796
    %2860 = vmatpush1.msra.mxu0 %v2795
    %2861 = vmatprep.subr.mxu0 %v2798
    %2862 = vmatpush1.msra.mxu0 %v2797
    %2863 = vmatprep.subr.mxu0 %v2800
    %2864 = vmatpush1.msra.mxu0 %v2799
    %2865 = vmatprep.subr.mxu0 %v2802
    %2866 = vmatpush1.msra.mxu0 %v2801
    %2867 = vmatprep.mubr.f32.mxu0 %v2737
    %2868 = vmatmul.mubr.f32.gmra.mrb[0].mxu0 %v2736
    %v2869 = vpop.f32.mrb[0].mxu0
    %v2870 = vadd.f32 0.0, %v2869
    %v2871 = vpop.f32.mrb[0].mxu0
    %v2872 = vadd.f32 0.0, %v2871
    %2873 = vdwg.mxu0
    %v2874 = vadd.f32 %v2495, %v2870
    %v2875 = vadd.f32 %v2496, %v2872
    %s2876 = scalar_lea.vmem [#allocation6], 4608
    %v2877 = vld [vmem:[%s2876] sm:$0xff]
    %v2878 = vld [vmem:[%s2876 + $0x8] sm:$0xff]
    %v2879 = vld [vmem:[%s2876 + $0x10] sm:$0xff]
    %v2880 = vld [vmem:[%s2876 + $0x18] sm:$0xff]
    %v2881 = vld [vmem:[%s2876 + $0x20] sm:$0xff]
    %v2882 = vld [vmem:[%s2876 + $0x28] sm:$0xff]
    %v2883 = vld [vmem:[%s2876 + $0x30] sm:$0xff]
    %v2884 = vld [vmem:[%s2876 + $0x38] sm:$0xff]
    %v2885 = vld [vmem:[%s2876 + $0x40] sm:$0xff]
    %v2886 = vld [vmem:[%s2876 + $0x48] sm:$0xff]
    %v2887 = vld [vmem:[%s2876 + $0x50] sm:$0xff]
    %v2888 = vld [vmem:[%s2876 + $0x58] sm:$0xff]
    %v2889 = vld [vmem:[%s2876 + $0x60] sm:$0xff]
    %v2890 = vld [vmem:[%s2876 + $0x68] sm:$0xff]
    %v2891 = vld [vmem:[%s2876 + $0x70] sm:$0xff]
    %v2892 = vld [vmem:[%s2876 + $0x78] sm:$0xff]
    %v2893 = vld [vmem:[%s2876 + $0x80] sm:$0xff]
    %v2894 = vld [vmem:[%s2876 + $0x88] sm:$0xff]
    %v2895 = vld [vmem:[%s2876 + $0x90] sm:$0xff]
    %v2896 = vld [vmem:[%s2876 + $0x98] sm:$0xff]
    %v2897 = vld [vmem:[%s2876 + $0xa0] sm:$0xff]
    %v2898 = vld [vmem:[%s2876 + $0xa8] sm:$0xff]
    %v2899 = vld [vmem:[%s2876 + $0xb0] sm:$0xff]
    %v2900 = vld [vmem:[%s2876 + $0xb8] sm:$0xff]
    %v2901 = vld [vmem:[%s2876 + $0xc0] sm:$0xff]
    %v2902 = vld [vmem:[%s2876 + $0xc8] sm:$0xff]
    %v2903 = vld [vmem:[%s2876 + $0xd0] sm:$0xff]
    %v2904 = vld [vmem:[%s2876 + $0xd8] sm:$0xff]
    %v2905 = vld [vmem:[%s2876 + $0xe0] sm:$0xff]
    %v2906 = vld [vmem:[%s2876 + $0xe8] sm:$0xff]
    %v2907 = vld [vmem:[%s2876 + $0xf0] sm:$0xff]
    %v2908 = vld [vmem:[%s2876 + $0xf8] sm:$0xff]
    %v2909 = vld [vmem:[%s2876 + $0x100] sm:$0xff]
    %v2910 = vld [vmem:[%s2876 + $0x108] sm:$0xff]
    %v2911 = vld [vmem:[%s2876 + $0x110] sm:$0xff]
    %v2912 = vld [vmem:[%s2876 + $0x118] sm:$0xff]
    %v2913 = vld [vmem:[%s2876 + $0x120] sm:$0xff]
    %v2914 = vld [vmem:[%s2876 + $0x128] sm:$0xff]
    %v2915 = vld [vmem:[%s2876 + $0x130] sm:$0xff]
    %v2916 = vld [vmem:[%s2876 + $0x138] sm:$0xff]
    %v2917 = vld [vmem:[%s2876 + $0x140] sm:$0xff]
    %v2918 = vld [vmem:[%s2876 + $0x148] sm:$0xff]
    %v2919 = vld [vmem:[%s2876 + $0x150] sm:$0xff]
    %v2920 = vld [vmem:[%s2876 + $0x158] sm:$0xff]
    %v2921 = vld [vmem:[%s2876 + $0x160] sm:$0xff]
    %v2922 = vld [vmem:[%s2876 + $0x168] sm:$0xff]
    %v2923 = vld [vmem:[%s2876 + $0x170] sm:$0xff]
    %v2924 = vld [vmem:[%s2876 + $0x178] sm:$0xff]
    %v2925 = vld [vmem:[%s2876 + $0x180] sm:$0xff]
    %v2926 = vld [vmem:[%s2876 + $0x188] sm:$0xff]
    %v2927 = vld [vmem:[%s2876 + $0x190] sm:$0xff]
    %v2928 = vld [vmem:[%s2876 + $0x198] sm:$0xff]
    %v2929 = vld [vmem:[%s2876 + $0x1a0] sm:$0xff]
    %v2930 = vld [vmem:[%s2876 + $0x1a8] sm:$0xff]
    %v2931 = vld [vmem:[%s2876 + $0x1b0] sm:$0xff]
    %v2932 = vld [vmem:[%s2876 + $0x1b8] sm:$0xff]
    %v2933 = vld [vmem:[%s2876 + $0x1c0] sm:$0xff]
    %v2934 = vld [vmem:[%s2876 + $0x1c8] sm:$0xff]
    %v2935 = vld [vmem:[%s2876 + $0x1d0] sm:$0xff]
    %v2936 = vld [vmem:[%s2876 + $0x1d8] sm:$0xff]
    %v2937 = vld [vmem:[%s2876 + $0x1e0] sm:$0xff]
    %v2938 = vld [vmem:[%s2876 + $0x1e8] sm:$0xff]
    %v2939 = vld [vmem:[%s2876 + $0x1f0] sm:$0xff]
    %v2940 = vld [vmem:[%s2876 + $0x1f8] sm:$0xff]
    %v2941 = vld [vmem:[%s2876 + $0x200] sm:$0xff]
    %v2942 = vld [vmem:[%s2876 + $0x208] sm:$0xff]
    %v2943 = vld [vmem:[%s2876 + $0x210] sm:$0xff]
    %v2944 = vld [vmem:[%s2876 + $0x218] sm:$0xff]
    %v2945 = vld [vmem:[%s2876 + $0x220] sm:$0xff]
    %v2946 = vld [vmem:[%s2876 + $0x228] sm:$0xff]
    %v2947 = vld [vmem:[%s2876 + $0x230] sm:$0xff]
    %v2948 = vld [vmem:[%s2876 + $0x238] sm:$0xff]
    %v2949 = vld [vmem:[%s2876 + $0x240] sm:$0xff]
    %v2950 = vld [vmem:[%s2876 + $0x248] sm:$0xff]
    %v2951 = vld [vmem:[%s2876 + $0x250] sm:$0xff]
    %v2952 = vld [vmem:[%s2876 + $0x258] sm:$0xff]
    %v2953 = vld [vmem:[%s2876 + $0x260] sm:$0xff]
    %v2954 = vld [vmem:[%s2876 + $0x268] sm:$0xff]
    %v2955 = vld [vmem:[%s2876 + $0x270] sm:$0xff]
    %v2956 = vld [vmem:[%s2876 + $0x278] sm:$0xff]
    %v2957 = vld [vmem:[%s2876 + $0x280] sm:$0xff]
    %v2958 = vld [vmem:[%s2876 + $0x288] sm:$0xff]
    %v2959 = vld [vmem:[%s2876 + $0x290] sm:$0xff]
    %v2960 = vld [vmem:[%s2876 + $0x298] sm:$0xff]
    %v2961 = vld [vmem:[%s2876 + $0x2a0] sm:$0xff]
    %v2962 = vld [vmem:[%s2876 + $0x2a8] sm:$0xff]
    %v2963 = vld [vmem:[%s2876 + $0x2b0] sm:$0xff]
    %v2964 = vld [vmem:[%s2876 + $0x2b8] sm:$0xff]
    %v2965 = vld [vmem:[%s2876 + $0x2c0] sm:$0xff]
    %v2966 = vld [vmem:[%s2876 + $0x2c8] sm:$0xff]
    %v2967 = vld [vmem:[%s2876 + $0x2d0] sm:$0xff]
    %v2968 = vld [vmem:[%s2876 + $0x2d8] sm:$0xff]
    %v2969 = vld [vmem:[%s2876 + $0x2e0] sm:$0xff]
    %v2970 = vld [vmem:[%s2876 + $0x2e8] sm:$0xff]
    %v2971 = vld [vmem:[%s2876 + $0x2f0] sm:$0xff]
    %v2972 = vld [vmem:[%s2876 + $0x2f8] sm:$0xff]
    %2973 = vmatprep.subr.mxu0 %v2878
    %2974 = vmatpush1.msra.mxu0 %v2877
    %2975 = vmatprep.subr.mxu0 %v2880
    %2976 = vmatpush1.msra.mxu0 %v2879
    %2977 = vmatprep.subr.mxu0 %v2882
    %2978 = vmatpush1.msra.mxu0 %v2881
    %2979 = vmatprep.subr.mxu0 %v2884
    %2980 = vmatpush1.msra.mxu0 %v2883
    %2981 = vmatprep.subr.mxu0 %v2886
    %2982 = vmatpush1.msra.mxu0 %v2885
    %2983 = vmatprep.subr.mxu0 %v2888
    %2984 = vmatpush1.msra.mxu0 %v2887
    %2985 = vmatprep.subr.mxu0 %v2890
    %2986 = vmatpush1.msra.mxu0 %v2889
    %2987 = vmatprep.subr.mxu0 %v2892
    %2988 = vmatpush1.msra.mxu0 %v2891
    %2989 = vmatprep.subr.mxu0 %v2894
    %2990 = vmatpush1.msra.mxu0 %v2893
    %2991 = vmatprep.subr.mxu0 %v2896
    %2992 = vmatpush1.msra.mxu0 %v2895
    %2993 = vmatprep.subr.mxu0 %v2898
    %2994 = vmatpush1.msra.mxu0 %v2897
    %2995 = vmatprep.subr.mxu0 %v2900
    %2996 = vmatpush1.msra.mxu0 %v2899
    %2997 = vmatprep.subr.mxu0 %v2902
    %2998 = vmatpush1.msra.mxu0 %v2901
    %2999 = vmatprep.subr.mxu0 %v2904
    %3000 = vmatpush1.msra.mxu0 %v2903
    %3001 = vmatprep.subr.mxu0 %v2906
    %3002 = vmatpush1.msra.mxu0 %v2905
    %3003 = vmatprep.subr.mxu0 %v2908
    %3004 = vmatpush1.msra.mxu0 %v2907
    %3005 = vmatprep.subr.mxu0 %v2910
    %3006 = vmatpush1.msra.mxu0 %v2909
    %3007 = vmatprep.subr.mxu0 %v2912
    %3008 = vmatpush1.msra.mxu0 %v2911
    %3009 = vmatprep.subr.mxu0 %v2914
    %3010 = vmatpush1.msra.mxu0 %v2913
    %3011 = vmatprep.subr.mxu0 %v2916
    %3012 = vmatpush1.msra.mxu0 %v2915
    %3013 = vmatprep.subr.mxu0 %v2918
    %3014 = vmatpush1.msra.mxu0 %v2917
    %3015 = vmatprep.subr.mxu0 %v2920
    %3016 = vmatpush1.msra.mxu0 %v2919
    %3017 = vmatprep.subr.mxu0 %v2922
    %3018 = vmatpush1.msra.mxu0 %v2921
    %3019 = vmatprep.subr.mxu0 %v2924
    %3020 = vmatpush1.msra.mxu0 %v2923
    %3021 = vmatprep.subr.mxu0 %v2926
    %3022 = vmatpush1.msra.mxu0 %v2925
    %3023 = vmatprep.subr.mxu0 %v2928
    %3024 = vmatpush1.msra.mxu0 %v2927
    %3025 = vmatprep.subr.mxu0 %v2930
    %3026 = vmatpush1.msra.mxu0 %v2929
    %3027 = vmatprep.subr.mxu0 %v2932
    %3028 = vmatpush1.msra.mxu0 %v2931
    %3029 = vmatprep.subr.mxu0 %v2934
    %3030 = vmatpush1.msra.mxu0 %v2933
    %3031 = vmatprep.subr.mxu0 %v2936
    %3032 = vmatpush1.msra.mxu0 %v2935
    %3033 = vmatprep.subr.mxu0 %v2938
    %3034 = vmatpush1.msra.mxu0 %v2937
    %3035 = vmatprep.subr.mxu0 %v2940
    %3036 = vmatpush1.msra.mxu0 %v2939
    %3037 = vmatprep.mubr.f32.mxu0 %v594
    %3038 = vmatmul.mubr.f32.gmra.mrb[0].mxu0 %v593
    %v3039 = vpop.f32.mrb[0].mxu0
    %v3040 = vadd.f32 %v697, %v3039
    %v3041 = vpop.f32.mrb[0].mxu0
    %v3042 = vadd.f32 %v701, %v3041
    %3043 = vdwg.mxu0
    %3044 = vmatprep.subr.mxu0 %v2942
    %3045 = vmatpush1.msra.mxu0 %v2941
    %3046 = vmatprep.subr.mxu0 %v2944
    %3047 = vmatpush1.msra.mxu0 %v2943
    %3048 = vmatprep.subr.mxu0 %v2946
    %3049 = vmatpush1.msra.mxu0 %v2945
    %3050 = vmatprep.subr.mxu0 %v2948
    %3051 = vmatpush1.msra.mxu0 %v2947
    %3052 = vmatprep.subr.mxu0 %v2950
    %3053 = vmatpush1.msra.mxu0 %v2949
    %3054 = vmatprep.subr.mxu0 %v2952
    %3055 = vmatpush1.msra.mxu0 %v2951
    %3056 = vmatprep.subr.mxu0 %v2954
    %3057 = vmatpush1.msra.mxu0 %v2953
    %3058 = vmatprep.subr.mxu0 %v2956
    %3059 = vmatpush1.msra.mxu0 %v2955
    %3060 = vmatprep.subr.mxu0 %v2958
    %3061 = vmatpush1.msra.mxu0 %v2957
    %3062 = vmatprep.subr.mxu0 %v2960
    %3063 = vmatpush1.msra.mxu0 %v2959
    %3064 = vmatprep.subr.mxu0 %v2962
    %3065 = vmatpush1.msra.mxu0 %v2961
    %3066 = vmatprep.subr.mxu0 %v2964
    %3067 = vmatpush1.msra.mxu0 %v2963
    %3068 = vmatprep.subr.mxu0 %v2966
    %3069 = vmatpush1.msra.mxu0 %v2965
    %3070 = vmatprep.subr.mxu0 %v2968
    %3071 = vmatpush1.msra.mxu0 %v2967
    %3072 = vmatprep.subr.mxu0 %v2970
    %3073 = vmatpush1.msra.mxu0 %v2969
    %3074 = vmatprep.subr.mxu0 %v2972
    %3075 = vmatpush1.msra.mxu0 %v2971
    %3076 = vmatprep.subr.mxu0 0.0
    %3077 = vmatpush1.msra.mxu0 0.0
    %3078 = vmatprep.subr.mxu0 0.0
    %3079 = vmatpush1.msra.mxu0 0.0
    %3080 = vmatprep.subr.mxu0 0.0
    %3081 = vmatpush1.msra.mxu0 0.0
    %3082 = vmatprep.subr.mxu0 0.0
    %3083 = vmatpush1.msra.mxu0 0.0
    %3084 = vmatprep.subr.mxu0 0.0
    %3085 = vmatpush1.msra.mxu0 0.0
    %3086 = vmatprep.subr.mxu0 0.0
    %3087 = vmatpush1.msra.mxu0 0.0
    %3088 = vmatprep.subr.mxu0 0.0
    %3089 = vmatpush1.msra.mxu0 0.0
    %3090 = vmatprep.subr.mxu0 0.0
    %3091 = vmatpush1.msra.mxu0 0.0
    %3092 = vmatprep.subr.mxu0 0.0
    %3093 = vmatpush1.msra.mxu0 0.0
    %3094 = vmatprep.subr.mxu0 0.0
    %3095 = vmatpush1.msra.mxu0 0.0
    %3096 = vmatprep.subr.mxu0 0.0
    %3097 = vmatpush1.msra.mxu0 0.0
    %3098 = vmatprep.subr.mxu0 0.0
    %3099 = vmatpush1.msra.mxu0 0.0
    %3100 = vmatprep.subr.mxu0 0.0
    %3101 = vmatpush1.msra.mxu0 0.0
    %3102 = vmatprep.subr.mxu0 0.0
    %3103 = vmatpush1.msra.mxu0 0.0
    %3104 = vmatprep.subr.mxu0 0.0
    %3105 = vmatpush1.msra.mxu0 0.0
    %3106 = vmatprep.subr.mxu0 0.0
    %3107 = vmatpush1.msra.mxu0 0.0
    %3108 = vmatprep.mubr.f32.mxu0 0.0
    %3109 = vmatmul.mubr.f32.gmra.mrb[0].mxu0 %v595
    %v3110 = vpop.f32.mrb[0].mxu0
    %v3111 = vadd.f32 %v3040, %v3110
    %v3112 = vpop.f32.mrb[0].mxu0
    %v3113 = vadd.f32 %v3042, %v3112
    %3114 = vdwg.mxu0
    %v3115 = vmax.f32 %v3111, 0.0
    %v3116 = vmax.f32 %v3113, 0.0
    %s3117 = scalar_lea.vmem [#allocation9], 3072
    %v3118 = vld [vmem:[%s3117] sm:$0xff]
    %v3119 = vld [vmem:[%s3117 + $0x8] sm:$0xff]
    %v3120 = vld [vmem:[%s3117 + $0x10] sm:$0xff]
    %v3121 = vld [vmem:[%s3117 + $0x18] sm:$0xff]
    %v3122 = vld [vmem:[%s3117 + $0x20] sm:$0xff]
    %v3123 = vld [vmem:[%s3117 + $0x28] sm:$0xff]
    %v3124 = vld [vmem:[%s3117 + $0x30] sm:$0xff]
    %v3125 = vld [vmem:[%s3117 + $0x38] sm:$0xff]
    %v3126 = vld [vmem:[%s3117 + $0x40] sm:$0xff]
    %v3127 = vld [vmem:[%s3117 + $0x48] sm:$0xff]
    %v3128 = vld [vmem:[%s3117 + $0x50] sm:$0xff]
    %v3129 = vld [vmem:[%s3117 + $0x58] sm:$0xff]
    %v3130 = vld [vmem:[%s3117 + $0x60] sm:$0xff]
    %v3131 = vld [vmem:[%s3117 + $0x68] sm:$0xff]
    %v3132 = vld [vmem:[%s3117 + $0x70] sm:$0xff]
    %v3133 = vld [vmem:[%s3117 + $0x78] sm:$0xff]
    %v3134 = vld [vmem:[%s3117 + $0x80] sm:$0xff]
    %v3135 = vld [vmem:[%s3117 + $0x88] sm:$0xff]
    %v3136 = vld [vmem:[%s3117 + $0x90] sm:$0xff]
    %v3137 = vld [vmem:[%s3117 + $0x98] sm:$0xff]
    %v3138 = vld [vmem:[%s3117 + $0xa0] sm:$0xff]
    %v3139 = vld [vmem:[%s3117 + $0xa8] sm:$0xff]
    %v3140 = vld [vmem:[%s3117 + $0xb0] sm:$0xff]
    %v3141 = vld [vmem:[%s3117 + $0xb8] sm:$0xff]
    %v3142 = vld [vmem:[%s3117 + $0xc0] sm:$0xff]
    %v3143 = vld [vmem:[%s3117 + $0xc8] sm:$0xff]
    %v3144 = vld [vmem:[%s3117 + $0xd0] sm:$0xff]
    %v3145 = vld [vmem:[%s3117 + $0xd8] sm:$0xff]
    %v3146 = vld [vmem:[%s3117 + $0xe0] sm:$0xff]
    %v3147 = vld [vmem:[%s3117 + $0xe8] sm:$0xff]
    %v3148 = vld [vmem:[%s3117 + $0xf0] sm:$0xff]
    %v3149 = vld [vmem:[%s3117 + $0xf8] sm:$0xff]
    %v3150 = vld [vmem:[%s3117 + $0x100] sm:$0xff]
    %v3151 = vld [vmem:[%s3117 + $0x108] sm:$0xff]
    %v3152 = vld [vmem:[%s3117 + $0x110] sm:$0xff]
    %v3153 = vld [vmem:[%s3117 + $0x118] sm:$0xff]
    %v3154 = vld [vmem:[%s3117 + $0x120] sm:$0xff]
    %v3155 = vld [vmem:[%s3117 + $0x128] sm:$0xff]
    %v3156 = vld [vmem:[%s3117 + $0x130] sm:$0xff]
    %v3157 = vld [vmem:[%s3117 + $0x138] sm:$0xff]
    %v3158 = vld [vmem:[%s3117 + $0x140] sm:$0xff]
    %v3159 = vld [vmem:[%s3117 + $0x148] sm:$0xff]
    %v3160 = vld [vmem:[%s3117 + $0x150] sm:$0xff]
    %v3161 = vld [vmem:[%s3117 + $0x158] sm:$0xff]
    %v3162 = vld [vmem:[%s3117 + $0x160] sm:$0xff]
    %v3163 = vld [vmem:[%s3117 + $0x168] sm:$0xff]
    %v3164 = vld [vmem:[%s3117 + $0x170] sm:$0xff]
    %v3165 = vld [vmem:[%s3117 + $0x178] sm:$0xff]
    %v3166 = vld [vmem:[%s3117 + $0x180] sm:$0xff]
    %v3167 = vld [vmem:[%s3117 + $0x188] sm:$0xff]
    %v3168 = vld [vmem:[%s3117 + $0x190] sm:$0xff]
    %v3169 = vld [vmem:[%s3117 + $0x198] sm:$0xff]
    %v3170 = vld [vmem:[%s3117 + $0x1a0] sm:$0xff]
    %v3171 = vld [vmem:[%s3117 + $0x1a8] sm:$0xff]
    %v3172 = vld [vmem:[%s3117 + $0x1b0] sm:$0xff]
    %v3173 = vld [vmem:[%s3117 + $0x1b8] sm:$0xff]
    %v3174 = vld [vmem:[%s3117 + $0x1c0] sm:$0xff]
    %v3175 = vld [vmem:[%s3117 + $0x1c8] sm:$0xff]
    %v3176 = vld [vmem:[%s3117 + $0x1d0] sm:$0xff]
    %v3177 = vld [vmem:[%s3117 + $0x1d8] sm:$0xff]
    %v3178 = vld [vmem:[%s3117 + $0x1e0] sm:$0xff]
    %v3179 = vld [vmem:[%s3117 + $0x1e8] sm:$0xff]
    %v3180 = vld [vmem:[%s3117 + $0x1f0] sm:$0xff]
    %v3181 = vld [vmem:[%s3117 + $0x1f8] sm:$0xff]
    %3182 = vmatprep.subr.mxu0 %v3119
    %3183 = vmatpush1.msra.mxu0 %v3118
    %3184 = vmatprep.subr.mxu0 %v3121
    %3185 = vmatpush1.msra.mxu0 %v3120
    %3186 = vmatprep.subr.mxu0 %v3123
    %3187 = vmatpush1.msra.mxu0 %v3122
    %3188 = vmatprep.subr.mxu0 %v3125
    %3189 = vmatpush1.msra.mxu0 %v3124
    %3190 = vmatprep.subr.mxu0 %v3127
    %3191 = vmatpush1.msra.mxu0 %v3126
    %3192 = vmatprep.subr.mxu0 %v3129
    %3193 = vmatpush1.msra.mxu0 %v3128
    %3194 = vmatprep.subr.mxu0 %v3131
    %3195 = vmatpush1.msra.mxu0 %v3130
    %3196 = vmatprep.subr.mxu0 %v3133
    %3197 = vmatpush1.msra.mxu0 %v3132
    %3198 = vmatprep.subr.mxu0 %v3135
    %3199 = vmatpush1.msra.mxu0 %v3134
    %3200 = vmatprep.subr.mxu0 %v3137
    %3201 = vmatpush1.msra.mxu0 %v3136
    %3202 = vmatprep.subr.mxu0 %v3139
    %3203 = vmatpush1.msra.mxu0 %v3138
    %3204 = vmatprep.subr.mxu0 %v3141
    %3205 = vmatpush1.msra.mxu0 %v3140
    %3206 = vmatprep.subr.mxu0 %v3143
    %3207 = vmatpush1.msra.mxu0 %v3142
    %3208 = vmatprep.subr.mxu0 %v3145
    %3209 = vmatpush1.msra.mxu0 %v3144
    %3210 = vmatprep.subr.mxu0 %v3147
    %3211 = vmatpush1.msra.mxu0 %v3146
    %3212 = vmatprep.subr.mxu0 %v3149
    %3213 = vmatpush1.msra.mxu0 %v3148
    %3214 = vmatprep.subr.mxu0 %v3151
    %3215 = vmatpush1.msra.mxu0 %v3150
    %3216 = vmatprep.subr.mxu0 %v3153
    %3217 = vmatpush1.msra.mxu0 %v3152
    %3218 = vmatprep.subr.mxu0 %v3155
    %3219 = vmatpush1.msra.mxu0 %v3154
    %3220 = vmatprep.subr.mxu0 %v3157
    %3221 = vmatpush1.msra.mxu0 %v3156
    %3222 = vmatprep.subr.mxu0 %v3159
    %3223 = vmatpush1.msra.mxu0 %v3158
    %3224 = vmatprep.subr.mxu0 %v3161
    %3225 = vmatpush1.msra.mxu0 %v3160
    %3226 = vmatprep.subr.mxu0 %v3163
    %3227 = vmatpush1.msra.mxu0 %v3162
    %3228 = vmatprep.subr.mxu0 %v3165
    %3229 = vmatpush1.msra.mxu0 %v3164
    %3230 = vmatprep.subr.mxu0 %v3167
    %3231 = vmatpush1.msra.mxu0 %v3166
    %3232 = vmatprep.subr.mxu0 %v3169
    %3233 = vmatpush1.msra.mxu0 %v3168
    %3234 = vmatprep.subr.mxu0 %v3171
    %3235 = vmatpush1.msra.mxu0 %v3170
    %3236 = vmatprep.subr.mxu0 %v3173
    %3237 = vmatpush1.msra.mxu0 %v3172
    %3238 = vmatprep.subr.mxu0 %v3175
    %3239 = vmatpush1.msra.mxu0 %v3174
    %3240 = vmatprep.subr.mxu0 %v3177
    %3241 = vmatpush1.msra.mxu0 %v3176
    %3242 = vmatprep.subr.mxu0 %v3179
    %3243 = vmatpush1.msra.mxu0 %v3178
    %3244 = vmatprep.subr.mxu0 %v3181
    %3245 = vmatpush1.msra.mxu0 %v3180
    %3246 = vmatprep.mubr.f32.mxu0 %v3116
    %3247 = vmatmul.mubr.f32.gmra.mrb[0].mxu0 %v3115
    %v3248 = vpop.f32.mrb[0].mxu0
    %v3249 = vadd.f32 0.0, %v3248
    %v3250 = vpop.f32.mrb[0].mxu0
    %v3251 = vadd.f32 0.0, %v3250
    %3252 = vdwg.mxu0
    %v3253 = vadd.f32 %v2874, %v3249
    %v3254 = vadd.f32 %v2875, %v3251
    %s3255 = scalar_lea.vmem [#allocation6], 5376
    %v3256 = vld [vmem:[%s3255] sm:$0xff]
    %v3257 = vld [vmem:[%s3255 + $0x8] sm:$0xff]
    %v3258 = vld [vmem:[%s3255 + $0x10] sm:$0xff]
    %v3259 = vld [vmem:[%s3255 + $0x18] sm:$0xff]
    %v3260 = vld [vmem:[%s3255 + $0x20] sm:$0xff]
    %v3261 = vld [vmem:[%s3255 + $0x28] sm:$0xff]
    %v3262 = vld [vmem:[%s3255 + $0x30] sm:$0xff]
    %v3263 = vld [vmem:[%s3255 + $0x38] sm:$0xff]
    %v3264 = vld [vmem:[%s3255 + $0x40] sm:$0xff]
    %v3265 = vld [vmem:[%s3255 + $0x48] sm:$0xff]
    %v3266 = vld [vmem:[%s3255 + $0x50] sm:$0xff]
    %v3267 = vld [vmem:[%s3255 + $0x58] sm:$0xff]
    %v3268 = vld [vmem:[%s3255 + $0x60] sm:$0xff]
    %v3269 = vld [vmem:[%s3255 + $0x68] sm:$0xff]
    %v3270 = vld [vmem:[%s3255 + $0x70] sm:$0xff]
    %v3271 = vld [vmem:[%s3255 + $0x78] sm:$0xff]
    %v3272 = vld [vmem:[%s3255 + $0x80] sm:$0xff]
    %v3273 = vld [vmem:[%s3255 + $0x88] sm:$0xff]
    %v3274 = vld [vmem:[%s3255 + $0x90] sm:$0xff]
    %v3275 = vld [vmem:[%s3255 + $0x98] sm:$0xff]
    %v3276 = vld [vmem:[%s3255 + $0xa0] sm:$0xff]
    %v3277 = vld [vmem:[%s3255 + $0xa8] sm:$0xff]
    %v3278 = vld [vmem:[%s3255 + $0xb0] sm:$0xff]
    %v3279 = vld [vmem:[%s3255 + $0xb8] sm:$0xff]
    %v3280 = vld [vmem:[%s3255 + $0xc0] sm:$0xff]
    %v3281 = vld [vmem:[%s3255 + $0xc8] sm:$0xff]
    %v3282 = vld [vmem:[%s3255 + $0xd0] sm:$0xff]
    %v3283 = vld [vmem:[%s3255 + $0xd8] sm:$0xff]
    %v3284 = vld [vmem:[%s3255 + $0xe0] sm:$0xff]
    %v3285 = vld [vmem:[%s3255 + $0xe8] sm:$0xff]
    %v3286 = vld [vmem:[%s3255 + $0xf0] sm:$0xff]
    %v3287 = vld [vmem:[%s3255 + $0xf8] sm:$0xff]
    %v3288 = vld [vmem:[%s3255 + $0x100] sm:$0xff]
    %v3289 = vld [vmem:[%s3255 + $0x108] sm:$0xff]
    %v3290 = vld [vmem:[%s3255 + $0x110] sm:$0xff]
    %v3291 = vld [vmem:[%s3255 + $0x118] sm:$0xff]
    %v3292 = vld [vmem:[%s3255 + $0x120] sm:$0xff]
    %v3293 = vld [vmem:[%s3255 + $0x128] sm:$0xff]
    %v3294 = vld [vmem:[%s3255 + $0x130] sm:$0xff]
    %v3295 = vld [vmem:[%s3255 + $0x138] sm:$0xff]
    %v3296 = vld [vmem:[%s3255 + $0x140] sm:$0xff]
    %v3297 = vld [vmem:[%s3255 + $0x148] sm:$0xff]
    %v3298 = vld [vmem:[%s3255 + $0x150] sm:$0xff]
    %v3299 = vld [vmem:[%s3255 + $0x158] sm:$0xff]
    %v3300 = vld [vmem:[%s3255 + $0x160] sm:$0xff]
    %v3301 = vld [vmem:[%s3255 + $0x168] sm:$0xff]
    %v3302 = vld [vmem:[%s3255 + $0x170] sm:$0xff]
    %v3303 = vld [vmem:[%s3255 + $0x178] sm:$0xff]
    %v3304 = vld [vmem:[%s3255 + $0x180] sm:$0xff]
    %v3305 = vld [vmem:[%s3255 + $0x188] sm:$0xff]
    %v3306 = vld [vmem:[%s3255 + $0x190] sm:$0xff]
    %v3307 = vld [vmem:[%s3255 + $0x198] sm:$0xff]
    %v3308 = vld [vmem:[%s3255 + $0x1a0] sm:$0xff]
    %v3309 = vld [vmem:[%s3255 + $0x1a8] sm:$0xff]
    %v3310 = vld [vmem:[%s3255 + $0x1b0] sm:$0xff]
    %v3311 = vld [vmem:[%s3255 + $0x1b8] sm:$0xff]
    %v3312 = vld [vmem:[%s3255 + $0x1c0] sm:$0xff]
    %v3313 = vld [vmem:[%s3255 + $0x1c8] sm:$0xff]
    %v3314 = vld [vmem:[%s3255 + $0x1d0] sm:$0xff]
    %v3315 = vld [vmem:[%s3255 + $0x1d8] sm:$0xff]
    %v3316 = vld [vmem:[%s3255 + $0x1e0] sm:$0xff]
    %v3317 = vld [vmem:[%s3255 + $0x1e8] sm:$0xff]
    %v3318 = vld [vmem:[%s3255 + $0x1f0] sm:$0xff]
    %v3319 = vld [vmem:[%s3255 + $0x1f8] sm:$0xff]
    %v3320 = vld [vmem:[%s3255 + $0x200] sm:$0xff]
    %v3321 = vld [vmem:[%s3255 + $0x208] sm:$0xff]
    %v3322 = vld [vmem:[%s3255 + $0x210] sm:$0xff]
    %v3323 = vld [vmem:[%s3255 + $0x218] sm:$0xff]
    %v3324 = vld [vmem:[%s3255 + $0x220] sm:$0xff]
    %v3325 = vld [vmem:[%s3255 + $0x228] sm:$0xff]
    %v3326 = vld [vmem:[%s3255 + $0x230] sm:$0xff]
    %v3327 = vld [vmem:[%s3255 + $0x238] sm:$0xff]
    %v3328 = vld [vmem:[%s3255 + $0x240] sm:$0xff]
    %v3329 = vld [vmem:[%s3255 + $0x248] sm:$0xff]
    %v3330 = vld [vmem:[%s3255 + $0x250] sm:$0xff]
    %v3331 = vld [vmem:[%s3255 + $0x258] sm:$0xff]
    %v3332 = vld [vmem:[%s3255 + $0x260] sm:$0xff]
    %v3333 = vld [vmem:[%s3255 + $0x268] sm:$0xff]
    %v3334 = vld [vmem:[%s3255 + $0x270] sm:$0xff]
    %v3335 = vld [vmem:[%s3255 + $0x278] sm:$0xff]
    %v3336 = vld [vmem:[%s3255 + $0x280] sm:$0xff]
    %v3337 = vld [vmem:[%s3255 + $0x288] sm:$0xff]
    %v3338 = vld [vmem:[%s3255 + $0x290] sm:$0xff]
    %v3339 = vld [vmem:[%s3255 + $0x298] sm:$0xff]
    %v3340 = vld [vmem:[%s3255 + $0x2a0] sm:$0xff]
    %v3341 = vld [vmem:[%s3255 + $0x2a8] sm:$0xff]
    %v3342 = vld [vmem:[%s3255 + $0x2b0] sm:$0xff]
    %v3343 = vld [vmem:[%s3255 + $0x2b8] sm:$0xff]
    %v3344 = vld [vmem:[%s3255 + $0x2c0] sm:$0xff]
    %v3345 = vld [vmem:[%s3255 + $0x2c8] sm:$0xff]
    %v3346 = vld [vmem:[%s3255 + $0x2d0] sm:$0xff]
    %v3347 = vld [vmem:[%s3255 + $0x2d8] sm:$0xff]
    %v3348 = vld [vmem:[%s3255 + $0x2e0] sm:$0xff]
    %v3349 = vld [vmem:[%s3255 + $0x2e8] sm:$0xff]
    %v3350 = vld [vmem:[%s3255 + $0x2f0] sm:$0xff]
    %v3351 = vld [vmem:[%s3255 + $0x2f8] sm:$0xff]
    %3352 = vmatprep.subr.mxu0 %v3257
    %3353 = vmatpush1.msra.mxu0 %v3256
    %3354 = vmatprep.subr.mxu0 %v3259
    %3355 = vmatpush1.msra.mxu0 %v3258
    %3356 = vmatprep.subr.mxu0 %v3261
    %3357 = vmatpush1.msra.mxu0 %v3260
    %3358 = vmatprep.subr.mxu0 %v3263
    %3359 = vmatpush1.msra.mxu0 %v3262
    %3360 = vmatprep.subr.mxu0 %v3265
    %3361 = vmatpush1.msra.mxu0 %v3264
    %3362 = vmatprep.subr.mxu0 %v3267
    %3363 = vmatpush1.msra.mxu0 %v3266
    %3364 = vmatprep.subr.mxu0 %v3269
    %3365 = vmatpush1.msra.mxu0 %v3268
    %3366 = vmatprep.subr.mxu0 %v3271
    %3367 = vmatpush1.msra.mxu0 %v3270
    %3368 = vmatprep.subr.mxu0 %v3273
    %3369 = vmatpush1.msra.mxu0 %v3272
    %3370 = vmatprep.subr.mxu0 %v3275
    %3371 = vmatpush1.msra.mxu0 %v3274
    %3372 = vmatprep.subr.mxu0 %v3277
    %3373 = vmatpush1.msra.mxu0 %v3276
    %3374 = vmatprep.subr.mxu0 %v3279
    %3375 = vmatpush1.msra.mxu0 %v3278
    %3376 = vmatprep.subr.mxu0 %v3281
    %3377 = vmatpush1.msra.mxu0 %v3280
    %3378 = vmatprep.subr.mxu0 %v3283
    %3379 = vmatpush1.msra.mxu0 %v3282
    %3380 = vmatprep.subr.mxu0 %v3285
    %3381 = vmatpush1.msra.mxu0 %v3284
    %3382 = vmatprep.subr.mxu0 %v3287
    %3383 = vmatpush1.msra.mxu0 %v3286
    %3384 = vmatprep.subr.mxu0 %v3289
    %3385 = vmatpush1.msra.mxu0 %v3288
    %3386 = vmatprep.subr.mxu0 %v3291
    %3387 = vmatpush1.msra.mxu0 %v3290
    %3388 = vmatprep.subr.mxu0 %v3293
    %3389 = vmatpush1.msra.mxu0 %v3292
    %3390 = vmatprep.subr.mxu0 %v3295
    %3391 = vmatpush1.msra.mxu0 %v3294
    %3392 = vmatprep.subr.mxu0 %v3297
    %3393 = vmatpush1.msra.mxu0 %v3296
    %3394 = vmatprep.subr.mxu0 %v3299
    %3395 = vmatpush1.msra.mxu0 %v3298
    %3396 = vmatprep.subr.mxu0 %v3301
    %3397 = vmatpush1.msra.mxu0 %v3300
    %3398 = vmatprep.subr.mxu0 %v3303
    %3399 = vmatpush1.msra.mxu0 %v3302
    %3400 = vmatprep.subr.mxu0 %v3305
    %3401 = vmatpush1.msra.mxu0 %v3304
    %3402 = vmatprep.subr.mxu0 %v3307
    %3403 = vmatpush1.msra.mxu0 %v3306
    %3404 = vmatprep.subr.mxu0 %v3309
    %3405 = vmatpush1.msra.mxu0 %v3308
    %3406 = vmatprep.subr.mxu0 %v3311
    %3407 = vmatpush1.msra.mxu0 %v3310
    %3408 = vmatprep.subr.mxu0 %v3313
    %3409 = vmatpush1.msra.mxu0 %v3312
    %3410 = vmatprep.subr.mxu0 %v3315
    %3411 = vmatpush1.msra.mxu0 %v3314
    %3412 = vmatprep.subr.mxu0 %v3317
    %3413 = vmatpush1.msra.mxu0 %v3316
    %3414 = vmatprep.subr.mxu0 %v3319
    %3415 = vmatpush1.msra.mxu0 %v3318
    %3416 = vmatprep.mubr.f32.mxu0 %v594
    %3417 = vmatmul.mubr.f32.gmra.mrb[0].mxu0 %v593
    %v3418 = vpop.f32.mrb[0].mxu0
    %v3419 = vadd.f32 %v697, %v3418
    %v3420 = vpop.f32.mrb[0].mxu0
    %v3421 = vadd.f32 %v701, %v3420
    %3422 = vdwg.mxu0
    %3423 = vmatprep.subr.mxu0 %v3321
    %3424 = vmatpush1.msra.mxu0 %v3320
    %3425 = vmatprep.subr.mxu0 %v3323
    %3426 = vmatpush1.msra.mxu0 %v3322
    %3427 = vmatprep.subr.mxu0 %v3325
    %3428 = vmatpush1.msra.mxu0 %v3324
    %3429 = vmatprep.subr.mxu0 %v3327
    %3430 = vmatpush1.msra.mxu0 %v3326
    %3431 = vmatprep.subr.mxu0 %v3329
    %3432 = vmatpush1.msra.mxu0 %v3328
    %3433 = vmatprep.subr.mxu0 %v3331
    %3434 = vmatpush1.msra.mxu0 %v3330
    %3435 = vmatprep.subr.mxu0 %v3333
    %3436 = vmatpush1.msra.mxu0 %v3332
    %3437 = vmatprep.subr.mxu0 %v3335
    %3438 = vmatpush1.msra.mxu0 %v3334
    %3439 = vmatprep.subr.mxu0 %v3337
    %3440 = vmatpush1.msra.mxu0 %v3336
    %3441 = vmatprep.subr.mxu0 %v3339
    %3442 = vmatpush1.msra.mxu0 %v3338
    %3443 = vmatprep.subr.mxu0 %v3341
    %3444 = vmatpush1.msra.mxu0 %v3340
    %3445 = vmatprep.subr.mxu0 %v3343
    %3446 = vmatpush1.msra.mxu0 %v3342
    %3447 = vmatprep.subr.mxu0 %v3345
    %3448 = vmatpush1.msra.mxu0 %v3344
    %3449 = vmatprep.subr.mxu0 %v3347
    %3450 = vmatpush1.msra.mxu0 %v3346
    %3451 = vmatprep.subr.mxu0 %v3349
    %3452 = vmatpush1.msra.mxu0 %v3348
    %3453 = vmatprep.subr.mxu0 %v3351
    %3454 = vmatpush1.msra.mxu0 %v3350
    %3455 = vmatprep.subr.mxu0 0.0
    %3456 = vmatpush1.msra.mxu0 0.0
    %3457 = vmatprep.subr.mxu0 0.0
    %3458 = vmatpush1.msra.mxu0 0.0
    %3459 = vmatprep.subr.mxu0 0.0
    %3460 = vmatpush1.msra.mxu0 0.0
    %3461 = vmatprep.subr.mxu0 0.0
    %3462 = vmatpush1.msra.mxu0 0.0
    %3463 = vmatprep.subr.mxu0 0.0
    %3464 = vmatpush1.msra.mxu0 0.0
    %3465 = vmatprep.subr.mxu0 0.0
    %3466 = vmatpush1.msra.mxu0 0.0
    %3467 = vmatprep.subr.mxu0 0.0
    %3468 = vmatpush1.msra.mxu0 0.0
    %3469 = vmatprep.subr.mxu0 0.0
    %3470 = vmatpush1.msra.mxu0 0.0
    %3471 = vmatprep.subr.mxu0 0.0
    %3472 = vmatpush1.msra.mxu0 0.0
    %3473 = vmatprep.subr.mxu0 0.0
    %3474 = vmatpush1.msra.mxu0 0.0
    %3475 = vmatprep.subr.mxu0 0.0
    %3476 = vmatpush1.msra.mxu0 0.0
    %3477 = vmatprep.subr.mxu0 0.0
    %3478 = vmatpush1.msra.mxu0 0.0
    %3479 = vmatprep.subr.mxu0 0.0
    %3480 = vmatpush1.msra.mxu0 0.0
    %3481 = vmatprep.subr.mxu0 0.0
    %3482 = vmatpush1.msra.mxu0 0.0
    %3483 = vmatprep.subr.mxu0 0.0
    %3484 = vmatpush1.msra.mxu0 0.0
    %3485 = vmatprep.subr.mxu0 0.0
    %3486 = vmatpush1.msra.mxu0 0.0
    %3487 = vmatprep.mubr.f32.mxu0 0.0
    %3488 = vmatmul.mubr.f32.gmra.mrb[0].mxu0 %v595
    %v3489 = vpop.f32.mrb[0].mxu0
    %v3490 = vadd.f32 %v3419, %v3489
    %v3491 = vpop.f32.mrb[0].mxu0
    %v3492 = vadd.f32 %v3421, %v3491
    %3493 = vdwg.mxu0
    %v3494 = vmax.f32 %v3490, 0.0
    %v3495 = vmax.f32 %v3492, 0.0
    %s3496 = scalar_lea.vmem [#allocation9], 3584
    %v3497 = vld [vmem:[%s3496] sm:$0xff]
    %v3498 = vld [vmem:[%s3496 + $0x8] sm:$0xff]
    %v3499 = vld [vmem:[%s3496 + $0x10] sm:$0xff]
    %v3500 = vld [vmem:[%s3496 + $0x18] sm:$0xff]
    %v3501 = vld [vmem:[%s3496 + $0x20] sm:$0xff]
    %v3502 = vld [vmem:[%s3496 + $0x28] sm:$0xff]
    %v3503 = vld [vmem:[%s3496 + $0x30] sm:$0xff]
    %v3504 = vld [vmem:[%s3496 + $0x38] sm:$0xff]
    %v3505 = vld [vmem:[%s3496 + $0x40] sm:$0xff]
    %v3506 = vld [vmem:[%s3496 + $0x48] sm:$0xff]
    %v3507 = vld [vmem:[%s3496 + $0x50] sm:$0xff]
    %v3508 = vld [vmem:[%s3496 + $0x58] sm:$0xff]
    %v3509 = vld [vmem:[%s3496 + $0x60] sm:$0xff]
    %v3510 = vld [vmem:[%s3496 + $0x68] sm:$0xff]
    %v3511 = vld [vmem:[%s3496 + $0x70] sm:$0xff]
    %v3512 = vld [vmem:[%s3496 + $0x78] sm:$0xff]
    %v3513 = vld [vmem:[%s3496 + $0x80] sm:$0xff]
    %v3514 = vld [vmem:[%s3496 + $0x88] sm:$0xff]
    %v3515 = vld [vmem:[%s3496 + $0x90] sm:$0xff]
    %v3516 = vld [vmem:[%s3496 + $0x98] sm:$0xff]
    %v3517 = vld [vmem:[%s3496 + $0xa0] sm:$0xff]
    %v3518 = vld [vmem:[%s3496 + $0xa8] sm:$0xff]
    %v3519 = vld [vmem:[%s3496 + $0xb0] sm:$0xff]
    %v3520 = vld [vmem:[%s3496 + $0xb8] sm:$0xff]
    %v3521 = vld [vmem:[%s3496 + $0xc0] sm:$0xff]
    %v3522 = vld [vmem:[%s3496 + $0xc8] sm:$0xff]
    %v3523 = vld [vmem:[%s3496 + $0xd0] sm:$0xff]
    %v3524 = vld [vmem:[%s3496 + $0xd8] sm:$0xff]
    %v3525 = vld [vmem:[%s3496 + $0xe0] sm:$0xff]
    %v3526 = vld [vmem:[%s3496 + $0xe8] sm:$0xff]
    %v3527 = vld [vmem:[%s3496 + $0xf0] sm:$0xff]
    %v3528 = vld [vmem:[%s3496 + $0xf8] sm:$0xff]
    %v3529 = vld [vmem:[%s3496 + $0x100] sm:$0xff]
    %v3530 = vld [vmem:[%s3496 + $0x108] sm:$0xff]
    %v3531 = vld [vmem:[%s3496 + $0x110] sm:$0xff]
    %v3532 = vld [vmem:[%s3496 + $0x118] sm:$0xff]
    %v3533 = vld [vmem:[%s3496 + $0x120] sm:$0xff]
    %v3534 = vld [vmem:[%s3496 + $0x128] sm:$0xff]
    %v3535 = vld [vmem:[%s3496 + $0x130] sm:$0xff]
    %v3536 = vld [vmem:[%s3496 + $0x138] sm:$0xff]
    %v3537 = vld [vmem:[%s3496 + $0x140] sm:$0xff]
    %v3538 = vld [vmem:[%s3496 + $0x148] sm:$0xff]
    %v3539 = vld [vmem:[%s3496 + $0x150] sm:$0xff]
    %v3540 = vld [vmem:[%s3496 + $0x158] sm:$0xff]
    %v3541 = vld [vmem:[%s3496 + $0x160] sm:$0xff]
    %v3542 = vld [vmem:[%s3496 + $0x168] sm:$0xff]
    %v3543 = vld [vmem:[%s3496 + $0x170] sm:$0xff]
    %v3544 = vld [vmem:[%s3496 + $0x178] sm:$0xff]
    %v3545 = vld [vmem:[%s3496 + $0x180] sm:$0xff]
    %v3546 = vld [vmem:[%s3496 + $0x188] sm:$0xff]
    %v3547 = vld [vmem:[%s3496 + $0x190] sm:$0xff]
    %v3548 = vld [vmem:[%s3496 + $0x198] sm:$0xff]
    %v3549 = vld [vmem:[%s3496 + $0x1a0] sm:$0xff]
    %v3550 = vld [vmem:[%s3496 + $0x1a8] sm:$0xff]
    %v3551 = vld [vmem:[%s3496 + $0x1b0] sm:$0xff]
    %v3552 = vld [vmem:[%s3496 + $0x1b8] sm:$0xff]
    %v3553 = vld [vmem:[%s3496 + $0x1c0] sm:$0xff]
    %v3554 = vld [vmem:[%s3496 + $0x1c8] sm:$0xff]
    %v3555 = vld [vmem:[%s3496 + $0x1d0] sm:$0xff]
    %v3556 = vld [vmem:[%s3496 + $0x1d8] sm:$0xff]
    %v3557 = vld [vmem:[%s3496 + $0x1e0] sm:$0xff]
    %v3558 = vld [vmem:[%s3496 + $0x1e8] sm:$0xff]
    %v3559 = vld [vmem:[%s3496 + $0x1f0] sm:$0xff]
    %v3560 = vld [vmem:[%s3496 + $0x1f8] sm:$0xff]
    %3561 = vmatprep.subr.mxu0 %v3498
    %3562 = vmatpush1.msra.mxu0 %v3497
    %3563 = vmatprep.subr.mxu0 %v3500
    %3564 = vmatpush1.msra.mxu0 %v3499
    %3565 = vmatprep.subr.mxu0 %v3502
    %3566 = vmatpush1.msra.mxu0 %v3501
    %3567 = vmatprep.subr.mxu0 %v3504
    %3568 = vmatpush1.msra.mxu0 %v3503
    %3569 = vmatprep.subr.mxu0 %v3506
    %3570 = vmatpush1.msra.mxu0 %v3505
    %3571 = vmatprep.subr.mxu0 %v3508
    %3572 = vmatpush1.msra.mxu0 %v3507
    %3573 = vmatprep.subr.mxu0 %v3510
    %3574 = vmatpush1.msra.mxu0 %v3509
    %3575 = vmatprep.subr.mxu0 %v3512
    %3576 = vmatpush1.msra.mxu0 %v3511
    %3577 = vmatprep.subr.mxu0 %v3514
    %3578 = vmatpush1.msra.mxu0 %v3513
    %3579 = vmatprep.subr.mxu0 %v3516
    %3580 = vmatpush1.msra.mxu0 %v3515
    %3581 = vmatprep.subr.mxu0 %v3518
    %3582 = vmatpush1.msra.mxu0 %v3517
    %3583 = vmatprep.subr.mxu0 %v3520
    %3584 = vmatpush1.msra.mxu0 %v3519
    %3585 = vmatprep.subr.mxu0 %v3522
    %3586 = vmatpush1.msra.mxu0 %v3521
    %3587 = vmatprep.subr.mxu0 %v3524
    %3588 = vmatpush1.msra.mxu0 %v3523
    %3589 = vmatprep.subr.mxu0 %v3526
    %3590 = vmatpush1.msra.mxu0 %v3525
    %3591 = vmatprep.subr.mxu0 %v3528
    %3592 = vmatpush1.msra.mxu0 %v3527
    %3593 = vmatprep.subr.mxu0 %v3530
    %3594 = vmatpush1.msra.mxu0 %v3529
    %3595 = vmatprep.subr.mxu0 %v3532
    %3596 = vmatpush1.msra.mxu0 %v3531
    %3597 = vmatprep.subr.mxu0 %v3534
    %3598 = vmatpush1.msra.mxu0 %v3533
    %3599 = vmatprep.subr.mxu0 %v3536
    %3600 = vmatpush1.msra.mxu0 %v3535
    %3601 = vmatprep.subr.mxu0 %v3538
    %3602 = vmatpush1.msra.mxu0 %v3537
    %3603 = vmatprep.subr.mxu0 %v3540
    %3604 = vmatpush1.msra.mxu0 %v3539
    %3605 = vmatprep.subr.mxu0 %v3542
    %3606 = vmatpush1.msra.mxu0 %v3541
    %3607 = vmatprep.subr.mxu0 %v3544
    %3608 = vmatpush1.msra.mxu0 %v3543
    %3609 = vmatprep.subr.mxu0 %v3546
    %3610 = vmatpush1.msra.mxu0 %v3545
    %3611 = vmatprep.subr.mxu0 %v3548
    %3612 = vmatpush1.msra.mxu0 %v3547
    %3613 = vmatprep.subr.mxu0 %v3550
    %3614 = vmatpush1.msra.mxu0 %v3549
    %3615 = vmatprep.subr.mxu0 %v3552
    %3616 = vmatpush1.msra.mxu0 %v3551
    %3617 = vmatprep.subr.mxu0 %v3554
    %3618 = vmatpush1.msra.mxu0 %v3553
    %3619 = vmatprep.subr.mxu0 %v3556
    %3620 = vmatpush1.msra.mxu0 %v3555
    %3621 = vmatprep.subr.mxu0 %v3558
    %3622 = vmatpush1.msra.mxu0 %v3557
    %3623 = vmatprep.subr.mxu0 %v3560
    %3624 = vmatpush1.msra.mxu0 %v3559
    %3625 = vmatprep.mubr.f32.mxu0 %v3495
    %3626 = vmatmul.mubr.f32.gmra.mrb[0].mxu0 %v3494
    %v3627 = vpop.f32.mrb[0].mxu0
    %v3628 = vadd.f32 0.0, %v3627
    %v3629 = vpop.f32.mrb[0].mxu0
    %v3630 = vadd.f32 0.0, %v3629
    %3631 = vdwg.mxu0
    %v3632 = vadd.f32 %v3253, %v3628
    %v3633 = vadd.f32 %v3254, %v3630
    %v3634 = vld [vmem:[#allocation10] sm:$0x3]
    %v3636 = vlaneseq
    %v3637 = vshrl.u32 %v3636, 7
    %v3638 = vsub.s32 0, %v3637
    %v3639 = vrot.slane %v3634, %v3638
    %v3640 = vlaneseq
    %v3641 = vshrl.u32 %v3640, 7
    %v3642 = vsub.s32 1, %v3641
    %v3643 = vrot.slane %v3634, %v3642
    %v3646 = vadd.f32 %v3632, %v3639
    %v3647 = vadd.f32 %v3633, %v3643
    %v3648 = vmax.f32 %v3646, 0.0
    %v3649 = vmax.f32 %v3647, 0.0
    %v3650 = vld [vmem:[#allocation12] sm:$0xff]
    %v3651 = vld [vmem:[#allocation12 + $0x8] sm:$0xff]
    %v3652 = vld [vmem:[#allocation12 + $0x10] sm:$0xff]
    %v3653 = vld [vmem:[#allocation12 + $0x18] sm:$0xff]
    %v3654 = vld [vmem:[#allocation12 + $0x20] sm:$0xff]
    %v3655 = vld [vmem:[#allocation12 + $0x28] sm:$0xff]
    %v3656 = vld [vmem:[#allocation12 + $0x30] sm:$0xff]
    %v3657 = vld [vmem:[#allocation12 + $0x38] sm:$0xff]
    %v3658 = vld [vmem:[#allocation12 + $0x40] sm:$0xff]
    %v3659 = vld [vmem:[#allocation12 + $0x48] sm:$0xff]
    %v3660 = vld [vmem:[#allocation12 + $0x50] sm:$0xff]
    %v3661 = vld [vmem:[#allocation12 + $0x58] sm:$0xff]
    %v3662 = vld [vmem:[#allocation12 + $0x60] sm:$0xff]
    %v3663 = vld [vmem:[#allocation12 + $0x68] sm:$0xff]
    %v3664 = vld [vmem:[#allocation12 + $0x70] sm:$0xff]
    %v3665 = vld [vmem:[#allocation12 + $0x78] sm:$0xff]
    %v3666 = vld [vmem:[#allocation12 + $0x80] sm:$0xff]
    %v3667 = vld [vmem:[#allocation12 + $0x88] sm:$0xff]
    %v3668 = vld [vmem:[#allocation12 + $0x90] sm:$0xff]
    %v3669 = vld [vmem:[#allocation12 + $0x98] sm:$0xff]
    %v3670 = vld [vmem:[#allocation12 + $0xa0] sm:$0xff]
    %v3671 = vld [vmem:[#allocation12 + $0xa8] sm:$0xff]
    %v3672 = vld [vmem:[#allocation12 + $0xb0] sm:$0xff]
    %v3673 = vld [vmem:[#allocation12 + $0xb8] sm:$0xff]
    %v3674 = vld [vmem:[#allocation12 + $0xc0] sm:$0xff]
    %v3675 = vld [vmem:[#allocation12 + $0xc8] sm:$0xff]
    %v3676 = vld [vmem:[#allocation12 + $0xd0] sm:$0xff]
    %v3677 = vld [vmem:[#allocation12 + $0xd8] sm:$0xff]
    %v3678 = vld [vmem:[#allocation12 + $0xe0] sm:$0xff]
    %v3679 = vld [vmem:[#allocation12 + $0xe8] sm:$0xff]
    %v3680 = vld [vmem:[#allocation12 + $0xf0] sm:$0xff]
    %v3681 = vld [vmem:[#allocation12 + $0xf8] sm:$0xff]
    %v3682 = vld [vmem:[#allocation12 + $0x100] sm:$0xff]
    %v3683 = vld [vmem:[#allocation12 + $0x108] sm:$0xff]
    %v3684 = vld [vmem:[#allocation12 + $0x110] sm:$0xff]
    %v3685 = vld [vmem:[#allocation12 + $0x118] sm:$0xff]
    %v3686 = vld [vmem:[#allocation12 + $0x120] sm:$0xff]
    %v3687 = vld [vmem:[#allocation12 + $0x128] sm:$0xff]
    %v3688 = vld [vmem:[#allocation12 + $0x130] sm:$0xff]
    %v3689 = vld [vmem:[#allocation12 + $0x138] sm:$0xff]
    %v3690 = vld [vmem:[#allocation12 + $0x140] sm:$0xff]
    %v3691 = vld [vmem:[#allocation12 + $0x148] sm:$0xff]
    %v3692 = vld [vmem:[#allocation12 + $0x150] sm:$0xff]
    %v3693 = vld [vmem:[#allocation12 + $0x158] sm:$0xff]
    %v3694 = vld [vmem:[#allocation12 + $0x160] sm:$0xff]
    %v3695 = vld [vmem:[#allocation12 + $0x168] sm:$0xff]
    %v3696 = vld [vmem:[#allocation12 + $0x170] sm:$0xff]
    %v3697 = vld [vmem:[#allocation12 + $0x178] sm:$0xff]
    %v3698 = vld [vmem:[#allocation12 + $0x180] sm:$0xff]
    %v3699 = vld [vmem:[#allocation12 + $0x188] sm:$0xff]
    %v3700 = vld [vmem:[#allocation12 + $0x190] sm:$0xff]
    %v3701 = vld [vmem:[#allocation12 + $0x198] sm:$0xff]
    %v3702 = vld [vmem:[#allocation12 + $0x1a0] sm:$0xff]
    %v3703 = vld [vmem:[#allocation12 + $0x1a8] sm:$0xff]
    %v3704 = vld [vmem:[#allocation12 + $0x1b0] sm:$0xff]
    %v3705 = vld [vmem:[#allocation12 + $0x1b8] sm:$0xff]
    %v3706 = vld [vmem:[#allocation12 + $0x1c0] sm:$0xff]
    %v3707 = vld [vmem:[#allocation12 + $0x1c8] sm:$0xff]
    %v3708 = vld [vmem:[#allocation12 + $0x1d0] sm:$0xff]
    %v3709 = vld [vmem:[#allocation12 + $0x1d8] sm:$0xff]
    %v3710 = vld [vmem:[#allocation12 + $0x1e0] sm:$0xff]
    %v3711 = vld [vmem:[#allocation12 + $0x1e8] sm:$0xff]
    %v3712 = vld [vmem:[#allocation12 + $0x1f0] sm:$0xff]
    %v3713 = vld [vmem:[#allocation12 + $0x1f8] sm:$0xff]
    %v3714 = vld [vmem:[#allocation12 + $0x200] sm:$0xff]
    %v3715 = vld [vmem:[#allocation12 + $0x208] sm:$0xff]
    %v3716 = vld [vmem:[#allocation12 + $0x210] sm:$0xff]
    %v3717 = vld [vmem:[#allocation12 + $0x218] sm:$0xff]
    %v3718 = vld [vmem:[#allocation12 + $0x220] sm:$0xff]
    %v3719 = vld [vmem:[#allocation12 + $0x228] sm:$0xff]
    %v3720 = vld [vmem:[#allocation12 + $0x230] sm:$0xff]
    %v3721 = vld [vmem:[#allocation12 + $0x238] sm:$0xff]
    %v3722 = vld [vmem:[#allocation12 + $0x240] sm:$0xff]
    %v3723 = vld [vmem:[#allocation12 + $0x248] sm:$0xff]
    %v3724 = vld [vmem:[#allocation12 + $0x250] sm:$0xff]
    %v3725 = vld [vmem:[#allocation12 + $0x258] sm:$0xff]
    %v3726 = vld [vmem:[#allocation12 + $0x260] sm:$0xff]
    %v3727 = vld [vmem:[#allocation12 + $0x268] sm:$0xff]
    %v3728 = vld [vmem:[#allocation12 + $0x270] sm:$0xff]
    %v3729 = vld [vmem:[#allocation12 + $0x278] sm:$0xff]
    %v3730 = vld [vmem:[#allocation12 + $0x280] sm:$0xff]
    %v3731 = vld [vmem:[#allocation12 + $0x288] sm:$0xff]
    %v3732 = vld [vmem:[#allocation12 + $0x290] sm:$0xff]
    %v3733 = vld [vmem:[#allocation12 + $0x298] sm:$0xff]
    %v3734 = vld [vmem:[#allocation12 + $0x2a0] sm:$0xff]
    %v3735 = vld [vmem:[#allocation12 + $0x2a8] sm:$0xff]
    %v3736 = vld [vmem:[#allocation12 + $0x2b0] sm:$0xff]
    %v3737 = vld [vmem:[#allocation12 + $0x2b8] sm:$0xff]
    %v3738 = vld [vmem:[#allocation12 + $0x2c0] sm:$0xff]
    %v3739 = vld [vmem:[#allocation12 + $0x2c8] sm:$0xff]
    %v3740 = vld [vmem:[#allocation12 + $0x2d0] sm:$0xff]
    %v3741 = vld [vmem:[#allocation12 + $0x2d8] sm:$0xff]
    %v3742 = vld [vmem:[#allocation12 + $0x2e0] sm:$0xff]
    %v3743 = vld [vmem:[#allocation12 + $0x2e8] sm:$0xff]
    %v3744 = vld [vmem:[#allocation12 + $0x2f0] sm:$0xff]
    %v3745 = vld [vmem:[#allocation12 + $0x2f8] sm:$0xff]
    %v3746 = vld [vmem:[#allocation12 + $0x300] sm:$0xff]
    %v3747 = vld [vmem:[#allocation12 + $0x308] sm:$0xff]
    %v3748 = vld [vmem:[#allocation12 + $0x310] sm:$0xff]
    %v3749 = vld [vmem:[#allocation12 + $0x318] sm:$0xff]
    %v3750 = vld [vmem:[#allocation12 + $0x320] sm:$0xff]
    %v3751 = vld [vmem:[#allocation12 + $0x328] sm:$0xff]
    %v3752 = vld [vmem:[#allocation12 + $0x330] sm:$0xff]
    %v3753 = vld [vmem:[#allocation12 + $0x338] sm:$0xff]
    %v3754 = vld [vmem:[#allocation12 + $0x340] sm:$0xff]
    %v3755 = vld [vmem:[#allocation12 + $0x348] sm:$0xff]
    %v3756 = vld [vmem:[#allocation12 + $0x350] sm:$0xff]
    %v3757 = vld [vmem:[#allocation12 + $0x358] sm:$0xff]
    %v3758 = vld [vmem:[#allocation12 + $0x360] sm:$0xff]
    %v3759 = vld [vmem:[#allocation12 + $0x368] sm:$0xff]
    %v3760 = vld [vmem:[#allocation12 + $0x370] sm:$0xff]
    %v3761 = vld [vmem:[#allocation12 + $0x378] sm:$0xff]
    %v3762 = vld [vmem:[#allocation12 + $0x380] sm:$0xff]
    %v3763 = vld [vmem:[#allocation12 + $0x388] sm:$0xff]
    %v3764 = vld [vmem:[#allocation12 + $0x390] sm:$0xff]
    %v3765 = vld [vmem:[#allocation12 + $0x398] sm:$0xff]
    %v3766 = vld [vmem:[#allocation12 + $0x3a0] sm:$0xff]
    %v3767 = vld [vmem:[#allocation12 + $0x3a8] sm:$0xff]
    %v3768 = vld [vmem:[#allocation12 + $0x3b0] sm:$0xff]
    %v3769 = vld [vmem:[#allocation12 + $0x3b8] sm:$0xff]
    %v3770 = vld [vmem:[#allocation12 + $0x3c0] sm:$0xff]
    %v3771 = vld [vmem:[#allocation12 + $0x3c8] sm:$0xff]
    %v3772 = vld [vmem:[#allocation12 + $0x3d0] sm:$0xff]
    %v3773 = vld [vmem:[#allocation12 + $0x3d8] sm:$0xff]
    %v3774 = vld [vmem:[#allocation12 + $0x3e0] sm:$0xff]
    %v3775 = vld [vmem:[#allocation12 + $0x3e8] sm:$0xff]
    %v3776 = vld [vmem:[#allocation12 + $0x3f0] sm:$0xff]
    %v3777 = vld [vmem:[#allocation12 + $0x3f8] sm:$0xff]
    %v3778 = vld [vmem:[#allocation12 + $0x400] sm:$0xff]
    %v3779 = vld [vmem:[#allocation12 + $0x408] sm:$0xff]
    %v3780 = vld [vmem:[#allocation12 + $0x410] sm:$0xff]
    %v3781 = vld [vmem:[#allocation12 + $0x418] sm:$0xff]
    %v3782 = vld [vmem:[#allocation12 + $0x420] sm:$0xff]
    %v3783 = vld [vmem:[#allocation12 + $0x428] sm:$0xff]
    %v3784 = vld [vmem:[#allocation12 + $0x430] sm:$0xff]
    %v3785 = vld [vmem:[#allocation12 + $0x438] sm:$0xff]
    %v3786 = vld [vmem:[#allocation12 + $0x440] sm:$0xff]
    %v3787 = vld [vmem:[#allocation12 + $0x448] sm:$0xff]
    %v3788 = vld [vmem:[#allocation12 + $0x450] sm:$0xff]
    %v3789 = vld [vmem:[#allocation12 + $0x458] sm:$0xff]
    %v3790 = vld [vmem:[#allocation12 + $0x460] sm:$0xff]
    %v3791 = vld [vmem:[#allocation12 + $0x468] sm:$0xff]
    %v3792 = vld [vmem:[#allocation12 + $0x470] sm:$0xff]
    %v3793 = vld [vmem:[#allocation12 + $0x478] sm:$0xff]
    %v3794 = vld [vmem:[#allocation12 + $0x480] sm:$0xff]
    %v3795 = vld [vmem:[#allocation12 + $0x488] sm:$0xff]
    %v3796 = vld [vmem:[#allocation12 + $0x490] sm:$0xff]
    %v3797 = vld [vmem:[#allocation12 + $0x498] sm:$0xff]
    %v3798 = vld [vmem:[#allocation12 + $0x4a0] sm:$0xff]
    %v3799 = vld [vmem:[#allocation12 + $0x4a8] sm:$0xff]
    %v3800 = vld [vmem:[#allocation12 + $0x4b0] sm:$0xff]
    %v3801 = vld [vmem:[#allocation12 + $0x4b8] sm:$0xff]
    %v3802 = vld [vmem:[#allocation12 + $0x4c0] sm:$0xff]
    %v3803 = vld [vmem:[#allocation12 + $0x4c8] sm:$0xff]
    %v3804 = vld [vmem:[#allocation12 + $0x4d0] sm:$0xff]
    %v3805 = vld [vmem:[#allocation12 + $0x4d8] sm:$0xff]
    %v3806 = vld [vmem:[#allocation12 + $0x4e0] sm:$0xff]
    %v3807 = vld [vmem:[#allocation12 + $0x4e8] sm:$0xff]
    %v3808 = vld [vmem:[#allocation12 + $0x4f0] sm:$0xff]
    %v3809 = vld [vmem:[#allocation12 + $0x4f8] sm:$0xff]
    %v3810 = vld [vmem:[#allocation12 + $0x500] sm:$0xff]
    %v3811 = vld [vmem:[#allocation12 + $0x508] sm:$0xff]
    %v3812 = vld [vmem:[#allocation12 + $0x510] sm:$0xff]
    %v3813 = vld [vmem:[#allocation12 + $0x518] sm:$0xff]
    %v3814 = vld [vmem:[#allocation12 + $0x520] sm:$0xff]
    %v3815 = vld [vmem:[#allocation12 + $0x528] sm:$0xff]
    %v3816 = vld [vmem:[#allocation12 + $0x530] sm:$0xff]
    %v3817 = vld [vmem:[#allocation12 + $0x538] sm:$0xff]
    %v3818 = vld [vmem:[#allocation12 + $0x540] sm:$0xff]
    %v3819 = vld [vmem:[#allocation12 + $0x548] sm:$0xff]
    %v3820 = vld [vmem:[#allocation12 + $0x550] sm:$0xff]
    %v3821 = vld [vmem:[#allocation12 + $0x558] sm:$0xff]
    %v3822 = vld [vmem:[#allocation12 + $0x560] sm:$0xff]
    %v3823 = vld [vmem:[#allocation12 + $0x568] sm:$0xff]
    %v3824 = vld [vmem:[#allocation12 + $0x570] sm:$0xff]
    %v3825 = vld [vmem:[#allocation12 + $0x578] sm:$0xff]
    %v3826 = vld [vmem:[#allocation12 + $0x580] sm:$0xff]
    %v3827 = vld [vmem:[#allocation12 + $0x588] sm:$0xff]
    %v3828 = vld [vmem:[#allocation12 + $0x590] sm:$0xff]
    %v3829 = vld [vmem:[#allocation12 + $0x598] sm:$0xff]
    %v3830 = vld [vmem:[#allocation12 + $0x5a0] sm:$0xff]
    %v3831 = vld [vmem:[#allocation12 + $0x5a8] sm:$0xff]
    %v3832 = vld [vmem:[#allocation12 + $0x5b0] sm:$0xff]
    %v3833 = vld [vmem:[#allocation12 + $0x5b8] sm:$0xff]
    %v3834 = vld [vmem:[#allocation12 + $0x5c0] sm:$0xff]
    %v3835 = vld [vmem:[#allocation12 + $0x5c8] sm:$0xff]
    %v3836 = vld [vmem:[#allocation12 + $0x5d0] sm:$0xff]
    %v3837 = vld [vmem:[#allocation12 + $0x5d8] sm:$0xff]
    %v3838 = vld [vmem:[#allocation12 + $0x5e0] sm:$0xff]
    %v3839 = vld [vmem:[#allocation12 + $0x5e8] sm:$0xff]
    %v3840 = vld [vmem:[#allocation12 + $0x5f0] sm:$0xff]
    %v3841 = vld [vmem:[#allocation12 + $0x5f8] sm:$0xff]
    %v3842 = vld [vmem:[#allocation12 + $0x600] sm:$0xff]
    %v3843 = vld [vmem:[#allocation12 + $0x608] sm:$0xff]
    %v3844 = vld [vmem:[#allocation12 + $0x610] sm:$0xff]
    %v3845 = vld [vmem:[#allocation12 + $0x618] sm:$0xff]
    %v3846 = vld [vmem:[#allocation12 + $0x620] sm:$0xff]
    %v3847 = vld [vmem:[#allocation12 + $0x628] sm:$0xff]
    %v3848 = vld [vmem:[#allocation12 + $0x630] sm:$0xff]
    %v3849 = vld [vmem:[#allocation12 + $0x638] sm:$0xff]
    %v3850 = vld [vmem:[#allocation12 + $0x640] sm:$0xff]
    %v3851 = vld [vmem:[#allocation12 + $0x648] sm:$0xff]
    %v3852 = vld [vmem:[#allocation12 + $0x650] sm:$0xff]
    %v3853 = vld [vmem:[#allocation12 + $0x658] sm:$0xff]
    %v3854 = vld [vmem:[#allocation12 + $0x660] sm:$0xff]
    %v3855 = vld [vmem:[#allocation12 + $0x668] sm:$0xff]
    %v3856 = vld [vmem:[#allocation12 + $0x670] sm:$0xff]
    %v3857 = vld [vmem:[#allocation12 + $0x678] sm:$0xff]
    %v3858 = vld [vmem:[#allocation12 + $0x680] sm:$0xff]
    %v3859 = vld [vmem:[#allocation12 + $0x688] sm:$0xff]
    %v3860 = vld [vmem:[#allocation12 + $0x690] sm:$0xff]
    %v3861 = vld [vmem:[#allocation12 + $0x698] sm:$0xff]
    %v3862 = vld [vmem:[#allocation12 + $0x6a0] sm:$0xff]
    %v3863 = vld [vmem:[#allocation12 + $0x6a8] sm:$0xff]
    %v3864 = vld [vmem:[#allocation12 + $0x6b0] sm:$0xff]
    %v3865 = vld [vmem:[#allocation12 + $0x6b8] sm:$0xff]
    %v3866 = vld [vmem:[#allocation12 + $0x6c0] sm:$0xff]
    %v3867 = vld [vmem:[#allocation12 + $0x6c8] sm:$0xff]
    %v3868 = vld [vmem:[#allocation12 + $0x6d0] sm:$0xff]
    %v3869 = vld [vmem:[#allocation12 + $0x6d8] sm:$0xff]
    %v3870 = vld [vmem:[#allocation12 + $0x6e0] sm:$0xff]
    %v3871 = vld [vmem:[#allocation12 + $0x6e8] sm:$0xff]
    %v3872 = vld [vmem:[#allocation12 + $0x6f0] sm:$0xff]
    %v3873 = vld [vmem:[#allocation12 + $0x6f8] sm:$0xff]
    %v3874 = vld [vmem:[#allocation12 + $0x700] sm:$0xff]
    %v3875 = vld [vmem:[#allocation12 + $0x708] sm:$0xff]
    %v3876 = vld [vmem:[#allocation12 + $0x710] sm:$0xff]
    %v3877 = vld [vmem:[#allocation12 + $0x718] sm:$0xff]
    %v3878 = vld [vmem:[#allocation12 + $0x720] sm:$0xff]
    %v3879 = vld [vmem:[#allocation12 + $0x728] sm:$0xff]
    %v3880 = vld [vmem:[#allocation12 + $0x730] sm:$0xff]
    %v3881 = vld [vmem:[#allocation12 + $0x738] sm:$0xff]
    %v3882 = vld [vmem:[#allocation12 + $0x740] sm:$0xff]
    %v3883 = vld [vmem:[#allocation12 + $0x748] sm:$0xff]
    %v3884 = vld [vmem:[#allocation12 + $0x750] sm:$0xff]
    %v3885 = vld [vmem:[#allocation12 + $0x758] sm:$0xff]
    %v3886 = vld [vmem:[#allocation12 + $0x760] sm:$0xff]
    %v3887 = vld [vmem:[#allocation12 + $0x768] sm:$0xff]
    %v3888 = vld [vmem:[#allocation12 + $0x770] sm:$0xff]
    %v3889 = vld [vmem:[#allocation12 + $0x778] sm:$0xff]
    %v3890 = vld [vmem:[#allocation12 + $0x780] sm:$0xff]
    %v3891 = vld [vmem:[#allocation12 + $0x788] sm:$0xff]
    %v3892 = vld [vmem:[#allocation12 + $0x790] sm:$0xff]
    %v3893 = vld [vmem:[#allocation12 + $0x798] sm:$0xff]
    %v3894 = vld [vmem:[#allocation12 + $0x7a0] sm:$0xff]
    %v3895 = vld [vmem:[#allocation12 + $0x7a8] sm:$0xff]
    %v3896 = vld [vmem:[#allocation12 + $0x7b0] sm:$0xff]
    %v3897 = vld [vmem:[#allocation12 + $0x7b8] sm:$0xff]
    %v3898 = vld [vmem:[#allocation12 + $0x7c0] sm:$0xff]
    %v3899 = vld [vmem:[#allocation12 + $0x7c8] sm:$0xff]
    %v3900 = vld [vmem:[#allocation12 + $0x7d0] sm:$0xff]
    %v3901 = vld [vmem:[#allocation12 + $0x7d8] sm:$0xff]
    %v3902 = vld [vmem:[#allocation12 + $0x7e0] sm:$0xff]
    %v3903 = vld [vmem:[#allocation12 + $0x7e8] sm:$0xff]
    %v3904 = vld [vmem:[#allocation12 + $0x7f0] sm:$0xff]
    %v3905 = vld [vmem:[#allocation12 + $0x7f8] sm:$0xff]
    %v3906 = vld [vmem:[#allocation12 + $0x800] sm:$0xff]
    %v3907 = vld [vmem:[#allocation12 + $0x808] sm:$0xff]
    %v3908 = vld [vmem:[#allocation12 + $0x810] sm:$0xff]
    %v3909 = vld [vmem:[#allocation12 + $0x818] sm:$0xff]
    %v3910 = vld [vmem:[#allocation12 + $0x820] sm:$0xff]
    %v3911 = vld [vmem:[#allocation12 + $0x828] sm:$0xff]
    %v3912 = vld [vmem:[#allocation12 + $0x830] sm:$0xff]
    %v3913 = vld [vmem:[#allocation12 + $0x838] sm:$0xff]
    %v3914 = vld [vmem:[#allocation12 + $0x840] sm:$0xff]
    %v3915 = vld [vmem:[#allocation12 + $0x848] sm:$0xff]
    %v3916 = vld [vmem:[#allocation12 + $0x850] sm:$0xff]
    %v3917 = vld [vmem:[#allocation12 + $0x858] sm:$0xff]
    %v3918 = vld [vmem:[#allocation12 + $0x860] sm:$0xff]
    %v3919 = vld [vmem:[#allocation12 + $0x868] sm:$0xff]
    %v3920 = vld [vmem:[#allocation12 + $0x870] sm:$0xff]
    %v3921 = vld [vmem:[#allocation12 + $0x878] sm:$0xff]
    %v3922 = vld [vmem:[#allocation12 + $0x880] sm:$0xff]
    %v3923 = vld [vmem:[#allocation12 + $0x888] sm:$0xff]
    %v3924 = vld [vmem:[#allocation12 + $0x890] sm:$0xff]
    %v3925 = vld [vmem:[#allocation12 + $0x898] sm:$0xff]
    %v3926 = vld [vmem:[#allocation12 + $0x8a0] sm:$0xff]
    %v3927 = vld [vmem:[#allocation12 + $0x8a8] sm:$0xff]
    %v3928 = vld [vmem:[#allocation12 + $0x8b0] sm:$0xff]
    %v3929 = vld [vmem:[#allocation12 + $0x8b8] sm:$0xff]
    %v3930 = vld [vmem:[#allocation12 + $0x8c0] sm:$0xff]
    %v3931 = vld [vmem:[#allocation12 + $0x8c8] sm:$0xff]
    %v3932 = vld [vmem:[#allocation12 + $0x8d0] sm:$0xff]
    %v3933 = vld [vmem:[#allocation12 + $0x8d8] sm:$0xff]
    %v3934 = vld [vmem:[#allocation12 + $0x8e0] sm:$0xff]
    %v3935 = vld [vmem:[#allocation12 + $0x8e8] sm:$0xff]
    %v3936 = vld [vmem:[#allocation12 + $0x8f0] sm:$0xff]
    %v3937 = vld [vmem:[#allocation12 + $0x8f8] sm:$0xff]
    %v3938 = vld [vmem:[#allocation12 + $0x900] sm:$0xff]
    %v3939 = vld [vmem:[#allocation12 + $0x908] sm:$0xff]
    %v3940 = vld [vmem:[#allocation12 + $0x910] sm:$0xff]
    %v3941 = vld [vmem:[#allocation12 + $0x918] sm:$0xff]
    %v3942 = vld [vmem:[#allocation12 + $0x920] sm:$0xff]
    %v3943 = vld [vmem:[#allocation12 + $0x928] sm:$0xff]
    %v3944 = vld [vmem:[#allocation12 + $0x930] sm:$0xff]
    %v3945 = vld [vmem:[#allocation12 + $0x938] sm:$0xff]
    %v3946 = vld [vmem:[#allocation12 + $0x940] sm:$0xff]
    %v3947 = vld [vmem:[#allocation12 + $0x948] sm:$0xff]
    %v3948 = vld [vmem:[#allocation12 + $0x950] sm:$0xff]
    %v3949 = vld [vmem:[#allocation12 + $0x958] sm:$0xff]
    %v3950 = vld [vmem:[#allocation12 + $0x960] sm:$0xff]
    %v3951 = vld [vmem:[#allocation12 + $0x968] sm:$0xff]
    %v3952 = vld [vmem:[#allocation12 + $0x970] sm:$0xff]
    %v3953 = vld [vmem:[#allocation12 + $0x978] sm:$0xff]
    %v3954 = vld [vmem:[#allocation12 + $0x980] sm:$0xff]
    %v3955 = vld [vmem:[#allocation12 + $0x988] sm:$0xff]
    %v3956 = vld [vmem:[#allocation12 + $0x990] sm:$0xff]
    %v3957 = vld [vmem:[#allocation12 + $0x998] sm:$0xff]
    %v3958 = vld [vmem:[#allocation12 + $0x9a0] sm:$0xff]
    %v3959 = vld [vmem:[#allocation12 + $0x9a8] sm:$0xff]
    %v3960 = vld [vmem:[#allocation12 + $0x9b0] sm:$0xff]
    %v3961 = vld [vmem:[#allocation12 + $0x9b8] sm:$0xff]
    %v3962 = vld [vmem:[#allocation12 + $0x9c0] sm:$0xff]
    %v3963 = vld [vmem:[#allocation12 + $0x9c8] sm:$0xff]
    %v3964 = vld [vmem:[#allocation12 + $0x9d0] sm:$0xff]
    %v3965 = vld [vmem:[#allocation12 + $0x9d8] sm:$0xff]
    %v3966 = vld [vmem:[#allocation12 + $0x9e0] sm:$0xff]
    %v3967 = vld [vmem:[#allocation12 + $0x9e8] sm:$0xff]
    %v3968 = vld [vmem:[#allocation12 + $0x9f0] sm:$0xff]
    %v3969 = vld [vmem:[#allocation12 + $0x9f8] sm:$0xff]
    %v3970 = vld [vmem:[#allocation12 + $0xa00] sm:$0xff]
    %v3971 = vld [vmem:[#allocation12 + $0xa08] sm:$0xff]
    %v3972 = vld [vmem:[#allocation12 + $0xa10] sm:$0xff]
    %v3973 = vld [vmem:[#allocation12 + $0xa18] sm:$0xff]
    %v3974 = vld [vmem:[#allocation12 + $0xa20] sm:$0xff]
    %v3975 = vld [vmem:[#allocation12 + $0xa28] sm:$0xff]
    %v3976 = vld [vmem:[#allocation12 + $0xa30] sm:$0xff]
    %v3977 = vld [vmem:[#allocation12 + $0xa38] sm:$0xff]
    %v3978 = vld [vmem:[#allocation12 + $0xa40] sm:$0xff]
    %v3979 = vld [vmem:[#allocation12 + $0xa48] sm:$0xff]
    %v3980 = vld [vmem:[#allocation12 + $0xa50] sm:$0xff]
    %v3981 = vld [vmem:[#allocation12 + $0xa58] sm:$0xff]
    %v3982 = vld [vmem:[#allocation12 + $0xa60] sm:$0xff]
    %v3983 = vld [vmem:[#allocation12 + $0xa68] sm:$0xff]
    %v3984 = vld [vmem:[#allocation12 + $0xa70] sm:$0xff]
    %v3985 = vld [vmem:[#allocation12 + $0xa78] sm:$0xff]
    %v3986 = vld [vmem:[#allocation12 + $0xa80] sm:$0xff]
    %v3987 = vld [vmem:[#allocation12 + $0xa88] sm:$0xff]
    %v3988 = vld [vmem:[#allocation12 + $0xa90] sm:$0xff]
    %v3989 = vld [vmem:[#allocation12 + $0xa98] sm:$0xff]
    %v3990 = vld [vmem:[#allocation12 + $0xaa0] sm:$0xff]
    %v3991 = vld [vmem:[#allocation12 + $0xaa8] sm:$0xff]
    %v3992 = vld [vmem:[#allocation12 + $0xab0] sm:$0xff]
    %v3993 = vld [vmem:[#allocation12 + $0xab8] sm:$0xff]
    %v3994 = vld [vmem:[#allocation12 + $0xac0] sm:$0xff]
    %v3995 = vld [vmem:[#allocation12 + $0xac8] sm:$0xff]
    %v3996 = vld [vmem:[#allocation12 + $0xad0] sm:$0xff]
    %v3997 = vld [vmem:[#allocation12 + $0xad8] sm:$0xff]
    %v3998 = vld [vmem:[#allocation12 + $0xae0] sm:$0xff]
    %v3999 = vld [vmem:[#allocation12 + $0xae8] sm:$0xff]
    %v4000 = vld [vmem:[#allocation12 + $0xaf0] sm:$0xff]
    %v4001 = vld [vmem:[#allocation12 + $0xaf8] sm:$0xff]
    %v4002 = vld [vmem:[#allocation12 + $0xb00] sm:$0xff]
    %v4003 = vld [vmem:[#allocation12 + $0xb08] sm:$0xff]
    %v4004 = vld [vmem:[#allocation12 + $0xb10] sm:$0xff]
    %v4005 = vld [vmem:[#allocation12 + $0xb18] sm:$0xff]
    %v4006 = vld [vmem:[#allocation12 + $0xb20] sm:$0xff]
    %v4007 = vld [vmem:[#allocation12 + $0xb28] sm:$0xff]
    %v4008 = vld [vmem:[#allocation12 + $0xb30] sm:$0xff]
    %v4009 = vld [vmem:[#allocation12 + $0xb38] sm:$0xff]
    %v4010 = vld [vmem:[#allocation12 + $0xb40] sm:$0xff]
    %v4011 = vld [vmem:[#allocation12 + $0xb48] sm:$0xff]
    %v4012 = vld [vmem:[#allocation12 + $0xb50] sm:$0xff]
    %v4013 = vld [vmem:[#allocation12 + $0xb58] sm:$0xff]
    %v4014 = vld [vmem:[#allocation12 + $0xb60] sm:$0xff]
    %v4015 = vld [vmem:[#allocation12 + $0xb68] sm:$0xff]
    %v4016 = vld [vmem:[#allocation12 + $0xb70] sm:$0xff]
    %v4017 = vld [vmem:[#allocation12 + $0xb78] sm:$0xff]
    %v4018 = vld [vmem:[#allocation12 + $0xb80] sm:$0xff]
    %v4019 = vld [vmem:[#allocation12 + $0xb88] sm:$0xff]
    %v4020 = vld [vmem:[#allocation12 + $0xb90] sm:$0xff]
    %v4021 = vld [vmem:[#allocation12 + $0xb98] sm:$0xff]
    %v4022 = vld [vmem:[#allocation12 + $0xba0] sm:$0xff]
    %v4023 = vld [vmem:[#allocation12 + $0xba8] sm:$0xff]
    %v4024 = vld [vmem:[#allocation12 + $0xbb0] sm:$0xff]
    %v4025 = vld [vmem:[#allocation12 + $0xbb8] sm:$0xff]
    %v4026 = vld [vmem:[#allocation12 + $0xbc0] sm:$0xff]
    %v4027 = vld [vmem:[#allocation12 + $0xbc8] sm:$0xff]
    %v4028 = vld [vmem:[#allocation12 + $0xbd0] sm:$0xff]
    %v4029 = vld [vmem:[#allocation12 + $0xbd8] sm:$0xff]
    %v4030 = vld [vmem:[#allocation12 + $0xbe0] sm:$0xff]
    %v4031 = vld [vmem:[#allocation12 + $0xbe8] sm:$0xff]
    %v4032 = vld [vmem:[#allocation12 + $0xbf0] sm:$0xff]
    %v4033 = vld [vmem:[#allocation12 + $0xbf8] sm:$0xff]
    %v4034 = vld [vmem:[#allocation12 + $0xc00] sm:$0xff]
    %v4035 = vld [vmem:[#allocation12 + $0xc08] sm:$0xff]
    %v4036 = vld [vmem:[#allocation12 + $0xc10] sm:$0xff]
    %v4037 = vld [vmem:[#allocation12 + $0xc18] sm:$0xff]
    %v4038 = vld [vmem:[#allocation12 + $0xc20] sm:$0xff]
    %v4039 = vld [vmem:[#allocation12 + $0xc28] sm:$0xff]
    %v4040 = vld [vmem:[#allocation12 + $0xc30] sm:$0xff]
    %v4041 = vld [vmem:[#allocation12 + $0xc38] sm:$0xff]
    %v4042 = vld [vmem:[#allocation12 + $0xc40] sm:$0xff]
    %v4043 = vld [vmem:[#allocation12 + $0xc48] sm:$0xff]
    %v4044 = vld [vmem:[#allocation12 + $0xc50] sm:$0xff]
    %v4045 = vld [vmem:[#allocation12 + $0xc58] sm:$0xff]
    %v4046 = vld [vmem:[#allocation12 + $0xc60] sm:$0xff]
    %v4047 = vld [vmem:[#allocation12 + $0xc68] sm:$0xff]
    %v4048 = vld [vmem:[#allocation12 + $0xc70] sm:$0xff]
    %v4049 = vld [vmem:[#allocation12 + $0xc78] sm:$0xff]
    %v4050 = vld [vmem:[#allocation12 + $0xc80] sm:$0xff]
    %v4051 = vld [vmem:[#allocation12 + $0xc88] sm:$0xff]
    %v4052 = vld [vmem:[#allocation12 + $0xc90] sm:$0xff]
    %v4053 = vld [vmem:[#allocation12 + $0xc98] sm:$0xff]
    %v4054 = vld [vmem:[#allocation12 + $0xca0] sm:$0xff]
    %v4055 = vld [vmem:[#allocation12 + $0xca8] sm:$0xff]
    %v4056 = vld [vmem:[#allocation12 + $0xcb0] sm:$0xff]
    %v4057 = vld [vmem:[#allocation12 + $0xcb8] sm:$0xff]
    %v4058 = vld [vmem:[#allocation12 + $0xcc0] sm:$0xff]
    %v4059 = vld [vmem:[#allocation12 + $0xcc8] sm:$0xff]
    %v4060 = vld [vmem:[#allocation12 + $0xcd0] sm:$0xff]
    %v4061 = vld [vmem:[#allocation12 + $0xcd8] sm:$0xff]
    %v4062 = vld [vmem:[#allocation12 + $0xce0] sm:$0xff]
    %v4063 = vld [vmem:[#allocation12 + $0xce8] sm:$0xff]
    %v4064 = vld [vmem:[#allocation12 + $0xcf0] sm:$0xff]
    %v4065 = vld [vmem:[#allocation12 + $0xcf8] sm:$0xff]
    %v4066 = vld [vmem:[#allocation12 + $0xd00] sm:$0xff]
    %v4067 = vld [vmem:[#allocation12 + $0xd08] sm:$0xff]
    %v4068 = vld [vmem:[#allocation12 + $0xd10] sm:$0xff]
    %v4069 = vld [vmem:[#allocation12 + $0xd18] sm:$0xff]
    %v4070 = vld [vmem:[#allocation12 + $0xd20] sm:$0xff]
    %v4071 = vld [vmem:[#allocation12 + $0xd28] sm:$0xff]
    %v4072 = vld [vmem:[#allocation12 + $0xd30] sm:$0xff]
    %v4073 = vld [vmem:[#allocation12 + $0xd38] sm:$0xff]
    %v4074 = vld [vmem:[#allocation12 + $0xd40] sm:$0xff]
    %v4075 = vld [vmem:[#allocation12 + $0xd48] sm:$0xff]
    %v4076 = vld [vmem:[#allocation12 + $0xd50] sm:$0xff]
    %v4077 = vld [vmem:[#allocation12 + $0xd58] sm:$0xff]
    %v4078 = vld [vmem:[#allocation12 + $0xd60] sm:$0xff]
    %v4079 = vld [vmem:[#allocation12 + $0xd68] sm:$0xff]
    %v4080 = vld [vmem:[#allocation12 + $0xd70] sm:$0xff]
    %v4081 = vld [vmem:[#allocation12 + $0xd78] sm:$0xff]
    %v4082 = vld [vmem:[#allocation12 + $0xd80] sm:$0xff]
    %v4083 = vld [vmem:[#allocation12 + $0xd88] sm:$0xff]
    %v4084 = vld [vmem:[#allocation12 + $0xd90] sm:$0xff]
    %v4085 = vld [vmem:[#allocation12 + $0xd98] sm:$0xff]
    %v4086 = vld [vmem:[#allocation12 + $0xda0] sm:$0xff]
    %v4087 = vld [vmem:[#allocation12 + $0xda8] sm:$0xff]
    %v4088 = vld [vmem:[#allocation12 + $0xdb0] sm:$0xff]
    %v4089 = vld [vmem:[#allocation12 + $0xdb8] sm:$0xff]
    %v4090 = vld [vmem:[#allocation12 + $0xdc0] sm:$0xff]
    %v4091 = vld [vmem:[#allocation12 + $0xdc8] sm:$0xff]
    %v4092 = vld [vmem:[#allocation12 + $0xdd0] sm:$0xff]
    %v4093 = vld [vmem:[#allocation12 + $0xdd8] sm:$0xff]
    %v4094 = vld [vmem:[#allocation12 + $0xde0] sm:$0xff]
    %v4095 = vld [vmem:[#allocation12 + $0xde8] sm:$0xff]
    %v4096 = vld [vmem:[#allocation12 + $0xdf0] sm:$0xff]
    %v4097 = vld [vmem:[#allocation12 + $0xdf8] sm:$0xff]
    %v4098 = vld [vmem:[#allocation12 + $0xe00] sm:$0xff]
    %v4099 = vld [vmem:[#allocation12 + $0xe08] sm:$0xff]
    %v4100 = vld [vmem:[#allocation12 + $0xe10] sm:$0xff]
    %v4101 = vld [vmem:[#allocation12 + $0xe18] sm:$0xff]
    %v4102 = vld [vmem:[#allocation12 + $0xe20] sm:$0xff]
    %v4103 = vld [vmem:[#allocation12 + $0xe28] sm:$0xff]
    %v4104 = vld [vmem:[#allocation12 + $0xe30] sm:$0xff]
    %v4105 = vld [vmem:[#allocation12 + $0xe38] sm:$0xff]
    %v4106 = vld [vmem:[#allocation12 + $0xe40] sm:$0xff]
    %v4107 = vld [vmem:[#allocation12 + $0xe48] sm:$0xff]
    %v4108 = vld [vmem:[#allocation12 + $0xe50] sm:$0xff]
    %v4109 = vld [vmem:[#allocation12 + $0xe58] sm:$0xff]
    %v4110 = vld [vmem:[#allocation12 + $0xe60] sm:$0xff]
    %v4111 = vld [vmem:[#allocation12 + $0xe68] sm:$0xff]
    %v4112 = vld [vmem:[#allocation12 + $0xe70] sm:$0xff]
    %v4113 = vld [vmem:[#allocation12 + $0xe78] sm:$0xff]
    %v4114 = vld [vmem:[#allocation12 + $0xe80] sm:$0xff]
    %v4115 = vld [vmem:[#allocation12 + $0xe88] sm:$0xff]
    %v4116 = vld [vmem:[#allocation12 + $0xe90] sm:$0xff]
    %v4117 = vld [vmem:[#allocation12 + $0xe98] sm:$0xff]
    %v4118 = vld [vmem:[#allocation12 + $0xea0] sm:$0xff]
    %v4119 = vld [vmem:[#allocation12 + $0xea8] sm:$0xff]
    %v4120 = vld [vmem:[#allocation12 + $0xeb0] sm:$0xff]
    %v4121 = vld [vmem:[#allocation12 + $0xeb8] sm:$0xff]
    %v4122 = vld [vmem:[#allocation12 + $0xec0] sm:$0xff]
    %v4123 = vld [vmem:[#allocation12 + $0xec8] sm:$0xff]
    %v4124 = vld [vmem:[#allocation12 + $0xed0] sm:$0xff]
    %v4125 = vld [vmem:[#allocation12 + $0xed8] sm:$0xff]
    %v4126 = vld [vmem:[#allocation12 + $0xee0] sm:$0xff]
    %v4127 = vld [vmem:[#allocation12 + $0xee8] sm:$0xff]
    %v4128 = vld [vmem:[#allocation12 + $0xef0] sm:$0xff]
    %v4129 = vld [vmem:[#allocation12 + $0xef8] sm:$0xff]
    %v4130 = vld [vmem:[#allocation12 + $0xf00] sm:$0xff]
    %v4131 = vld [vmem:[#allocation12 + $0xf08] sm:$0xff]
    %v4132 = vld [vmem:[#allocation12 + $0xf10] sm:$0xff]
    %v4133 = vld [vmem:[#allocation12 + $0xf18] sm:$0xff]
    %v4134 = vld [vmem:[#allocation12 + $0xf20] sm:$0xff]
    %v4135 = vld [vmem:[#allocation12 + $0xf28] sm:$0xff]
    %v4136 = vld [vmem:[#allocation12 + $0xf30] sm:$0xff]
    %v4137 = vld [vmem:[#allocation12 + $0xf38] sm:$0xff]
    %v4138 = vld [vmem:[#allocation12 + $0xf40] sm:$0xff]
    %v4139 = vld [vmem:[#allocation12 + $0xf48] sm:$0xff]
    %v4140 = vld [vmem:[#allocation12 + $0xf50] sm:$0xff]
    %v4141 = vld [vmem:[#allocation12 + $0xf58] sm:$0xff]
    %v4142 = vld [vmem:[#allocation12 + $0xf60] sm:$0xff]
    %v4143 = vld [vmem:[#allocation12 + $0xf68] sm:$0xff]
    %v4144 = vld [vmem:[#allocation12 + $0xf70] sm:$0xff]
    %v4145 = vld [vmem:[#allocation12 + $0xf78] sm:$0xff]
    %v4146 = vld [vmem:[#allocation12 + $0xf80] sm:$0xff]
    %v4147 = vld [vmem:[#allocation12 + $0xf88] sm:$0xff]
    %v4148 = vld [vmem:[#allocation12 + $0xf90] sm:$0xff]
    %v4149 = vld [vmem:[#allocation12 + $0xf98] sm:$0xff]
    %v4150 = vld [vmem:[#allocation12 + $0xfa0] sm:$0xff]
    %v4151 = vld [vmem:[#allocation12 + $0xfa8] sm:$0xff]
    %v4152 = vld [vmem:[#allocation12 + $0xfb0] sm:$0xff]
    %v4153 = vld [vmem:[#allocation12 + $0xfb8] sm:$0xff]
    %v4154 = vld [vmem:[#allocation12 + $0xfc0] sm:$0xff]
    %v4155 = vld [vmem:[#allocation12 + $0xfc8] sm:$0xff]
    %v4156 = vld [vmem:[#allocation12 + $0xfd0] sm:$0xff]
    %v4157 = vld [vmem:[#allocation12 + $0xfd8] sm:$0xff]
    %v4158 = vld [vmem:[#allocation12 + $0xfe0] sm:$0xff]
    %v4159 = vld [vmem:[#allocation12 + $0xfe8] sm:$0xff]
    %v4160 = vld [vmem:[#allocation12 + $0xff0] sm:$0xff]
    %v4161 = vld [vmem:[#allocation12 + $0xff8] sm:$0xff]
    %v4162 = vld [vmem:[#allocation12 + $0x1000] sm:$0xff]
    %v4163 = vld [vmem:[#allocation12 + $0x1008] sm:$0xff]
    %v4164 = vld [vmem:[#allocation12 + $0x1010] sm:$0xff]
    %v4165 = vld [vmem:[#allocation12 + $0x1018] sm:$0xff]
    %v4166 = vld [vmem:[#allocation12 + $0x1020] sm:$0xff]
    %v4167 = vld [vmem:[#allocation12 + $0x1028] sm:$0xff]
    %v4168 = vld [vmem:[#allocation12 + $0x1030] sm:$0xff]
    %v4169 = vld [vmem:[#allocation12 + $0x1038] sm:$0xff]
    %v4170 = vld [vmem:[#allocation12 + $0x1040] sm:$0xff]
    %v4171 = vld [vmem:[#allocation12 + $0x1048] sm:$0xff]
    %v4172 = vld [vmem:[#allocation12 + $0x1050] sm:$0xff]
    %v4173 = vld [vmem:[#allocation12 + $0x1058] sm:$0xff]
    %v4174 = vld [vmem:[#allocation12 + $0x1060] sm:$0xff]
    %v4175 = vld [vmem:[#allocation12 + $0x1068] sm:$0xff]
    %v4176 = vld [vmem:[#allocation12 + $0x1070] sm:$0xff]
    %v4177 = vld [vmem:[#allocation12 + $0x1078] sm:$0xff]
    %v4178 = vld [vmem:[#allocation12 + $0x1080] sm:$0xff]
    %v4179 = vld [vmem:[#allocation12 + $0x1088] sm:$0xff]
    %v4180 = vld [vmem:[#allocation12 + $0x1090] sm:$0xff]
    %v4181 = vld [vmem:[#allocation12 + $0x1098] sm:$0xff]
    %v4182 = vld [vmem:[#allocation12 + $0x10a0] sm:$0xff]
    %v4183 = vld [vmem:[#allocation12 + $0x10a8] sm:$0xff]
    %v4184 = vld [vmem:[#allocation12 + $0x10b0] sm:$0xff]
    %v4185 = vld [vmem:[#allocation12 + $0x10b8] sm:$0xff]
    %v4186 = vld [vmem:[#allocation12 + $0x10c0] sm:$0xff]
    %v4187 = vld [vmem:[#allocation12 + $0x10c8] sm:$0xff]
    %v4188 = vld [vmem:[#allocation12 + $0x10d0] sm:$0xff]
    %v4189 = vld [vmem:[#allocation12 + $0x10d8] sm:$0xff]
    %v4190 = vld [vmem:[#allocation12 + $0x10e0] sm:$0xff]
    %v4191 = vld [vmem:[#allocation12 + $0x10e8] sm:$0xff]
    %v4192 = vld [vmem:[#allocation12 + $0x10f0] sm:$0xff]
    %v4193 = vld [vmem:[#allocation12 + $0x10f8] sm:$0xff]
    %v4194 = vld [vmem:[#allocation12 + $0x1100] sm:$0xff]
    %v4195 = vld [vmem:[#allocation12 + $0x1108] sm:$0xff]
    %v4196 = vld [vmem:[#allocation12 + $0x1110] sm:$0xff]
    %v4197 = vld [vmem:[#allocation12 + $0x1118] sm:$0xff]
    %v4198 = vld [vmem:[#allocation12 + $0x1120] sm:$0xff]
    %v4199 = vld [vmem:[#allocation12 + $0x1128] sm:$0xff]
    %v4200 = vld [vmem:[#allocation12 + $0x1130] sm:$0xff]
    %v4201 = vld [vmem:[#allocation12 + $0x1138] sm:$0xff]
    %v4202 = vld [vmem:[#allocation12 + $0x1140] sm:$0xff]
    %v4203 = vld [vmem:[#allocation12 + $0x1148] sm:$0xff]
    %v4204 = vld [vmem:[#allocation12 + $0x1150] sm:$0xff]
    %v4205 = vld [vmem:[#allocation12 + $0x1158] sm:$0xff]
    %v4206 = vld [vmem:[#allocation12 + $0x1160] sm:$0xff]
    %v4207 = vld [vmem:[#allocation12 + $0x1168] sm:$0xff]
    %v4208 = vld [vmem:[#allocation12 + $0x1170] sm:$0xff]
    %v4209 = vld [vmem:[#allocation12 + $0x1178] sm:$0xff]
    %v4210 = vld [vmem:[#allocation12 + $0x1180] sm:$0xff]
    %v4211 = vld [vmem:[#allocation12 + $0x1188] sm:$0xff]
    %v4212 = vld [vmem:[#allocation12 + $0x1190] sm:$0xff]
    %v4213 = vld [vmem:[#allocation12 + $0x1198] sm:$0xff]
    %v4214 = vld [vmem:[#allocation12 + $0x11a0] sm:$0xff]
    %v4215 = vld [vmem:[#allocation12 + $0x11a8] sm:$0xff]
    %v4216 = vld [vmem:[#allocation12 + $0x11b0] sm:$0xff]
    %v4217 = vld [vmem:[#allocation12 + $0x11b8] sm:$0xff]
    %v4218 = vld [vmem:[#allocation12 + $0x11c0] sm:$0xff]
    %v4219 = vld [vmem:[#allocation12 + $0x11c8] sm:$0xff]
    %v4220 = vld [vmem:[#allocation12 + $0x11d0] sm:$0xff]
    %v4221 = vld [vmem:[#allocation12 + $0x11d8] sm:$0xff]
    %v4222 = vld [vmem:[#allocation12 + $0x11e0] sm:$0xff]
    %v4223 = vld [vmem:[#allocation12 + $0x11e8] sm:$0xff]
    %v4224 = vld [vmem:[#allocation12 + $0x11f0] sm:$0xff]
    %v4225 = vld [vmem:[#allocation12 + $0x11f8] sm:$0xff]
    %v4226 = vld [vmem:[#allocation12 + $0x1200] sm:$0xff]
    %v4227 = vld [vmem:[#allocation12 + $0x1208] sm:$0xff]
    %v4228 = vld [vmem:[#allocation12 + $0x1210] sm:$0xff]
    %v4229 = vld [vmem:[#allocation12 + $0x1218] sm:$0xff]
    %v4230 = vld [vmem:[#allocation12 + $0x1220] sm:$0xff]
    %v4231 = vld [vmem:[#allocation12 + $0x1228] sm:$0xff]
    %v4232 = vld [vmem:[#allocation12 + $0x1230] sm:$0xff]
    %v4233 = vld [vmem:[#allocation12 + $0x1238] sm:$0xff]
    %v4234 = vld [vmem:[#allocation12 + $0x1240] sm:$0xff]
    %v4235 = vld [vmem:[#allocation12 + $0x1248] sm:$0xff]
    %v4236 = vld [vmem:[#allocation12 + $0x1250] sm:$0xff]
    %v4237 = vld [vmem:[#allocation12 + $0x1258] sm:$0xff]
    %v4238 = vld [vmem:[#allocation12 + $0x1260] sm:$0xff]
    %v4239 = vld [vmem:[#allocation12 + $0x1268] sm:$0xff]
    %v4240 = vld [vmem:[#allocation12 + $0x1270] sm:$0xff]
    %v4241 = vld [vmem:[#allocation12 + $0x1278] sm:$0xff]
    %v4242 = vld [vmem:[#allocation12 + $0x1280] sm:$0xff]
    %v4243 = vld [vmem:[#allocation12 + $0x1288] sm:$0xff]
    %v4244 = vld [vmem:[#allocation12 + $0x1290] sm:$0xff]
    %v4245 = vld [vmem:[#allocation12 + $0x1298] sm:$0xff]
    %v4246 = vld [vmem:[#allocation12 + $0x12a0] sm:$0xff]
    %v4247 = vld [vmem:[#allocation12 + $0x12a8] sm:$0xff]
    %v4248 = vld [vmem:[#allocation12 + $0x12b0] sm:$0xff]
    %v4249 = vld [vmem:[#allocation12 + $0x12b8] sm:$0xff]
    %v4250 = vld [vmem:[#allocation12 + $0x12c0] sm:$0xff]
    %v4251 = vld [vmem:[#allocation12 + $0x12c8] sm:$0xff]
    %v4252 = vld [vmem:[#allocation12 + $0x12d0] sm:$0xff]
    %v4253 = vld [vmem:[#allocation12 + $0x12d8] sm:$0xff]
    %v4254 = vld [vmem:[#allocation12 + $0x12e0] sm:$0xff]
    %v4255 = vld [vmem:[#allocation12 + $0x12e8] sm:$0xff]
    %v4256 = vld [vmem:[#allocation12 + $0x12f0] sm:$0xff]
    %v4257 = vld [vmem:[#allocation12 + $0x12f8] sm:$0xff]
    %v4258 = vld [vmem:[#allocation12 + $0x1300] sm:$0xff]
    %v4259 = vld [vmem:[#allocation12 + $0x1308] sm:$0xff]
    %v4260 = vld [vmem:[#allocation12 + $0x1310] sm:$0xff]
    %v4261 = vld [vmem:[#allocation12 + $0x1318] sm:$0xff]
    %v4262 = vld [vmem:[#allocation12 + $0x1320] sm:$0xff]
    %v4263 = vld [vmem:[#allocation12 + $0x1328] sm:$0xff]
    %v4264 = vld [vmem:[#allocation12 + $0x1330] sm:$0xff]
    %v4265 = vld [vmem:[#allocation12 + $0x1338] sm:$0xff]
    %v4266 = vld [vmem:[#allocation12 + $0x1340] sm:$0xff]
    %v4267 = vld [vmem:[#allocation12 + $0x1348] sm:$0xff]
    %v4268 = vld [vmem:[#allocation12 + $0x1350] sm:$0xff]
    %v4269 = vld [vmem:[#allocation12 + $0x1358] sm:$0xff]
    %v4270 = vld [vmem:[#allocation12 + $0x1360] sm:$0xff]
    %v4271 = vld [vmem:[#allocation12 + $0x1368] sm:$0xff]
    %v4272 = vld [vmem:[#allocation12 + $0x1370] sm:$0xff]
    %v4273 = vld [vmem:[#allocation12 + $0x1378] sm:$0xff]
    %v4274 = vld [vmem:[#allocation12 + $0x1380] sm:$0xff]
    %v4275 = vld [vmem:[#allocation12 + $0x1388] sm:$0xff]
    %v4276 = vld [vmem:[#allocation12 + $0x1390] sm:$0xff]
    %v4277 = vld [vmem:[#allocation12 + $0x1398] sm:$0xff]
    %v4278 = vld [vmem:[#allocation12 + $0x13a0] sm:$0xff]
    %v4279 = vld [vmem:[#allocation12 + $0x13a8] sm:$0xff]
    %v4280 = vld [vmem:[#allocation12 + $0x13b0] sm:$0xff]
    %v4281 = vld [vmem:[#allocation12 + $0x13b8] sm:$0xff]
    %v4282 = vld [vmem:[#allocation12 + $0x13c0] sm:$0xff]
    %v4283 = vld [vmem:[#allocation12 + $0x13c8] sm:$0xff]
    %v4284 = vld [vmem:[#allocation12 + $0x13d0] sm:$0xff]
    %v4285 = vld [vmem:[#allocation12 + $0x13d8] sm:$0xff]
    %v4286 = vld [vmem:[#allocation12 + $0x13e0] sm:$0xff]
    %v4287 = vld [vmem:[#allocation12 + $0x13e8] sm:$0xff]
    %v4288 = vld [vmem:[#allocation12 + $0x13f0] sm:$0xff]
    %v4289 = vld [vmem:[#allocation12 + $0x13f8] sm:$0xff]
    %v4290 = vld [vmem:[#allocation12 + $0x1400] sm:$0xff]
    %v4291 = vld [vmem:[#allocation12 + $0x1408] sm:$0xff]
    %v4292 = vld [vmem:[#allocation12 + $0x1410] sm:$0xff]
    %v4293 = vld [vmem:[#allocation12 + $0x1418] sm:$0xff]
    %v4294 = vld [vmem:[#allocation12 + $0x1420] sm:$0xff]
    %v4295 = vld [vmem:[#allocation12 + $0x1428] sm:$0xff]
    %v4296 = vld [vmem:[#allocation12 + $0x1430] sm:$0xff]
    %v4297 = vld [vmem:[#allocation12 + $0x1438] sm:$0xff]
    %v4298 = vld [vmem:[#allocation12 + $0x1440] sm:$0xff]
    %v4299 = vld [vmem:[#allocation12 + $0x1448] sm:$0xff]
    %v4300 = vld [vmem:[#allocation12 + $0x1450] sm:$0xff]
    %v4301 = vld [vmem:[#allocation12 + $0x1458] sm:$0xff]
    %v4302 = vld [vmem:[#allocation12 + $0x1460] sm:$0xff]
    %v4303 = vld [vmem:[#allocation12 + $0x1468] sm:$0xff]
    %v4304 = vld [vmem:[#allocation12 + $0x1470] sm:$0xff]
    %v4305 = vld [vmem:[#allocation12 + $0x1478] sm:$0xff]
    %v4306 = vld [vmem:[#allocation12 + $0x1480] sm:$0xff]
    %v4307 = vld [vmem:[#allocation12 + $0x1488] sm:$0xff]
    %v4308 = vld [vmem:[#allocation12 + $0x1490] sm:$0xff]
    %v4309 = vld [vmem:[#allocation12 + $0x1498] sm:$0xff]
    %v4310 = vld [vmem:[#allocation12 + $0x14a0] sm:$0xff]
    %v4311 = vld [vmem:[#allocation12 + $0x14a8] sm:$0xff]
    %v4312 = vld [vmem:[#allocation12 + $0x14b0] sm:$0xff]
    %v4313 = vld [vmem:[#allocation12 + $0x14b8] sm:$0xff]
    %v4314 = vld [vmem:[#allocation12 + $0x14c0] sm:$0xff]
    %v4315 = vld [vmem:[#allocation12 + $0x14c8] sm:$0xff]
    %v4316 = vld [vmem:[#allocation12 + $0x14d0] sm:$0xff]
    %v4317 = vld [vmem:[#allocation12 + $0x14d8] sm:$0xff]
    %v4318 = vld [vmem:[#allocation12 + $0x14e0] sm:$0xff]
    %v4319 = vld [vmem:[#allocation12 + $0x14e8] sm:$0xff]
    %v4320 = vld [vmem:[#allocation12 + $0x14f0] sm:$0xff]
    %v4321 = vld [vmem:[#allocation12 + $0x14f8] sm:$0xff]
    %v4322 = vld [vmem:[#allocation12 + $0x1500] sm:$0xff]
    %v4323 = vld [vmem:[#allocation12 + $0x1508] sm:$0xff]
    %v4324 = vld [vmem:[#allocation12 + $0x1510] sm:$0xff]
    %v4325 = vld [vmem:[#allocation12 + $0x1518] sm:$0xff]
    %v4326 = vld [vmem:[#allocation12 + $0x1520] sm:$0xff]
    %v4327 = vld [vmem:[#allocation12 + $0x1528] sm:$0xff]
    %v4328 = vld [vmem:[#allocation12 + $0x1530] sm:$0xff]
    %v4329 = vld [vmem:[#allocation12 + $0x1538] sm:$0xff]
    %v4330 = vld [vmem:[#allocation12 + $0x1540] sm:$0xff]
    %v4331 = vld [vmem:[#allocation12 + $0x1548] sm:$0xff]
    %v4332 = vld [vmem:[#allocation12 + $0x1550] sm:$0xff]
    %v4333 = vld [vmem:[#allocation12 + $0x1558] sm:$0xff]
    %v4334 = vld [vmem:[#allocation12 + $0x1560] sm:$0xff]
    %v4335 = vld [vmem:[#allocation12 + $0x1568] sm:$0xff]
    %v4336 = vld [vmem:[#allocation12 + $0x1570] sm:$0xff]
    %v4337 = vld [vmem:[#allocation12 + $0x1578] sm:$0xff]
    %v4338 = vld [vmem:[#allocation12 + $0x1580] sm:$0xff]
    %v4339 = vld [vmem:[#allocation12 + $0x1588] sm:$0xff]
    %v4340 = vld [vmem:[#allocation12 + $0x1590] sm:$0xff]
    %v4341 = vld [vmem:[#allocation12 + $0x1598] sm:$0xff]
    %v4342 = vld [vmem:[#allocation12 + $0x15a0] sm:$0xff]
    %v4343 = vld [vmem:[#allocation12 + $0x15a8] sm:$0xff]
    %v4344 = vld [vmem:[#allocation12 + $0x15b0] sm:$0xff]
    %v4345 = vld [vmem:[#allocation12 + $0x15b8] sm:$0xff]
    %v4346 = vld [vmem:[#allocation12 + $0x15c0] sm:$0xff]
    %v4347 = vld [vmem:[#allocation12 + $0x15c8] sm:$0xff]
    %v4348 = vld [vmem:[#allocation12 + $0x15d0] sm:$0xff]
    %v4349 = vld [vmem:[#allocation12 + $0x15d8] sm:$0xff]
    %v4350 = vld [vmem:[#allocation12 + $0x15e0] sm:$0xff]
    %v4351 = vld [vmem:[#allocation12 + $0x15e8] sm:$0xff]
    %v4352 = vld [vmem:[#allocation12 + $0x15f0] sm:$0xff]
    %v4353 = vld [vmem:[#allocation12 + $0x15f8] sm:$0xff]
    %v4354 = vld [vmem:[#allocation12 + $0x1600] sm:$0xff]
    %v4355 = vld [vmem:[#allocation12 + $0x1608] sm:$0xff]
    %v4356 = vld [vmem:[#allocation12 + $0x1610] sm:$0xff]
    %v4357 = vld [vmem:[#allocation12 + $0x1618] sm:$0xff]
    %v4358 = vld [vmem:[#allocation12 + $0x1620] sm:$0xff]
    %v4359 = vld [vmem:[#allocation12 + $0x1628] sm:$0xff]
    %v4360 = vld [vmem:[#allocation12 + $0x1630] sm:$0xff]
    %v4361 = vld [vmem:[#allocation12 + $0x1638] sm:$0xff]
    %v4362 = vld [vmem:[#allocation12 + $0x1640] sm:$0xff]
    %v4363 = vld [vmem:[#allocation12 + $0x1648] sm:$0xff]
    %v4364 = vld [vmem:[#allocation12 + $0x1650] sm:$0xff]
    %v4365 = vld [vmem:[#allocation12 + $0x1658] sm:$0xff]
    %v4366 = vld [vmem:[#allocation12 + $0x1660] sm:$0xff]
    %v4367 = vld [vmem:[#allocation12 + $0x1668] sm:$0xff]
    %v4368 = vld [vmem:[#allocation12 + $0x1670] sm:$0xff]
    %v4369 = vld [vmem:[#allocation12 + $0x1678] sm:$0xff]
    %v4370 = vld [vmem:[#allocation12 + $0x1680] sm:$0xff]
    %v4371 = vld [vmem:[#allocation12 + $0x1688] sm:$0xff]
    %v4372 = vld [vmem:[#allocation12 + $0x1690] sm:$0xff]
    %v4373 = vld [vmem:[#allocation12 + $0x1698] sm:$0xff]
    %v4374 = vld [vmem:[#allocation12 + $0x16a0] sm:$0xff]
    %v4375 = vld [vmem:[#allocation12 + $0x16a8] sm:$0xff]
    %v4376 = vld [vmem:[#allocation12 + $0x16b0] sm:$0xff]
    %v4377 = vld [vmem:[#allocation12 + $0x16b8] sm:$0xff]
    %v4378 = vld [vmem:[#allocation12 + $0x16c0] sm:$0xff]
    %v4379 = vld [vmem:[#allocation12 + $0x16c8] sm:$0xff]
    %v4380 = vld [vmem:[#allocation12 + $0x16d0] sm:$0xff]
    %v4381 = vld [vmem:[#allocation12 + $0x16d8] sm:$0xff]
    %v4382 = vld [vmem:[#allocation12 + $0x16e0] sm:$0xff]
    %v4383 = vld [vmem:[#allocation12 + $0x16e8] sm:$0xff]
    %v4384 = vld [vmem:[#allocation12 + $0x16f0] sm:$0xff]
    %v4385 = vld [vmem:[#allocation12 + $0x16f8] sm:$0xff]
    %v4386 = vld [vmem:[#allocation12 + $0x1700] sm:$0xff]
    %v4387 = vld [vmem:[#allocation12 + $0x1708] sm:$0xff]
    %v4388 = vld [vmem:[#allocation12 + $0x1710] sm:$0xff]
    %v4389 = vld [vmem:[#allocation12 + $0x1718] sm:$0xff]
    %v4390 = vld [vmem:[#allocation12 + $0x1720] sm:$0xff]
    %v4391 = vld [vmem:[#allocation12 + $0x1728] sm:$0xff]
    %v4392 = vld [vmem:[#allocation12 + $0x1730] sm:$0xff]
    %v4393 = vld [vmem:[#allocation12 + $0x1738] sm:$0xff]
    %v4394 = vld [vmem:[#allocation12 + $0x1740] sm:$0xff]
    %v4395 = vld [vmem:[#allocation12 + $0x1748] sm:$0xff]
    %v4396 = vld [vmem:[#allocation12 + $0x1750] sm:$0xff]
    %v4397 = vld [vmem:[#allocation12 + $0x1758] sm:$0xff]
    %v4398 = vld [vmem:[#allocation12 + $0x1760] sm:$0xff]
    %v4399 = vld [vmem:[#allocation12 + $0x1768] sm:$0xff]
    %v4400 = vld [vmem:[#allocation12 + $0x1770] sm:$0xff]
    %v4401 = vld [vmem:[#allocation12 + $0x1778] sm:$0xff]
    %v4402 = vld [vmem:[#allocation12 + $0x1780] sm:$0xff]
    %v4403 = vld [vmem:[#allocation12 + $0x1788] sm:$0xff]
    %v4404 = vld [vmem:[#allocation12 + $0x1790] sm:$0xff]
    %v4405 = vld [vmem:[#allocation12 + $0x1798] sm:$0xff]
    %v4406 = vld [vmem:[#allocation12 + $0x17a0] sm:$0xff]
    %v4407 = vld [vmem:[#allocation12 + $0x17a8] sm:$0xff]
    %v4408 = vld [vmem:[#allocation12 + $0x17b0] sm:$0xff]
    %v4409 = vld [vmem:[#allocation12 + $0x17b8] sm:$0xff]
    %v4410 = vld [vmem:[#allocation12 + $0x17c0] sm:$0xff]
    %v4411 = vld [vmem:[#allocation12 + $0x17c8] sm:$0xff]
    %v4412 = vld [vmem:[#allocation12 + $0x17d0] sm:$0xff]
    %v4413 = vld [vmem:[#allocation12 + $0x17d8] sm:$0xff]
    %v4414 = vld [vmem:[#allocation12 + $0x17e0] sm:$0xff]
    %v4415 = vld [vmem:[#allocation12 + $0x17e8] sm:$0xff]
    %v4416 = vld [vmem:[#allocation12 + $0x17f0] sm:$0xff]
    %v4417 = vld [vmem:[#allocation12 + $0x17f8] sm:$0xff]
    %v4418 = vld [vmem:[#allocation12 + $0x1800] sm:$0xff]
    %v4419 = vld [vmem:[#allocation12 + $0x1808] sm:$0xff]
    %v4420 = vld [vmem:[#allocation12 + $0x1810] sm:$0xff]
    %v4421 = vld [vmem:[#allocation12 + $0x1818] sm:$0xff]
    %v4422 = vld [vmem:[#allocation12 + $0x1820] sm:$0xff]
    %v4423 = vld [vmem:[#allocation12 + $0x1828] sm:$0xff]
    %v4424 = vld [vmem:[#allocation12 + $0x1830] sm:$0xff]
    %v4425 = vld [vmem:[#allocation12 + $0x1838] sm:$0xff]
    %v4426 = vld [vmem:[#allocation12 + $0x1840] sm:$0xff]
    %v4427 = vld [vmem:[#allocation12 + $0x1848] sm:$0xff]
    %v4428 = vld [vmem:[#allocation12 + $0x1850] sm:$0xff]
    %v4429 = vld [vmem:[#allocation12 + $0x1858] sm:$0xff]
    %v4430 = vld [vmem:[#allocation12 + $0x1860] sm:$0xff]
    %v4431 = vld [vmem:[#allocation12 + $0x1868] sm:$0xff]
    %v4432 = vld [vmem:[#allocation12 + $0x1870] sm:$0xff]
    %v4433 = vld [vmem:[#allocation12 + $0x1878] sm:$0xff]
    %v4434 = vld [vmem:[#allocation12 + $0x1880] sm:$0xff]
    %v4435 = vld [vmem:[#allocation12 + $0x1888] sm:$0xff]
    %v4436 = vld [vmem:[#allocation12 + $0x1890] sm:$0xff]
    %v4437 = vld [vmem:[#allocation12 + $0x1898] sm:$0xff]
    %v4438 = vld [vmem:[#allocation12 + $0x18a0] sm:$0xff]
    %v4439 = vld [vmem:[#allocation12 + $0x18a8] sm:$0xff]
    %v4440 = vld [vmem:[#allocation12 + $0x18b0] sm:$0xff]
    %v4441 = vld [vmem:[#allocation12 + $0x18b8] sm:$0xff]
    %v4442 = vld [vmem:[#allocation12 + $0x18c0] sm:$0xff]
    %v4443 = vld [vmem:[#allocation12 + $0x18c8] sm:$0xff]
    %v4444 = vld [vmem:[#allocation12 + $0x18d0] sm:$0xff]
    %v4445 = vld [vmem:[#allocation12 + $0x18d8] sm:$0xff]
    %v4446 = vld [vmem:[#allocation12 + $0x18e0] sm:$0xff]
    %v4447 = vld [vmem:[#allocation12 + $0x18e8] sm:$0xff]
    %v4448 = vld [vmem:[#allocation12 + $0x18f0] sm:$0xff]
    %v4449 = vld [vmem:[#allocation12 + $0x18f8] sm:$0xff]
    %v4450 = vld [vmem:[#allocation12 + $0x1900] sm:$0xff]
    %v4451 = vld [vmem:[#allocation12 + $0x1908] sm:$0xff]
    %v4452 = vld [vmem:[#allocation12 + $0x1910] sm:$0xff]
    %v4453 = vld [vmem:[#allocation12 + $0x1918] sm:$0xff]
    %v4454 = vld [vmem:[#allocation12 + $0x1920] sm:$0xff]
    %v4455 = vld [vmem:[#allocation12 + $0x1928] sm:$0xff]
    %v4456 = vld [vmem:[#allocation12 + $0x1930] sm:$0xff]
    %v4457 = vld [vmem:[#allocation12 + $0x1938] sm:$0xff]
    %v4458 = vld [vmem:[#allocation12 + $0x1940] sm:$0xff]
    %v4459 = vld [vmem:[#allocation12 + $0x1948] sm:$0xff]
    %v4460 = vld [vmem:[#allocation12 + $0x1950] sm:$0xff]
    %v4461 = vld [vmem:[#allocation12 + $0x1958] sm:$0xff]
    %v4462 = vld [vmem:[#allocation12 + $0x1960] sm:$0xff]
    %v4463 = vld [vmem:[#allocation12 + $0x1968] sm:$0xff]
    %v4464 = vld [vmem:[#allocation12 + $0x1970] sm:$0xff]
    %v4465 = vld [vmem:[#allocation12 + $0x1978] sm:$0xff]
    %v4466 = vld [vmem:[#allocation12 + $0x1980] sm:$0xff]
    %v4467 = vld [vmem:[#allocation12 + $0x1988] sm:$0xff]
    %v4468 = vld [vmem:[#allocation12 + $0x1990] sm:$0xff]
    %v4469 = vld [vmem:[#allocation12 + $0x1998] sm:$0xff]
    %v4470 = vld [vmem:[#allocation12 + $0x19a0] sm:$0xff]
    %v4471 = vld [vmem:[#allocation12 + $0x19a8] sm:$0xff]
    %v4472 = vld [vmem:[#allocation12 + $0x19b0] sm:$0xff]
    %v4473 = vld [vmem:[#allocation12 + $0x19b8] sm:$0xff]
    %v4474 = vld [vmem:[#allocation12 + $0x19c0] sm:$0xff]
    %v4475 = vld [vmem:[#allocation12 + $0x19c8] sm:$0xff]
    %v4476 = vld [vmem:[#allocation12 + $0x19d0] sm:$0xff]
    %v4477 = vld [vmem:[#allocation12 + $0x19d8] sm:$0xff]
    %v4478 = vld [vmem:[#allocation12 + $0x19e0] sm:$0xff]
    %v4479 = vld [vmem:[#allocation12 + $0x19e8] sm:$0xff]
    %v4480 = vld [vmem:[#allocation12 + $0x19f0] sm:$0xff]
    %v4481 = vld [vmem:[#allocation12 + $0x19f8] sm:$0xff]
    %v4482 = vld [vmem:[#allocation12 + $0x1a00] sm:$0xff]
    %v4483 = vld [vmem:[#allocation12 + $0x1a08] sm:$0xff]
    %v4484 = vld [vmem:[#allocation12 + $0x1a10] sm:$0xff]
    %v4485 = vld [vmem:[#allocation12 + $0x1a18] sm:$0xff]
    %v4486 = vld [vmem:[#allocation12 + $0x1a20] sm:$0xff]
    %v4487 = vld [vmem:[#allocation12 + $0x1a28] sm:$0xff]
    %v4488 = vld [vmem:[#allocation12 + $0x1a30] sm:$0xff]
    %v4489 = vld [vmem:[#allocation12 + $0x1a38] sm:$0xff]
    %v4490 = vld [vmem:[#allocation12 + $0x1a40] sm:$0xff]
    %v4491 = vld [vmem:[#allocation12 + $0x1a48] sm:$0xff]
    %v4492 = vld [vmem:[#allocation12 + $0x1a50] sm:$0xff]
    %v4493 = vld [vmem:[#allocation12 + $0x1a58] sm:$0xff]
    %v4494 = vld [vmem:[#allocation12 + $0x1a60] sm:$0xff]
    %v4495 = vld [vmem:[#allocation12 + $0x1a68] sm:$0xff]
    %v4496 = vld [vmem:[#allocation12 + $0x1a70] sm:$0xff]
    %v4497 = vld [vmem:[#allocation12 + $0x1a78] sm:$0xff]
    %v4498 = vld [vmem:[#allocation12 + $0x1a80] sm:$0xff]
    %v4499 = vld [vmem:[#allocation12 + $0x1a88] sm:$0xff]
    %v4500 = vld [vmem:[#allocation12 + $0x1a90] sm:$0xff]
    %v4501 = vld [vmem:[#allocation12 + $0x1a98] sm:$0xff]
    %v4502 = vld [vmem:[#allocation12 + $0x1aa0] sm:$0xff]
    %v4503 = vld [vmem:[#allocation12 + $0x1aa8] sm:$0xff]
    %v4504 = vld [vmem:[#allocation12 + $0x1ab0] sm:$0xff]
    %v4505 = vld [vmem:[#allocation12 + $0x1ab8] sm:$0xff]
    %v4506 = vld [vmem:[#allocation12 + $0x1ac0] sm:$0xff]
    %v4507 = vld [vmem:[#allocation12 + $0x1ac8] sm:$0xff]
    %v4508 = vld [vmem:[#allocation12 + $0x1ad0] sm:$0xff]
    %v4509 = vld [vmem:[#allocation12 + $0x1ad8] sm:$0xff]
    %v4510 = vld [vmem:[#allocation12 + $0x1ae0] sm:$0xff]
    %v4511 = vld [vmem:[#allocation12 + $0x1ae8] sm:$0xff]
    %v4512 = vld [vmem:[#allocation12 + $0x1af0] sm:$0xff]
    %v4513 = vld [vmem:[#allocation12 + $0x1af8] sm:$0xff]
    %v4514 = vld [vmem:[#allocation12 + $0x1b00] sm:$0xff]
    %v4515 = vld [vmem:[#allocation12 + $0x1b08] sm:$0xff]
    %v4516 = vld [vmem:[#allocation12 + $0x1b10] sm:$0xff]
    %v4517 = vld [vmem:[#allocation12 + $0x1b18] sm:$0xff]
    %v4518 = vld [vmem:[#allocation12 + $0x1b20] sm:$0xff]
    %v4519 = vld [vmem:[#allocation12 + $0x1b28] sm:$0xff]
    %v4520 = vld [vmem:[#allocation12 + $0x1b30] sm:$0xff]
    %v4521 = vld [vmem:[#allocation12 + $0x1b38] sm:$0xff]
    %v4522 = vld [vmem:[#allocation12 + $0x1b40] sm:$0xff]
    %v4523 = vld [vmem:[#allocation12 + $0x1b48] sm:$0xff]
    %v4524 = vld [vmem:[#allocation12 + $0x1b50] sm:$0xff]
    %v4525 = vld [vmem:[#allocation12 + $0x1b58] sm:$0xff]
    %v4526 = vld [vmem:[#allocation12 + $0x1b60] sm:$0xff]
    %v4527 = vld [vmem:[#allocation12 + $0x1b68] sm:$0xff]
    %v4528 = vld [vmem:[#allocation12 + $0x1b70] sm:$0xff]
    %v4529 = vld [vmem:[#allocation12 + $0x1b78] sm:$0xff]
    %v4530 = vld [vmem:[#allocation12 + $0x1b80] sm:$0xff]
    %v4531 = vld [vmem:[#allocation12 + $0x1b88] sm:$0xff]
    %v4532 = vld [vmem:[#allocation12 + $0x1b90] sm:$0xff]
    %v4533 = vld [vmem:[#allocation12 + $0x1b98] sm:$0xff]
    %v4534 = vld [vmem:[#allocation12 + $0x1ba0] sm:$0xff]
    %v4535 = vld [vmem:[#allocation12 + $0x1ba8] sm:$0xff]
    %v4536 = vld [vmem:[#allocation12 + $0x1bb0] sm:$0xff]
    %v4537 = vld [vmem:[#allocation12 + $0x1bb8] sm:$0xff]
    %v4538 = vld [vmem:[#allocation12 + $0x1bc0] sm:$0xff]
    %v4539 = vld [vmem:[#allocation12 + $0x1bc8] sm:$0xff]
    %v4540 = vld [vmem:[#allocation12 + $0x1bd0] sm:$0xff]
    %v4541 = vld [vmem:[#allocation12 + $0x1bd8] sm:$0xff]
    %v4542 = vld [vmem:[#allocation12 + $0x1be0] sm:$0xff]
    %v4543 = vld [vmem:[#allocation12 + $0x1be8] sm:$0xff]
    %v4544 = vld [vmem:[#allocation12 + $0x1bf0] sm:$0xff]
    %v4545 = vld [vmem:[#allocation12 + $0x1bf8] sm:$0xff]
    %v4546 = vld [vmem:[#allocation12 + $0x1c00] sm:$0xff]
    %v4547 = vld [vmem:[#allocation12 + $0x1c08] sm:$0xff]
    %v4548 = vld [vmem:[#allocation12 + $0x1c10] sm:$0xff]
    %v4549 = vld [vmem:[#allocation12 + $0x1c18] sm:$0xff]
    %v4550 = vld [vmem:[#allocation12 + $0x1c20] sm:$0xff]
    %v4551 = vld [vmem:[#allocation12 + $0x1c28] sm:$0xff]
    %v4552 = vld [vmem:[#allocation12 + $0x1c30] sm:$0xff]
    %v4553 = vld [vmem:[#allocation12 + $0x1c38] sm:$0xff]
    %v4554 = vld [vmem:[#allocation12 + $0x1c40] sm:$0xff]
    %v4555 = vld [vmem:[#allocation12 + $0x1c48] sm:$0xff]
    %v4556 = vld [vmem:[#allocation12 + $0x1c50] sm:$0xff]
    %v4557 = vld [vmem:[#allocation12 + $0x1c58] sm:$0xff]
    %v4558 = vld [vmem:[#allocation12 + $0x1c60] sm:$0xff]
    %v4559 = vld [vmem:[#allocation12 + $0x1c68] sm:$0xff]
    %v4560 = vld [vmem:[#allocation12 + $0x1c70] sm:$0xff]
    %v4561 = vld [vmem:[#allocation12 + $0x1c78] sm:$0xff]
    %v4562 = vld [vmem:[#allocation12 + $0x1c80] sm:$0xff]
    %v4563 = vld [vmem:[#allocation12 + $0x1c88] sm:$0xff]
    %v4564 = vld [vmem:[#allocation12 + $0x1c90] sm:$0xff]
    %v4565 = vld [vmem:[#allocation12 + $0x1c98] sm:$0xff]
    %v4566 = vld [vmem:[#allocation12 + $0x1ca0] sm:$0xff]
    %v4567 = vld [vmem:[#allocation12 + $0x1ca8] sm:$0xff]
    %v4568 = vld [vmem:[#allocation12 + $0x1cb0] sm:$0xff]
    %v4569 = vld [vmem:[#allocation12 + $0x1cb8] sm:$0xff]
    %v4570 = vld [vmem:[#allocation12 + $0x1cc0] sm:$0xff]
    %v4571 = vld [vmem:[#allocation12 + $0x1cc8] sm:$0xff]
    %v4572 = vld [vmem:[#allocation12 + $0x1cd0] sm:$0xff]
    %v4573 = vld [vmem:[#allocation12 + $0x1cd8] sm:$0xff]
    %v4574 = vld [vmem:[#allocation12 + $0x1ce0] sm:$0xff]
    %v4575 = vld [vmem:[#allocation12 + $0x1ce8] sm:$0xff]
    %v4576 = vld [vmem:[#allocation12 + $0x1cf0] sm:$0xff]
    %v4577 = vld [vmem:[#allocation12 + $0x1cf8] sm:$0xff]
    %v4578 = vld [vmem:[#allocation12 + $0x1d00] sm:$0xff]
    %v4579 = vld [vmem:[#allocation12 + $0x1d08] sm:$0xff]
    %v4580 = vld [vmem:[#allocation12 + $0x1d10] sm:$0xff]
    %v4581 = vld [vmem:[#allocation12 + $0x1d18] sm:$0xff]
    %v4582 = vld [vmem:[#allocation12 + $0x1d20] sm:$0xff]
    %v4583 = vld [vmem:[#allocation12 + $0x1d28] sm:$0xff]
    %v4584 = vld [vmem:[#allocation12 + $0x1d30] sm:$0xff]
    %v4585 = vld [vmem:[#allocation12 + $0x1d38] sm:$0xff]
    %v4586 = vld [vmem:[#allocation12 + $0x1d40] sm:$0xff]
    %v4587 = vld [vmem:[#allocation12 + $0x1d48] sm:$0xff]
    %v4588 = vld [vmem:[#allocation12 + $0x1d50] sm:$0xff]
    %v4589 = vld [vmem:[#allocation12 + $0x1d58] sm:$0xff]
    %v4590 = vld [vmem:[#allocation12 + $0x1d60] sm:$0xff]
    %v4591 = vld [vmem:[#allocation12 + $0x1d68] sm:$0xff]
    %v4592 = vld [vmem:[#allocation12 + $0x1d70] sm:$0xff]
    %v4593 = vld [vmem:[#allocation12 + $0x1d78] sm:$0xff]
    %v4594 = vld [vmem:[#allocation12 + $0x1d80] sm:$0xff]
    %v4595 = vld [vmem:[#allocation12 + $0x1d88] sm:$0xff]
    %v4596 = vld [vmem:[#allocation12 + $0x1d90] sm:$0xff]
    %v4597 = vld [vmem:[#allocation12 + $0x1d98] sm:$0xff]
    %v4598 = vld [vmem:[#allocation12 + $0x1da0] sm:$0xff]
    %v4599 = vld [vmem:[#allocation12 + $0x1da8] sm:$0xff]
    %v4600 = vld [vmem:[#allocation12 + $0x1db0] sm:$0xff]
    %v4601 = vld [vmem:[#allocation12 + $0x1db8] sm:$0xff]
    %v4602 = vld [vmem:[#allocation12 + $0x1dc0] sm:$0xff]
    %v4603 = vld [vmem:[#allocation12 + $0x1dc8] sm:$0xff]
    %v4604 = vld [vmem:[#allocation12 + $0x1dd0] sm:$0xff]
    %v4605 = vld [vmem:[#allocation12 + $0x1dd8] sm:$0xff]
    %v4606 = vld [vmem:[#allocation12 + $0x1de0] sm:$0xff]
    %v4607 = vld [vmem:[#allocation12 + $0x1de8] sm:$0xff]
    %v4608 = vld [vmem:[#allocation12 + $0x1df0] sm:$0xff]
    %v4609 = vld [vmem:[#allocation12 + $0x1df8] sm:$0xff]
    %v4610 = vld [vmem:[#allocation12 + $0x1e00] sm:$0xff]
    %v4611 = vld [vmem:[#allocation12 + $0x1e08] sm:$0xff]
    %v4612 = vld [vmem:[#allocation12 + $0x1e10] sm:$0xff]
    %v4613 = vld [vmem:[#allocation12 + $0x1e18] sm:$0xff]
    %v4614 = vld [vmem:[#allocation12 + $0x1e20] sm:$0xff]
    %v4615 = vld [vmem:[#allocation12 + $0x1e28] sm:$0xff]
    %v4616 = vld [vmem:[#allocation12 + $0x1e30] sm:$0xff]
    %v4617 = vld [vmem:[#allocation12 + $0x1e38] sm:$0xff]
    %v4618 = vld [vmem:[#allocation12 + $0x1e40] sm:$0xff]
    %v4619 = vld [vmem:[#allocation12 + $0x1e48] sm:$0xff]
    %v4620 = vld [vmem:[#allocation12 + $0x1e50] sm:$0xff]
    %v4621 = vld [vmem:[#allocation12 + $0x1e58] sm:$0xff]
    %v4622 = vld [vmem:[#allocation12 + $0x1e60] sm:$0xff]
    %v4623 = vld [vmem:[#allocation12 + $0x1e68] sm:$0xff]
    %v4624 = vld [vmem:[#allocation12 + $0x1e70] sm:$0xff]
    %v4625 = vld [vmem:[#allocation12 + $0x1e78] sm:$0xff]
    %v4626 = vld [vmem:[#allocation12 + $0x1e80] sm:$0xff]
    %v4627 = vld [vmem:[#allocation12 + $0x1e88] sm:$0xff]
    %v4628 = vld [vmem:[#allocation12 + $0x1e90] sm:$0xff]
    %v4629 = vld [vmem:[#allocation12 + $0x1e98] sm:$0xff]
    %v4630 = vld [vmem:[#allocation12 + $0x1ea0] sm:$0xff]
    %v4631 = vld [vmem:[#allocation12 + $0x1ea8] sm:$0xff]
    %v4632 = vld [vmem:[#allocation12 + $0x1eb0] sm:$0xff]
    %v4633 = vld [vmem:[#allocation12 + $0x1eb8] sm:$0xff]
    %v4634 = vld [vmem:[#allocation12 + $0x1ec0] sm:$0xff]
    %v4635 = vld [vmem:[#allocation12 + $0x1ec8] sm:$0xff]
    %v4636 = vld [vmem:[#allocation12 + $0x1ed0] sm:$0xff]
    %v4637 = vld [vmem:[#allocation12 + $0x1ed8] sm:$0xff]
    %v4638 = vld [vmem:[#allocation12 + $0x1ee0] sm:$0xff]
    %v4639 = vld [vmem:[#allocation12 + $0x1ee8] sm:$0xff]
    %v4640 = vld [vmem:[#allocation12 + $0x1ef0] sm:$0xff]
    %v4641 = vld [vmem:[#allocation12 + $0x1ef8] sm:$0xff]
    %v4642 = vld [vmem:[#allocation12 + $0x1f00] sm:$0xff]
    %v4643 = vld [vmem:[#allocation12 + $0x1f08] sm:$0xff]
    %v4644 = vld [vmem:[#allocation12 + $0x1f10] sm:$0xff]
    %v4645 = vld [vmem:[#allocation12 + $0x1f18] sm:$0xff]
    %v4646 = vld [vmem:[#allocation12 + $0x1f20] sm:$0xff]
    %v4647 = vld [vmem:[#allocation12 + $0x1f28] sm:$0xff]
    %v4648 = vld [vmem:[#allocation12 + $0x1f30] sm:$0xff]
    %v4649 = vld [vmem:[#allocation12 + $0x1f38] sm:$0xff]
    %v4650 = vld [vmem:[#allocation12 + $0x1f40] sm:$0xff]
    %v4651 = vld [vmem:[#allocation12 + $0x1f48] sm:$0xff]
    %v4652 = vld [vmem:[#allocation12 + $0x1f50] sm:$0xff]
    %v4653 = vld [vmem:[#allocation12 + $0x1f58] sm:$0xff]
    %v4654 = vld [vmem:[#allocation12 + $0x1f60] sm:$0xff]
    %v4655 = vld [vmem:[#allocation12 + $0x1f68] sm:$0xff]
    %v4656 = vld [vmem:[#allocation12 + $0x1f70] sm:$0xff]
    %v4657 = vld [vmem:[#allocation12 + $0x1f78] sm:$0xff]
    %v4658 = vld [vmem:[#allocation12 + $0x1f80] sm:$0xff]
    %v4659 = vld [vmem:[#allocation12 + $0x1f88] sm:$0xff]
    %v4660 = vld [vmem:[#allocation12 + $0x1f90] sm:$0xff]
    %v4661 = vld [vmem:[#allocation12 + $0x1f98] sm:$0xff]
    %v4662 = vld [vmem:[#allocation12 + $0x1fa0] sm:$0xff]
    %v4663 = vld [vmem:[#allocation12 + $0x1fa8] sm:$0xff]
    %v4664 = vld [vmem:[#allocation12 + $0x1fb0] sm:$0xff]
    %v4665 = vld [vmem:[#allocation12 + $0x1fb8] sm:$0xff]
    %v4666 = vld [vmem:[#allocation12 + $0x1fc0] sm:$0xff]
    %v4667 = vld [vmem:[#allocation12 + $0x1fc8] sm:$0xff]
    %v4668 = vld [vmem:[#allocation12 + $0x1fd0] sm:$0xff]
    %v4669 = vld [vmem:[#allocation12 + $0x1fd8] sm:$0xff]
    %v4670 = vld [vmem:[#allocation12 + $0x1fe0] sm:$0xff]
    %v4671 = vld [vmem:[#allocation12 + $0x1fe8] sm:$0xff]
    %v4672 = vld [vmem:[#allocation12 + $0x1ff0] sm:$0xff]
    %v4673 = vld [vmem:[#allocation12 + $0x1ff8] sm:$0xff]
    %v4674 = vld [vmem:[#allocation13] sm:$0xff]
    %v4675 = vld [vmem:[#allocation13 + $0x8] sm:$0xff]
    %v4676 = vld [vmem:[#allocation13 + $0x10] sm:$0xff]
    %v4677 = vld [vmem:[#allocation13 + $0x18] sm:$0xff]
    %v4682 = vlaneseq
    %v4683 = vshrl.u32 %v4682, 7
    %v4684 = vsub.s32 0, %v4683
    %v4685 = vrot.slane %v4674, %v4684
    %v4686 = vlaneseq
    %v4687 = vshrl.u32 %v4686, 7
    %v4688 = vsub.s32 1, %v4687
    %v4689 = vrot.slane %v4674, %v4688
    %v4690 = vlaneseq
    %v4691 = vshrl.u32 %v4690, 7
    %v4692 = vsub.s32 2, %v4691
    %v4693 = vrot.slane %v4674, %v4692
    %v4694 = vlaneseq
    %v4695 = vshrl.u32 %v4694, 7
    %v4696 = vsub.s32 3, %v4695
    %v4697 = vrot.slane %v4674, %v4696
    %v4698 = vlaneseq
    %v4699 = vshrl.u32 %v4698, 7
    %v4700 = vsub.s32 4, %v4699
    %v4701 = vrot.slane %v4674, %v4700
    %v4702 = vlaneseq
    %v4703 = vshrl.u32 %v4702, 7
    %v4704 = vsub.s32 5, %v4703
    %v4705 = vrot.slane %v4674, %v4704
    %v4706 = vlaneseq
    %v4707 = vshrl.u32 %v4706, 7
    %v4708 = vsub.s32 6, %v4707
    %v4709 = vrot.slane %v4674, %v4708
    %v4710 = vlaneseq
    %v4711 = vshrl.u32 %v4710, 7
    %v4712 = vsub.s32 7, %v4711
    %v4713 = vrot.slane %v4674, %v4712
    %v4714 = vlaneseq
    %v4715 = vshrl.u32 %v4714, 7
    %v4716 = vsub.s32 0, %v4715
    %v4717 = vrot.slane %v4675, %v4716
    %v4718 = vlaneseq
    %v4719 = vshrl.u32 %v4718, 7
    %v4720 = vsub.s32 1, %v4719
    %v4721 = vrot.slane %v4675, %v4720
    %v4722 = vlaneseq
    %v4723 = vshrl.u32 %v4722, 7
    %v4724 = vsub.s32 2, %v4723
    %v4725 = vrot.slane %v4675, %v4724
    %v4726 = vlaneseq
    %v4727 = vshrl.u32 %v4726, 7
    %v4728 = vsub.s32 3, %v4727
    %v4729 = vrot.slane %v4675, %v4728
    %v4730 = vlaneseq
    %v4731 = vshrl.u32 %v4730, 7
    %v4732 = vsub.s32 4, %v4731
    %v4733 = vrot.slane %v4675, %v4732
    %v4734 = vlaneseq
    %v4735 = vshrl.u32 %v4734, 7
    %v4736 = vsub.s32 5, %v4735
    %v4737 = vrot.slane %v4675, %v4736
    %v4738 = vlaneseq
    %v4739 = vshrl.u32 %v4738, 7
    %v4740 = vsub.s32 6, %v4739
    %v4741 = vrot.slane %v4675, %v4740
    %v4742 = vlaneseq
    %v4743 = vshrl.u32 %v4742, 7
    %v4744 = vsub.s32 7, %v4743
    %v4745 = vrot.slane %v4675, %v4744
    %v4746 = vlaneseq
    %v4747 = vshrl.u32 %v4746, 7
    %v4748 = vsub.s32 0, %v4747
    %v4749 = vrot.slane %v4676, %v4748
    %v4750 = vlaneseq
    %v4751 = vshrl.u32 %v4750, 7
    %v4752 = vsub.s32 1, %v4751
    %v4753 = vrot.slane %v4676, %v4752
    %v4754 = vlaneseq
    %v4755 = vshrl.u32 %v4754, 7
    %v4756 = vsub.s32 2, %v4755
    %v4757 = vrot.slane %v4676, %v4756
    %v4758 = vlaneseq
    %v4759 = vshrl.u32 %v4758, 7
    %v4760 = vsub.s32 3, %v4759
    %v4761 = vrot.slane %v4676, %v4760
    %v4762 = vlaneseq
    %v4763 = vshrl.u32 %v4762, 7
    %v4764 = vsub.s32 4, %v4763
    %v4765 = vrot.slane %v4676, %v4764
    %v4766 = vlaneseq
    %v4767 = vshrl.u32 %v4766, 7
    %v4768 = vsub.s32 5, %v4767
    %v4769 = vrot.slane %v4676, %v4768
    %v4770 = vlaneseq
    %v4771 = vshrl.u32 %v4770, 7
    %v4772 = vsub.s32 6, %v4771
    %v4773 = vrot.slane %v4676, %v4772
    %v4774 = vlaneseq
    %v4775 = vshrl.u32 %v4774, 7
    %v4776 = vsub.s32 7, %v4775
    %v4777 = vrot.slane %v4676, %v4776
    %v4778 = vlaneseq
    %v4779 = vshrl.u32 %v4778, 7
    %v4780 = vsub.s32 0, %v4779
    %v4781 = vrot.slane %v4677, %v4780
    %v4782 = vlaneseq
    %v4783 = vshrl.u32 %v4782, 7
    %v4784 = vsub.s32 1, %v4783
    %v4785 = vrot.slane %v4677, %v4784
    %v4786 = vlaneseq
    %v4787 = vshrl.u32 %v4786, 7
    %v4788 = vsub.s32 2, %v4787
    %v4789 = vrot.slane %v4677, %v4788
    %v4790 = vlaneseq
    %v4791 = vshrl.u32 %v4790, 7
    %v4792 = vsub.s32 3, %v4791
    %v4793 = vrot.slane %v4677, %v4792
    %v4794 = vlaneseq
    %v4795 = vshrl.u32 %v4794, 7
    %v4796 = vsub.s32 4, %v4795
    %v4797 = vrot.slane %v4677, %v4796
    %v4798 = vlaneseq
    %v4799 = vshrl.u32 %v4798, 7
    %v4800 = vsub.s32 5, %v4799
    %v4801 = vrot.slane %v4677, %v4800
    %v4802 = vlaneseq
    %v4803 = vshrl.u32 %v4802, 7
    %v4804 = vsub.s32 6, %v4803
    %v4805 = vrot.slane %v4677, %v4804
    %v4806 = vlaneseq
    %v4807 = vshrl.u32 %v4806, 7
    %v4808 = vsub.s32 7, %v4807
    %v4809 = vrot.slane %v4677, %v4808
    %4842 = vmatprep.subr.mxu0 %v3651
    %4843 = vmatpush1.msra.mxu0 %v3650
    %4844 = vmatprep.subr.mxu0 %v3683
    %4845 = vmatpush1.msra.mxu0 %v3682
    %4846 = vmatprep.subr.mxu0 %v3715
    %4847 = vmatpush1.msra.mxu0 %v3714
    %4848 = vmatprep.subr.mxu0 %v3747
    %4849 = vmatpush1.msra.mxu0 %v3746
    %4850 = vmatprep.subr.mxu0 %v3779
    %4851 = vmatpush1.msra.mxu0 %v3778
    %4852 = vmatprep.subr.mxu0 %v3811
    %4853 = vmatpush1.msra.mxu0 %v3810
    %4854 = vmatprep.subr.mxu0 %v3843
    %4855 = vmatpush1.msra.mxu0 %v3842
    %4856 = vmatprep.subr.mxu0 %v3875
    %4857 = vmatpush1.msra.mxu0 %v3874
    %4858 = vmatprep.subr.mxu0 %v3907
    %4859 = vmatpush1.msra.mxu0 %v3906
    %4860 = vmatprep.subr.mxu0 %v3939
    %4861 = vmatpush1.msra.mxu0 %v3938
    %4862 = vmatprep.subr.mxu0 %v3971
    %4863 = vmatpush1.msra.mxu0 %v3970
    %4864 = vmatprep.subr.mxu0 %v4003
    %4865 = vmatpush1.msra.mxu0 %v4002
    %4866 = vmatprep.subr.mxu0 %v4035
    %4867 = vmatpush1.msra.mxu0 %v4034
    %4868 = vmatprep.subr.mxu0 %v4067
    %4869 = vmatpush1.msra.mxu0 %v4066
    %4870 = vmatprep.subr.mxu0 %v4099
    %4871 = vmatpush1.msra.mxu0 %v4098
    %4872 = vmatprep.subr.mxu0 %v4131
    %4873 = vmatpush1.msra.mxu0 %v4130
    %4874 = vmatprep.subr.mxu0 %v4163
    %4875 = vmatpush1.msra.mxu0 %v4162
    %4876 = vmatprep.subr.mxu0 %v4195
    %4877 = vmatpush1.msra.mxu0 %v4194
    %4878 = vmatprep.subr.mxu0 %v4227
    %4879 = vmatpush1.msra.mxu0 %v4226
    %4880 = vmatprep.subr.mxu0 %v4259
    %4881 = vmatpush1.msra.mxu0 %v4258
    %4882 = vmatprep.subr.mxu0 %v4291
    %4883 = vmatpush1.msra.mxu0 %v4290
    %4884 = vmatprep.subr.mxu0 %v4323
    %4885 = vmatpush1.msra.mxu0 %v4322
    %4886 = vmatprep.subr.mxu0 %v4355
    %4887 = vmatpush1.msra.mxu0 %v4354
    %4888 = vmatprep.subr.mxu0 %v4387
    %4889 = vmatpush1.msra.mxu0 %v4386
    %4890 = vmatprep.subr.mxu0 %v4419
    %4891 = vmatpush1.msra.mxu0 %v4418
    %4892 = vmatprep.subr.mxu0 %v4451
    %4893 = vmatpush1.msra.mxu0 %v4450
    %4894 = vmatprep.subr.mxu0 %v4483
    %4895 = vmatpush1.msra.mxu0 %v4482
    %4896 = vmatprep.subr.mxu0 %v4515
    %4897 = vmatpush1.msra.mxu0 %v4514
    %4898 = vmatprep.subr.mxu0 %v4547
    %4899 = vmatpush1.msra.mxu0 %v4546
    %4900 = vmatprep.subr.mxu0 %v4579
    %4901 = vmatpush1.msra.mxu0 %v4578
    %4902 = vmatprep.subr.mxu0 %v4611
    %4903 = vmatpush1.msra.mxu0 %v4610
    %4904 = vmatprep.subr.mxu0 %v4643
    %4905 = vmatpush1.msra.mxu0 %v4642
    %4906 = vmatprep.mubr.f32.mxu0 %v3649
    %4907 = vmatmul.mubr.f32.gmra.mrb[0].mxu0 %v3648
    %v4908 = vpop.f32.mrb[0].mxu0
    %v4909 = vadd.f32 %v4685, %v4908
    %v4910 = vpop.f32.mrb[0].mxu0
    %v4911 = vadd.f32 %v4689, %v4910
    %4912 = vdwg.mxu0
    %4913 = vmatprep.subr.mxu0 %v3653
    %4914 = vmatpush1.msra.mxu0 %v3652
    %4915 = vmatprep.subr.mxu0 %v3685
    %4916 = vmatpush1.msra.mxu0 %v3684
    %4917 = vmatprep.subr.mxu0 %v3717
    %4918 = vmatpush1.msra.mxu0 %v3716
    %4919 = vmatprep.subr.mxu0 %v3749
    %4920 = vmatpush1.msra.mxu0 %v3748
    %4921 = vmatprep.subr.mxu0 %v3781
    %4922 = vmatpush1.msra.mxu0 %v3780
    %4923 = vmatprep.subr.mxu0 %v3813
    %4924 = vmatpush1.msra.mxu0 %v3812
    %4925 = vmatprep.subr.mxu0 %v3845
    %4926 = vmatpush1.msra.mxu0 %v3844
    %4927 = vmatprep.subr.mxu0 %v3877
    %4928 = vmatpush1.msra.mxu0 %v3876
    %4929 = vmatprep.subr.mxu0 %v3909
    %4930 = vmatpush1.msra.mxu0 %v3908
    %4931 = vmatprep.subr.mxu0 %v3941
    %4932 = vmatpush1.msra.mxu0 %v3940
    %4933 = vmatprep.subr.mxu0 %v3973
    %4934 = vmatpush1.msra.mxu0 %v3972
    %4935 = vmatprep.subr.mxu0 %v4005
    %4936 = vmatpush1.msra.mxu0 %v4004
    %4937 = vmatprep.subr.mxu0 %v4037
    %4938 = vmatpush1.msra.mxu0 %v4036
    %4939 = vmatprep.subr.mxu0 %v4069
    %4940 = vmatpush1.msra.mxu0 %v4068
    %4941 = vmatprep.subr.mxu0 %v4101
    %4942 = vmatpush1.msra.mxu0 %v4100
    %4943 = vmatprep.subr.mxu0 %v4133
    %4944 = vmatpush1.msra.mxu0 %v4132
    %4945 = vmatprep.subr.mxu0 %v4165
    %4946 = vmatpush1.msra.mxu0 %v4164
    %4947 = vmatprep.subr.mxu0 %v4197
    %4948 = vmatpush1.msra.mxu0 %v4196
    %4949 = vmatprep.subr.mxu0 %v4229
    %4950 = vmatpush1.msra.mxu0 %v4228
    %4951 = vmatprep.subr.mxu0 %v4261
    %4952 = vmatpush1.msra.mxu0 %v4260
    %4953 = vmatprep.subr.mxu0 %v4293
    %4954 = vmatpush1.msra.mxu0 %v4292
    %4955 = vmatprep.subr.mxu0 %v4325
    %4956 = vmatpush1.msra.mxu0 %v4324
    %4957 = vmatprep.subr.mxu0 %v4357
    %4958 = vmatpush1.msra.mxu0 %v4356
    %4959 = vmatprep.subr.mxu0 %v4389
    %4960 = vmatpush1.msra.mxu0 %v4388
    %4961 = vmatprep.subr.mxu0 %v4421
    %4962 = vmatpush1.msra.mxu0 %v4420
    %4963 = vmatprep.subr.mxu0 %v4453
    %4964 = vmatpush1.msra.mxu0 %v4452
    %4965 = vmatprep.subr.mxu0 %v4485
    %4966 = vmatpush1.msra.mxu0 %v4484
    %4967 = vmatprep.subr.mxu0 %v4517
    %4968 = vmatpush1.msra.mxu0 %v4516
    %4969 = vmatprep.subr.mxu0 %v4549
    %4970 = vmatpush1.msra.mxu0 %v4548
    %4971 = vmatprep.subr.mxu0 %v4581
    %4972 = vmatpush1.msra.mxu0 %v4580
    %4973 = vmatprep.subr.mxu0 %v4613
    %4974 = vmatpush1.msra.mxu0 %v4612
    %4975 = vmatprep.subr.mxu0 %v4645
    %4976 = vmatpush1.msra.mxu0 %v4644
    %4977 = vmatprep.mubr.f32.mxu0 %v3649
    %4978 = vmatmul.mubr.f32.gmra.mrb[0].mxu0 %v3648
    %v4979 = vpop.f32.mrb[0].mxu0
    %v4980 = vadd.f32 %v4693, %v4979
    %v4981 = vpop.f32.mrb[0].mxu0
    %v4982 = vadd.f32 %v4697, %v4981
    %4983 = vdwg.mxu0
    %4984 = vmatprep.subr.mxu0 %v3655
    %4985 = vmatpush1.msra.mxu0 %v3654
    %4986 = vmatprep.subr.mxu0 %v3687
    %4987 = vmatpush1.msra.mxu0 %v3686
    %4988 = vmatprep.subr.mxu0 %v3719
    %4989 = vmatpush1.msra.mxu0 %v3718
    %4990 = vmatprep.subr.mxu0 %v3751
    %4991 = vmatpush1.msra.mxu0 %v3750
    %4992 = vmatprep.subr.mxu0 %v3783
    %4993 = vmatpush1.msra.mxu0 %v3782
    %4994 = vmatprep.subr.mxu0 %v3815
    %4995 = vmatpush1.msra.mxu0 %v3814
    %4996 = vmatprep.subr.mxu0 %v3847
    %4997 = vmatpush1.msra.mxu0 %v3846
    %4998 = vmatprep.subr.mxu0 %v3879
    %4999 = vmatpush1.msra.mxu0 %v3878
    %5000 = vmatprep.subr.mxu0 %v3911
    %5001 = vmatpush1.msra.mxu0 %v3910
    %5002 = vmatprep.subr.mxu0 %v3943
    %5003 = vmatpush1.msra.mxu0 %v3942
    %5004 = vmatprep.subr.mxu0 %v3975
    %5005 = vmatpush1.msra.mxu0 %v3974
    %5006 = vmatprep.subr.mxu0 %v4007
    %5007 = vmatpush1.msra.mxu0 %v4006
    %5008 = vmatprep.subr.mxu0 %v4039
    %5009 = vmatpush1.msra.mxu0 %v4038
    %5010 = vmatprep.subr.mxu0 %v4071
    %5011 = vmatpush1.msra.mxu0 %v4070
    %5012 = vmatprep.subr.mxu0 %v4103
    %5013 = vmatpush1.msra.mxu0 %v4102
    %5014 = vmatprep.subr.mxu0 %v4135
    %5015 = vmatpush1.msra.mxu0 %v4134
    %5016 = vmatprep.subr.mxu0 %v4167
    %5017 = vmatpush1.msra.mxu0 %v4166
    %5018 = vmatprep.subr.mxu0 %v4199
    %5019 = vmatpush1.msra.mxu0 %v4198
    %5020 = vmatprep.subr.mxu0 %v4231
    %5021 = vmatpush1.msra.mxu0 %v4230
    %5022 = vmatprep.subr.mxu0 %v4263
    %5023 = vmatpush1.msra.mxu0 %v4262
    %5024 = vmatprep.subr.mxu0 %v4295
    %5025 = vmatpush1.msra.mxu0 %v4294
    %5026 = vmatprep.subr.mxu0 %v4327
    %5027 = vmatpush1.msra.mxu0 %v4326
    %5028 = vmatprep.subr.mxu0 %v4359
    %5029 = vmatpush1.msra.mxu0 %v4358
    %5030 = vmatprep.subr.mxu0 %v4391
    %5031 = vmatpush1.msra.mxu0 %v4390
    %5032 = vmatprep.subr.mxu0 %v4423
    %5033 = vmatpush1.msra.mxu0 %v4422
    %5034 = vmatprep.subr.mxu0 %v4455
    %5035 = vmatpush1.msra.mxu0 %v4454
    %5036 = vmatprep.subr.mxu0 %v4487
    %5037 = vmatpush1.msra.mxu0 %v4486
    %5038 = vmatprep.subr.mxu0 %v4519
    %5039 = vmatpush1.msra.mxu0 %v4518
    %5040 = vmatprep.subr.mxu0 %v4551
    %5041 = vmatpush1.msra.mxu0 %v4550
    %5042 = vmatprep.subr.mxu0 %v4583
    %5043 = vmatpush1.msra.mxu0 %v4582
    %5044 = vmatprep.subr.mxu0 %v4615
    %5045 = vmatpush1.msra.mxu0 %v4614
    %5046 = vmatprep.subr.mxu0 %v4647
    %5047 = vmatpush1.msra.mxu0 %v4646
    %5048 = vmatprep.mubr.f32.mxu0 %v3649
    %5049 = vmatmul.mubr.f32.gmra.mrb[0].mxu0 %v3648
    %v5050 = vpop.f32.mrb[0].mxu0
    %v5051 = vadd.f32 %v4701, %v5050
    %v5052 = vpop.f32.mrb[0].mxu0
    %v5053 = vadd.f32 %v4705, %v5052
    %5054 = vdwg.mxu0
    %5055 = vmatprep.subr.mxu0 %v3657
    %5056 = vmatpush1.msra.mxu0 %v3656
    %5057 = vmatprep.subr.mxu0 %v3689
    %5058 = vmatpush1.msra.mxu0 %v3688
    %5059 = vmatprep.subr.mxu0 %v3721
    %5060 = vmatpush1.msra.mxu0 %v3720
    %5061 = vmatprep.subr.mxu0 %v3753
    %5062 = vmatpush1.msra.mxu0 %v3752
    %5063 = vmatprep.subr.mxu0 %v3785
    %5064 = vmatpush1.msra.mxu0 %v3784
    %5065 = vmatprep.subr.mxu0 %v3817
    %5066 = vmatpush1.msra.mxu0 %v3816
    %5067 = vmatprep.subr.mxu0 %v3849
    %5068 = vmatpush1.msra.mxu0 %v3848
    %5069 = vmatprep.subr.mxu0 %v3881
    %5070 = vmatpush1.msra.mxu0 %v3880
    %5071 = vmatprep.subr.mxu0 %v3913
    %5072 = vmatpush1.msra.mxu0 %v3912
    %5073 = vmatprep.subr.mxu0 %v3945
    %5074 = vmatpush1.msra.mxu0 %v3944
    %5075 = vmatprep.subr.mxu0 %v3977
    %5076 = vmatpush1.msra.mxu0 %v3976
    %5077 = vmatprep.subr.mxu0 %v4009
    %5078 = vmatpush1.msra.mxu0 %v4008
    %5079 = vmatprep.subr.mxu0 %v4041
    %5080 = vmatpush1.msra.mxu0 %v4040
    %5081 = vmatprep.subr.mxu0 %v4073
    %5082 = vmatpush1.msra.mxu0 %v4072
    %5083 = vmatprep.subr.mxu0 %v4105
    %5084 = vmatpush1.msra.mxu0 %v4104
    %5085 = vmatprep.subr.mxu0 %v4137
    %5086 = vmatpush1.msra.mxu0 %v4136
    %5087 = vmatprep.subr.mxu0 %v4169
    %5088 = vmatpush1.msra.mxu0 %v4168
    %5089 = vmatprep.subr.mxu0 %v4201
    %5090 = vmatpush1.msra.mxu0 %v4200
    %5091 = vmatprep.subr.mxu0 %v4233
    %5092 = vmatpush1.msra.mxu0 %v4232
    %5093 = vmatprep.subr.mxu0 %v4265
    %5094 = vmatpush1.msra.mxu0 %v4264
    %5095 = vmatprep.subr.mxu0 %v4297
    %5096 = vmatpush1.msra.mxu0 %v4296
    %5097 = vmatprep.subr.mxu0 %v4329
    %5098 = vmatpush1.msra.mxu0 %v4328
    %5099 = vmatprep.subr.mxu0 %v4361
    %5100 = vmatpush1.msra.mxu0 %v4360
    %5101 = vmatprep.subr.mxu0 %v4393
    %5102 = vmatpush1.msra.mxu0 %v4392
    %5103 = vmatprep.subr.mxu0 %v4425
    %5104 = vmatpush1.msra.mxu0 %v4424
    %5105 = vmatprep.subr.mxu0 %v4457
    %5106 = vmatpush1.msra.mxu0 %v4456
    %5107 = vmatprep.subr.mxu0 %v4489
    %5108 = vmatpush1.msra.mxu0 %v4488
    %5109 = vmatprep.subr.mxu0 %v4521
    %5110 = vmatpush1.msra.mxu0 %v4520
    %5111 = vmatprep.subr.mxu0 %v4553
    %5112 = vmatpush1.msra.mxu0 %v4552
    %5113 = vmatprep.subr.mxu0 %v4585
    %5114 = vmatpush1.msra.mxu0 %v4584
    %5115 = vmatprep.subr.mxu0 %v4617
    %5116 = vmatpush1.msra.mxu0 %v4616
    %5117 = vmatprep.subr.mxu0 %v4649
    %5118 = vmatpush1.msra.mxu0 %v4648
    %5119 = vmatprep.mubr.f32.mxu0 %v3649
    %5120 = vmatmul.mubr.f32.gmra.mrb[0].mxu0 %v3648
    %v5121 = vpop.f32.mrb[0].mxu0
    %v5122 = vadd.f32 %v4709, %v5121
    %v5123 = vpop.f32.mrb[0].mxu0
    %v5124 = vadd.f32 %v4713, %v5123
    %5125 = vdwg.mxu0
    %5126 = vmatprep.subr.mxu0 %v3659
    %5127 = vmatpush1.msra.mxu0 %v3658
    %5128 = vmatprep.subr.mxu0 %v3691
    %5129 = vmatpush1.msra.mxu0 %v3690
    %5130 = vmatprep.subr.mxu0 %v3723
    %5131 = vmatpush1.msra.mxu0 %v3722
    %5132 = vmatprep.subr.mxu0 %v3755
    %5133 = vmatpush1.msra.mxu0 %v3754
    %5134 = vmatprep.subr.mxu0 %v3787
    %5135 = vmatpush1.msra.mxu0 %v3786
    %5136 = vmatprep.subr.mxu0 %v3819
    %5137 = vmatpush1.msra.mxu0 %v3818
    %5138 = vmatprep.subr.mxu0 %v3851
    %5139 = vmatpush1.msra.mxu0 %v3850
    %5140 = vmatprep.subr.mxu0 %v3883
    %5141 = vmatpush1.msra.mxu0 %v3882
    %5142 = vmatprep.subr.mxu0 %v3915
    %5143 = vmatpush1.msra.mxu0 %v3914
    %5144 = vmatprep.subr.mxu0 %v3947
    %5145 = vmatpush1.msra.mxu0 %v3946
    %5146 = vmatprep.subr.mxu0 %v3979
    %5147 = vmatpush1.msra.mxu0 %v3978
    %5148 = vmatprep.subr.mxu0 %v4011
    %5149 = vmatpush1.msra.mxu0 %v4010
    %5150 = vmatprep.subr.mxu0 %v4043
    %5151 = vmatpush1.msra.mxu0 %v4042
    %5152 = vmatprep.subr.mxu0 %v4075
    %5153 = vmatpush1.msra.mxu0 %v4074
    %5154 = vmatprep.subr.mxu0 %v4107
    %5155 = vmatpush1.msra.mxu0 %v4106
    %5156 = vmatprep.subr.mxu0 %v4139
    %5157 = vmatpush1.msra.mxu0 %v4138
    %5158 = vmatprep.subr.mxu0 %v4171
    %5159 = vmatpush1.msra.mxu0 %v4170
    %5160 = vmatprep.subr.mxu0 %v4203
    %5161 = vmatpush1.msra.mxu0 %v4202
    %5162 = vmatprep.subr.mxu0 %v4235
    %5163 = vmatpush1.msra.mxu0 %v4234
    %5164 = vmatprep.subr.mxu0 %v4267
    %5165 = vmatpush1.msra.mxu0 %v4266
    %5166 = vmatprep.subr.mxu0 %v4299
    %5167 = vmatpush1.msra.mxu0 %v4298
    %5168 = vmatprep.subr.mxu0 %v4331
    %5169 = vmatpush1.msra.mxu0 %v4330
    %5170 = vmatprep.subr.mxu0 %v4363
    %5171 = vmatpush1.msra.mxu0 %v4362
    %5172 = vmatprep.subr.mxu0 %v4395
    %5173 = vmatpush1.msra.mxu0 %v4394
    %5174 = vmatprep.subr.mxu0 %v4427
    %5175 = vmatpush1.msra.mxu0 %v4426
    %5176 = vmatprep.subr.mxu0 %v4459
    %5177 = vmatpush1.msra.mxu0 %v4458
    %5178 = vmatprep.subr.mxu0 %v4491
    %5179 = vmatpush1.msra.mxu0 %v4490
    %5180 = vmatprep.subr.mxu0 %v4523
    %5181 = vmatpush1.msra.mxu0 %v4522
    %5182 = vmatprep.subr.mxu0 %v4555
    %5183 = vmatpush1.msra.mxu0 %v4554
    %5184 = vmatprep.subr.mxu0 %v4587
    %5185 = vmatpush1.msra.mxu0 %v4586
    %5186 = vmatprep.subr.mxu0 %v4619
    %5187 = vmatpush1.msra.mxu0 %v4618
    %5188 = vmatprep.subr.mxu0 %v4651
    %5189 = vmatpush1.msra.mxu0 %v4650
    %5190 = vmatprep.mubr.f32.mxu0 %v3649
    %5191 = vmatmul.mubr.f32.gmra.mrb[0].mxu0 %v3648
    %v5192 = vpop.f32.mrb[0].mxu0
    %v5193 = vadd.f32 %v4717, %v5192
    %v5194 = vpop.f32.mrb[0].mxu0
    %v5195 = vadd.f32 %v4721, %v5194
    %5196 = vdwg.mxu0
    %5197 = vmatprep.subr.mxu0 %v3661
    %5198 = vmatpush1.msra.mxu0 %v3660
    %5199 = vmatprep.subr.mxu0 %v3693
    %5200 = vmatpush1.msra.mxu0 %v3692
    %5201 = vmatprep.subr.mxu0 %v3725
    %5202 = vmatpush1.msra.mxu0 %v3724
    %5203 = vmatprep.subr.mxu0 %v3757
    %5204 = vmatpush1.msra.mxu0 %v3756
    %5205 = vmatprep.subr.mxu0 %v3789
    %5206 = vmatpush1.msra.mxu0 %v3788
    %5207 = vmatprep.subr.mxu0 %v3821
    %5208 = vmatpush1.msra.mxu0 %v3820
    %5209 = vmatprep.subr.mxu0 %v3853
    %5210 = vmatpush1.msra.mxu0 %v3852
    %5211 = vmatprep.subr.mxu0 %v3885
    %5212 = vmatpush1.msra.mxu0 %v3884
    %5213 = vmatprep.subr.mxu0 %v3917
    %5214 = vmatpush1.msra.mxu0 %v3916
    %5215 = vmatprep.subr.mxu0 %v3949
    %5216 = vmatpush1.msra.mxu0 %v3948
    %5217 = vmatprep.subr.mxu0 %v3981
    %5218 = vmatpush1.msra.mxu0 %v3980
    %5219 = vmatprep.subr.mxu0 %v4013
    %5220 = vmatpush1.msra.mxu0 %v4012
    %5221 = vmatprep.subr.mxu0 %v4045
    %5222 = vmatpush1.msra.mxu0 %v4044
    %5223 = vmatprep.subr.mxu0 %v4077
    %5224 = vmatpush1.msra.mxu0 %v4076
    %5225 = vmatprep.subr.mxu0 %v4109
    %5226 = vmatpush1.msra.mxu0 %v4108
    %5227 = vmatprep.subr.mxu0 %v4141
    %5228 = vmatpush1.msra.mxu0 %v4140
    %5229 = vmatprep.subr.mxu0 %v4173
    %5230 = vmatpush1.msra.mxu0 %v4172
    %5231 = vmatprep.subr.mxu0 %v4205
    %5232 = vmatpush1.msra.mxu0 %v4204
    %5233 = vmatprep.subr.mxu0 %v4237
    %5234 = vmatpush1.msra.mxu0 %v4236
    %5235 = vmatprep.subr.mxu0 %v4269
    %5236 = vmatpush1.msra.mxu0 %v4268
    %5237 = vmatprep.subr.mxu0 %v4301
    %5238 = vmatpush1.msra.mxu0 %v4300
    %5239 = vmatprep.subr.mxu0 %v4333
    %5240 = vmatpush1.msra.mxu0 %v4332
    %5241 = vmatprep.subr.mxu0 %v4365
    %5242 = vmatpush1.msra.mxu0 %v4364
    %5243 = vmatprep.subr.mxu0 %v4397
    %5244 = vmatpush1.msra.mxu0 %v4396
    %5245 = vmatprep.subr.mxu0 %v4429
    %5246 = vmatpush1.msra.mxu0 %v4428
    %5247 = vmatprep.subr.mxu0 %v4461
    %5248 = vmatpush1.msra.mxu0 %v4460
    %5249 = vmatprep.subr.mxu0 %v4493
    %5250 = vmatpush1.msra.mxu0 %v4492
    %5251 = vmatprep.subr.mxu0 %v4525
    %5252 = vmatpush1.msra.mxu0 %v4524
    %5253 = vmatprep.subr.mxu0 %v4557
    %5254 = vmatpush1.msra.mxu0 %v4556
    %5255 = vmatprep.subr.mxu0 %v4589
    %5256 = vmatpush1.msra.mxu0 %v4588
    %5257 = vmatprep.subr.mxu0 %v4621
    %5258 = vmatpush1.msra.mxu0 %v4620
    %5259 = vmatprep.subr.mxu0 %v4653
    %5260 = vmatpush1.msra.mxu0 %v4652
    %5261 = vmatprep.mubr.f32.mxu0 %v3649
    %5262 = vmatmul.mubr.f32.gmra.mrb[0].mxu0 %v3648
    %v5263 = vpop.f32.mrb[0].mxu0
    %v5264 = vadd.f32 %v4725, %v5263
    %v5265 = vpop.f32.mrb[0].mxu0
    %v5266 = vadd.f32 %v4729, %v5265
    %5267 = vdwg.mxu0
    %5268 = vmatprep.subr.mxu0 %v3663
    %5269 = vmatpush1.msra.mxu0 %v3662
    %5270 = vmatprep.subr.mxu0 %v3695
    %5271 = vmatpush1.msra.mxu0 %v3694
    %5272 = vmatprep.subr.mxu0 %v3727
    %5273 = vmatpush1.msra.mxu0 %v3726
    %5274 = vmatprep.subr.mxu0 %v3759
    %5275 = vmatpush1.msra.mxu0 %v3758
    %5276 = vmatprep.subr.mxu0 %v3791
    %5277 = vmatpush1.msra.mxu0 %v3790
    %5278 = vmatprep.subr.mxu0 %v3823
    %5279 = vmatpush1.msra.mxu0 %v3822
    %5280 = vmatprep.subr.mxu0 %v3855
    %5281 = vmatpush1.msra.mxu0 %v3854
    %5282 = vmatprep.subr.mxu0 %v3887
    %5283 = vmatpush1.msra.mxu0 %v3886
    %5284 = vmatprep.subr.mxu0 %v3919
    %5285 = vmatpush1.msra.mxu0 %v3918
    %5286 = vmatprep.subr.mxu0 %v3951
    %5287 = vmatpush1.msra.mxu0 %v3950
    %5288 = vmatprep.subr.mxu0 %v3983
    %5289 = vmatpush1.msra.mxu0 %v3982
    %5290 = vmatprep.subr.mxu0 %v4015
    %5291 = vmatpush1.msra.mxu0 %v4014
    %5292 = vmatprep.subr.mxu0 %v4047
    %5293 = vmatpush1.msra.mxu0 %v4046
    %5294 = vmatprep.subr.mxu0 %v4079
    %5295 = vmatpush1.msra.mxu0 %v4078
    %5296 = vmatprep.subr.mxu0 %v4111
    %5297 = vmatpush1.msra.mxu0 %v4110
    %5298 = vmatprep.subr.mxu0 %v4143
    %5299 = vmatpush1.msra.mxu0 %v4142
    %5300 = vmatprep.subr.mxu0 %v4175
    %5301 = vmatpush1.msra.mxu0 %v4174
    %5302 = vmatprep.subr.mxu0 %v4207
    %5303 = vmatpush1.msra.mxu0 %v4206
    %5304 = vmatprep.subr.mxu0 %v4239
    %5305 = vmatpush1.msra.mxu0 %v4238
    %5306 = vmatprep.subr.mxu0 %v4271
    %5307 = vmatpush1.msra.mxu0 %v4270
    %5308 = vmatprep.subr.mxu0 %v4303
    %5309 = vmatpush1.msra.mxu0 %v4302
    %5310 = vmatprep.subr.mxu0 %v4335
    %5311 = vmatpush1.msra.mxu0 %v4334
    %5312 = vmatprep.subr.mxu0 %v4367
    %5313 = vmatpush1.msra.mxu0 %v4366
    %5314 = vmatprep.subr.mxu0 %v4399
    %5315 = vmatpush1.msra.mxu0 %v4398
    %5316 = vmatprep.subr.mxu0 %v4431
    %5317 = vmatpush1.msra.mxu0 %v4430
    %5318 = vmatprep.subr.mxu0 %v4463
    %5319 = vmatpush1.msra.mxu0 %v4462
    %5320 = vmatprep.subr.mxu0 %v4495
    %5321 = vmatpush1.msra.mxu0 %v4494
    %5322 = vmatprep.subr.mxu0 %v4527
    %5323 = vmatpush1.msra.mxu0 %v4526
    %5324 = vmatprep.subr.mxu0 %v4559
    %5325 = vmatpush1.msra.mxu0 %v4558
    %5326 = vmatprep.subr.mxu0 %v4591
    %5327 = vmatpush1.msra.mxu0 %v4590
    %5328 = vmatprep.subr.mxu0 %v4623
    %5329 = vmatpush1.msra.mxu0 %v4622
    %5330 = vmatprep.subr.mxu0 %v4655
    %5331 = vmatpush1.msra.mxu0 %v4654
    %5332 = vmatprep.mubr.f32.mxu0 %v3649
    %5333 = vmatmul.mubr.f32.gmra.mrb[0].mxu0 %v3648
    %v5334 = vpop.f32.mrb[0].mxu0
    %v5335 = vadd.f32 %v4733, %v5334
    %v5336 = vpop.f32.mrb[0].mxu0
    %v5337 = vadd.f32 %v4737, %v5336
    %5338 = vdwg.mxu0
    %5339 = vmatprep.subr.mxu0 %v3665
    %5340 = vmatpush1.msra.mxu0 %v3664
    %5341 = vmatprep.subr.mxu0 %v3697
    %5342 = vmatpush1.msra.mxu0 %v3696
    %5343 = vmatprep.subr.mxu0 %v3729
    %5344 = vmatpush1.msra.mxu0 %v3728
    %5345 = vmatprep.subr.mxu0 %v3761
    %5346 = vmatpush1.msra.mxu0 %v3760
    %5347 = vmatprep.subr.mxu0 %v3793
    %5348 = vmatpush1.msra.mxu0 %v3792
    %5349 = vmatprep.subr.mxu0 %v3825
    %5350 = vmatpush1.msra.mxu0 %v3824
    %5351 = vmatprep.subr.mxu0 %v3857
    %5352 = vmatpush1.msra.mxu0 %v3856
    %5353 = vmatprep.subr.mxu0 %v3889
    %5354 = vmatpush1.msra.mxu0 %v3888
    %5355 = vmatprep.subr.mxu0 %v3921
    %5356 = vmatpush1.msra.mxu0 %v3920
    %5357 = vmatprep.subr.mxu0 %v3953
    %5358 = vmatpush1.msra.mxu0 %v3952
    %5359 = vmatprep.subr.mxu0 %v3985
    %5360 = vmatpush1.msra.mxu0 %v3984
    %5361 = vmatprep.subr.mxu0 %v4017
    %5362 = vmatpush1.msra.mxu0 %v4016
    %5363 = vmatprep.subr.mxu0 %v4049
    %5364 = vmatpush1.msra.mxu0 %v4048
    %5365 = vmatprep.subr.mxu0 %v4081
    %5366 = vmatpush1.msra.mxu0 %v4080
    %5367 = vmatprep.subr.mxu0 %v4113
    %5368 = vmatpush1.msra.mxu0 %v4112
    %5369 = vmatprep.subr.mxu0 %v4145
    %5370 = vmatpush1.msra.mxu0 %v4144
    %5371 = vmatprep.subr.mxu0 %v4177
    %5372 = vmatpush1.msra.mxu0 %v4176
    %5373 = vmatprep.subr.mxu0 %v4209
    %5374 = vmatpush1.msra.mxu0 %v4208
    %5375 = vmatprep.subr.mxu0 %v4241
    %5376 = vmatpush1.msra.mxu0 %v4240
    %5377 = vmatprep.subr.mxu0 %v4273
    %5378 = vmatpush1.msra.mxu0 %v4272
    %5379 = vmatprep.subr.mxu0 %v4305
    %5380 = vmatpush1.msra.mxu0 %v4304
    %5381 = vmatprep.subr.mxu0 %v4337
    %5382 = vmatpush1.msra.mxu0 %v4336
    %5383 = vmatprep.subr.mxu0 %v4369
    %5384 = vmatpush1.msra.mxu0 %v4368
    %5385 = vmatprep.subr.mxu0 %v4401
    %5386 = vmatpush1.msra.mxu0 %v4400
    %5387 = vmatprep.subr.mxu0 %v4433
    %5388 = vmatpush1.msra.mxu0 %v4432
    %5389 = vmatprep.subr.mxu0 %v4465
    %5390 = vmatpush1.msra.mxu0 %v4464
    %5391 = vmatprep.subr.mxu0 %v4497
    %5392 = vmatpush1.msra.mxu0 %v4496
    %5393 = vmatprep.subr.mxu0 %v4529
    %5394 = vmatpush1.msra.mxu0 %v4528
    %5395 = vmatprep.subr.mxu0 %v4561
    %5396 = vmatpush1.msra.mxu0 %v4560
    %5397 = vmatprep.subr.mxu0 %v4593
    %5398 = vmatpush1.msra.mxu0 %v4592
    %5399 = vmatprep.subr.mxu0 %v4625
    %5400 = vmatpush1.msra.mxu0 %v4624
    %5401 = vmatprep.subr.mxu0 %v4657
    %5402 = vmatpush1.msra.mxu0 %v4656
    %5403 = vmatprep.mubr.f32.mxu0 %v3649
    %5404 = vmatmul.mubr.f32.gmra.mrb[0].mxu0 %v3648
    %v5405 = vpop.f32.mrb[0].mxu0
    %v5406 = vadd.f32 %v4741, %v5405
    %v5407 = vpop.f32.mrb[0].mxu0
    %v5408 = vadd.f32 %v4745, %v5407
    %5409 = vdwg.mxu0
    %5410 = vmatprep.subr.mxu0 %v3667
    %5411 = vmatpush1.msra.mxu0 %v3666
    %5412 = vmatprep.subr.mxu0 %v3699
    %5413 = vmatpush1.msra.mxu0 %v3698
    %5414 = vmatprep.subr.mxu0 %v3731
    %5415 = vmatpush1.msra.mxu0 %v3730
    %5416 = vmatprep.subr.mxu0 %v3763
    %5417 = vmatpush1.msra.mxu0 %v3762
    %5418 = vmatprep.subr.mxu0 %v3795
    %5419 = vmatpush1.msra.mxu0 %v3794
    %5420 = vmatprep.subr.mxu0 %v3827
    %5421 = vmatpush1.msra.mxu0 %v3826
    %5422 = vmatprep.subr.mxu0 %v3859
    %5423 = vmatpush1.msra.mxu0 %v3858
    %5424 = vmatprep.subr.mxu0 %v3891
    %5425 = vmatpush1.msra.mxu0 %v3890
    %5426 = vmatprep.subr.mxu0 %v3923
    %5427 = vmatpush1.msra.mxu0 %v3922
    %5428 = vmatprep.subr.mxu0 %v3955
    %5429 = vmatpush1.msra.mxu0 %v3954
    %5430 = vmatprep.subr.mxu0 %v3987
    %5431 = vmatpush1.msra.mxu0 %v3986
    %5432 = vmatprep.subr.mxu0 %v4019
    %5433 = vmatpush1.msra.mxu0 %v4018
    %5434 = vmatprep.subr.mxu0 %v4051
    %5435 = vmatpush1.msra.mxu0 %v4050
    %5436 = vmatprep.subr.mxu0 %v4083
    %5437 = vmatpush1.msra.mxu0 %v4082
    %5438 = vmatprep.subr.mxu0 %v4115
    %5439 = vmatpush1.msra.mxu0 %v4114
    %5440 = vmatprep.subr.mxu0 %v4147
    %5441 = vmatpush1.msra.mxu0 %v4146
    %5442 = vmatprep.subr.mxu0 %v4179
    %5443 = vmatpush1.msra.mxu0 %v4178
    %5444 = vmatprep.subr.mxu0 %v4211
    %5445 = vmatpush1.msra.mxu0 %v4210
    %5446 = vmatprep.subr.mxu0 %v4243
    %5447 = vmatpush1.msra.mxu0 %v4242
    %5448 = vmatprep.subr.mxu0 %v4275
    %5449 = vmatpush1.msra.mxu0 %v4274
    %5450 = vmatprep.subr.mxu0 %v4307
    %5451 = vmatpush1.msra.mxu0 %v4306
    %5452 = vmatprep.subr.mxu0 %v4339
    %5453 = vmatpush1.msra.mxu0 %v4338
    %5454 = vmatprep.subr.mxu0 %v4371
    %5455 = vmatpush1.msra.mxu0 %v4370
    %5456 = vmatprep.subr.mxu0 %v4403
    %5457 = vmatpush1.msra.mxu0 %v4402
    %5458 = vmatprep.subr.mxu0 %v4435
    %5459 = vmatpush1.msra.mxu0 %v4434
    %5460 = vmatprep.subr.mxu0 %v4467
    %5461 = vmatpush1.msra.mxu0 %v4466
    %5462 = vmatprep.subr.mxu0 %v4499
    %5463 = vmatpush1.msra.mxu0 %v4498
    %5464 = vmatprep.subr.mxu0 %v4531
    %5465 = vmatpush1.msra.mxu0 %v4530
    %5466 = vmatprep.subr.mxu0 %v4563
    %5467 = vmatpush1.msra.mxu0 %v4562
    %5468 = vmatprep.subr.mxu0 %v4595
    %5469 = vmatpush1.msra.mxu0 %v4594
    %5470 = vmatprep.subr.mxu0 %v4627
    %5471 = vmatpush1.msra.mxu0 %v4626
    %5472 = vmatprep.subr.mxu0 %v4659
    %5473 = vmatpush1.msra.mxu0 %v4658
    %5474 = vmatprep.mubr.f32.mxu0 %v3649
    %5475 = vmatmul.mubr.f32.gmra.mrb[0].mxu0 %v3648
    %v5476 = vpop.f32.mrb[0].mxu0
    %v5477 = vadd.f32 %v4749, %v5476
    %v5478 = vpop.f32.mrb[0].mxu0
    %v5479 = vadd.f32 %v4753, %v5478
    %5480 = vdwg.mxu0
    %5481 = vmatprep.subr.mxu0 %v3669
    %5482 = vmatpush1.msra.mxu0 %v3668
    %5483 = vmatprep.subr.mxu0 %v3701
    %5484 = vmatpush1.msra.mxu0 %v3700
    %5485 = vmatprep.subr.mxu0 %v3733
    %5486 = vmatpush1.msra.mxu0 %v3732
    %5487 = vmatprep.subr.mxu0 %v3765
    %5488 = vmatpush1.msra.mxu0 %v3764
    %5489 = vmatprep.subr.mxu0 %v3797
    %5490 = vmatpush1.msra.mxu0 %v3796
    %5491 = vmatprep.subr.mxu0 %v3829
    %5492 = vmatpush1.msra.mxu0 %v3828
    %5493 = vmatprep.subr.mxu0 %v3861
    %5494 = vmatpush1.msra.mxu0 %v3860
    %5495 = vmatprep.subr.mxu0 %v3893
    %5496 = vmatpush1.msra.mxu0 %v3892
    %5497 = vmatprep.subr.mxu0 %v3925
    %5498 = vmatpush1.msra.mxu0 %v3924
    %5499 = vmatprep.subr.mxu0 %v3957
    %5500 = vmatpush1.msra.mxu0 %v3956
    %5501 = vmatprep.subr.mxu0 %v3989
    %5502 = vmatpush1.msra.mxu0 %v3988
    %5503 = vmatprep.subr.mxu0 %v4021
    %5504 = vmatpush1.msra.mxu0 %v4020
    %5505 = vmatprep.subr.mxu0 %v4053
    %5506 = vmatpush1.msra.mxu0 %v4052
    %5507 = vmatprep.subr.mxu0 %v4085
    %5508 = vmatpush1.msra.mxu0 %v4084
    %5509 = vmatprep.subr.mxu0 %v4117
    %5510 = vmatpush1.msra.mxu0 %v4116
    %5511 = vmatprep.subr.mxu0 %v4149
    %5512 = vmatpush1.msra.mxu0 %v4148
    %5513 = vmatprep.subr.mxu0 %v4181
    %5514 = vmatpush1.msra.mxu0 %v4180
    %5515 = vmatprep.subr.mxu0 %v4213
    %5516 = vmatpush1.msra.mxu0 %v4212
    %5517 = vmatprep.subr.mxu0 %v4245
    %5518 = vmatpush1.msra.mxu0 %v4244
    %5519 = vmatprep.subr.mxu0 %v4277
    %5520 = vmatpush1.msra.mxu0 %v4276
    %5521 = vmatprep.subr.mxu0 %v4309
    %5522 = vmatpush1.msra.mxu0 %v4308
    %5523 = vmatprep.subr.mxu0 %v4341
    %5524 = vmatpush1.msra.mxu0 %v4340
    %5525 = vmatprep.subr.mxu0 %v4373
    %5526 = vmatpush1.msra.mxu0 %v4372
    %5527 = vmatprep.subr.mxu0 %v4405
    %5528 = vmatpush1.msra.mxu0 %v4404
    %5529 = vmatprep.subr.mxu0 %v4437
    %5530 = vmatpush1.msra.mxu0 %v4436
    %5531 = vmatprep.subr.mxu0 %v4469
    %5532 = vmatpush1.msra.mxu0 %v4468
    %5533 = vmatprep.subr.mxu0 %v4501
    %5534 = vmatpush1.msra.mxu0 %v4500
    %5535 = vmatprep.subr.mxu0 %v4533
    %5536 = vmatpush1.msra.mxu0 %v4532
    %5537 = vmatprep.subr.mxu0 %v4565
    %5538 = vmatpush1.msra.mxu0 %v4564
    %5539 = vmatprep.subr.mxu0 %v4597
    %5540 = vmatpush1.msra.mxu0 %v4596
    %5541 = vmatprep.subr.mxu0 %v4629
    %5542 = vmatpush1.msra.mxu0 %v4628
    %5543 = vmatprep.subr.mxu0 %v4661
    %5544 = vmatpush1.msra.mxu0 %v4660
    %5545 = vmatprep.mubr.f32.mxu0 %v3649
    %5546 = vmatmul.mubr.f32.gmra.mrb[0].mxu0 %v3648
    %v5547 = vpop.f32.mrb[0].mxu0
    %v5548 = vadd.f32 %v4757, %v5547
    %v5549 = vpop.f32.mrb[0].mxu0
    %v5550 = vadd.f32 %v4761, %v5549
    %5551 = vdwg.mxu0
    %5552 = vmatprep.subr.mxu0 %v3671
    %5553 = vmatpush1.msra.mxu0 %v3670
    %5554 = vmatprep.subr.mxu0 %v3703
    %5555 = vmatpush1.msra.mxu0 %v3702
    %5556 = vmatprep.subr.mxu0 %v3735
    %5557 = vmatpush1.msra.mxu0 %v3734
    %5558 = vmatprep.subr.mxu0 %v3767
    %5559 = vmatpush1.msra.mxu0 %v3766
    %5560 = vmatprep.subr.mxu0 %v3799
    %5561 = vmatpush1.msra.mxu0 %v3798
    %5562 = vmatprep.subr.mxu0 %v3831
    %5563 = vmatpush1.msra.mxu0 %v3830
    %5564 = vmatprep.subr.mxu0 %v3863
    %5565 = vmatpush1.msra.mxu0 %v3862
    %5566 = vmatprep.subr.mxu0 %v3895
    %5567 = vmatpush1.msra.mxu0 %v3894
    %5568 = vmatprep.subr.mxu0 %v3927
    %5569 = vmatpush1.msra.mxu0 %v3926
    %5570 = vmatprep.subr.mxu0 %v3959
    %5571 = vmatpush1.msra.mxu0 %v3958
    %5572 = vmatprep.subr.mxu0 %v3991
    %5573 = vmatpush1.msra.mxu0 %v3990
    %5574 = vmatprep.subr.mxu0 %v4023
    %5575 = vmatpush1.msra.mxu0 %v4022
    %5576 = vmatprep.subr.mxu0 %v4055
    %5577 = vmatpush1.msra.mxu0 %v4054
    %5578 = vmatprep.subr.mxu0 %v4087
    %5579 = vmatpush1.msra.mxu0 %v4086
    %5580 = vmatprep.subr.mxu0 %v4119
    %5581 = vmatpush1.msra.mxu0 %v4118
    %5582 = vmatprep.subr.mxu0 %v4151
    %5583 = vmatpush1.msra.mxu0 %v4150
    %5584 = vmatprep.subr.mxu0 %v4183
    %5585 = vmatpush1.msra.mxu0 %v4182
    %5586 = vmatprep.subr.mxu0 %v4215
    %5587 = vmatpush1.msra.mxu0 %v4214
    %5588 = vmatprep.subr.mxu0 %v4247
    %5589 = vmatpush1.msra.mxu0 %v4246
    %5590 = vmatprep.subr.mxu0 %v4279
    %5591 = vmatpush1.msra.mxu0 %v4278
    %5592 = vmatprep.subr.mxu0 %v4311
    %5593 = vmatpush1.msra.mxu0 %v4310
    %5594 = vmatprep.subr.mxu0 %v4343
    %5595 = vmatpush1.msra.mxu0 %v4342
    %5596 = vmatprep.subr.mxu0 %v4375
    %5597 = vmatpush1.msra.mxu0 %v4374
    %5598 = vmatprep.subr.mxu0 %v4407
    %5599 = vmatpush1.msra.mxu0 %v4406
    %5600 = vmatprep.subr.mxu0 %v4439
    %5601 = vmatpush1.msra.mxu0 %v4438
    %5602 = vmatprep.subr.mxu0 %v4471
    %5603 = vmatpush1.msra.mxu0 %v4470
    %5604 = vmatprep.subr.mxu0 %v4503
    %5605 = vmatpush1.msra.mxu0 %v4502
    %5606 = vmatprep.subr.mxu0 %v4535
    %5607 = vmatpush1.msra.mxu0 %v4534
    %5608 = vmatprep.subr.mxu0 %v4567
    %5609 = vmatpush1.msra.mxu0 %v4566
    %5610 = vmatprep.subr.mxu0 %v4599
    %5611 = vmatpush1.msra.mxu0 %v4598
    %5612 = vmatprep.subr.mxu0 %v4631
    %5613 = vmatpush1.msra.mxu0 %v4630
    %5614 = vmatprep.subr.mxu0 %v4663
    %5615 = vmatpush1.msra.mxu0 %v4662
    %5616 = vmatprep.mubr.f32.mxu0 %v3649
    %5617 = vmatmul.mubr.f32.gmra.mrb[0].mxu0 %v3648
    %v5618 = vpop.f32.mrb[0].mxu0
    %v5619 = vadd.f32 %v4765, %v5618
    %v5620 = vpop.f32.mrb[0].mxu0
    %v5621 = vadd.f32 %v4769, %v5620
    %5622 = vdwg.mxu0
    %5623 = vmatprep.subr.mxu0 %v3673
    %5624 = vmatpush1.msra.mxu0 %v3672
    %5625 = vmatprep.subr.mxu0 %v3705
    %5626 = vmatpush1.msra.mxu0 %v3704
    %5627 = vmatprep.subr.mxu0 %v3737
    %5628 = vmatpush1.msra.mxu0 %v3736
    %5629 = vmatprep.subr.mxu0 %v3769
    %5630 = vmatpush1.msra.mxu0 %v3768
    %5631 = vmatprep.subr.mxu0 %v3801
    %5632 = vmatpush1.msra.mxu0 %v3800
    %5633 = vmatprep.subr.mxu0 %v3833
    %5634 = vmatpush1.msra.mxu0 %v3832
    %5635 = vmatprep.subr.mxu0 %v3865
    %5636 = vmatpush1.msra.mxu0 %v3864
    %5637 = vmatprep.subr.mxu0 %v3897
    %5638 = vmatpush1.msra.mxu0 %v3896
    %5639 = vmatprep.subr.mxu0 %v3929
    %5640 = vmatpush1.msra.mxu0 %v3928
    %5641 = vmatprep.subr.mxu0 %v3961
    %5642 = vmatpush1.msra.mxu0 %v3960
    %5643 = vmatprep.subr.mxu0 %v3993
    %5644 = vmatpush1.msra.mxu0 %v3992
    %5645 = vmatprep.subr.mxu0 %v4025
    %5646 = vmatpush1.msra.mxu0 %v4024
    %5647 = vmatprep.subr.mxu0 %v4057
    %5648 = vmatpush1.msra.mxu0 %v4056
    %5649 = vmatprep.subr.mxu0 %v4089
    %5650 = vmatpush1.msra.mxu0 %v4088
    %5651 = vmatprep.subr.mxu0 %v4121
    %5652 = vmatpush1.msra.mxu0 %v4120
    %5653 = vmatprep.subr.mxu0 %v4153
    %5654 = vmatpush1.msra.mxu0 %v4152
    %5655 = vmatprep.subr.mxu0 %v4185
    %5656 = vmatpush1.msra.mxu0 %v4184
    %5657 = vmatprep.subr.mxu0 %v4217
    %5658 = vmatpush1.msra.mxu0 %v4216
    %5659 = vmatprep.subr.mxu0 %v4249
    %5660 = vmatpush1.msra.mxu0 %v4248
    %5661 = vmatprep.subr.mxu0 %v4281
    %5662 = vmatpush1.msra.mxu0 %v4280
    %5663 = vmatprep.subr.mxu0 %v4313
    %5664 = vmatpush1.msra.mxu0 %v4312
    %5665 = vmatprep.subr.mxu0 %v4345
    %5666 = vmatpush1.msra.mxu0 %v4344
    %5667 = vmatprep.subr.mxu0 %v4377
    %5668 = vmatpush1.msra.mxu0 %v4376
    %5669 = vmatprep.subr.mxu0 %v4409
    %5670 = vmatpush1.msra.mxu0 %v4408
    %5671 = vmatprep.subr.mxu0 %v4441
    %5672 = vmatpush1.msra.mxu0 %v4440
    %5673 = vmatprep.subr.mxu0 %v4473
    %5674 = vmatpush1.msra.mxu0 %v4472
    %5675 = vmatprep.subr.mxu0 %v4505
    %5676 = vmatpush1.msra.mxu0 %v4504
    %5677 = vmatprep.subr.mxu0 %v4537
    %5678 = vmatpush1.msra.mxu0 %v4536
    %5679 = vmatprep.subr.mxu0 %v4569
    %5680 = vmatpush1.msra.mxu0 %v4568
    %5681 = vmatprep.subr.mxu0 %v4601
    %5682 = vmatpush1.msra.mxu0 %v4600
    %5683 = vmatprep.subr.mxu0 %v4633
    %5684 = vmatpush1.msra.mxu0 %v4632
    %5685 = vmatprep.subr.mxu0 %v4665
    %5686 = vmatpush1.msra.mxu0 %v4664
    %5687 = vmatprep.mubr.f32.mxu0 %v3649
    %5688 = vmatmul.mubr.f32.gmra.mrb[0].mxu0 %v3648
    %v5689 = vpop.f32.mrb[0].mxu0
    %v5690 = vadd.f32 %v4773, %v5689
    %v5691 = vpop.f32.mrb[0].mxu0
    %v5692 = vadd.f32 %v4777, %v5691
    %5693 = vdwg.mxu0
    %5694 = vmatprep.subr.mxu0 %v3675
    %5695 = vmatpush1.msra.mxu0 %v3674
    %5696 = vmatprep.subr.mxu0 %v3707
    %5697 = vmatpush1.msra.mxu0 %v3706
    %5698 = vmatprep.subr.mxu0 %v3739
    %5699 = vmatpush1.msra.mxu0 %v3738
    %5700 = vmatprep.subr.mxu0 %v3771
    %5701 = vmatpush1.msra.mxu0 %v3770
    %5702 = vmatprep.subr.mxu0 %v3803
    %5703 = vmatpush1.msra.mxu0 %v3802
    %5704 = vmatprep.subr.mxu0 %v3835
    %5705 = vmatpush1.msra.mxu0 %v3834
    %5706 = vmatprep.subr.mxu0 %v3867
    %5707 = vmatpush1.msra.mxu0 %v3866
    %5708 = vmatprep.subr.mxu0 %v3899
    %5709 = vmatpush1.msra.mxu0 %v3898
    %5710 = vmatprep.subr.mxu0 %v3931
    %5711 = vmatpush1.msra.mxu0 %v3930
    %5712 = vmatprep.subr.mxu0 %v3963
    %5713 = vmatpush1.msra.mxu0 %v3962
    %5714 = vmatprep.subr.mxu0 %v3995
    %5715 = vmatpush1.msra.mxu0 %v3994
    %5716 = vmatprep.subr.mxu0 %v4027
    %5717 = vmatpush1.msra.mxu0 %v4026
    %5718 = vmatprep.subr.mxu0 %v4059
    %5719 = vmatpush1.msra.mxu0 %v4058
    %5720 = vmatprep.subr.mxu0 %v4091
    %5721 = vmatpush1.msra.mxu0 %v4090
    %5722 = vmatprep.subr.mxu0 %v4123
    %5723 = vmatpush1.msra.mxu0 %v4122
    %5724 = vmatprep.subr.mxu0 %v4155
    %5725 = vmatpush1.msra.mxu0 %v4154
    %5726 = vmatprep.subr.mxu0 %v4187
    %5727 = vmatpush1.msra.mxu0 %v4186
    %5728 = vmatprep.subr.mxu0 %v4219
    %5729 = vmatpush1.msra.mxu0 %v4218
    %5730 = vmatprep.subr.mxu0 %v4251
    %5731 = vmatpush1.msra.mxu0 %v4250
    %5732 = vmatprep.subr.mxu0 %v4283
    %5733 = vmatpush1.msra.mxu0 %v4282
    %5734 = vmatprep.subr.mxu0 %v4315
    %5735 = vmatpush1.msra.mxu0 %v4314
    %5736 = vmatprep.subr.mxu0 %v4347
    %5737 = vmatpush1.msra.mxu0 %v4346
    %5738 = vmatprep.subr.mxu0 %v4379
    %5739 = vmatpush1.msra.mxu0 %v4378
    %5740 = vmatprep.subr.mxu0 %v4411
    %5741 = vmatpush1.msra.mxu0 %v4410
    %5742 = vmatprep.subr.mxu0 %v4443
    %5743 = vmatpush1.msra.mxu0 %v4442
    %5744 = vmatprep.subr.mxu0 %v4475
    %5745 = vmatpush1.msra.mxu0 %v4474
    %5746 = vmatprep.subr.mxu0 %v4507
    %5747 = vmatpush1.msra.mxu0 %v4506
    %5748 = vmatprep.subr.mxu0 %v4539
    %5749 = vmatpush1.msra.mxu0 %v4538
    %5750 = vmatprep.subr.mxu0 %v4571
    %5751 = vmatpush1.msra.mxu0 %v4570
    %5752 = vmatprep.subr.mxu0 %v4603
    %5753 = vmatpush1.msra.mxu0 %v4602
    %5754 = vmatprep.subr.mxu0 %v4635
    %5755 = vmatpush1.msra.mxu0 %v4634
    %5756 = vmatprep.subr.mxu0 %v4667
    %5757 = vmatpush1.msra.mxu0 %v4666
    %5758 = vmatprep.mubr.f32.mxu0 %v3649
    %5759 = vmatmul.mubr.f32.gmra.mrb[0].mxu0 %v3648
    %v5760 = vpop.f32.mrb[0].mxu0
    %v5761 = vadd.f32 %v4781, %v5760
    %v5762 = vpop.f32.mrb[0].mxu0
    %v5763 = vadd.f32 %v4785, %v5762
    %5764 = vdwg.mxu0
    %5765 = vmatprep.subr.mxu0 %v3677
    %5766 = vmatpush1.msra.mxu0 %v3676
    %5767 = vmatprep.subr.mxu0 %v3709
    %5768 = vmatpush1.msra.mxu0 %v3708
    %5769 = vmatprep.subr.mxu0 %v3741
    %5770 = vmatpush1.msra.mxu0 %v3740
    %5771 = vmatprep.subr.mxu0 %v3773
    %5772 = vmatpush1.msra.mxu0 %v3772
    %5773 = vmatprep.subr.mxu0 %v3805
    %5774 = vmatpush1.msra.mxu0 %v3804
    %5775 = vmatprep.subr.mxu0 %v3837
    %5776 = vmatpush1.msra.mxu0 %v3836
    %5777 = vmatprep.subr.mxu0 %v3869
    %5778 = vmatpush1.msra.mxu0 %v3868
    %5779 = vmatprep.subr.mxu0 %v3901
    %5780 = vmatpush1.msra.mxu0 %v3900
    %5781 = vmatprep.subr.mxu0 %v3933
    %5782 = vmatpush1.msra.mxu0 %v3932
    %5783 = vmatprep.subr.mxu0 %v3965
    %5784 = vmatpush1.msra.mxu0 %v3964
    %5785 = vmatprep.subr.mxu0 %v3997
    %5786 = vmatpush1.msra.mxu0 %v3996
    %5787 = vmatprep.subr.mxu0 %v4029
    %5788 = vmatpush1.msra.mxu0 %v4028
    %5789 = vmatprep.subr.mxu0 %v4061
    %5790 = vmatpush1.msra.mxu0 %v4060
    %5791 = vmatprep.subr.mxu0 %v4093
    %5792 = vmatpush1.msra.mxu0 %v4092
    %5793 = vmatprep.subr.mxu0 %v4125
    %5794 = vmatpush1.msra.mxu0 %v4124
    %5795 = vmatprep.subr.mxu0 %v4157
    %5796 = vmatpush1.msra.mxu0 %v4156
    %5797 = vmatprep.subr.mxu0 %v4189
    %5798 = vmatpush1.msra.mxu0 %v4188
    %5799 = vmatprep.subr.mxu0 %v4221
    %5800 = vmatpush1.msra.mxu0 %v4220
    %5801 = vmatprep.subr.mxu0 %v4253
    %5802 = vmatpush1.msra.mxu0 %v4252
    %5803 = vmatprep.subr.mxu0 %v4285
    %5804 = vmatpush1.msra.mxu0 %v4284
    %5805 = vmatprep.subr.mxu0 %v4317
    %5806 = vmatpush1.msra.mxu0 %v4316
    %5807 = vmatprep.subr.mxu0 %v4349
    %5808 = vmatpush1.msra.mxu0 %v4348
    %5809 = vmatprep.subr.mxu0 %v4381
    %5810 = vmatpush1.msra.mxu0 %v4380
    %5811 = vmatprep.subr.mxu0 %v4413
    %5812 = vmatpush1.msra.mxu0 %v4412
    %5813 = vmatprep.subr.mxu0 %v4445
    %5814 = vmatpush1.msra.mxu0 %v4444
    %5815 = vmatprep.subr.mxu0 %v4477
    %5816 = vmatpush1.msra.mxu0 %v4476
    %5817 = vmatprep.subr.mxu0 %v4509
    %5818 = vmatpush1.msra.mxu0 %v4508
    %5819 = vmatprep.subr.mxu0 %v4541
    %5820 = vmatpush1.msra.mxu0 %v4540
    %5821 = vmatprep.subr.mxu0 %v4573
    %5822 = vmatpush1.msra.mxu0 %v4572
    %5823 = vmatprep.subr.mxu0 %v4605
    %5824 = vmatpush1.msra.mxu0 %v4604
    %5825 = vmatprep.subr.mxu0 %v4637
    %5826 = vmatpush1.msra.mxu0 %v4636
    %5827 = vmatprep.subr.mxu0 %v4669
    %5828 = vmatpush1.msra.mxu0 %v4668
    %5829 = vmatprep.mubr.f32.mxu0 %v3649
    %5830 = vmatmul.mubr.f32.gmra.mrb[0].mxu0 %v3648
    %v5831 = vpop.f32.mrb[0].mxu0
    %v5832 = vadd.f32 %v4789, %v5831
    %v5833 = vpop.f32.mrb[0].mxu0
    %v5834 = vadd.f32 %v4793, %v5833
    %5835 = vdwg.mxu0
    %5836 = vmatprep.subr.mxu0 %v3679
    %5837 = vmatpush1.msra.mxu0 %v3678
    %5838 = vmatprep.subr.mxu0 %v3711
    %5839 = vmatpush1.msra.mxu0 %v3710
    %5840 = vmatprep.subr.mxu0 %v3743
    %5841 = vmatpush1.msra.mxu0 %v3742
    %5842 = vmatprep.subr.mxu0 %v3775
    %5843 = vmatpush1.msra.mxu0 %v3774
    %5844 = vmatprep.subr.mxu0 %v3807
    %5845 = vmatpush1.msra.mxu0 %v3806
    %5846 = vmatprep.subr.mxu0 %v3839
    %5847 = vmatpush1.msra.mxu0 %v3838
    %5848 = vmatprep.subr.mxu0 %v3871
    %5849 = vmatpush1.msra.mxu0 %v3870
    %5850 = vmatprep.subr.mxu0 %v3903
    %5851 = vmatpush1.msra.mxu0 %v3902
    %5852 = vmatprep.subr.mxu0 %v3935
    %5853 = vmatpush1.msra.mxu0 %v3934
    %5854 = vmatprep.subr.mxu0 %v3967
    %5855 = vmatpush1.msra.mxu0 %v3966
    %5856 = vmatprep.subr.mxu0 %v3999
    %5857 = vmatpush1.msra.mxu0 %v3998
    %5858 = vmatprep.subr.mxu0 %v4031
    %5859 = vmatpush1.msra.mxu0 %v4030
    %5860 = vmatprep.subr.mxu0 %v4063
    %5861 = vmatpush1.msra.mxu0 %v4062
    %5862 = vmatprep.subr.mxu0 %v4095
    %5863 = vmatpush1.msra.mxu0 %v4094
    %5864 = vmatprep.subr.mxu0 %v4127
    %5865 = vmatpush1.msra.mxu0 %v4126
    %5866 = vmatprep.subr.mxu0 %v4159
    %5867 = vmatpush1.msra.mxu0 %v4158
    %5868 = vmatprep.subr.mxu0 %v4191
    %5869 = vmatpush1.msra.mxu0 %v4190
    %5870 = vmatprep.subr.mxu0 %v4223
    %5871 = vmatpush1.msra.mxu0 %v4222
    %5872 = vmatprep.subr.mxu0 %v4255
    %5873 = vmatpush1.msra.mxu0 %v4254
    %5874 = vmatprep.subr.mxu0 %v4287
    %5875 = vmatpush1.msra.mxu0 %v4286
    %5876 = vmatprep.subr.mxu0 %v4319
    %5877 = vmatpush1.msra.mxu0 %v4318
    %5878 = vmatprep.subr.mxu0 %v4351
    %5879 = vmatpush1.msra.mxu0 %v4350
    %5880 = vmatprep.subr.mxu0 %v4383
    %5881 = vmatpush1.msra.mxu0 %v4382
    %5882 = vmatprep.subr.mxu0 %v4415
    %5883 = vmatpush1.msra.mxu0 %v4414
    %5884 = vmatprep.subr.mxu0 %v4447
    %5885 = vmatpush1.msra.mxu0 %v4446
    %5886 = vmatprep.subr.mxu0 %v4479
    %5887 = vmatpush1.msra.mxu0 %v4478
    %5888 = vmatprep.subr.mxu0 %v4511
    %5889 = vmatpush1.msra.mxu0 %v4510
    %5890 = vmatprep.subr.mxu0 %v4543
    %5891 = vmatpush1.msra.mxu0 %v4542
    %5892 = vmatprep.subr.mxu0 %v4575
    %5893 = vmatpush1.msra.mxu0 %v4574
    %5894 = vmatprep.subr.mxu0 %v4607
    %5895 = vmatpush1.msra.mxu0 %v4606
    %5896 = vmatprep.subr.mxu0 %v4639
    %5897 = vmatpush1.msra.mxu0 %v4638
    %5898 = vmatprep.subr.mxu0 %v4671
    %5899 = vmatpush1.msra.mxu0 %v4670
    %5900 = vmatprep.mubr.f32.mxu0 %v3649
    %5901 = vmatmul.mubr.f32.gmra.mrb[0].mxu0 %v3648
    %v5902 = vpop.f32.mrb[0].mxu0
    %v5903 = vadd.f32 %v4797, %v5902
    %v5904 = vpop.f32.mrb[0].mxu0
    %v5905 = vadd.f32 %v4801, %v5904
    %5906 = vdwg.mxu0
    %5907 = vmatprep.subr.mxu0 %v3681
    %5908 = vmatpush1.msra.mxu0 %v3680
    %5909 = vmatprep.subr.mxu0 %v3713
    %5910 = vmatpush1.msra.mxu0 %v3712
    %5911 = vmatprep.subr.mxu0 %v3745
    %5912 = vmatpush1.msra.mxu0 %v3744
    %5913 = vmatprep.subr.mxu0 %v3777
    %5914 = vmatpush1.msra.mxu0 %v3776
    %5915 = vmatprep.subr.mxu0 %v3809
    %5916 = vmatpush1.msra.mxu0 %v3808
    %5917 = vmatprep.subr.mxu0 %v3841
    %5918 = vmatpush1.msra.mxu0 %v3840
    %5919 = vmatprep.subr.mxu0 %v3873
    %5920 = vmatpush1.msra.mxu0 %v3872
    %5921 = vmatprep.subr.mxu0 %v3905
    %5922 = vmatpush1.msra.mxu0 %v3904
    %5923 = vmatprep.subr.mxu0 %v3937
    %5924 = vmatpush1.msra.mxu0 %v3936
    %5925 = vmatprep.subr.mxu0 %v3969
    %5926 = vmatpush1.msra.mxu0 %v3968
    %5927 = vmatprep.subr.mxu0 %v4001
    %5928 = vmatpush1.msra.mxu0 %v4000
    %5929 = vmatprep.subr.mxu0 %v4033
    %5930 = vmatpush1.msra.mxu0 %v4032
    %5931 = vmatprep.subr.mxu0 %v4065
    %5932 = vmatpush1.msra.mxu0 %v4064
    %5933 = vmatprep.subr.mxu0 %v4097
    %5934 = vmatpush1.msra.mxu0 %v4096
    %5935 = vmatprep.subr.mxu0 %v4129
    %5936 = vmatpush1.msra.mxu0 %v4128
    %5937 = vmatprep.subr.mxu0 %v4161
    %5938 = vmatpush1.msra.mxu0 %v4160
    %5939 = vmatprep.subr.mxu0 %v4193
    %5940 = vmatpush1.msra.mxu0 %v4192
    %5941 = vmatprep.subr.mxu0 %v4225
    %5942 = vmatpush1.msra.mxu0 %v4224
    %5943 = vmatprep.subr.mxu0 %v4257
    %5944 = vmatpush1.msra.mxu0 %v4256
    %5945 = vmatprep.subr.mxu0 %v4289
    %5946 = vmatpush1.msra.mxu0 %v4288
    %5947 = vmatprep.subr.mxu0 %v4321
    %5948 = vmatpush1.msra.mxu0 %v4320
    %5949 = vmatprep.subr.mxu0 %v4353
    %5950 = vmatpush1.msra.mxu0 %v4352
    %5951 = vmatprep.subr.mxu0 %v4385
    %5952 = vmatpush1.msra.mxu0 %v4384
    %5953 = vmatprep.subr.mxu0 %v4417
    %5954 = vmatpush1.msra.mxu0 %v4416
    %5955 = vmatprep.subr.mxu0 %v4449
    %5956 = vmatpush1.msra.mxu0 %v4448
    %5957 = vmatprep.subr.mxu0 %v4481
    %5958 = vmatpush1.msra.mxu0 %v4480
    %5959 = vmatprep.subr.mxu0 %v4513
    %5960 = vmatpush1.msra.mxu0 %v4512
    %5961 = vmatprep.subr.mxu0 %v4545
    %5962 = vmatpush1.msra.mxu0 %v4544
    %5963 = vmatprep.subr.mxu0 %v4577
    %5964 = vmatpush1.msra.mxu0 %v4576
    %5965 = vmatprep.subr.mxu0 %v4609
    %5966 = vmatpush1.msra.mxu0 %v4608
    %5967 = vmatprep.subr.mxu0 %v4641
    %5968 = vmatpush1.msra.mxu0 %v4640
    %5969 = vmatprep.subr.mxu0 %v4673
    %5970 = vmatpush1.msra.mxu0 %v4672
    %5971 = vmatprep.mubr.f32.mxu0 %v3649
    %5972 = vmatmul.mubr.f32.gmra.mrb[0].mxu0 %v3648
    %v5973 = vpop.f32.mrb[0].mxu0
    %v5974 = vadd.f32 %v4805, %v5973
    %v5975 = vpop.f32.mrb[0].mxu0
    %v5976 = vadd.f32 %v4809, %v5975
    %5977 = vdwg.mxu0
    %5978 = vst [vmem:[%s9] sm:$0xff] %v4909
    %5979 = vst [vmem:[%s9 + $0x8] sm:$0xff] %v4911
    %5980 = vst [vmem:[%s9 + $0x10] sm:$0xff] %v4980
    %5981 = vst [vmem:[%s9 + $0x18] sm:$0xff] %v4982
    %5982 = vst [vmem:[%s9 + $0x20] sm:$0xff] %v5051
    %5983 = vst [vmem:[%s9 + $0x28] sm:$0xff] %v5053
    %5984 = vst [vmem:[%s9 + $0x30] sm:$0xff] %v5122
    %5985 = vst [vmem:[%s9 + $0x38] sm:$0xff] %v5124
    %5986 = vst [vmem:[%s9 + $0x40] sm:$0xff] %v5193
    %5987 = vst [vmem:[%s9 + $0x48] sm:$0xff] %v5195
    %5988 = vst [vmem:[%s9 + $0x50] sm:$0xff] %v5264
    %5989 = vst [vmem:[%s9 + $0x58] sm:$0xff] %v5266
    %5990 = vst [vmem:[%s9 + $0x60] sm:$0xff] %v5335
    %5991 = vst [vmem:[%s9 + $0x68] sm:$0xff] %v5337
    %5992 = vst [vmem:[%s9 + $0x70] sm:$0xff] %v5406
    %5993 = vst [vmem:[%s9 + $0x78] sm:$0xff] %v5408
    %5994 = vst [vmem:[%s9 + $0x80] sm:$0xff] %v5477
    %5995 = vst [vmem:[%s9 + $0x88] sm:$0xff] %v5479
    %5996 = vst [vmem:[%s9 + $0x90] sm:$0xff] %v5548
    %5997 = vst [vmem:[%s9 + $0x98] sm:$0xff] %v5550
    %5998 = vst [vmem:[%s9 + $0xa0] sm:$0xff] %v5619
    %5999 = vst [vmem:[%s9 + $0xa8] sm:$0xff] %v5621
    %6000 = vst [vmem:[%s9 + $0xb0] sm:$0xff] %v5690
    %6001 = vst [vmem:[%s9 + $0xb8] sm:$0xff] %v5692
    %6002 = vst [vmem:[%s9 + $0xc0] sm:$0xff] %v5761
    %6003 = vst [vmem:[%s9 + $0xc8] sm:$0xff] %v5763
    %6004 = vst [vmem:[%s9 + $0xd0] sm:$0xff] %v5832
    %6005 = vst [vmem:[%s9 + $0xd8] sm:$0xff] %v5834
    %6006 = vst [vmem:[%s9 + $0xe0] sm:$0xff] %v5903
    %6007 = vst [vmem:[%s9 + $0xe8] sm:$0xff] %v5905
    %6008 = vst [vmem:[%s9 + $0xf0] sm:$0xff] %v5974
    %6009 = vst [vmem:[%s9 + $0xf8] sm:$0xff] %v5976
    // Predicated region
    $region70: #{chess_cnn_forward.1} parent=1 // pred_check
      _
    $region71: #{chess_cnn_forward.1} parent=1 // pred_check_branch
      %6011 = sbr.rel (0) target = $region73
    $region72: #{chess_cnn_forward.1} parent=1 // pred_region
      _
    $region73: #{chess_cnn_forward.1} parent=1 // pred_fallthru
      _
    // Predicated region
    $region74: #{chess_cnn_forward.1} parent=1 // pred_check
      _
    $region75: #{chess_cnn_forward.1} parent=1 // pred_check_branch
      %6013 = sbr.rel (0) target = $region77
    $region76: #{chess_cnn_forward.1} parent=1 // pred_region
      _
    $region77: #{chess_cnn_forward.1} parent=1 // pred_fallthru
      _
    %6014 = vsyncpa [#allocation3], 1
    %6015 = vsyncpa [#allocation5], 1
    %6016 = vsyncpa [#allocation8], 1
    %6017 = vsyncpa [#allocation11], 1
    %6018 = vsyncpa [#allocation14], 1

</llo_original>
